<compile_context>
chip_gen: v5e
topology: v5e:2x2
jax: 0.10.0
libtpu: 0.0.40
codegen_flags: <defaults>
</compile_context>

<pallas_src>
import numpy as np

import jax
import jax.numpy as jnp
from jax.experimental import pallas as pl
from jax.experimental.pallas import tpu as pltpu


# ----------------------------------------------------------------------------
# Problem sizes (implied by a typical model_config_dict for this module)
# ----------------------------------------------------------------------------
N_BATCH = 2
C_IN, C_IN_P = 7, 8            # conv1 input channels (7 real, padded to 8 for K alignment)
H1 = W1 = 16                   # conv1 spatial size
C1 = 8                         # conv1 output channels
H2 = W2 = 8                    # after pool1
C2 = 16                        # conv2 output channels (VMEM-resident, no lane padding)
H3 = W3 = 4                    # after pool2
FC_IN, FC_OUT = 256, 64        # fc1: NCHW flatten of (16,4,4) -> 64
SPLIT = 32                     # split_size
HEAD = 7                       # per-branch output (4 quat + 3 transl)
OUT_W = 16                     # packed head output lanes: [0:7]=branch1, [7:14]=branch2

# conv1 flattened, zero-padded input geometry: per image rows = (yp*18 + xp), yp,xp in [0,18)
X1_ROW = 18
X1_IMG = X1_ROW * X1_ROW       # 324
X1_ROWS = N_BATCH * X1_IMG     # 648
X1_ROWS_PAD = 656              # >= 38 + M1 = 650 (last-tap overhang), zero slack rows
V1 = H1 * X1_ROW               # 288 valid virtual-raster output rows per image
M1 = X1_IMG + V1               # 612: one collapsed conv1 GEMM window covers both images

# conv2 flattened, zero-padded input geometry (built by pool1 inside the kernel)
P1_ROW = 10
P1_IMG = 100
P1_ROWS_PAD = 208              # >= 22 + M2 = 202, 8-aligned; zeroed at kernel entry
V2 = H2 * P1_ROW               # 80
M2 = P1_IMG + V2               # 180

Y1_ROWS = 616                  # >= M1, 8-aligned
Y2_ROWS = 184                  # >= M2, 8-aligned
P2_ROWS = 128                  # pool2 scratch rows = s*8 + n (8-aligned 2-row slabs per s)

_ARG_ORDER = ("w1", "b1", "w2", "b2", "wfc", "bfc", "wh", "bh", "wo", "bo")


# ----------------------------------------------------------------------------
# The single fused Pallas kernel
# ----------------------------------------------------------------------------
def _lapvideous_fused_kernel(x_ref, w1_ref, b1_ref, w2_ref, b2_ref,
                             wfc_ref, bfc_ref, wh_ref, bh_ref, wo_ref, bo_ref,
                             out_ref, y1_ref, p1_ref, y2_ref, p2_ref):
    """Whole forward network in one kernel; every intermediate stays in VMEM."""
    f32, bf16 = jnp.float32, jnp.bfloat16

    def leaky(v):  # F.leaky_relu, default negative_slope = 0.01
        return jnp.where(v >= 0, v, 0.01 * v)

    # conv2's flattened input must be zero in its spatial-padding rows; pool1 only
    # writes the interior 8x8 of each padded 10x10 image, so clear the whole scratch.
    p1_ref[...] = jnp.zeros_like(p1_ref)

    # ---- conv1 (3x3, pad=1): 9 accumulated GEMMs over one shifted contiguous window
    #      spanning BOTH batch images (M=612).  Rows 288..323 of the output are dead
    #      inter-image rows; per-row columns 16,17 are virtual-raster garbage.  Neither
    #      is ever read by pool1.
    acc1 = None
    for ky in range(3):
        for kx in range(3):
            tap = ky * 3 + kx
            start = ky * X1_ROW + kx
            patch = x_ref[start:start + M1, :].astype(bf16)                  # (612, 8)
            term = jnp.dot(patch, w1_ref[8 * tap:8 * tap + 8, :],
                           preferred_element_type=f32)                       # (612, 8)
            acc1 = term if acc1 is None else acc1 + term
    y1_ref[0:M1, :] = leaky(acc1 + b1_ref[...])

    # ---- maxpool1 (2x2, stride 2): VPU max over 4 strided row-window reads of y1;
    #      results are scattered directly into conv2's zero-padded flattened layout.
    for n in range(N_BATCH):
        for yo in range(H2):
            taps = [y1_ref[pl.ds(n * X1_IMG + (2 * yo + dy) * X1_ROW + dx, W2, stride=2), :]
                    for dy in range(2) for dx in range(2)]                   # 4 x (8, 8)
            pooled = jnp.maximum(jnp.maximum(taps[0], taps[1]),
                                 jnp.maximum(taps[2], taps[3]))
            dst = n * P1_IMG + (yo + 1) * P1_ROW + 1
            p1_ref[dst:dst + W2, :] = pooled

    # ---- conv2 (3x3, pad=1): same collapsed virtual-raster scheme (M=180).
    acc2 = None
    for ky in range(3):
        for kx in range(3):
            tap = ky * 3 + kx
            start = ky * P1_ROW + kx
            patch = p1_ref[start:start + M2, :].astype(bf16)                 # (180, 8)
            term = jnp.dot(patch, w2_ref[8 * tap:8 * tap + 8, :],
                           preferred_element_type=f32)                       # (180, 16)
            acc2 = term if acc2 is None else acc2 + term
    y2_ref[0:M2, :] = leaky(acc2 + b2_ref[...])

    # ---- maxpool2: strided VPU max; rows written as s*8 + n so fc1 reads aligned
    #      2-row (batch) slabs per spatial position s.
    for n in range(N_BATCH):
        for yo in range(H3):
            taps = [y2_ref[pl.ds(n * P1_IMG + (2 * yo + dy) * P1_ROW + dx, W3, stride=2), :]
                    for dy in range(2) for dx in range(2)]                   # 4 x (4, 16)
            pooled = jnp.maximum(jnp.maximum(taps[0], taps[1]),
                                 jnp.maximum(taps[2], taps[3]))
            for xo in range(W3):
                s = yo * W3 + xo
                p2_ref[8 * s + n:8 * s + n + 1, :] = pooled[xo:xo + 1, :]

    # ---- torch.flatten(NCHW) + fc1: wfc rows are re-ordered to [s*16 + c], so the
    #      flatten is a sum of 16 tiny GEMMs over the per-spatial (batch, channel) slabs.
    acc = None
    for s in range(H3 * W3):
        lhs = p2_ref[8 * s:8 * s + 2, :].astype(bf16)                        # (2, 16)
        term = jnp.dot(lhs, wfc_ref[C2 * s:C2 * (s + 1), :],
                       preferred_element_type=f32)                           # (2, 64)
        acc = term if acc is None else acc + term
    h = leaky(acc + bfc_ref[...])                                            # (2, 64)

    # ---- both branch heads merged into block-diagonal GEMMs (one GEMM per layer).
    h = leaky(jnp.dot(h.astype(bf16), wh_ref[...],
                      preferred_element_type=f32) + bh_ref[...])             # (2, 64)
    out_ref[...] = (jnp.dot(h.astype(bf16), wo_ref[...],
                            preferred_element_type=f32) + bo_ref[...])       # (2, 16)


def _run_fused_network(x_flat, kp):
    flops = 2 * (M1 * C_IN_P * C1 * 9 + M2 * C1 * C2 * 9
                 + N_BATCH * FC_IN * FC_OUT + N_BATCH * FC_OUT * FC_OUT
                 + N_BATCH * FC_OUT * OUT_W)
    bytes_accessed = (X1_ROWS_PAD * C_IN_P * 4                      # x (f32)
                      + (72 * C1 + 72 * C2 + FC_IN * FC_OUT
                         + FC_OUT * FC_OUT + FC_OUT * OUT_W) * 2    # bf16 weights
                      + (C1 + C2 + 2 * FC_OUT + OUT_W) * 4          # f32 biases
                      + N_BATCH * OUT_W * 4)                        # output
    vmem_spec = lambda: pl.BlockSpec(memory_space=pltpu.MemorySpace.VMEM)
    return pl.pallas_call(
        _lapvideous_fused_kernel,
        out_shape=jax.ShapeDtypeStruct((N_BATCH, OUT_W), jnp.float32),
        in_specs=[vmem_spec() for _ in range(1 + len(_ARG_ORDER))],
        out_specs=vmem_spec(),
        scratch_shapes=[pltpu.VMEM((Y1_ROWS, C1), jnp.float32),        # conv1 output raster
                        pltpu.VMEM((P1_ROWS_PAD, C1), jnp.float32),    # pooled1 / conv2 input
                        pltpu.VMEM((Y2_ROWS, C2), jnp.float32),        # conv2 output raster
                        pltpu.VMEM((P2_ROWS, C2), jnp.float32)],       # pooled2 (fc1 slabs)
        cost_estimate=pl.CostEstimate(flops=flops, transcendentals=0,
                                      bytes_accessed=bytes_accessed),
    )(x_flat, *[kp[k] for k in _ARG_ORDER])


# ----------------------------------------------------------------------------
# Wrapper-side packing (done once for params, per-call for the image)
# ----------------------------------------------------------------------------
def _pack_input(image_data_nchw):
    # NCHW -> NHWC, zero-pad H/W by 1 (conv padding), pad channels 7->8, flatten rows,
    # then add zero slack rows for the virtual-raster overhang of the last conv tap.
    x = jnp.transpose(image_data_nchw, (0, 2, 3, 1)).astype(jnp.float32)
    x = jnp.pad(x, ((0, 0), (1, 1), (1, 1), (0, C_IN_P - C_IN)))
    x = x.reshape(X1_ROWS, C_IN_P)
    return jnp.pad(x, ((0, X1_ROWS_PAD - X1_ROWS), (0, 0)))


def pack_params(p):
    """Re-pack PyTorch-layout parameters into MXU-friendly bf16 kernel layouts."""
    f32, bf16 = jnp.float32, jnp.bfloat16

    # conv weights: OIHW -> rows = tap*8 + c_in (tap = ky*3+kx), lanes = c_out.
    w1 = jnp.transpose(p["conv1_w"], (2, 3, 1, 0)).reshape(9, C_IN, C1)
    w1 = jnp.pad(w1, ((0, 0), (0, C_IN_P - C_IN), (0, 0))).reshape(9 * C_IN_P, C1)
    b1 = p["conv1_b"].reshape(1, C1).astype(f32)

    w2 = jnp.transpose(p["conv2_w"], (2, 3, 1, 0)).reshape(9 * C1, C2)
    b2 = p["conv2_b"].reshape(1, C2).astype(f32)

    # fc1: PyTorch flattens NCHW, i.e. feature = c*16 + s (s = y*4 + x).  The kernel
    # accumulates per-s slabs, so re-order rows to [s*16 + c].
    wfc = p["fc1_w"].reshape(C2, H3 * W3, FC_OUT)          # (c, s, o)
    wfc = jnp.transpose(wfc, (1, 0, 2)).reshape(FC_IN, FC_OUT)
    bfc = p["fc1_b"].reshape(1, FC_OUT).astype(f32)

    # both branch heads merged into block-diagonal weights (one GEMM per layer).
    wh = jnp.zeros((FC_OUT, FC_OUT), f32)
    wh = wh.at[0:SPLIT, 0:SPLIT].set(p["br1_0_w"])
    wh = wh.at[SPLIT:2 * SPLIT, SPLIT:2 * SPLIT].set(p["br2_0_w"])
    bh = jnp.zeros((FC_OUT,), f32).at[0:SPLIT].set(p["br1_0_b"]).at[SPLIT:2 * SPLIT].set(p["br2_0_b"])
    wo = jnp.zeros((FC_OUT, OUT_W), f32)
    wo = wo.at[0:SPLIT, 0:HEAD].set(p["br1_1_w"])
    wo = wo.at[SPLIT:2 * SPLIT, HEAD:2 * HEAD].set(p["br2_1_w"])
    bo = jnp.zeros((OUT_W,), f32).at[0:HEAD].set(p["br1_1_b"]).at[HEAD:2 * HEAD].set(p["br2_1_b"])

    return {
        "w1": w1.astype(bf16), "b1": b1, "w2": w2.astype(bf16), "b2": b2,
        "wfc": wfc.astype(bf16), "bfc": bfc,
        "wh": wh.astype(bf16), "bh": bh.reshape(1, FC_OUT),
        "wo": wo.astype(bf16), "bo": bo.reshape(1, OUT_W),
    }


# ----------------------------------------------------------------------------
# Pose post-processing glue (pytorch3d conventions, batch=2 -> negligible compute)
# ----------------------------------------------------------------------------
def quaternion_to_matrix(q):
    # pytorch3d.transforms.quaternion_to_matrix (real part first).
    r, i, j, k = q[:, 0], q[:, 1], q[:, 2], q[:, 3]
    two_s = 2.0 / jnp.sum(q * q, axis=-1)
    R = jnp.stack(
        [
            1 - two_s * (j * j + k * k), two_s * (i * j - k * r), two_s * (i * k + j * r),
            two_s * (i * j + k * r), 1 - two_s * (i * i + k * k), two_s * (j * k - i * r),
            two_s * (i * k - j * r), two_s * (j * k + i * r), 1 - two_s * (i * i + j * j),
        ],
        axis=-1,
    ).reshape(-1, 3, 3)
    return R


def _pose_and_rigid_inverse(quat, transl, bounds):
    """post_process_predictions (quat -> R, local->global transl, opengl row-vector
    hom. matrix) plus the analytic rigid inverse (replaces jnp.linalg.inv)."""
    R = quaternion_to_matrix(quat)             # (B, 3, 3), orthonormal
    t = transl * bounds                        # local_to_global_space
    B = quat.shape[0]
    M = jnp.zeros((B, 4, 4), jnp.float32)
    M = M.at[:, :3, :3].set(jnp.transpose(R, (0, 2, 1)))   # cat_opengl_hom_matrix(R^T, t)
    M = M.at[:, 3, :3].set(t)
    M = M.at[:, 3, 3].set(1.0)
    # inverse of [[R^T, 0], [t, 1]] is [[R, 0], [-t @ R, 1]]
    Minv = jnp.zeros((B, 4, 4), jnp.float32)
    Minv = Minv.at[:, :3, :3].set(R)
    Minv = Minv.at[:, 3, :3].set(-jnp.einsum("bi,bij->bj", t, R))
    Minv = Minv.at[:, 3, 3].set(1.0)
    return M, Minv


# ----------------------------------------------------------------------------
# Forward pass
# ----------------------------------------------------------------------------
def lap_video_us_forward(kernel_params, image_data_nchw, bounds):
    x_flat = _pack_input(image_data_nchw)
    heads_packed = _run_fused_network(x_flat, kernel_params)     # (2, 16)

    heads = heads_packed[:, :2 * HEAD]                           # (2, 14): [c2l(7) | p2l(7)]
    c2l_q, c2l_t = heads[:, 0:4], heads[:, 4:7]
    p2l_q, p2l_t = heads[:, 7:11], heads[:, 11:14]

    M_c2l, M_l2c_pred = _pose_and_rigid_inverse(c2l_q, c2l_t, bounds)
    M_p2l, _ = _pose_and_rigid_inverse(p2l_q, p2l_t, bounds)
    # Transform3d: p2c_pred = p2l.compose(l2c_pred)  (row-vector convention)
    M_p2c_pred = jnp.matmul(M_p2l, M_l2c_pred)

    norm_trans = jnp.concatenate([c2l_t, p2l_t], axis=1)

    # TODO(synk): self.render_data (pytorch3d differentiable mesh rasterisation +
    # US slice sampling) has no Pallas equivalent; the predicted pose matrices are
    # returned instead of the re-rendered (N, 7, H, W) image tensor.
    return (M_l2c_pred, M_p2c_pred), (M_c2l, M_p2l), norm_trans, heads


# ----------------------------------------------------------------------------
# Plain-JAX reference of the PyTorch network (for numerical verification)
# ----------------------------------------------------------------------------
def _reference_heads(p, image_nchw):
    hi = jax.lax.Precision.HIGHEST

    def lrelu(v):
        return jnp.where(v >= 0, v, 0.01 * v)

    def conv(x, w_oihw, b):
        w = jnp.transpose(w_oihw, (2, 3, 1, 0))  # HWIO
        y = jax.lax.conv_general_dilated(
            x, w, window_strides=(1, 1), padding=((1, 1), (1, 1)),
            dimension_numbers=("NHWC", "HWIO", "NHWC"), precision=hi)
        return y + b

    def pool(x):
        n, h, w, c = x.shape
        return x.reshape(n, h // 2, 2, w // 2, 2, c).max(axis=(2, 4))

    x = jnp.transpose(image_nchw, (0, 2, 3, 1)).astype(jnp.float32)
    x = pool(lrelu(conv(x, p["conv1_w"], p["conv1_b"])))
    x = pool(lrelu(conv(x, p["conv2_w"], p["conv2_b"])))
    flat = jnp.transpose(x, (0, 3, 1, 2)).reshape(x.shape[0], -1)   # NCHW flatten
    h = lrelu(jnp.dot(flat, p["fc1_w"], precision=hi) + p["fc1_b"])
    b1, b2 = jnp.split(h, 2, axis=1)
    b1 = lrelu(jnp.dot(b1, p["br1_0_w"], precision=hi) + p["br1_0_b"])
    b1 = jnp.dot(b1, p["br1_1_w"], precision=hi) + p["br1_1_b"]
    b2 = lrelu(jnp.dot(b2, p["br2_0_w"], precision=hi) + p["br2_0_b"])
    b2 = jnp.dot(b2, p["br2_1_w"], precision=hi) + p["br2_1_b"]
    return jnp.concatenate([b1, b2], axis=1)    # (2, 14)


# ----------------------------------------------------------------------------
# Deterministic synthetic parameters (PyTorch layouts, as in the reference module)
# ----------------------------------------------------------------------------
def init_params(key):
    ks = jax.random.split(key, 12)
    s = 0.05
    return {
        # conv_backbone: Conv2d(7->8,3,pad=1), MaxPool2, Conv2d(8->16,3,pad=1), MaxPool2
        "conv1_w": s * jax.random.normal(ks[0], (8, 7, 3, 3), jnp.float32),   # OIHW
        "conv1_b": s * jax.random.normal(ks[1], (8,), jnp.float32),
        "conv2_w": s * jax.random.normal(ks[2], (16, 8, 3, 3), jnp.float32),
        "conv2_b": s * jax.random.normal(ks[3], (16,), jnp.float32),
        # fc1: Linear(16*4*4=256 -> 64); stored pre-transposed (in, out)
        "fc1_w": s * jax.random.normal(ks[4], (256, 64), jnp.float32),
        "fc1_b": s * jax.random.normal(ks[5], (64,), jnp.float32),
        # branch1: Linear(32->32), Linear(32->7)  (4 quat + 3 transl)
        "br1_0_w": s * jax.random.normal(ks[6], (32, 32), jnp.float32),
        "br1_0_b": s * jax.random.normal(ks[7], (32,), jnp.float32),
        "br1_1_w": s * jax.random.normal(ks[8], (32, 7), jnp.float32),
        "br1_1_b": jnp.array([1.0, 0.0, 0.0, 0.0, 0.1, 0.1, 0.1], jnp.float32),
        # branch2: Linear(32->32), Linear(32->7)
        "br2_0_w": s * jax.random.normal(ks[9], (32, 32), jnp.float32),
        "br2_0_b": s * jax.random.normal(ks[10], (32,), jnp.float32),
        "br2_1_w": s * jax.random.normal(ks[11], (32, 7), jnp.float32),
        "br2_1_b": jnp.array([1.0, 0.0, 0.0, 0.0, 0.1, 0.1, 0.1], jnp.float32),
    }


if __name__ == "__main__":
    key = jax.random.PRNGKey(0)
    k_img, k_par = jax.random.split(key)

    # image_data: (N, Ch, H, W) = (2, 7, 16, 16) -- 0:4 video channels, 4:7 US channels
    image_data = jax.random.normal(k_img, (2, 7, 16, 16), jnp.float32)
    params = init_params(k_par)
    bounds = jnp.array([500.0, 500.0, 500.0], jnp.float32)

    kernel_params = pack_params(params)

    fwd = jax.jit(lap_video_us_forward)
    (M_l2c, M_p2c), (M_c2l, M_p2l), norm_trans, heads = fwd(kernel_params, image_data, bounds)
    jax.block_until_ready((M_l2c, M_p2c, M_c2l, M_p2l, norm_trans, heads))

    # Verify the fused Pallas kernel against a plain-JAX f32 replica of the PyTorch
    # network (kernel uses bf16 operands with f32 MXU accumulation).
    ref_heads = _reference_heads(params, image_data)
    np.testing.assert_allclose(np.asarray(heads), np.asarray(ref_heads), rtol=5e-2, atol=1e-2)

    assert M_l2c.shape == (2, 4, 4) and M_p2c.shape == (2, 4, 4)
    assert M_c2l.shape == (2, 4, 4) and M_p2l.shape == (2, 4, 4)
    assert norm_trans.shape == (2, 6)
    print("KERNEL_OK")
</pallas_src>

<mosaic_0001>
module attributes {stable_mosaic.version = 11 : i64} {
  func.func @_lapvideous_fused_kernel(%arg0: memref<656x8xf32, #tpu.memory_space<vmem>>, %arg1: memref<72x8xbf16, #tpu.memory_space<vmem>>, %arg2: memref<1x8xf32, #tpu.memory_space<vmem>>, %arg3: memref<72x16xbf16, #tpu.memory_space<vmem>>, %arg4: memref<1x16xf32, #tpu.memory_space<vmem>>, %arg5: memref<256x64xbf16, #tpu.memory_space<vmem>>, %arg6: memref<1x64xf32, #tpu.memory_space<vmem>>, %arg7: memref<64x64xbf16, #tpu.memory_space<vmem>>, %arg8: memref<1x64xf32, #tpu.memory_space<vmem>>, %arg9: memref<64x16xbf16, #tpu.memory_space<vmem>>, %arg10: memref<1x16xf32, #tpu.memory_space<vmem>>, %arg11: memref<2x16xf32, #tpu.memory_space<vmem>>, %arg12: memref<616x8xf32, #tpu.memory_space<vmem>>, %arg13: memref<208x8xf32, #tpu.memory_space<vmem>>, %arg14: memref<184x16xf32, #tpu.memory_space<vmem>>, %arg15: memref<128x16xf32, #tpu.memory_space<vmem>>) attributes {dimension_semantics = [], scalar_prefetch = 0 : i64, scratch_operands = 4 : i64, tpu.core_type = #tpu.core_type<tc>} {
    %cst = arith.constant 0.000000e+00 : f32
    %0 = vector.broadcast %cst : f32 to vector<208x8xf32>
    %c0 = arith.constant 0 : index
    %c0_0 = arith.constant 0 : index
    %1 = vector.load %arg13[%c0, %c0_0] : memref<208x8xf32, #tpu.memory_space<vmem>>, vector<208x8xf32>
    tpu.vector_store %arg13[%c0, %c0_0], %0 {strides = array<i32>} : memref<208x8xf32, #tpu.memory_space<vmem>>, vector<208x8xf32>,
    %c0_1 = arith.constant 0 : index
    %c0_2 = arith.constant 0 : index
    %2 = vector.load %arg0[%c0_1, %c0_2] : memref<656x8xf32, #tpu.memory_space<vmem>>, vector<612x8xf32>
    %3 = arith.truncf %2 : vector<612x8xf32> to vector<612x8xbf16>
    %c0_3 = arith.constant 0 : index
    %c0_4 = arith.constant 0 : index
    %4 = vector.load %arg1[%c0_3, %c0_4] : memref<72x8xbf16, #tpu.memory_space<vmem>>, vector<8x8xbf16>
    %cst_5 = arith.constant dense<0.000000e+00> : vector<612x8xf32>
    %5 = tpu.matmul %3, %4, %cst_5 {dimension_numbers = #tpu.dot_dimension_numbers<[1], [0], [0], [1], [0, 0, 1, 1], [], []>} : vector<612x8xbf16>, vector<8x8xbf16>, vector<612x8xf32> -> vector<612x8xf32>
    %c1 = arith.constant 1 : index
    %c0_6 = arith.constant 0 : index
    %6 = vector.load %arg0[%c1, %c0_6] : memref<656x8xf32, #tpu.memory_space<vmem>>, vector<612x8xf32>
    %7 = arith.truncf %6 : vector<612x8xf32> to vector<612x8xbf16>
    %c8 = arith.constant 8 : index
    %c0_7 = arith.constant 0 : index
    %8 = vector.load %arg1[%c8, %c0_7] : memref<72x8xbf16, #tpu.memory_space<vmem>>, vector<8x8xbf16>
    %cst_8 = arith.constant dense<0.000000e+00> : vector<612x8xf32>
    %9 = tpu.matmul %7, %8, %cst_8 {dimension_numbers = #tpu.dot_dimension_numbers<[1], [0], [0], [1], [0, 0, 1, 1], [], []>} : vector<612x8xbf16>, vector<8x8xbf16>, vector<612x8xf32> -> vector<612x8xf32>
    %10 = arith.addf %5, %9 : vector<612x8xf32>
    %c2 = arith.constant 2 : index
    %c0_9 = arith.constant 0 : index
    %11 = vector.load %arg0[%c2, %c0_9] : memref<656x8xf32, #tpu.memory_space<vmem>>, vector<612x8xf32>
    %12 = arith.truncf %11 : vector<612x8xf32> to vector<612x8xbf16>
    %c16 = arith.constant 16 : index
    %c0_10 = arith.constant 0 : index
    %13 = vector.load %arg1[%c16, %c0_10] : memref<72x8xbf16, #tpu.memory_space<vmem>>, vector<8x8xbf16>
    %cst_11 = arith.constant dense<0.000000e+00> : vector<612x8xf32>
    %14 = tpu.matmul %12, %13, %cst_11 {dimension_numbers = #tpu.dot_dimension_numbers<[1], [0], [0], [1], [0, 0, 1, 1], [], []>} : vector<612x8xbf16>, vector<8x8xbf16>, vector<612x8xf32> -> vector<612x8xf32>
    %15 = arith.addf %10, %14 : vector<612x8xf32>
    %c18 = arith.constant 18 : index
    %c0_12 = arith.constant 0 : index
    %16 = vector.load %arg0[%c18, %c0_12] : memref<656x8xf32, #tpu.memory_space<vmem>>, vector<612x8xf32>
    %17 = arith.truncf %16 : vector<612x8xf32> to vector<612x8xbf16>
    %c24 = arith.constant 24 : index
    %c0_13 = arith.constant 0 : index
    %18 = vector.load %arg1[%c24, %c0_13] : memref<72x8xbf16, #tpu.memory_space<vmem>>, vector<8x8xbf16>
    %cst_14 = arith.constant dense<0.000000e+00> : vector<612x8xf32>
    %19 = tpu.matmul %17, %18, %cst_14 {dimension_numbers = #tpu.dot_dimension_numbers<[1], [0], [0], [1], [0, 0, 1, 1], [], []>} : vector<612x8xbf16>, vector<8x8xbf16>, vector<612x8xf32> -> vector<612x8xf32>
    %20 = arith.addf %15, %19 : vector<612x8xf32>
    %c19 = arith.constant 19 : index
    %c0_15 = arith.constant 0 : index
    %21 = vector.load %arg0[%c19, %c0_15] : memref<656x8xf32, #tpu.memory_space<vmem>>, vector<612x8xf32>
    %22 = arith.truncf %21 : vector<612x8xf32> to vector<612x8xbf16>
    %c32 = arith.constant 32 : index
    %c0_16 = arith.constant 0 : index
    %23 = vector.load %arg1[%c32, %c0_16] : memref<72x8xbf16, #tpu.memory_space<vmem>>, vector<8x8xbf16>
    %cst_17 = arith.constant dense<0.000000e+00> : vector<612x8xf32>
    %24 = tpu.matmul %22, %23, %cst_17 {dimension_numbers = #tpu.dot_dimension_numbers<[1], [0], [0], [1], [0, 0, 1, 1], [], []>} : vector<612x8xbf16>, vector<8x8xbf16>, vector<612x8xf32> -> vector<612x8xf32>
    %25 = arith.addf %20, %24 : vector<612x8xf32>
    %c20 = arith.constant 20 : index
    %c0_18 = arith.constant 0 : index
    %26 = vector.load %arg0[%c20, %c0_18] : memref<656x8xf32, #tpu.memory_space<vmem>>, vector<612x8xf32>
    %27 = arith.truncf %26 : vector<612x8xf32> to vector<612x8xbf16>
    %c40 = arith.constant 40 : index
    %c0_19 = arith.constant 0 : index
    %28 = vector.load %arg1[%c40, %c0_19] : memref<72x8xbf16, #tpu.memory_space<vmem>>, vector<8x8xbf16>
    %cst_20 = arith.constant dense<0.000000e+00> : vector<612x8xf32>
    %29 = tpu.matmul %27, %28, %cst_20 {dimension_numbers = #tpu.dot_dimension_numbers<[1], [0], [0], [1], [0, 0, 1, 1], [], []>} : vector<612x8xbf16>, vector<8x8xbf16>, vector<612x8xf32> -> vector<612x8xf32>
    %30 = arith.addf %25, %29 : vector<612x8xf32>
    %c36 = arith.constant 36 : index
    %c0_21 = arith.constant 0 : index
    %31 = vector.load %arg0[%c36, %c0_21] : memref<656x8xf32, #tpu.memory_space<vmem>>, vector<612x8xf32>
    %32 = arith.truncf %31 : vector<612x8xf32> to vector<612x8xbf16>
    %c48 = arith.constant 48 : index
    %c0_22 = arith.constant 0 : index
    %33 = vector.load %arg1[%c48, %c0_22] : memref<72x8xbf16, #tpu.memory_space<vmem>>, vector<8x8xbf16>
    %cst_23 = arith.constant dense<0.000000e+00> : vector<612x8xf32>
    %34 = tpu.matmul %32, %33, %cst_23 {dimension_numbers = #tpu.dot_dimension_numbers<[1], [0], [0], [1], [0, 0, 1, 1], [], []>} : vector<612x8xbf16>, vector<8x8xbf16>, vector<612x8xf32> -> vector<612x8xf32>
    %35 = arith.addf %30, %34 : vector<612x8xf32>
    %c37 = arith.constant 37 : index
    %c0_24 = arith.constant 0 : index
    %36 = vector.load %arg0[%c37, %c0_24] : memref<656x8xf32, #tpu.memory_space<vmem>>, vector<612x8xf32>
    %37 = arith.truncf %36 : vector<612x8xf32> to vector<612x8xbf16>
    %c56 = arith.constant 56 : index
    %c0_25 = arith.constant 0 : index
    %38 = vector.load %arg1[%c56, %c0_25] : memref<72x8xbf16, #tpu.memory_space<vmem>>, vector<8x8xbf16>
    %cst_26 = arith.constant dense<0.000000e+00> : vector<612x8xf32>
    %39 = tpu.matmul %37, %38, %cst_26 {dimension_numbers = #tpu.dot_dimension_numbers<[1], [0], [0], [1], [0, 0, 1, 1], [], []>} : vector<612x8xbf16>, vector<8x8xbf16>, vector<612x8xf32> -> vector<612x8xf32>
    %40 = arith.addf %35, %39 : vector<612x8xf32>
    %c38 = arith.constant 38 : index
    %c0_27 = arith.constant 0 : index
    %41 = vector.load %arg0[%c38, %c0_27] : memref<656x8xf32, #tpu.memory_space<vmem>>, vector<612x8xf32>
    %42 = arith.truncf %41 : vector<612x8xf32> to vector<612x8xbf16>
    %c64 = arith.constant 64 : index
    %c0_28 = arith.constant 0 : index
    %43 = vector.load %arg1[%c64, %c0_28] : memref<72x8xbf16, #tpu.memory_space<vmem>>, vector<8x8xbf16>
    %cst_29 = arith.constant dense<0.000000e+00> : vector<612x8xf32>
    %44 = tpu.matmul %42, %43, %cst_29 {dimension_numbers = #tpu.dot_dimension_numbers<[1], [0], [0], [1], [0, 0, 1, 1], [], []>} : vector<612x8xbf16>, vector<8x8xbf16>, vector<612x8xf32> -> vector<612x8xf32>
    %45 = arith.addf %40, %44 : vector<612x8xf32>
    %c0_30 = arith.constant 0 : index
    %c0_31 = arith.constant 0 : index
    %46 = vector.load %arg2[%c0_30, %c0_31] : memref<1x8xf32, #tpu.memory_space<vmem>>, vector<1x8xf32>
    %47 = vector.broadcast %46 : vector<1x8xf32> to vector<612x8xf32>
    %48 = arith.addf %45, %47 : vector<612x8xf32>
    %cst_32 = arith.constant 0.000000e+00 : f32
    %49 = vector.broadcast %cst_32 : f32 to vector<612x8xf32>
    %50 = arith.cmpf oge, %48, %49 : vector<612x8xf32>
    %cst_33 = arith.constant 0.00999999977 : f32
    %51 = vector.broadcast %cst_33 : f32 to vector<612x8xf32>
    %52 = arith.mulf %51, %48 : vector<612x8xf32>
    %53 = arith.select %50, %48, %52 : vector<612x8xi1>, vector<612x8xf32>
    %c0_34 = arith.constant 0 : index
    %c0_35 = arith.constant 0 : index
    %54 = vector.load %arg12[%c0_34, %c0_35] : memref<616x8xf32, #tpu.memory_space<vmem>>, vector<612x8xf32>
    tpu.vector_store %arg12[%c0_34, %c0_35], %53 {strides = array<i32>} : memref<616x8xf32, #tpu.memory_space<vmem>>, vector<612x8xf32>,
    %c0_36 = arith.constant 0 : index
    %c0_37 = arith.constant 0 : index
    %55 = tpu.strided_load %arg12[%c0_36, %c0_37] {strides = array<i32: 2, 1>} : memref<616x8xf32, #tpu.memory_space<vmem>>, vector<8x8xf32>
    %c1_38 = arith.constant 1 : index
    %c0_39 = arith.constant 0 : index
    %56 = tpu.strided_load %arg12[%c1_38, %c0_39] {strides = array<i32: 2, 1>} : memref<616x8xf32, #tpu.memory_space<vmem>>, vector<8x8xf32>
    %c18_40 = arith.constant 18 : index
    %c0_41 = arith.constant 0 : index
    %57 = tpu.strided_load %arg12[%c18_40, %c0_41] {strides = array<i32: 2, 1>} : memref<616x8xf32, #tpu.memory_space<vmem>>, vector<8x8xf32>
    %c19_42 = arith.constant 19 : index
    %c0_43 = arith.constant 0 : index
    %58 = tpu.strided_load %arg12[%c19_42, %c0_43] {strides = array<i32: 2, 1>} : memref<616x8xf32, #tpu.memory_space<vmem>>, vector<8x8xf32>
    %59 = arith.maximumf %55, %56 : vector<8x8xf32>
    %60 = arith.maximumf %57, %58 : vector<8x8xf32>
    %61 = arith.maximumf %59, %60 : vector<8x8xf32>
    %c11 = arith.constant 11 : index
    %c0_44 = arith.constant 0 : index
    %62 = vector.load %arg13[%c11, %c0_44] : memref<208x8xf32, #tpu.memory_space<vmem>>, vector<8x8xf32>
    tpu.vector_store %arg13[%c11, %c0_44], %61 {strides = array<i32>} : memref<208x8xf32, #tpu.memory_space<vmem>>, vector<8x8xf32>,
    %c36_45 = arith.constant 36 : index
    %c0_46 = arith.constant 0 : index
    %63 = tpu.strided_load %arg12[%c36_45, %c0_46] {strides = array<i32: 2, 1>} : memref<616x8xf32, #tpu.memory_space<vmem>>, vector<8x8xf32>
    %c37_47 = arith.constant 37 : index
    %c0_48 = arith.constant 0 : index
    %64 = tpu.strided_load %arg12[%c37_47, %c0_48] {strides = array<i32: 2, 1>} : memref<616x8xf32, #tpu.memory_space<vmem>>, vector<8x8xf32>
    %c54 = arith.constant 54 : index
    %c0_49 = arith.constant 0 : index
    %65 = tpu.strided_load %arg12[%c54, %c0_49] {strides = array<i32: 2, 1>} : memref<616x8xf32, #tpu.memory_space<vmem>>, vector<8x8xf32>
    %c55 = arith.constant 55 : index
    %c0_50 = arith.constant 0 : index
    %66 = tpu.strided_load %arg12[%c55, %c0_50] {strides = array<i32: 2, 1>} : memref<616x8xf32, #tpu.memory_space<vmem>>, vector<8x8xf32>
    %67 = arith.maximumf %63, %64 : vector<8x8xf32>
    %68 = arith.maximumf %65, %66 : vector<8x8xf32>
    %69 = arith.maximumf %67, %68 : vector<8x8xf32>
    %c21 = arith.constant 21 : index
    %c0_51 = arith.constant 0 : index
    %70 = vector.load %arg13[%c21, %c0_51] : memref<208x8xf32, #tpu.memory_space<vmem>>, vector<8x8xf32>
    tpu.vector_store %arg13[%c21, %c0_51], %69 {strides = array<i32>} : memref<208x8xf32, #tpu.memory_space<vmem>>, vector<8x8xf32>,
    %c72 = arith.constant 72 : index
    %c0_52 = arith.constant 0 : index
    %71 = tpu.strided_load %arg12[%c72, %c0_52] {strides = array<i32: 2, 1>} : memref<616x8xf32, #tpu.memory_space<vmem>>, vector<8x8xf32>
    %c73 = arith.constant 73 : index
    %c0_53 = arith.constant 0 : index
    %72 = tpu.strided_load %arg12[%c73, %c0_53] {strides = array<i32: 2, 1>} : memref<616x8xf32, #tpu.memory_space<vmem>>, vector<8x8xf32>
    %c90 = arith.constant 90 : index
    %c0_54 = arith.constant 0 : index
    %73 = tpu.strided_load %arg12[%c90, %c0_54] {strides = array<i32: 2, 1>} : memref<616x8xf32, #tpu.memory_space<vmem>>, vector<8x8xf32>
    %c91 = arith.constant 91 : index
    %c0_55 = arith.constant 0 : index
    %74 = tpu.strided_load %arg12[%c91, %c0_55] {strides = array<i32: 2, 1>} : memref<616x8xf32, #tpu.memory_space<vmem>>, vector<8x8xf32>
    %75 = arith.maximumf %71, %72 : vector<8x8xf32>
    %76 = arith.maximumf %73, %74 : vector<8x8xf32>
    %77 = arith.maximumf %75, %76 : vector<8x8xf32>
    %c31 = arith.constant 31 : index
    %c0_56 = arith.constant 0 : index
    %78 = vector.load %arg13[%c31, %c0_56] : memref<208x8xf32, #tpu.memory_space<vmem>>, vector<8x8xf32>
    tpu.vector_store %arg13[%c31, %c0_56], %77 {strides = array<i32>} : memref<208x8xf32, #tpu.memory_space<vmem>>, vector<8x8xf32>,
    %c108 = arith.constant 108 : index
    %c0_57 = arith.constant 0 : index
    %79 = tpu.strided_load %arg12[%c108, %c0_57] {strides = array<i32: 2, 1>} : memref<616x8xf32, #tpu.memory_space<vmem>>, vector<8x8xf32>
    %c109 = arith.constant 109 : index
    %c0_58 = arith.constant 0 : index
    %80 = tpu.strided_load %arg12[%c109, %c0_58] {strides = array<i32: 2, 1>} : memref<616x8xf32, #tpu.memory_space<vmem>>, vector<8x8xf32>
    %c126 = arith.constant 126 : index
    %c0_59 = arith.constant 0 : index
    %81 = tpu.strided_load %arg12[%c126, %c0_59] {strides = array<i32: 2, 1>} : memref<616x8xf32, #tpu.memory_space<vmem>>, vector<8x8xf32>
    %c127 = arith.constant 127 : index
    %c0_60 = arith.constant 0 : index
    %82 = tpu.strided_load %arg12[%c127, %c0_60] {strides = array<i32: 2, 1>} : memref<616x8xf32, #tpu.memory_space<vmem>>, vector<8x8xf32>
    %83 = arith.maximumf %79, %80 : vector<8x8xf32>
    %84 = arith.maximumf %81, %82 : vector<8x8xf32>
    %85 = arith.maximumf %83, %84 : vector<8x8xf32>
    %c41 = arith.constant 41 : index
    %c0_61 = arith.constant 0 : index
    %86 = vector.load %arg13[%c41, %c0_61] : memref<208x8xf32, #tpu.memory_space<vmem>>, vector<8x8xf32>
    tpu.vector_store %arg13[%c41, %c0_61], %85 {strides = array<i32>} : memref<208x8xf32, #tpu.memory_space<vmem>>, vector<8x8xf32>,
    %c144 = arith.constant 144 : index
    %c0_62 = arith.constant 0 : index
    %87 = tpu.strided_load %arg12[%c144, %c0_62] {strides = array<i32: 2, 1>} : memref<616x8xf32, #tpu.memory_space<vmem>>, vector<8x8xf32>
    %c145 = arith.constant 145 : index
    %c0_63 = arith.constant 0 : index
    %88 = tpu.strided_load %arg12[%c145, %c0_63] {strides = array<i32: 2, 1>} : memref<616x8xf32, #tpu.memory_space<vmem>>, vector<8x8xf32>
    %c162 = arith.constant 162 : index
    %c0_64 = arith.constant 0 : index
    %89 = tpu.strided_load %arg12[%c162, %c0_64] {strides = array<i32: 2, 1>} : memref<616x8xf32, #tpu.memory_space<vmem>>, vector<8x8xf32>
    %c163 = arith.constant 163 : index
    %c0_65 = arith.constant 0 : index
    %90 = tpu.strided_load %arg12[%c163, %c0_65] {strides = array<i32: 2, 1>} : memref<616x8xf32, #tpu.memory_space<vmem>>, vector<8x8xf32>
    %91 = arith.maximumf %87, %88 : vector<8x8xf32>
    %92 = arith.maximumf %89, %90 : vector<8x8xf32>
    %93 = arith.maximumf %91, %92 : vector<8x8xf32>
    %c51 = arith.constant 51 : index
    %c0_66 = arith.constant 0 : index
    %94 = vector.load %arg13[%c51, %c0_66] : memref<208x8xf32, #tpu.memory_space<vmem>>, vector<8x8xf32>
    tpu.vector_store %arg13[%c51, %c0_66], %93 {strides = array<i32>} : memref<208x8xf32, #tpu.memory_space<vmem>>, vector<8x8xf32>,
    %c180 = arith.constant 180 : index
    %c0_67 = arith.constant 0 : index
    %95 = tpu.strided_load %arg12[%c180, %c0_67] {strides = array<i32: 2, 1>} : memref<616x8xf32, #tpu.memory_space<vmem>>, vector<8x8xf32>
    %c181 = arith.constant 181 : index
    %c0_68 = arith.constant 0 : index
    %96 = tpu.strided_load %arg12[%c181, %c0_68] {strides = array<i32: 2, 1>} : memref<616x8xf32, #tpu.memory_space<vmem>>, vector<8x8xf32>
    %c198 = arith.constant 198 : index
    %c0_69 = arith.constant 0 : index
    %97 = tpu.strided_load %arg12[%c198, %c0_69] {strides = array<i32: 2, 1>} : memref<616x8xf32, #tpu.memory_space<vmem>>, vector<8x8xf32>
    %c199 = arith.constant 199 : index
    %c0_70 = arith.constant 0 : index
    %98 = tpu.strided_load %arg12[%c199, %c0_70] {strides = array<i32: 2, 1>} : memref<616x8xf32, #tpu.memory_space<vmem>>, vector<8x8xf32>
    %99 = arith.maximumf %95, %96 : vector<8x8xf32>
    %100 = arith.maximumf %97, %98 : vector<8x8xf32>
    %101 = arith.maximumf %99, %100 : vector<8x8xf32>
    %c61 = arith.constant 61 : index
    %c0_71 = arith.constant 0 : index
    %102 = vector.load %arg13[%c61, %c0_71] : memref<208x8xf32, #tpu.memory_space<vmem>>, vector<8x8xf32>
    tpu.vector_store %arg13[%c61, %c0_71], %101 {strides = array<i32>} : memref<208x8xf32, #tpu.memory_space<vmem>>, vector<8x8xf32>,
    %c216 = arith.constant 216 : index
    %c0_72 = arith.constant 0 : index
    %103 = tpu.strided_load %arg12[%c216, %c0_72] {strides = array<i32: 2, 1>} : memref<616x8xf32, #tpu.memory_space<vmem>>, vector<8x8xf32>
    %c217 = arith.constant 217 : index
    %c0_73 = arith.constant 0 : index
    %104 = tpu.strided_load %arg12[%c217, %c0_73] {strides = array<i32: 2, 1>} : memref<616x8xf32, #tpu.memory_space<vmem>>, vector<8x8xf32>
    %c234 = arith.constant 234 : index
    %c0_74 = arith.constant 0 : index
    %105 = tpu.strided_load %arg12[%c234, %c0_74] {strides = array<i32: 2, 1>} : memref<616x8xf32, #tpu.memory_space<vmem>>, vector<8x8xf32>
    %c235 = arith.constant 235 : index
    %c0_75 = arith.constant 0 : index
    %106 = tpu.strided_load %arg12[%c235, %c0_75] {strides = array<i32: 2, 1>} : memref<616x8xf32, #tpu.memory_space<vmem>>, vector<8x8xf32>
    %107 = arith.maximumf %103, %104 : vector<8x8xf32>
    %108 = arith.maximumf %105, %106 : vector<8x8xf32>
    %109 = arith.maximumf %107, %108 : vector<8x8xf32>
    %c71 = arith.constant 71 : index
    %c0_76 = arith.constant 0 : index
    %110 = vector.load %arg13[%c71, %c0_76] : memref<208x8xf32, #tpu.memory_space<vmem>>, vector<8x8xf32>
    tpu.vector_store %arg13[%c71, %c0_76], %109 {strides = array<i32>} : memref<208x8xf32, #tpu.memory_space<vmem>>, vector<8x8xf32>,
    %c252 = arith.constant 252 : index
    %c0_77 = arith.constant 0 : index
    %111 = tpu.strided_load %arg12[%c252, %c0_77] {strides = array<i32: 2, 1>} : memref<616x8xf32, #tpu.memory_space<vmem>>, vector<8x8xf32>
    %c253 = arith.constant 253 : index
    %c0_78 = arith.constant 0 : index
    %112 = tpu.strided_load %arg12[%c253, %c0_78] {strides = array<i32: 2, 1>} : memref<616x8xf32, #tpu.memory_space<vmem>>, vector<8x8xf32>
    %c270 = arith.constant 270 : index
    %c0_79 = arith.constant 0 : index
    %113 = tpu.strided_load %arg12[%c270, %c0_79] {strides = array<i32: 2, 1>} : memref<616x8xf32, #tpu.memory_space<vmem>>, vector<8x8xf32>
    %c271 = arith.constant 271 : index
    %c0_80 = arith.constant 0 : index
    %114 = tpu.strided_load %arg12[%c271, %c0_80] {strides = array<i32: 2, 1>} : memref<616x8xf32, #tpu.memory_space<vmem>>, vector<8x8xf32>
    %115 = arith.maximumf %111, %112 : vector<8x8xf32>
    %116 = arith.maximumf %113, %114 : vector<8x8xf32>
    %117 = arith.maximumf %115, %116 : vector<8x8xf32>
    %c81 = arith.constant 81 : index
    %c0_81 = arith.constant 0 : index
    %118 = vector.load %arg13[%c81, %c0_81] : memref<208x8xf32, #tpu.memory_space<vmem>>, vector<8x8xf32>
    tpu.vector_store %arg13[%c81, %c0_81], %117 {strides = array<i32>} : memref<208x8xf32, #tpu.memory_space<vmem>>, vector<8x8xf32>,
    %c324 = arith.constant 324 : index
    %c0_82 = arith.constant 0 : index
    %119 = tpu.strided_load %arg12[%c324, %c0_82] {strides = array<i32: 2, 1>} : memref<616x8xf32, #tpu.memory_space<vmem>>, vector<8x8xf32>
    %c325 = arith.constant 325 : index
    %c0_83 = arith.constant 0 : index
    %120 = tpu.strided_load %arg12[%c325, %c0_83] {strides = array<i32: 2, 1>} : memref<616x8xf32, #tpu.memory_space<vmem>>, vector<8x8xf32>
    %c342 = arith.constant 342 : index
    %c0_84 = arith.constant 0 : index
    %121 = tpu.strided_load %arg12[%c342, %c0_84] {strides = array<i32: 2, 1>} : memref<616x8xf32, #tpu.memory_space<vmem>>, vector<8x8xf32>
    %c343 = arith.constant 343 : index
    %c0_85 = arith.constant 0 : index
    %122 = tpu.strided_load %arg12[%c343, %c0_85] {strides = array<i32: 2, 1>} : memref<616x8xf32, #tpu.memory_space<vmem>>, vector<8x8xf32>
    %123 = arith.maximumf %119, %120 : vector<8x8xf32>
    %124 = arith.maximumf %121, %122 : vector<8x8xf32>
    %125 = arith.maximumf %123, %124 : vector<8x8xf32>
    %c111 = arith.constant 111 : index
    %c0_86 = arith.constant 0 : index
    %126 = vector.load %arg13[%c111, %c0_86] : memref<208x8xf32, #tpu.memory_space<vmem>>, vector<8x8xf32>
    tpu.vector_store %arg13[%c111, %c0_86], %125 {strides = array<i32>} : memref<208x8xf32, #tpu.memory_space<vmem>>, vector<8x8xf32>,
    %c360 = arith.constant 360 : index
    %c0_87 = arith.constant 0 : index
    %127 = tpu.strided_load %arg12[%c360, %c0_87] {strides = array<i32: 2, 1>} : memref<616x8xf32, #tpu.memory_space<vmem>>, vector<8x8xf32>
    %c361 = arith.constant 361 : index
    %c0_88 = arith.constant 0 : index
    %128 = tpu.strided_load %arg12[%c361, %c0_88] {strides = array<i32: 2, 1>} : memref<616x8xf32, #tpu.memory_space<vmem>>, vector<8x8xf32>
    %c378 = arith.constant 378 : index
    %c0_89 = arith.constant 0 : index
    %129 = tpu.strided_load %arg12[%c378, %c0_89] {strides = array<i32: 2, 1>} : memref<616x8xf32, #tpu.memory_space<vmem>>, vector<8x8xf32>
    %c379 = arith.constant 379 : index
    %c0_90 = arith.constant 0 : index
    %130 = tpu.strided_load %arg12[%c379, %c0_90] {strides = array<i32: 2, 1>} : memref<616x8xf32, #tpu.memory_space<vmem>>, vector<8x8xf32>
    %131 = arith.maximumf %127, %128 : vector<8x8xf32>
    %132 = arith.maximumf %129, %130 : vector<8x8xf32>
    %133 = arith.maximumf %131, %132 : vector<8x8xf32>
    %c121 = arith.constant 121 : index
    %c0_91 = arith.constant 0 : index
    %134 = vector.load %arg13[%c121, %c0_91] : memref<208x8xf32, #tpu.memory_space<vmem>>, vector<8x8xf32>
    tpu.vector_store %arg13[%c121, %c0_91], %133 {strides = array<i32>} : memref<208x8xf32, #tpu.memory_space<vmem>>, vector<8x8xf32>,
    %c396 = arith.constant 396 : index
    %c0_92 = arith.constant 0 : index
    %135 = tpu.strided_load %arg12[%c396, %c0_92] {strides = array<i32: 2, 1>} : memref<616x8xf32, #tpu.memory_space<vmem>>, vector<8x8xf32>
    %c397 = arith.constant 397 : index
    %c0_93 = arith.constant 0 : index
    %136 = tpu.strided_load %arg12[%c397, %c0_93] {strides = array<i32: 2, 1>} : memref<616x8xf32, #tpu.memory_space<vmem>>, vector<8x8xf32>
    %c414 = arith.constant 414 : index
    %c0_94 = arith.constant 0 : index
    %137 = tpu.strided_load %arg12[%c414, %c0_94] {strides = array<i32: 2, 1>} : memref<616x8xf32, #tpu.memory_space<vmem>>, vector<8x8xf32>
    %c415 = arith.constant 415 : index
    %c0_95 = arith.constant 0 : index
    %138 = tpu.strided_load %arg12[%c415, %c0_95] {strides = array<i32: 2, 1>} : memref<616x8xf32, #tpu.memory_space<vmem>>, vector<8x8xf32>
    %139 = arith.maximumf %135, %136 : vector<8x8xf32>
    %140 = arith.maximumf %137, %138 : vector<8x8xf32>
    %141 = arith.maximumf %139, %140 : vector<8x8xf32>
    %c131 = arith.constant 131 : index
    %c0_96 = arith.constant 0 : index
    %142 = vector.load %arg13[%c131, %c0_96] : memref<208x8xf32, #tpu.memory_space<vmem>>, vector<8x8xf32>
    tpu.vector_store %arg13[%c131, %c0_96], %141 {strides = array<i32>} : memref<208x8xf32, #tpu.memory_space<vmem>>, vector<8x8xf32>,
    %c432 = arith.constant 432 : index
    %c0_97 = arith.constant 0 : index
    %143 = tpu.strided_load %arg12[%c432, %c0_97] {strides = array<i32: 2, 1>} : memref<616x8xf32, #tpu.memory_space<vmem>>, vector<8x8xf32>
    %c433 = arith.constant 433 : index
    %c0_98 = arith.constant 0 : index
    %144 = tpu.strided_load %arg12[%c433, %c0_98] {strides = array<i32: 2, 1>} : memref<616x8xf32, #tpu.memory_space<vmem>>, vector<8x8xf32>
    %c450 = arith.constant 450 : index
    %c0_99 = arith.constant 0 : index
    %145 = tpu.strided_load %arg12[%c450, %c0_99] {strides = array<i32: 2, 1>} : memref<616x8xf32, #tpu.memory_space<vmem>>, vector<8x8xf32>
    %c451 = arith.constant 451 : index
    %c0_100 = arith.constant 0 : index
    %146 = tpu.strided_load %arg12[%c451, %c0_100] {strides = array<i32: 2, 1>} : memref<616x8xf32, #tpu.memory_space<vmem>>, vector<8x8xf32>
    %147 = arith.maximumf %143, %144 : vector<8x8xf32>
    %148 = arith.maximumf %145, %146 : vector<8x8xf32>
    %149 = arith.maximumf %147, %148 : vector<8x8xf32>
    %c141 = arith.constant 141 : index
    %c0_101 = arith.constant 0 : index
    %150 = vector.load %arg13[%c141, %c0_101] : memref<208x8xf32, #tpu.memory_space<vmem>>, vector<8x8xf32>
    tpu.vector_store %arg13[%c141, %c0_101], %149 {strides = array<i32>} : memref<208x8xf32, #tpu.memory_space<vmem>>, vector<8x8xf32>,
    %c468 = arith.constant 468 : index
    %c0_102 = arith.constant 0 : index
    %151 = tpu.strided_load %arg12[%c468, %c0_102] {strides = array<i32: 2, 1>} : memref<616x8xf32, #tpu.memory_space<vmem>>, vector<8x8xf32>
    %c469 = arith.constant 469 : index
    %c0_103 = arith.constant 0 : index
    %152 = tpu.strided_load %arg12[%c469, %c0_103] {strides = array<i32: 2, 1>} : memref<616x8xf32, #tpu.memory_space<vmem>>, vector<8x8xf32>
    %c486 = arith.constant 486 : index
    %c0_104 = arith.constant 0 : index
    %153 = tpu.strided_load %arg12[%c486, %c0_104] {strides = array<i32: 2, 1>} : memref<616x8xf32, #tpu.memory_space<vmem>>, vector<8x8xf32>
    %c487 = arith.constant 487 : index
    %c0_105 = arith.constant 0 : index
    %154 = tpu.strided_load %arg12[%c487, %c0_105] {strides = array<i32: 2, 1>} : memref<616x8xf32, #tpu.memory_space<vmem>>, vector<8x8xf32>
    %155 = arith.maximumf %151, %152 : vector<8x8xf32>
    %156 = arith.maximumf %153, %154 : vector<8x8xf32>
    %157 = arith.maximumf %155, %156 : vector<8x8xf32>
    %c151 = arith.constant 151 : index
    %c0_106 = arith.constant 0 : index
    %158 = vector.load %arg13[%c151, %c0_106] : memref<208x8xf32, #tpu.memory_space<vmem>>, vector<8x8xf32>
    tpu.vector_store %arg13[%c151, %c0_106], %157 {strides = array<i32>} : memref<208x8xf32, #tpu.memory_space<vmem>>, vector<8x8xf32>,
    %c504 = arith.constant 504 : index
    %c0_107 = arith.constant 0 : index
    %159 = tpu.strided_load %arg12[%c504, %c0_107] {strides = array<i32: 2, 1>} : memref<616x8xf32, #tpu.memory_space<vmem>>, vector<8x8xf32>
    %c505 = arith.constant 505 : index
    %c0_108 = arith.constant 0 : index
    %160 = tpu.strided_load %arg12[%c505, %c0_108] {strides = array<i32: 2, 1>} : memref<616x8xf32, #tpu.memory_space<vmem>>, vector<8x8xf32>
    %c522 = arith.constant 522 : index
    %c0_109 = arith.constant 0 : index
    %161 = tpu.strided_load %arg12[%c522, %c0_109] {strides = array<i32: 2, 1>} : memref<616x8xf32, #tpu.memory_space<vmem>>, vector<8x8xf32>
    %c523 = arith.constant 523 : index
    %c0_110 = arith.constant 0 : index
    %162 = tpu.strided_load %arg12[%c523, %c0_110] {strides = array<i32: 2, 1>} : memref<616x8xf32, #tpu.memory_space<vmem>>, vector<8x8xf32>
    %163 = arith.maximumf %159, %160 : vector<8x8xf32>
    %164 = arith.maximumf %161, %162 : vector<8x8xf32>
    %165 = arith.maximumf %163, %164 : vector<8x8xf32>
    %c161 = arith.constant 161 : index
    %c0_111 = arith.constant 0 : index
    %166 = vector.load %arg13[%c161, %c0_111] : memref<208x8xf32, #tpu.memory_space<vmem>>, vector<8x8xf32>
    tpu.vector_store %arg13[%c161, %c0_111], %165 {strides = array<i32>} : memref<208x8xf32, #tpu.memory_space<vmem>>, vector<8x8xf32>,
    %c540 = arith.constant 540 : index
    %c0_112 = arith.constant 0 : index
    %167 = tpu.strided_load %arg12[%c540, %c0_112] {strides = array<i32: 2, 1>} : memref<616x8xf32, #tpu.memory_space<vmem>>, vector<8x8xf32>
    %c541 = arith.constant 541 : index
    %c0_113 = arith.constant 0 : index
    %168 = tpu.strided_load %arg12[%c541, %c0_113] {strides = array<i32: 2, 1>} : memref<616x8xf32, #tpu.memory_space<vmem>>, vector<8x8xf32>
    %c558 = arith.constant 558 : index
    %c0_114 = arith.constant 0 : index
    %169 = tpu.strided_load %arg12[%c558, %c0_114] {strides = array<i32: 2, 1>} : memref<616x8xf32, #tpu.memory_space<vmem>>, vector<8x8xf32>
    %c559 = arith.constant 559 : index
    %c0_115 = arith.constant 0 : index
    %170 = tpu.strided_load %arg12[%c559, %c0_115] {strides = array<i32: 2, 1>} : memref<616x8xf32, #tpu.memory_space<vmem>>, vector<8x8xf32>
    %171 = arith.maximumf %167, %168 : vector<8x8xf32>
    %172 = arith.maximumf %169, %170 : vector<8x8xf32>
    %173 = arith.maximumf %171, %172 : vector<8x8xf32>
    %c171 = arith.constant 171 : index
    %c0_116 = arith.constant 0 : index
    %174 = vector.load %arg13[%c171, %c0_116] : memref<208x8xf32, #tpu.memory_space<vmem>>, vector<8x8xf32>
    tpu.vector_store %arg13[%c171, %c0_116], %173 {strides = array<i32>} : memref<208x8xf32, #tpu.memory_space<vmem>>, vector<8x8xf32>,
    %c576 = arith.constant 576 : index
    %c0_117 = arith.constant 0 : index
    %175 = tpu.strided_load %arg12[%c576, %c0_117] {strides = array<i32: 2, 1>} : memref<616x8xf32, #tpu.memory_space<vmem>>, vector<8x8xf32>
    %c577 = arith.constant 577 : index
    %c0_118 = arith.constant 0 : index
    %176 = tpu.strided_load %arg12[%c577, %c0_118] {strides = array<i32: 2, 1>} : memref<616x8xf32, #tpu.memory_space<vmem>>, vector<8x8xf32>
    %c594 = arith.constant 594 : index
    %c0_119 = arith.constant 0 : index
    %177 = tpu.strided_load %arg12[%c594, %c0_119] {strides = array<i32: 2, 1>} : memref<616x8xf32, #tpu.memory_space<vmem>>, vector<8x8xf32>
    %c595 = arith.constant 595 : index
    %c0_120 = arith.constant 0 : index
    %178 = tpu.strided_load %arg12[%c595, %c0_120] {strides = array<i32: 2, 1>} : memref<616x8xf32, #tpu.memory_space<vmem>>, vector<8x8xf32>
    %179 = arith.maximumf %175, %176 : vector<8x8xf32>
    %180 = arith.maximumf %177, %178 : vector<8x8xf32>
    %181 = arith.maximumf %179, %180 : vector<8x8xf32>
    %c181_121 = arith.constant 181 : index
    %c0_122 = arith.constant 0 : index
    %182 = vector.load %arg13[%c181_121, %c0_122] : memref<208x8xf32, #tpu.memory_space<vmem>>, vector<8x8xf32>
    tpu.vector_store %arg13[%c181_121, %c0_122], %181 {strides = array<i32>} : memref<208x8xf32, #tpu.memory_space<vmem>>, vector<8x8xf32>,
    %c0_123 = arith.constant 0 : index
    %c0_124 = arith.constant 0 : index
    %183 = vector.load %arg13[%c0_123, %c0_124] : memref<208x8xf32, #tpu.memory_space<vmem>>, vector<180x8xf32>
    %184 = arith.truncf %183 : vector<180x8xf32> to vector<180x8xbf16>
    %c0_125 = arith.constant 0 : index
    %c0_126 = arith.constant 0 : index
    %185 = vector.load %arg3[%c0_125, %c0_126] : memref<72x16xbf16, #tpu.memory_space<vmem>>, vector<8x16xbf16>
    %cst_127 = arith.constant dense<0.000000e+00> : vector<180x16xf32>
    %186 = tpu.matmul %184, %185, %cst_127 {dimension_numbers = #tpu.dot_dimension_numbers<[1], [0], [0], [1], [0, 0, 1, 1], [], []>} : vector<180x8xbf16>, vector<8x16xbf16>, vector<180x16xf32> -> vector<180x16xf32>
    %c1_128 = arith.constant 1 : index
    %c0_129 = arith.constant 0 : index
    %187 = vector.load %arg13[%c1_128, %c0_129] : memref<208x8xf32, #tpu.memory_space<vmem>>, vector<180x8xf32>
    %188 = arith.truncf %187 : vector<180x8xf32> to vector<180x8xbf16>
    %c8_130 = arith.constant 8 : index
    %c0_131 = arith.constant 0 : index
    %189 = vector.load %arg3[%c8_130, %c0_131] : memref<72x16xbf16, #tpu.memory_space<vmem>>, vector<8x16xbf16>
    %cst_132 = arith.constant dense<0.000000e+00> : vector<180x16xf32>
    %190 = tpu.matmul %188, %189, %cst_132 {dimension_numbers = #tpu.dot_dimension_numbers<[1], [0], [0], [1], [0, 0, 1, 1], [], []>} : vector<180x8xbf16>, vector<8x16xbf16>, vector<180x16xf32> -> vector<180x16xf32>
    %191 = arith.addf %186, %190 : vector<180x16xf32>
    %c2_133 = arith.constant 2 : index
    %c0_134 = arith.constant 0 : index
    %192 = vector.load %arg13[%c2_133, %c0_134] : memref<208x8xf32, #tpu.memory_space<vmem>>, vector<180x8xf32>
    %193 = arith.truncf %192 : vector<180x8xf32> to vector<180x8xbf16>
    %c16_135 = arith.constant 16 : index
    %c0_136 = arith.constant 0 : index
    %194 = vector.load %arg3[%c16_135, %c0_136] : memref<72x16xbf16, #tpu.memory_space<vmem>>, vector<8x16xbf16>
    %cst_137 = arith.constant dense<0.000000e+00> : vector<180x16xf32>
    %195 = tpu.matmul %193, %194, %cst_137 {dimension_numbers = #tpu.dot_dimension_numbers<[1], [0], [0], [1], [0, 0, 1, 1], [], []>} : vector<180x8xbf16>, vector<8x16xbf16>, vector<180x16xf32> -> vector<180x16xf32>
    %196 = arith.addf %191, %195 : vector<180x16xf32>
    %c10 = arith.constant 10 : index
    %c0_138 = arith.constant 0 : index
    %197 = vector.load %arg13[%c10, %c0_138] : memref<208x8xf32, #tpu.memory_space<vmem>>, vector<180x8xf32>
    %198 = arith.truncf %197 : vector<180x8xf32> to vector<180x8xbf16>
    %c24_139 = arith.constant 24 : index
    %c0_140 = arith.constant 0 : index
    %199 = vector.load %arg3[%c24_139, %c0_140] : memref<72x16xbf16, #tpu.memory_space<vmem>>, vector<8x16xbf16>
    %cst_141 = arith.constant dense<0.000000e+00> : vector<180x16xf32>
    %200 = tpu.matmul %198, %199, %cst_141 {dimension_numbers = #tpu.dot_dimension_numbers<[1], [0], [0], [1], [0, 0, 1, 1], [], []>} : vector<180x8xbf16>, vector<8x16xbf16>, vector<180x16xf32> -> vector<180x16xf32>
    %201 = arith.addf %196, %200 : vector<180x16xf32>
    %c11_142 = arith.constant 11 : index
    %c0_143 = arith.constant 0 : index
    %202 = vector.load %arg13[%c11_142, %c0_143] : memref<208x8xf32, #tpu.memory_space<vmem>>, vector<180x8xf32>
    %203 = arith.truncf %202 : vector<180x8xf32> to vector<180x8xbf16>
    %c32_144 = arith.constant 32 : index
    %c0_145 = arith.constant 0 : index
    %204 = vector.load %arg3[%c32_144, %c0_145] : memref<72x16xbf16, #tpu.memory_space<vmem>>, vector<8x16xbf16>
    %cst_146 = arith.constant dense<0.000000e+00> : vector<180x16xf32>
    %205 = tpu.matmul %203, %204, %cst_146 {dimension_numbers = #tpu.dot_dimension_numbers<[1], [0], [0], [1], [0, 0, 1, 1], [], []>} : vector<180x8xbf16>, vector<8x16xbf16>, vector<180x16xf32> -> vector<180x16xf32>
    %206 = arith.addf %201, %205 : vector<180x16xf32>
    %c12 = arith.constant 12 : index
    %c0_147 = arith.constant 0 : index
    %207 = vector.load %arg13[%c12, %c0_147] : memref<208x8xf32, #tpu.memory_space<vmem>>, vector<180x8xf32>
    %208 = arith.truncf %207 : vector<180x8xf32> to vector<180x8xbf16>
    %c40_148 = arith.constant 40 : index
    %c0_149 = arith.constant 0 : index
    %209 = vector.load %arg3[%c40_148, %c0_149] : memref<72x16xbf16, #tpu.memory_space<vmem>>, vector<8x16xbf16>
    %cst_150 = arith.constant dense<0.000000e+00> : vector<180x16xf32>
    %210 = tpu.matmul %208, %209, %cst_150 {dimension_numbers = #tpu.dot_dimension_numbers<[1], [0], [0], [1], [0, 0, 1, 1], [], []>} : vector<180x8xbf16>, vector<8x16xbf16>, vector<180x16xf32> -> vector<180x16xf32>
    %211 = arith.addf %206, %210 : vector<180x16xf32>
    %c20_151 = arith.constant 20 : index
    %c0_152 = arith.constant 0 : index
    %212 = vector.load %arg13[%c20_151, %c0_152] : memref<208x8xf32, #tpu.memory_space<vmem>>, vector<180x8xf32>
    %213 = arith.truncf %212 : vector<180x8xf32> to vector<180x8xbf16>
    %c48_153 = arith.constant 48 : index
    %c0_154 = arith.constant 0 : index
    %214 = vector.load %arg3[%c48_153, %c0_154] : memref<72x16xbf16, #tpu.memory_space<vmem>>, vector<8x16xbf16>
    %cst_155 = arith.constant dense<0.000000e+00> : vector<180x16xf32>
    %215 = tpu.matmul %213, %214, %cst_155 {dimension_numbers = #tpu.dot_dimension_numbers<[1], [0], [0], [1], [0, 0, 1, 1], [], []>} : vector<180x8xbf16>, vector<8x16xbf16>, vector<180x16xf32> -> vector<180x16xf32>
    %216 = arith.addf %211, %215 : vector<180x16xf32>
    %c21_156 = arith.constant 21 : index
    %c0_157 = arith.constant 0 : index
    %217 = vector.load %arg13[%c21_156, %c0_157] : memref<208x8xf32, #tpu.memory_space<vmem>>, vector<180x8xf32>
    %218 = arith.truncf %217 : vector<180x8xf32> to vector<180x8xbf16>
    %c56_158 = arith.constant 56 : index
    %c0_159 = arith.constant 0 : index
    %219 = vector.load %arg3[%c56_158, %c0_159] : memref<72x16xbf16, #tpu.memory_space<vmem>>, vector<8x16xbf16>
    %cst_160 = arith.constant dense<0.000000e+00> : vector<180x16xf32>
    %220 = tpu.matmul %218, %219, %cst_160 {dimension_numbers = #tpu.dot_dimension_numbers<[1], [0], [0], [1], [0, 0, 1, 1], [], []>} : vector<180x8xbf16>, vector<8x16xbf16>, vector<180x16xf32> -> vector<180x16xf32>
    %221 = arith.addf %216, %220 : vector<180x16xf32>
    %c22 = arith.constant 22 : index
    %c0_161 = arith.constant 0 : index
    %222 = vector.load %arg13[%c22, %c0_161] : memref<208x8xf32, #tpu.memory_space<vmem>>, vector<180x8xf32>
    %223 = arith.truncf %222 : vector<180x8xf32> to vector<180x8xbf16>
    %c64_162 = arith.constant 64 : index
    %c0_163 = arith.constant 0 : index
    %224 = vector.load %arg3[%c64_162, %c0_163] : memref<72x16xbf16, #tpu.memory_space<vmem>>, vector<8x16xbf16>
    %cst_164 = arith.constant dense<0.000000e+00> : vector<180x16xf32>
    %225 = tpu.matmul %223, %224, %cst_164 {dimension_numbers = #tpu.dot_dimension_numbers<[1], [0], [0], [1], [0, 0, 1, 1], [], []>} : vector<180x8xbf16>, vector<8x16xbf16>, vector<180x16xf32> -> vector<180x16xf32>
    %226 = arith.addf %221, %225 : vector<180x16xf32>
    %c0_165 = arith.constant 0 : index
    %c0_166 = arith.constant 0 : index
    %227 = vector.load %arg4[%c0_165, %c0_166] : memref<1x16xf32, #tpu.memory_space<vmem>>, vector<1x16xf32>
    %228 = vector.broadcast %227 : vector<1x16xf32> to vector<180x16xf32>
    %229 = arith.addf %226, %228 : vector<180x16xf32>
    %cst_167 = arith.constant 0.000000e+00 : f32
    %230 = vector.broadcast %cst_167 : f32 to vector<180x16xf32>
    %231 = arith.cmpf oge, %229, %230 : vector<180x16xf32>
    %cst_168 = arith.constant 0.00999999977 : f32
    %232 = vector.broadcast %cst_168 : f32 to vector<180x16xf32>
    %233 = arith.mulf %232, %229 : vector<180x16xf32>
    %234 = arith.select %231, %229, %233 : vector<180x16xi1>, vector<180x16xf32>
    %c0_169 = arith.constant 0 : index
    %c0_170 = arith.constant 0 : index
    %235 = vector.load %arg14[%c0_169, %c0_170] : memref<184x16xf32, #tpu.memory_space<vmem>>, vector<180x16xf32>
    tpu.vector_store %arg14[%c0_169, %c0_170], %234 {strides = array<i32>} : memref<184x16xf32, #tpu.memory_space<vmem>>, vector<180x16xf32>,
    %c0_171 = arith.constant 0 : index
    %c0_172 = arith.constant 0 : index
    %236 = tpu.strided_load %arg14[%c0_171, %c0_172] {strides = array<i32: 2, 1>} : memref<184x16xf32, #tpu.memory_space<vmem>>, vector<4x16xf32>
    %c1_173 = arith.constant 1 : index
    %c0_174 = arith.constant 0 : index
    %237 = tpu.strided_load %arg14[%c1_173, %c0_174] {strides = array<i32: 2, 1>} : memref<184x16xf32, #tpu.memory_space<vmem>>, vector<4x16xf32>
    %c10_175 = arith.constant 10 : index
    %c0_176 = arith.constant 0 : index
    %238 = tpu.strided_load %arg14[%c10_175, %c0_176] {strides = array<i32: 2, 1>} : memref<184x16xf32, #tpu.memory_space<vmem>>, vector<4x16xf32>
    %c11_177 = arith.constant 11 : index
    %c0_178 = arith.constant 0 : index
    %239 = tpu.strided_load %arg14[%c11_177, %c0_178] {strides = array<i32: 2, 1>} : memref<184x16xf32, #tpu.memory_space<vmem>>, vector<4x16xf32>
    %240 = arith.maximumf %236, %237 : vector<4x16xf32>
    %241 = arith.maximumf %238, %239 : vector<4x16xf32>
    %242 = arith.maximumf %240, %241 : vector<4x16xf32>
    %243 = vector.extract_strided_slice %242 {offsets = [0, 0], sizes = [1, 16], strides = [1, 1]} : vector<4x16xf32> to vector<1x16xf32>
    %c0_179 = arith.constant 0 : index
    %c0_180 = arith.constant 0 : index
    %244 = vector.load %arg15[%c0_179, %c0_180] : memref<128x16xf32, #tpu.memory_space<vmem>>, vector<1x16xf32>
    tpu.vector_store %arg15[%c0_179, %c0_180], %243 {strides = array<i32>} : memref<128x16xf32, #tpu.memory_space<vmem>>, vector<1x16xf32>,
    %245 = vector.extract_strided_slice %242 {offsets = [1, 0], sizes = [1, 16], strides = [1, 1]} : vector<4x16xf32> to vector<1x16xf32>
    %c8_181 = arith.constant 8 : index
    %c0_182 = arith.constant 0 : index
    %246 = vector.load %arg15[%c8_181, %c0_182] : memref<128x16xf32, #tpu.memory_space<vmem>>, vector<1x16xf32>
    tpu.vector_store %arg15[%c8_181, %c0_182], %245 {strides = array<i32>} : memref<128x16xf32, #tpu.memory_space<vmem>>, vector<1x16xf32>,
    %247 = vector.extract_strided_slice %242 {offsets = [2, 0], sizes = [1, 16], strides = [1, 1]} : vector<4x16xf32> to vector<1x16xf32>
    %c16_183 = arith.constant 16 : index
    %c0_184 = arith.constant 0 : index
    %248 = vector.load %arg15[%c16_183, %c0_184] : memref<128x16xf32, #tpu.memory_space<vmem>>, vector<1x16xf32>
    tpu.vector_store %arg15[%c16_183, %c0_184], %247 {strides = array<i32>} : memref<128x16xf32, #tpu.memory_space<vmem>>, vector<1x16xf32>,
    %249 = vector.extract_strided_slice %242 {offsets = [3, 0], sizes = [1, 16], strides = [1, 1]} : vector<4x16xf32> to vector<1x16xf32>
    %c24_185 = arith.constant 24 : index
    %c0_186 = arith.constant 0 : index
    %250 = vector.load %arg15[%c24_185, %c0_186] : memref<128x16xf32, #tpu.memory_space<vmem>>, vector<1x16xf32>
    tpu.vector_store %arg15[%c24_185, %c0_186], %249 {strides = array<i32>} : memref<128x16xf32, #tpu.memory_space<vmem>>, vector<1x16xf32>,
    %c20_187 = arith.constant 20 : index
    %c0_188 = arith.constant 0 : index
    %251 = tpu.strided_load %arg14[%c20_187, %c0_188] {strides = array<i32: 2, 1>} : memref<184x16xf32, #tpu.memory_space<vmem>>, vector<4x16xf32>
    %c21_189 = arith.constant 21 : index
    %c0_190 = arith.constant 0 : index
    %252 = tpu.strided_load %arg14[%c21_189, %c0_190] {strides = array<i32: 2, 1>} : memref<184x16xf32, #tpu.memory_space<vmem>>, vector<4x16xf32>
    %c30 = arith.constant 30 : index
    %c0_191 = arith.constant 0 : index
    %253 = tpu.strided_load %arg14[%c30, %c0_191] {strides = array<i32: 2, 1>} : memref<184x16xf32, #tpu.memory_space<vmem>>, vector<4x16xf32>
    %c31_192 = arith.constant 31 : index
    %c0_193 = arith.constant 0 : index
    %254 = tpu.strided_load %arg14[%c31_192, %c0_193] {strides = array<i32: 2, 1>} : memref<184x16xf32, #tpu.memory_space<vmem>>, vector<4x16xf32>
    %255 = arith.maximumf %251, %252 : vector<4x16xf32>
    %256 = arith.maximumf %253, %254 : vector<4x16xf32>
    %257 = arith.maximumf %255, %256 : vector<4x16xf32>
    %258 = vector.extract_strided_slice %257 {offsets = [0, 0], sizes = [1, 16], strides = [1, 1]} : vector<4x16xf32> to vector<1x16xf32>
    %c32_194 = arith.constant 32 : index
    %c0_195 = arith.constant 0 : index
    %259 = vector.load %arg15[%c32_194, %c0_195] : memref<128x16xf32, #tpu.memory_space<vmem>>, vector<1x16xf32>
    tpu.vector_store %arg15[%c32_194, %c0_195], %258 {strides = array<i32>} : memref<128x16xf32, #tpu.memory_space<vmem>>, vector<1x16xf32>,
    %260 = vector.extract_strided_slice %257 {offsets = [1, 0], sizes = [1, 16], strides = [1, 1]} : vector<4x16xf32> to vector<1x16xf32>
    %c40_196 = arith.constant 40 : index
    %c0_197 = arith.constant 0 : index
    %261 = vector.load %arg15[%c40_196, %c0_197] : memref<128x16xf32, #tpu.memory_space<vmem>>, vector<1x16xf32>
    tpu.vector_store %arg15[%c40_196, %c0_197], %260 {strides = array<i32>} : memref<128x16xf32, #tpu.memory_space<vmem>>, vector<1x16xf32>,
    %262 = vector.extract_strided_slice %257 {offsets = [2, 0], sizes = [1, 16], strides = [1, 1]} : vector<4x16xf32> to vector<1x16xf32>
    %c48_198 = arith.constant 48 : index
    %c0_199 = arith.constant 0 : index
    %263 = vector.load %arg15[%c48_198, %c0_199] : memref<128x16xf32, #tpu.memory_space<vmem>>, vector<1x16xf32>
    tpu.vector_store %arg15[%c48_198, %c0_199], %262 {strides = array<i32>} : memref<128x16xf32, #tpu.memory_space<vmem>>, vector<1x16xf32>,
    %264 = vector.extract_strided_slice %257 {offsets = [3, 0], sizes = [1, 16], strides = [1, 1]} : vector<4x16xf32> to vector<1x16xf32>
    %c56_200 = arith.constant 56 : index
    %c0_201 = arith.constant 0 : index
    %265 = vector.load %arg15[%c56_200, %c0_201] : memref<128x16xf32, #tpu.memory_space<vmem>>, vector<1x16xf32>
    tpu.vector_store %arg15[%c56_200, %c0_201], %264 {strides = array<i32>} : memref<128x16xf32, #tpu.memory_space<vmem>>, vector<1x16xf32>,
    %c40_202 = arith.constant 40 : index
    %c0_203 = arith.constant 0 : index
    %266 = tpu.strided_load %arg14[%c40_202, %c0_203] {strides = array<i32: 2, 1>} : memref<184x16xf32, #tpu.memory_space<vmem>>, vector<4x16xf32>
    %c41_204 = arith.constant 41 : index
    %c0_205 = arith.constant 0 : index
    %267 = tpu.strided_load %arg14[%c41_204, %c0_205] {strides = array<i32: 2, 1>} : memref<184x16xf32, #tpu.memory_space<vmem>>, vector<4x16xf32>
    %c50 = arith.constant 50 : index
    %c0_206 = arith.constant 0 : index
    %268 = tpu.strided_load %arg14[%c50, %c0_206] {strides = array<i32: 2, 1>} : memref<184x16xf32, #tpu.memory_space<vmem>>, vector<4x16xf32>
    %c51_207 = arith.constant 51 : index
    %c0_208 = arith.constant 0 : index
    %269 = tpu.strided_load %arg14[%c51_207, %c0_208] {strides = array<i32: 2, 1>} : memref<184x16xf32, #tpu.memory_space<vmem>>, vector<4x16xf32>
    %270 = arith.maximumf %266, %267 : vector<4x16xf32>
    %271 = arith.maximumf %268, %269 : vector<4x16xf32>
    %272 = arith.maximumf %270, %271 : vector<4x16xf32>
    %273 = vector.extract_strided_slice %272 {offsets = [0, 0], sizes = [1, 16], strides = [1, 1]} : vector<4x16xf32> to vector<1x16xf32>
    %c64_209 = arith.constant 64 : index
    %c0_210 = arith.constant 0 : index
    %274 = vector.load %arg15[%c64_209, %c0_210] : memref<128x16xf32, #tpu.memory_space<vmem>>, vector<1x16xf32>
    tpu.vector_store %arg15[%c64_209, %c0_210], %273 {strides = array<i32>} : memref<128x16xf32, #tpu.memory_space<vmem>>, vector<1x16xf32>,
    %275 = vector.extract_strided_slice %272 {offsets = [1, 0], sizes = [1, 16], strides = [1, 1]} : vector<4x16xf32> to vector<1x16xf32>
    %c72_211 = arith.constant 72 : index
    %c0_212 = arith.constant 0 : index
    %276 = vector.load %arg15[%c72_211, %c0_212] : memref<128x16xf32, #tpu.memory_space<vmem>>, vector<1x16xf32>
    tpu.vector_store %arg15[%c72_211, %c0_212], %275 {strides = array<i32>} : memref<128x16xf32, #tpu.memory_space<vmem>>, vector<1x16xf32>,
    %277 = vector.extract_strided_slice %272 {offsets = [2, 0], sizes = [1, 16], strides = [1, 1]} : vector<4x16xf32> to vector<1x16xf32>
    %c80 = arith.constant 80 : index
    %c0_213 = arith.constant 0 : index
    %278 = vector.load %arg15[%c80, %c0_213] : memref<128x16xf32, #tpu.memory_space<vmem>>, vector<1x16xf32>
    tpu.vector_store %arg15[%c80, %c0_213], %277 {strides = array<i32>} : memref<128x16xf32, #tpu.memory_space<vmem>>, vector<1x16xf32>,
    %279 = vector.extract_strided_slice %272 {offsets = [3, 0], sizes = [1, 16], strides = [1, 1]} : vector<4x16xf32> to vector<1x16xf32>
    %c88 = arith.constant 88 : index
    %c0_214 = arith.constant 0 : index
    %280 = vector.load %arg15[%c88, %c0_214] : memref<128x16xf32, #tpu.memory_space<vmem>>, vector<1x16xf32>
    tpu.vector_store %arg15[%c88, %c0_214], %279 {strides = array<i32>} : memref<128x16xf32, #tpu.memory_space<vmem>>, vector<1x16xf32>,
    %c60 = arith.constant 60 : index
    %c0_215 = arith.constant 0 : index
    %281 = tpu.strided_load %arg14[%c60, %c0_215] {strides = array<i32: 2, 1>} : memref<184x16xf32, #tpu.memory_space<vmem>>, vector<4x16xf32>
    %c61_216 = arith.constant 61 : index
    %c0_217 = arith.constant 0 : index
    %282 = tpu.strided_load %arg14[%c61_216, %c0_217] {strides = array<i32: 2, 1>} : memref<184x16xf32, #tpu.memory_space<vmem>>, vector<4x16xf32>
    %c70 = arith.constant 70 : index
    %c0_218 = arith.constant 0 : index
    %283 = tpu.strided_load %arg14[%c70, %c0_218] {strides = array<i32: 2, 1>} : memref<184x16xf32, #tpu.memory_space<vmem>>, vector<4x16xf32>
    %c71_219 = arith.constant 71 : index
    %c0_220 = arith.constant 0 : index
    %284 = tpu.strided_load %arg14[%c71_219, %c0_220] {strides = array<i32: 2, 1>} : memref<184x16xf32, #tpu.memory_space<vmem>>, vector<4x16xf32>
    %285 = arith.maximumf %281, %282 : vector<4x16xf32>
    %286 = arith.maximumf %283, %284 : vector<4x16xf32>
    %287 = arith.maximumf %285, %286 : vector<4x16xf32>
    %288 = vector.extract_strided_slice %287 {offsets = [0, 0], sizes = [1, 16], strides = [1, 1]} : vector<4x16xf32> to vector<1x16xf32>
    %c96 = arith.constant 96 : index
    %c0_221 = arith.constant 0 : index
    %289 = vector.load %arg15[%c96, %c0_221] : memref<128x16xf32, #tpu.memory_space<vmem>>, vector<1x16xf32>
    tpu.vector_store %arg15[%c96, %c0_221], %288 {strides = array<i32>} : memref<128x16xf32, #tpu.memory_space<vmem>>, vector<1x16xf32>,
    %290 = vector.extract_strided_slice %287 {offsets = [1, 0], sizes = [1, 16], strides = [1, 1]} : vector<4x16xf32> to vector<1x16xf32>
    %c104 = arith.constant 104 : index
    %c0_222 = arith.constant 0 : index
    %291 = vector.load %arg15[%c104, %c0_222] : memref<128x16xf32, #tpu.memory_space<vmem>>, vector<1x16xf32>
    tpu.vector_store %arg15[%c104, %c0_222], %290 {strides = array<i32>} : memref<128x16xf32, #tpu.memory_space<vmem>>, vector<1x16xf32>,
    %292 = vector.extract_strided_slice %287 {offsets = [2, 0], sizes = [1, 16], strides = [1, 1]} : vector<4x16xf32> to vector<1x16xf32>
    %c112 = arith.constant 112 : index
    %c0_223 = arith.constant 0 : index
    %293 = vector.load %arg15[%c112, %c0_223] : memref<128x16xf32, #tpu.memory_space<vmem>>, vector<1x16xf32>
    tpu.vector_store %arg15[%c112, %c0_223], %292 {strides = array<i32>} : memref<128x16xf32, #tpu.memory_space<vmem>>, vector<1x16xf32>,
    %294 = vector.extract_strided_slice %287 {offsets = [3, 0], sizes = [1, 16], strides = [1, 1]} : vector<4x16xf32> to vector<1x16xf32>
    %c120 = arith.constant 120 : index
    %c0_224 = arith.constant 0 : index
    %295 = vector.load %arg15[%c120, %c0_224] : memref<128x16xf32, #tpu.memory_space<vmem>>, vector<1x16xf32>
    tpu.vector_store %arg15[%c120, %c0_224], %294 {strides = array<i32>} : memref<128x16xf32, #tpu.memory_space<vmem>>, vector<1x16xf32>,
    %c100 = arith.constant 100 : index
    %c0_225 = arith.constant 0 : index
    %296 = tpu.strided_load %arg14[%c100, %c0_225] {strides = array<i32: 2, 1>} : memref<184x16xf32, #tpu.memory_space<vmem>>, vector<4x16xf32>
    %c101 = arith.constant 101 : index
    %c0_226 = arith.constant 0 : index
    %297 = tpu.strided_load %arg14[%c101, %c0_226] {strides = array<i32: 2, 1>} : memref<184x16xf32, #tpu.memory_space<vmem>>, vector<4x16xf32>
    %c110 = arith.constant 110 : index
    %c0_227 = arith.constant 0 : index
    %298 = tpu.strided_load %arg14[%c110, %c0_227] {strides = array<i32: 2, 1>} : memref<184x16xf32, #tpu.memory_space<vmem>>, vector<4x16xf32>
    %c111_228 = arith.constant 111 : index
    %c0_229 = arith.constant 0 : index
    %299 = tpu.strided_load %arg14[%c111_228, %c0_229] {strides = array<i32: 2, 1>} : memref<184x16xf32, #tpu.memory_space<vmem>>, vector<4x16xf32>
    %300 = arith.maximumf %296, %297 : vector<4x16xf32>
    %301 = arith.maximumf %298, %299 : vector<4x16xf32>
    %302 = arith.maximumf %300, %301 : vector<4x16xf32>
    %303 = vector.extract_strided_slice %302 {offsets = [0, 0], sizes = [1, 16], strides = [1, 1]} : vector<4x16xf32> to vector<1x16xf32>
    %c1_230 = arith.constant 1 : index
    %c0_231 = arith.constant 0 : index
    %304 = vector.load %arg15[%c1_230, %c0_231] : memref<128x16xf32, #tpu.memory_space<vmem>>, vector<1x16xf32>
    tpu.vector_store %arg15[%c1_230, %c0_231], %303 {strides = array<i32>} : memref<128x16xf32, #tpu.memory_space<vmem>>, vector<1x16xf32>,
    %305 = vector.extract_strided_slice %302 {offsets = [1, 0], sizes = [1, 16], strides = [1, 1]} : vector<4x16xf32> to vector<1x16xf32>
    %c9 = arith.constant 9 : index
    %c0_232 = arith.constant 0 : index
    %306 = vector.load %arg15[%c9, %c0_232] : memref<128x16xf32, #tpu.memory_space<vmem>>, vector<1x16xf32>
    tpu.vector_store %arg15[%c9, %c0_232], %305 {strides = array<i32>} : memref<128x16xf32, #tpu.memory_space<vmem>>, vector<1x16xf32>,
    %307 = vector.extract_strided_slice %302 {offsets = [2, 0], sizes = [1, 16], strides = [1, 1]} : vector<4x16xf32> to vector<1x16xf32>
    %c17 = arith.constant 17 : index
    %c0_233 = arith.constant 0 : index
    %308 = vector.load %arg15[%c17, %c0_233] : memref<128x16xf32, #tpu.memory_space<vmem>>, vector<1x16xf32>
    tpu.vector_store %arg15[%c17, %c0_233], %307 {strides = array<i32>} : memref<128x16xf32, #tpu.memory_space<vmem>>, vector<1x16xf32>,
    %309 = vector.extract_strided_slice %302 {offsets = [3, 0], sizes = [1, 16], strides = [1, 1]} : vector<4x16xf32> to vector<1x16xf32>
    %c25 = arith.constant 25 : index
    %c0_234 = arith.constant 0 : index
    %310 = vector.load %arg15[%c25, %c0_234] : memref<128x16xf32, #tpu.memory_space<vmem>>, vector<1x16xf32>
    tpu.vector_store %arg15[%c25, %c0_234], %309 {strides = array<i32>} : memref<128x16xf32, #tpu.memory_space<vmem>>, vector<1x16xf32>,
    %c120_235 = arith.constant 120 : index
    %c0_236 = arith.constant 0 : index
    %311 = tpu.strided_load %arg14[%c120_235, %c0_236] {strides = array<i32: 2, 1>} : memref<184x16xf32, #tpu.memory_space<vmem>>, vector<4x16xf32>
    %c121_237 = arith.constant 121 : index
    %c0_238 = arith.constant 0 : index
    %312 = tpu.strided_load %arg14[%c121_237, %c0_238] {strides = array<i32: 2, 1>} : memref<184x16xf32, #tpu.memory_space<vmem>>, vector<4x16xf32>
    %c130 = arith.constant 130 : index
    %c0_239 = arith.constant 0 : index
    %313 = tpu.strided_load %arg14[%c130, %c0_239] {strides = array<i32: 2, 1>} : memref<184x16xf32, #tpu.memory_space<vmem>>, vector<4x16xf32>
    %c131_240 = arith.constant 131 : index
    %c0_241 = arith.constant 0 : index
    %314 = tpu.strided_load %arg14[%c131_240, %c0_241] {strides = array<i32: 2, 1>} : memref<184x16xf32, #tpu.memory_space<vmem>>, vector<4x16xf32>
    %315 = arith.maximumf %311, %312 : vector<4x16xf32>
    %316 = arith.maximumf %313, %314 : vector<4x16xf32>
    %317 = arith.maximumf %315, %316 : vector<4x16xf32>
    %318 = vector.extract_strided_slice %317 {offsets = [0, 0], sizes = [1, 16], strides = [1, 1]} : vector<4x16xf32> to vector<1x16xf32>
    %c33 = arith.constant 33 : index
    %c0_242 = arith.constant 0 : index
    %319 = vector.load %arg15[%c33, %c0_242] : memref<128x16xf32, #tpu.memory_space<vmem>>, vector<1x16xf32>
    tpu.vector_store %arg15[%c33, %c0_242], %318 {strides = array<i32>} : memref<128x16xf32, #tpu.memory_space<vmem>>, vector<1x16xf32>,
    %320 = vector.extract_strided_slice %317 {offsets = [1, 0], sizes = [1, 16], strides = [1, 1]} : vector<4x16xf32> to vector<1x16xf32>
    %c41_243 = arith.constant 41 : index
    %c0_244 = arith.constant 0 : index
    %321 = vector.load %arg15[%c41_243, %c0_244] : memref<128x16xf32, #tpu.memory_space<vmem>>, vector<1x16xf32>
    tpu.vector_store %arg15[%c41_243, %c0_244], %320 {strides = array<i32>} : memref<128x16xf32, #tpu.memory_space<vmem>>, vector<1x16xf32>,
    %322 = vector.extract_strided_slice %317 {offsets = [2, 0], sizes = [1, 16], strides = [1, 1]} : vector<4x16xf32> to vector<1x16xf32>
    %c49 = arith.constant 49 : index
    %c0_245 = arith.constant 0 : index
    %323 = vector.load %arg15[%c49, %c0_245] : memref<128x16xf32, #tpu.memory_space<vmem>>, vector<1x16xf32>
    tpu.vector_store %arg15[%c49, %c0_245], %322 {strides = array<i32>} : memref<128x16xf32, #tpu.memory_space<vmem>>, vector<1x16xf32>,
    %324 = vector.extract_strided_slice %317 {offsets = [3, 0], sizes = [1, 16], strides = [1, 1]} : vector<4x16xf32> to vector<1x16xf32>
    %c57 = arith.constant 57 : index
    %c0_246 = arith.constant 0 : index
    %325 = vector.load %arg15[%c57, %c0_246] : memref<128x16xf32, #tpu.memory_space<vmem>>, vector<1x16xf32>
    tpu.vector_store %arg15[%c57, %c0_246], %324 {strides = array<i32>} : memref<128x16xf32, #tpu.memory_space<vmem>>, vector<1x16xf32>,
    %c140 = arith.constant 140 : index
    %c0_247 = arith.constant 0 : index
    %326 = tpu.strided_load %arg14[%c140, %c0_247] {strides = array<i32: 2, 1>} : memref<184x16xf32, #tpu.memory_space<vmem>>, vector<4x16xf32>
    %c141_248 = arith.constant 141 : index
    %c0_249 = arith.constant 0 : index
    %327 = tpu.strided_load %arg14[%c141_248, %c0_249] {strides = array<i32: 2, 1>} : memref<184x16xf32, #tpu.memory_space<vmem>>, vector<4x16xf32>
    %c150 = arith.constant 150 : index
    %c0_250 = arith.constant 0 : index
    %328 = tpu.strided_load %arg14[%c150, %c0_250] {strides = array<i32: 2, 1>} : memref<184x16xf32, #tpu.memory_space<vmem>>, vector<4x16xf32>
    %c151_251 = arith.constant 151 : index
    %c0_252 = arith.constant 0 : index
    %329 = tpu.strided_load %arg14[%c151_251, %c0_252] {strides = array<i32: 2, 1>} : memref<184x16xf32, #tpu.memory_space<vmem>>, vector<4x16xf32>
    %330 = arith.maximumf %326, %327 : vector<4x16xf32>
    %331 = arith.maximumf %328, %329 : vector<4x16xf32>
    %332 = arith.maximumf %330, %331 : vector<4x16xf32>
    %333 = vector.extract_strided_slice %332 {offsets = [0, 0], sizes = [1, 16], strides = [1, 1]} : vector<4x16xf32> to vector<1x16xf32>
    %c65 = arith.constant 65 : index
    %c0_253 = arith.constant 0 : index
    %334 = vector.load %arg15[%c65, %c0_253] : memref<128x16xf32, #tpu.memory_space<vmem>>, vector<1x16xf32>
    tpu.vector_store %arg15[%c65, %c0_253], %333 {strides = array<i32>} : memref<128x16xf32, #tpu.memory_space<vmem>>, vector<1x16xf32>,
    %335 = vector.extract_strided_slice %332 {offsets = [1, 0], sizes = [1, 16], strides = [1, 1]} : vector<4x16xf32> to vector<1x16xf32>
    %c73_254 = arith.constant 73 : index
    %c0_255 = arith.constant 0 : index
    %336 = vector.load %arg15[%c73_254, %c0_255] : memref<128x16xf32, #tpu.memory_space<vmem>>, vector<1x16xf32>
    tpu.vector_store %arg15[%c73_254, %c0_255], %335 {strides = array<i32>} : memref<128x16xf32, #tpu.memory_space<vmem>>, vector<1x16xf32>,
    %337 = vector.extract_strided_slice %332 {offsets = [2, 0], sizes = [1, 16], strides = [1, 1]} : vector<4x16xf32> to vector<1x16xf32>
    %c81_256 = arith.constant 81 : index
    %c0_257 = arith.constant 0 : index
    %338 = vector.load %arg15[%c81_256, %c0_257] : memref<128x16xf32, #tpu.memory_space<vmem>>, vector<1x16xf32>
    tpu.vector_store %arg15[%c81_256, %c0_257], %337 {strides = array<i32>} : memref<128x16xf32, #tpu.memory_space<vmem>>, vector<1x16xf32>,
    %339 = vector.extract_strided_slice %332 {offsets = [3, 0], sizes = [1, 16], strides = [1, 1]} : vector<4x16xf32> to vector<1x16xf32>
    %c89 = arith.constant 89 : index
    %c0_258 = arith.constant 0 : index
    %340 = vector.load %arg15[%c89, %c0_258] : memref<128x16xf32, #tpu.memory_space<vmem>>, vector<1x16xf32>
    tpu.vector_store %arg15[%c89, %c0_258], %339 {strides = array<i32>} : memref<128x16xf32, #tpu.memory_space<vmem>>, vector<1x16xf32>,
    %c160 = arith.constant 160 : index
    %c0_259 = arith.constant 0 : index
    %341 = tpu.strided_load %arg14[%c160, %c0_259] {strides = array<i32: 2, 1>} : memref<184x16xf32, #tpu.memory_space<vmem>>, vector<4x16xf32>
    %c161_260 = arith.constant 161 : index
    %c0_261 = arith.constant 0 : index
    %342 = tpu.strided_load %arg14[%c161_260, %c0_261] {strides = array<i32: 2, 1>} : memref<184x16xf32, #tpu.memory_space<vmem>>, vector<4x16xf32>
    %c170 = arith.constant 170 : index
    %c0_262 = arith.constant 0 : index
    %343 = tpu.strided_load %arg14[%c170, %c0_262] {strides = array<i32: 2, 1>} : memref<184x16xf32, #tpu.memory_space<vmem>>, vector<4x16xf32>
    %c171_263 = arith.constant 171 : index
    %c0_264 = arith.constant 0 : index
    %344 = tpu.strided_load %arg14[%c171_263, %c0_264] {strides = array<i32: 2, 1>} : memref<184x16xf32, #tpu.memory_space<vmem>>, vector<4x16xf32>
    %345 = arith.maximumf %341, %342 : vector<4x16xf32>
    %346 = arith.maximumf %343, %344 : vector<4x16xf32>
    %347 = arith.maximumf %345, %346 : vector<4x16xf32>
    %348 = vector.extract_strided_slice %347 {offsets = [0, 0], sizes = [1, 16], strides = [1, 1]} : vector<4x16xf32> to vector<1x16xf32>
    %c97 = arith.constant 97 : index
    %c0_265 = arith.constant 0 : index
    %349 = vector.load %arg15[%c97, %c0_265] : memref<128x16xf32, #tpu.memory_space<vmem>>, vector<1x16xf32>
    tpu.vector_store %arg15[%c97, %c0_265], %348 {strides = array<i32>} : memref<128x16xf32, #tpu.memory_space<vmem>>, vector<1x16xf32>,
    %350 = vector.extract_strided_slice %347 {offsets = [1, 0], sizes = [1, 16], strides = [1, 1]} : vector<4x16xf32> to vector<1x16xf32>
    %c105 = arith.constant 105 : index
    %c0_266 = arith.constant 0 : index
    %351 = vector.load %arg15[%c105, %c0_266] : memref<128x16xf32, #tpu.memory_space<vmem>>, vector<1x16xf32>
    tpu.vector_store %arg15[%c105, %c0_266], %350 {strides = array<i32>} : memref<128x16xf32, #tpu.memory_space<vmem>>, vector<1x16xf32>,
    %352 = vector.extract_strided_slice %347 {offsets = [2, 0], sizes = [1, 16], strides = [1, 1]} : vector<4x16xf32> to vector<1x16xf32>
    %c113 = arith.constant 113 : index
    %c0_267 = arith.constant 0 : index
    %353 = vector.load %arg15[%c113, %c0_267] : memref<128x16xf32, #tpu.memory_space<vmem>>, vector<1x16xf32>
    tpu.vector_store %arg15[%c113, %c0_267], %352 {strides = array<i32>} : memref<128x16xf32, #tpu.memory_space<vmem>>, vector<1x16xf32>,
    %354 = vector.extract_strided_slice %347 {offsets = [3, 0], sizes = [1, 16], strides = [1, 1]} : vector<4x16xf32> to vector<1x16xf32>
    %c121_268 = arith.constant 121 : index
    %c0_269 = arith.constant 0 : index
    %355 = vector.load %arg15[%c121_268, %c0_269] : memref<128x16xf32, #tpu.memory_space<vmem>>, vector<1x16xf32>
    tpu.vector_store %arg15[%c121_268, %c0_269], %354 {strides = array<i32>} : memref<128x16xf32, #tpu.memory_space<vmem>>, vector<1x16xf32>,
    %c0_270 = arith.constant 0 : index
    %c0_271 = arith.constant 0 : index
    %356 = vector.load %arg15[%c0_270, %c0_271] : memref<128x16xf32, #tpu.memory_space<vmem>>, vector<2x16xf32>
    %357 = arith.truncf %356 : vector<2x16xf32> to vector<2x16xbf16>
    %c0_272 = arith.constant 0 : index
    %c0_273 = arith.constant 0 : index
    %358 = vector.load %arg5[%c0_272, %c0_273] : memref<256x64xbf16, #tpu.memory_space<vmem>>, vector<16x64xbf16>
    %cst_274 = arith.constant dense<0.000000e+00> : vector<2x64xf32>
    %359 = tpu.matmul %357, %358, %cst_274 {dimension_numbers = #tpu.dot_dimension_numbers<[1], [0], [0], [1], [0, 0, 1, 1], [], []>} : vector<2x16xbf16>, vector<16x64xbf16>, vector<2x64xf32> -> vector<2x64xf32>
    %c8_275 = arith.constant 8 : index
    %c0_276 = arith.constant 0 : index
    %360 = vector.load %arg15[%c8_275, %c0_276] : memref<128x16xf32, #tpu.memory_space<vmem>>, vector<2x16xf32>
    %361 = arith.truncf %360 : vector<2x16xf32> to vector<2x16xbf16>
    %c16_277 = arith.constant 16 : index
    %c0_278 = arith.constant 0 : index
    %362 = vector.load %arg5[%c16_277, %c0_278] : memref<256x64xbf16, #tpu.memory_space<vmem>>, vector<16x64xbf16>
    %cst_279 = arith.constant dense<0.000000e+00> : vector<2x64xf32>
    %363 = tpu.matmul %361, %362, %cst_279 {dimension_numbers = #tpu.dot_dimension_numbers<[1], [0], [0], [1], [0, 0, 1, 1], [], []>} : vector<2x16xbf16>, vector<16x64xbf16>, vector<2x64xf32> -> vector<2x64xf32>
    %364 = arith.addf %359, %363 : vector<2x64xf32>
    %c16_280 = arith.constant 16 : index
    %c0_281 = arith.constant 0 : index
    %365 = vector.load %arg15[%c16_280, %c0_281] : memref<128x16xf32, #tpu.memory_space<vmem>>, vector<2x16xf32>
    %366 = arith.truncf %365 : vector<2x16xf32> to vector<2x16xbf16>
    %c32_282 = arith.constant 32 : index
    %c0_283 = arith.constant 0 : index
    %367 = vector.load %arg5[%c32_282, %c0_283] : memref<256x64xbf16, #tpu.memory_space<vmem>>, vector<16x64xbf16>
    %cst_284 = arith.constant dense<0.000000e+00> : vector<2x64xf32>
    %368 = tpu.matmul %366, %367, %cst_284 {dimension_numbers = #tpu.dot_dimension_numbers<[1], [0], [0], [1], [0, 0, 1, 1], [], []>} : vector<2x16xbf16>, vector<16x64xbf16>, vector<2x64xf32> -> vector<2x64xf32>
    %369 = arith.addf %364, %368 : vector<2x64xf32>
    %c24_285 = arith.constant 24 : index
    %c0_286 = arith.constant 0 : index
    %370 = vector.load %arg15[%c24_285, %c0_286] : memref<128x16xf32, #tpu.memory_space<vmem>>, vector<2x16xf32>
    %371 = arith.truncf %370 : vector<2x16xf32> to vector<2x16xbf16>
    %c48_287 = arith.constant 48 : index
    %c0_288 = arith.constant 0 : index
    %372 = vector.load %arg5[%c48_287, %c0_288] : memref<256x64xbf16, #tpu.memory_space<vmem>>, vector<16x64xbf16>
    %cst_289 = arith.constant dense<0.000000e+00> : vector<2x64xf32>
    %373 = tpu.matmul %371, %372, %cst_289 {dimension_numbers = #tpu.dot_dimension_numbers<[1], [0], [0], [1], [0, 0, 1, 1], [], []>} : vector<2x16xbf16>, vector<16x64xbf16>, vector<2x64xf32> -> vector<2x64xf32>
    %374 = arith.addf %369, %373 : vector<2x64xf32>
    %c32_290 = arith.constant 32 : index
    %c0_291 = arith.constant 0 : index
    %375 = vector.load %arg15[%c32_290, %c0_291] : memref<128x16xf32, #tpu.memory_space<vmem>>, vector<2x16xf32>
    %376 = arith.truncf %375 : vector<2x16xf32> to vector<2x16xbf16>
    %c64_292 = arith.constant 64 : index
    %c0_293 = arith.constant 0 : index
    %377 = vector.load %arg5[%c64_292, %c0_293] : memref<256x64xbf16, #tpu.memory_space<vmem>>, vector<16x64xbf16>
    %cst_294 = arith.constant dense<0.000000e+00> : vector<2x64xf32>
    %378 = tpu.matmul %376, %377, %cst_294 {dimension_numbers = #tpu.dot_dimension_numbers<[1], [0], [0], [1], [0, 0, 1, 1], [], []>} : vector<2x16xbf16>, vector<16x64xbf16>, vector<2x64xf32> -> vector<2x64xf32>
    %379 = arith.addf %374, %378 : vector<2x64xf32>
    %c40_295 = arith.constant 40 : index
    %c0_296 = arith.constant 0 : index
    %380 = vector.load %arg15[%c40_295, %c0_296] : memref<128x16xf32, #tpu.memory_space<vmem>>, vector<2x16xf32>
    %381 = arith.truncf %380 : vector<2x16xf32> to vector<2x16xbf16>
    %c80_297 = arith.constant 80 : index
    %c0_298 = arith.constant 0 : index
    %382 = vector.load %arg5[%c80_297, %c0_298] : memref<256x64xbf16, #tpu.memory_space<vmem>>, vector<16x64xbf16>
    %cst_299 = arith.constant dense<0.000000e+00> : vector<2x64xf32>
    %383 = tpu.matmul %381, %382, %cst_299 {dimension_numbers = #tpu.dot_dimension_numbers<[1], [0], [0], [1], [0, 0, 1, 1], [], []>} : vector<2x16xbf16>, vector<16x64xbf16>, vector<2x64xf32> -> vector<2x64xf32>
    %384 = arith.addf %379, %383 : vector<2x64xf32>
    %c48_300 = arith.constant 48 : index
    %c0_301 = arith.constant 0 : index
    %385 = vector.load %arg15[%c48_300, %c0_301] : memref<128x16xf32, #tpu.memory_space<vmem>>, vector<2x16xf32>
    %386 = arith.truncf %385 : vector<2x16xf32> to vector<2x16xbf16>
    %c96_302 = arith.constant 96 : index
    %c0_303 = arith.constant 0 : index
    %387 = vector.load %arg5[%c96_302, %c0_303] : memref<256x64xbf16, #tpu.memory_space<vmem>>, vector<16x64xbf16>
    %cst_304 = arith.constant dense<0.000000e+00> : vector<2x64xf32>
    %388 = tpu.matmul %386, %387, %cst_304 {dimension_numbers = #tpu.dot_dimension_numbers<[1], [0], [0], [1], [0, 0, 1, 1], [], []>} : vector<2x16xbf16>, vector<16x64xbf16>, vector<2x64xf32> -> vector<2x64xf32>
    %389 = arith.addf %384, %388 : vector<2x64xf32>
    %c56_305 = arith.constant 56 : index
    %c0_306 = arith.constant 0 : index
    %390 = vector.load %arg15[%c56_305, %c0_306] : memref<128x16xf32, #tpu.memory_space<vmem>>, vector<2x16xf32>
    %391 = arith.truncf %390 : vector<2x16xf32> to vector<2x16xbf16>
    %c112_307 = arith.constant 112 : index
    %c0_308 = arith.constant 0 : index
    %392 = vector.load %arg5[%c112_307, %c0_308] : memref<256x64xbf16, #tpu.memory_space<vmem>>, vector<16x64xbf16>
    %cst_309 = arith.constant dense<0.000000e+00> : vector<2x64xf32>
    %393 = tpu.matmul %391, %392, %cst_309 {dimension_numbers = #tpu.dot_dimension_numbers<[1], [0], [0], [1], [0, 0, 1, 1], [], []>} : vector<2x16xbf16>, vector<16x64xbf16>, vector<2x64xf32> -> vector<2x64xf32>
    %394 = arith.addf %389, %393 : vector<2x64xf32>
    %c64_310 = arith.constant 64 : index
    %c0_311 = arith.constant 0 : index
    %395 = vector.load %arg15[%c64_310, %c0_311] : memref<128x16xf32, #tpu.memory_space<vmem>>, vector<2x16xf32>
    %396 = arith.truncf %395 : vector<2x16xf32> to vector<2x16xbf16>
    %c128 = arith.constant 128 : index
    %c0_312 = arith.constant 0 : index
    %397 = vector.load %arg5[%c128, %c0_312] : memref<256x64xbf16, #tpu.memory_space<vmem>>, vector<16x64xbf16>
    %cst_313 = arith.constant dense<0.000000e+00> : vector<2x64xf32>
    %398 = tpu.matmul %396, %397, %cst_313 {dimension_numbers = #tpu.dot_dimension_numbers<[1], [0], [0], [1], [0, 0, 1, 1], [], []>} : vector<2x16xbf16>, vector<16x64xbf16>, vector<2x64xf32> -> vector<2x64xf32>
    %399 = arith.addf %394, %398 : vector<2x64xf32>
    %c72_314 = arith.constant 72 : index
    %c0_315 = arith.constant 0 : index
    %400 = vector.load %arg15[%c72_314, %c0_315] : memref<128x16xf32, #tpu.memory_space<vmem>>, vector<2x16xf32>
    %401 = arith.truncf %400 : vector<2x16xf32> to vector<2x16xbf16>
    %c144_316 = arith.constant 144 : index
    %c0_317 = arith.constant 0 : index
    %402 = vector.load %arg5[%c144_316, %c0_317] : memref<256x64xbf16, #tpu.memory_space<vmem>>, vector<16x64xbf16>
    %cst_318 = arith.constant dense<0.000000e+00> : vector<2x64xf32>
    %403 = tpu.matmul %401, %402, %cst_318 {dimension_numbers = #tpu.dot_dimension_numbers<[1], [0], [0], [1], [0, 0, 1, 1], [], []>} : vector<2x16xbf16>, vector<16x64xbf16>, vector<2x64xf32> -> vector<2x64xf32>
    %404 = arith.addf %399, %403 : vector<2x64xf32>
    %c80_319 = arith.constant 80 : index
    %c0_320 = arith.constant 0 : index
    %405 = vector.load %arg15[%c80_319, %c0_320] : memref<128x16xf32, #tpu.memory_space<vmem>>, vector<2x16xf32>
    %406 = arith.truncf %405 : vector<2x16xf32> to vector<2x16xbf16>
    %c160_321 = arith.constant 160 : index
    %c0_322 = arith.constant 0 : index
    %407 = vector.load %arg5[%c160_321, %c0_322] : memref<256x64xbf16, #tpu.memory_space<vmem>>, vector<16x64xbf16>
    %cst_323 = arith.constant dense<0.000000e+00> : vector<2x64xf32>
    %408 = tpu.matmul %406, %407, %cst_323 {dimension_numbers = #tpu.dot_dimension_numbers<[1], [0], [0], [1], [0, 0, 1, 1], [], []>} : vector<2x16xbf16>, vector<16x64xbf16>, vector<2x64xf32> -> vector<2x64xf32>
    %409 = arith.addf %404, %408 : vector<2x64xf32>
    %c88_324 = arith.constant 88 : index
    %c0_325 = arith.constant 0 : index
    %410 = vector.load %arg15[%c88_324, %c0_325] : memref<128x16xf32, #tpu.memory_space<vmem>>, vector<2x16xf32>
    %411 = arith.truncf %410 : vector<2x16xf32> to vector<2x16xbf16>
    %c176 = arith.constant 176 : index
    %c0_326 = arith.constant 0 : index
    %412 = vector.load %arg5[%c176, %c0_326] : memref<256x64xbf16, #tpu.memory_space<vmem>>, vector<16x64xbf16>
    %cst_327 = arith.constant dense<0.000000e+00> : vector<2x64xf32>
    %413 = tpu.matmul %411, %412, %cst_327 {dimension_numbers = #tpu.dot_dimension_numbers<[1], [0], [0], [1], [0, 0, 1, 1], [], []>} : vector<2x16xbf16>, vector<16x64xbf16>, vector<2x64xf32> -> vector<2x64xf32>
    %414 = arith.addf %409, %413 : vector<2x64xf32>
    %c96_328 = arith.constant 96 : index
    %c0_329 = arith.constant 0 : index
    %415 = vector.load %arg15[%c96_328, %c0_329] : memref<128x16xf32, #tpu.memory_space<vmem>>, vector<2x16xf32>
    %416 = arith.truncf %415 : vector<2x16xf32> to vector<2x16xbf16>
    %c192 = arith.constant 192 : index
    %c0_330 = arith.constant 0 : index
    %417 = vector.load %arg5[%c192, %c0_330] : memref<256x64xbf16, #tpu.memory_space<vmem>>, vector<16x64xbf16>
    %cst_331 = arith.constant dense<0.000000e+00> : vector<2x64xf32>
    %418 = tpu.matmul %416, %417, %cst_331 {dimension_numbers = #tpu.dot_dimension_numbers<[1], [0], [0], [1], [0, 0, 1, 1], [], []>} : vector<2x16xbf16>, vector<16x64xbf16>, vector<2x64xf32> -> vector<2x64xf32>
    %419 = arith.addf %414, %418 : vector<2x64xf32>
    %c104_332 = arith.constant 104 : index
    %c0_333 = arith.constant 0 : index
    %420 = vector.load %arg15[%c104_332, %c0_333] : memref<128x16xf32, #tpu.memory_space<vmem>>, vector<2x16xf32>
    %421 = arith.truncf %420 : vector<2x16xf32> to vector<2x16xbf16>
    %c208 = arith.constant 208 : index
    %c0_334 = arith.constant 0 : index
    %422 = vector.load %arg5[%c208, %c0_334] : memref<256x64xbf16, #tpu.memory_space<vmem>>, vector<16x64xbf16>
    %cst_335 = arith.constant dense<0.000000e+00> : vector<2x64xf32>
    %423 = tpu.matmul %421, %422, %cst_335 {dimension_numbers = #tpu.dot_dimension_numbers<[1], [0], [0], [1], [0, 0, 1, 1], [], []>} : vector<2x16xbf16>, vector<16x64xbf16>, vector<2x64xf32> -> vector<2x64xf32>
    %424 = arith.addf %419, %423 : vector<2x64xf32>
    %c112_336 = arith.constant 112 : index
    %c0_337 = arith.constant 0 : index
    %425 = vector.load %arg15[%c112_336, %c0_337] : memref<128x16xf32, #tpu.memory_space<vmem>>, vector<2x16xf32>
    %426 = arith.truncf %425 : vector<2x16xf32> to vector<2x16xbf16>
    %c224 = arith.constant 224 : index
    %c0_338 = arith.constant 0 : index
    %427 = vector.load %arg5[%c224, %c0_338] : memref<256x64xbf16, #tpu.memory_space<vmem>>, vector<16x64xbf16>
    %cst_339 = arith.constant dense<0.000000e+00> : vector<2x64xf32>
    %428 = tpu.matmul %426, %427, %cst_339 {dimension_numbers = #tpu.dot_dimension_numbers<[1], [0], [0], [1], [0, 0, 1, 1], [], []>} : vector<2x16xbf16>, vector<16x64xbf16>, vector<2x64xf32> -> vector<2x64xf32>
    %429 = arith.addf %424, %428 : vector<2x64xf32>
    %c120_340 = arith.constant 120 : index
    %c0_341 = arith.constant 0 : index
    %430 = vector.load %arg15[%c120_340, %c0_341] : memref<128x16xf32, #tpu.memory_space<vmem>>, vector<2x16xf32>
    %431 = arith.truncf %430 : vector<2x16xf32> to vector<2x16xbf16>
    %c240 = arith.constant 240 : index
    %c0_342 = arith.constant 0 : index
    %432 = vector.load %arg5[%c240, %c0_342] : memref<256x64xbf16, #tpu.memory_space<vmem>>, vector<16x64xbf16>
    %cst_343 = arith.constant dense<0.000000e+00> : vector<2x64xf32>
    %433 = tpu.matmul %431, %432, %cst_343 {dimension_numbers = #tpu.dot_dimension_numbers<[1], [0], [0], [1], [0, 0, 1, 1], [], []>} : vector<2x16xbf16>, vector<16x64xbf16>, vector<2x64xf32> -> vector<2x64xf32>
    %434 = arith.addf %429, %433 : vector<2x64xf32>
    %c0_344 = arith.constant 0 : index
    %c0_345 = arith.constant 0 : index
    %435 = vector.load %arg6[%c0_344, %c0_345] : memref<1x64xf32, #tpu.memory_space<vmem>>, vector<1x64xf32>
    %436 = vector.broadcast %435 : vector<1x64xf32> to vector<2x64xf32>
    %437 = arith.addf %434, %436 : vector<2x64xf32>
    %cst_346 = arith.constant 0.000000e+00 : f32
    %438 = vector.broadcast %cst_346 : f32 to vector<2x64xf32>
    %439 = arith.cmpf oge, %437, %438 : vector<2x64xf32>
    %cst_347 = arith.constant 0.00999999977 : f32
    %440 = vector.broadcast %cst_347 : f32 to vector<2x64xf32>
    %441 = arith.mulf %440, %437 : vector<2x64xf32>
    %442 = arith.select %439, %437, %441 : vector<2x64xi1>, vector<2x64xf32>
    %443 = arith.truncf %442 : vector<2x64xf32> to vector<2x64xbf16>
    %c0_348 = arith.constant 0 : index
    %c0_349 = arith.constant 0 : index
    %444 = vector.load %arg7[%c0_348, %c0_349] : memref<64x64xbf16, #tpu.memory_space<vmem>>, vector<64x64xbf16>
    %cst_350 = arith.constant dense<0.000000e+00> : vector<2x64xf32>
    %445 = tpu.matmul %443, %444, %cst_350 {dimension_numbers = #tpu.dot_dimension_numbers<[1], [0], [0], [1], [0, 0, 1, 1], [], []>} : vector<2x64xbf16>, vector<64x64xbf16>, vector<2x64xf32> -> vector<2x64xf32>
    %c0_351 = arith.constant 0 : index
    %c0_352 = arith.constant 0 : index
    %446 = vector.load %arg8[%c0_351, %c0_352] : memref<1x64xf32, #tpu.memory_space<vmem>>, vector<1x64xf32>
    %447 = vector.broadcast %446 : vector<1x64xf32> to vector<2x64xf32>
    %448 = arith.addf %445, %447 : vector<2x64xf32>
    %cst_353 = arith.constant 0.000000e+00 : f32
    %449 = vector.broadcast %cst_353 : f32 to vector<2x64xf32>
    %450 = arith.cmpf oge, %448, %449 : vector<2x64xf32>
    %cst_354 = arith.constant 0.00999999977 : f32
    %451 = vector.broadcast %cst_354 : f32 to vector<2x64xf32>
    %452 = arith.mulf %451, %448 : vector<2x64xf32>
    %453 = arith.select %450, %448, %452 : vector<2x64xi1>, vector<2x64xf32>
    %454 = arith.truncf %453 : vector<2x64xf32> to vector<2x64xbf16>
    %c0_355 = arith.constant 0 : index
    %c0_356 = arith.constant 0 : index
    %455 = vector.load %arg9[%c0_355, %c0_356] : memref<64x16xbf16, #tpu.memory_space<vmem>>, vector<64x16xbf16>
    %cst_357 = arith.constant dense<0.000000e+00> : vector<2x16xf32>
    %456 = tpu.matmul %454, %455, %cst_357 {dimension_numbers = #tpu.dot_dimension_numbers<[1], [0], [0], [1], [0, 0, 1, 1], [], []>} : vector<2x64xbf16>, vector<64x16xbf16>, vector<2x16xf32> -> vector<2x16xf32>
    %c0_358 = arith.constant 0 : index
    %c0_359 = arith.constant 0 : index
    %457 = vector.load %arg10[%c0_358, %c0_359] : memref<1x16xf32, #tpu.memory_space<vmem>>, vector<1x16xf32>
    %458 = vector.broadcast %457 : vector<1x16xf32> to vector<2x16xf32>
    %459 = arith.addf %456, %458 : vector<2x16xf32>
    %c0_360 = arith.constant 0 : index
    %c0_361 = arith.constant 0 : index
    %460 = vector.load %arg11[%c0_360, %c0_361] : memref<2x16xf32, #tpu.memory_space<vmem>>, vector<2x16xf32>
    tpu.vector_store %arg11[%c0_360, %c0_361], %459 {strides = array<i32>} : memref<2x16xf32, #tpu.memory_space<vmem>>, vector<2x16xf32>,
    return
  }
}

</mosaic_0001>

<llo_original>
// kernel: neg.2
$region0: #{neg.2}
  #allocation0 [shape = 's32[1]{0}', space=sflag, size = 0x4, scoped, tag = 'scoped memory for neg.2']
  %s0 = inlined_call_operand.vmem [shape: f32[2,3], index: 0, kind: input, shape index: {}]
  %s1 = inlined_call_operand.vmem [shape: f32[2,3], index: 1, kind: output, shape index: {}]
  %v2 = vld [vmem:[%s0] sm:$0x3]
  %3 = xla_tuple %v2
  %4 = xla_tuple %3
  %v5 = vxor.u32 %v2, 2147483648
  %6 = xla_tuple %v5
  %7 = vst [vmem:[%s1] sm:$0x3] %v5

// kernel: lap_video_us_forward.1
$region0: #{lap_video_us_forward.1}
  #allocation0 [shape = 'u32[]', space=smem, size = 0x4, offset = 0x4, fixed_abs, tag = 'smem constant byte address 0x4 - core index']
  #allocation1 [shape = 'u32[72,128]{1,0:T(1,128)}', space=vmem, size = 0x9000, scoped, tag = 'internal scratch']
  #allocation2 [shape = 'f32[616,8]{1,0:T(8,128)}', space=vmem, size = 0x4d000, scoped, tag = 'scratch operand']
  #allocation3 [shape = 'f32[208,8]{1,0:T(8,128)}', space=vmem, size = 0x1a000, scoped, tag = 'scratch operand']
  #allocation4 [shape = 'f32[184,16]{1,0:T(8,128)}', space=vmem, size = 0x17000, scoped, tag = 'scratch operand']
  #allocation5 [shape = 'f32[128,16]{1,0:T(8,128)}', space=vmem, size = 0x10000, scoped, tag = 'scratch operand']
  %s0 = inlined_call_operand.vmem [shape: f32[656,8], index: 0, kind: input, shape index: {}]
  %s1 = inlined_call_operand.vmem [shape: bf16[72,8], index: 1, kind: input, shape index: {}]
  %s2 = inlined_call_operand.vmem [shape: f32[1,8], index: 2, kind: input, shape index: {}]
  %s3 = inlined_call_operand.vmem [shape: bf16[72,16], index: 3, kind: input, shape index: {}]
  %s4 = inlined_call_operand.vmem [shape: f32[1,16], index: 4, kind: input, shape index: {}]
  %s5 = inlined_call_operand.vmem [shape: bf16[256,64], index: 5, kind: input, shape index: {}]
  %s6 = inlined_call_operand.vmem [shape: f32[1,64], index: 6, kind: input, shape index: {}]
  %s7 = inlined_call_operand.vmem [shape: bf16[64,64], index: 7, kind: input, shape index: {}]
  %s8 = inlined_call_operand.vmem [shape: f32[1,64], index: 8, kind: input, shape index: {}]
  %s9 = inlined_call_operand.vmem [shape: bf16[64,16], index: 9, kind: input, shape index: {}]
  %s10 = inlined_call_operand.vmem [shape: f32[1,16], index: 10, kind: input, shape index: {}]
  %s11 = inlined_call_operand.vmem [shape: f32[2,16], index: 11, kind: output, shape index: {}]
  %s12 = sld [smem:[#allocation0]]
  $region54: #{lap_video_us_forward.1} parent=0
    _
  %s14 = ssub.s32 1, %s12
  %s15 = scalar_select 0, %s14, %s12
  // Predicated region
  $region2: #{lap_video_us_forward.1} parent=0 // pred_check
    _
  $region3: #{lap_video_us_forward.1} parent=0 // pred_check_branch
    %17 = sbr.rel (0) target = $region5
  $region4: #{lap_video_us_forward.1} parent=0 // pred_region
    _
  $region5: #{lap_video_us_forward.1} parent=0 // pred_fallthru
    _
  // Predicated region
  $region6: #{lap_video_us_forward.1} parent=0 // pred_check
    _
  $region7: #{lap_video_us_forward.1} parent=0 // pred_check_branch
    %19 = sbr.rel (0) target = $region9
  $region8: #{lap_video_us_forward.1} parent=0 // pred_region
    _
  $region9: #{lap_video_us_forward.1} parent=0 // pred_fallthru
    _
  // Predicated region
  $region10: #{lap_video_us_forward.1} parent=0 // pred_check
    _
  $region11: #{lap_video_us_forward.1} parent=0 // pred_check_branch
    %21 = sbr.rel (0) target = $region13
  $region12: #{lap_video_us_forward.1} parent=0 // pred_region
    _
  $region13: #{lap_video_us_forward.1} parent=0 // pred_fallthru
    _
  // Predicated region
  $region14: #{lap_video_us_forward.1} parent=0 // pred_check
    _
  $region15: #{lap_video_us_forward.1} parent=0 // pred_check_branch
    %23 = sbr.rel (0) target = $region17
  $region16: #{lap_video_us_forward.1} parent=0 // pred_region
    _
  $region17: #{lap_video_us_forward.1} parent=0 // pred_fallthru
    _
  // Predicated region
  $region18: #{lap_video_us_forward.1} parent=0 // pred_check
    _
  $region19: #{lap_video_us_forward.1} parent=0 // pred_check_branch
    %25 = sbr.rel (0) target = $region21
  $region20: #{lap_video_us_forward.1} parent=0 // pred_region
    _
  $region21: #{lap_video_us_forward.1} parent=0 // pred_fallthru
    _
  // Predicated region
  $region22: #{lap_video_us_forward.1} parent=0 // pred_check
    _
  $region23: #{lap_video_us_forward.1} parent=0 // pred_check_branch
    %27 = sbr.rel (0) target = $region25
  $region24: #{lap_video_us_forward.1} parent=0 // pred_region
    _
  $region25: #{lap_video_us_forward.1} parent=0 // pred_fallthru
    _
  // Predicated region
  $region26: #{lap_video_us_forward.1} parent=0 // pred_check
    _
  $region27: #{lap_video_us_forward.1} parent=0 // pred_check_branch
    %29 = sbr.rel (0) target = $region29
  $region28: #{lap_video_us_forward.1} parent=0 // pred_region
    _
  $region29: #{lap_video_us_forward.1} parent=0 // pred_fallthru
    _
  // Predicated region
  $region30: #{lap_video_us_forward.1} parent=0 // pred_check
    _
  $region31: #{lap_video_us_forward.1} parent=0 // pred_check_branch
    %31 = sbr.rel (0) target = $region33
  $region32: #{lap_video_us_forward.1} parent=0 // pred_region
    _
  $region33: #{lap_video_us_forward.1} parent=0 // pred_fallthru
    _
  // Predicated region
  $region34: #{lap_video_us_forward.1} parent=0 // pred_check
    _
  $region35: #{lap_video_us_forward.1} parent=0 // pred_check_branch
    %33 = sbr.rel (0) target = $region37
  $region36: #{lap_video_us_forward.1} parent=0 // pred_region
    _
  $region37: #{lap_video_us_forward.1} parent=0 // pred_fallthru
    _
  // Predicated region
  $region38: #{lap_video_us_forward.1} parent=0 // pred_check
    _
  $region39: #{lap_video_us_forward.1} parent=0 // pred_check_branch
    %35 = sbr.rel (0) target = $region41
  $region40: #{lap_video_us_forward.1} parent=0 // pred_region
    _
  $region41: #{lap_video_us_forward.1} parent=0 // pred_fallthru
    _
  // Predicated region
  $region42: #{lap_video_us_forward.1} parent=0 // pred_check
    _
  $region43: #{lap_video_us_forward.1} parent=0 // pred_check_branch
    %37 = sbr.rel (0) target = $region45
  $region44: #{lap_video_us_forward.1} parent=0 // pred_region
    _
  $region45: #{lap_video_us_forward.1} parent=0 // pred_fallthru
    _
  %vm39 = vcmask 64512
  %40 = vst.msk [vmem:[#allocation3] sm:$0xff] %vm39, 0.0
  %41 = vst.msk [vmem:[#allocation3 + $0x8] sm:$0xff] %vm39, 0.0
  %42 = vst.msk [vmem:[#allocation3 + $0x10] sm:$0xff] %vm39, 0.0
  %43 = vst.msk [vmem:[#allocation3 + $0x18] sm:$0xff] %vm39, 0.0
  %44 = vst.msk [vmem:[#allocation3 + $0x20] sm:$0xff] %vm39, 0.0
  %45 = vst.msk [vmem:[#allocation3 + $0x28] sm:$0xff] %vm39, 0.0
  %46 = vst.msk [vmem:[#allocation3 + $0x30] sm:$0xff] %vm39, 0.0
  %47 = vst.msk [vmem:[#allocation3 + $0x38] sm:$0xff] %vm39, 0.0
  %48 = vst.msk [vmem:[#allocation3 + $0x40] sm:$0xff] %vm39, 0.0
  %49 = vst.msk [vmem:[#allocation3 + $0x48] sm:$0xff] %vm39, 0.0
  %50 = vst.msk [vmem:[#allocation3 + $0x50] sm:$0xff] %vm39, 0.0
  %51 = vst.msk [vmem:[#allocation3 + $0x58] sm:$0xff] %vm39, 0.0
  %52 = vst.msk [vmem:[#allocation3 + $0x60] sm:$0xff] %vm39, 0.0
  %53 = vst.msk [vmem:[#allocation3 + $0x68] sm:$0xff] %vm39, 0.0
  %54 = vst.msk [vmem:[#allocation3 + $0x70] sm:$0xff] %vm39, 0.0
  %55 = vst.msk [vmem:[#allocation3 + $0x78] sm:$0xff] %vm39, 0.0
  %56 = vst.msk [vmem:[#allocation3 + $0x80] sm:$0xff] %vm39, 0.0
  %57 = vst.msk [vmem:[#allocation3 + $0x88] sm:$0xff] %vm39, 0.0
  %58 = vst.msk [vmem:[#allocation3 + $0x90] sm:$0xff] %vm39, 0.0
  %59 = vst.msk [vmem:[#allocation3 + $0x98] sm:$0xff] %vm39, 0.0
  %60 = vst.msk [vmem:[#allocation3 + $0xa0] sm:$0xff] %vm39, 0.0
  %61 = vst.msk [vmem:[#allocation3 + $0xa8] sm:$0xff] %vm39, 0.0
  %62 = vst.msk [vmem:[#allocation3 + $0xb0] sm:$0xff] %vm39, 0.0
  %63 = vst.msk [vmem:[#allocation3 + $0xb8] sm:$0xff] %vm39, 0.0
  %64 = vst.msk [vmem:[#allocation3 + $0xc0] sm:$0xff] %vm39, 0.0
  %65 = vst.msk [vmem:[#allocation3 + $0xc8] sm:$0xff] %vm39, 0.0
  %v66 = vld [vmem:[%s0] sm:$0xff]
  %v67 = vld [vmem:[%s0 + $0x8] sm:$0xff]
  %v68 = vld [vmem:[%s0 + $0x10] sm:$0xff]
  %v69 = vld [vmem:[%s0 + $0x18] sm:$0xff]
  %v70 = vld [vmem:[%s0 + $0x20] sm:$0xff]
  %v71 = vld [vmem:[%s0 + $0x28] sm:$0xff]
  %v72 = vld [vmem:[%s0 + $0x30] sm:$0xff]
  %v73 = vld [vmem:[%s0 + $0x38] sm:$0xff]
  %v74 = vld [vmem:[%s0 + $0x40] sm:$0xff]
  %v75 = vld [vmem:[%s0 + $0x48] sm:$0xff]
  %v76 = vld [vmem:[%s0 + $0x50] sm:$0xff]
  %v77 = vld [vmem:[%s0 + $0x58] sm:$0xff]
  %v78 = vld [vmem:[%s0 + $0x60] sm:$0xff]
  %v79 = vld [vmem:[%s0 + $0x68] sm:$0xff]
  %v80 = vld [vmem:[%s0 + $0x70] sm:$0xff]
  %v81 = vld [vmem:[%s0 + $0x78] sm:$0xff]
  %v82 = vld [vmem:[%s0 + $0x80] sm:$0xff]
  %v83 = vld [vmem:[%s0 + $0x88] sm:$0xff]
  %v84 = vld [vmem:[%s0 + $0x90] sm:$0xff]
  %v85 = vld [vmem:[%s0 + $0x98] sm:$0xff]
  %v86 = vld [vmem:[%s0 + $0xa0] sm:$0xff]
  %v87 = vld [vmem:[%s0 + $0xa8] sm:$0xff]
  %v88 = vld [vmem:[%s0 + $0xb0] sm:$0xff]
  %v89 = vld [vmem:[%s0 + $0xb8] sm:$0xff]
  %v90 = vld [vmem:[%s0 + $0xc0] sm:$0xff]
  %v91 = vld [vmem:[%s0 + $0xc8] sm:$0xff]
  %v92 = vld [vmem:[%s0 + $0xd0] sm:$0xff]
  %v93 = vld [vmem:[%s0 + $0xd8] sm:$0xff]
  %v94 = vld [vmem:[%s0 + $0xe0] sm:$0xff]
  %v95 = vld [vmem:[%s0 + $0xe8] sm:$0xff]
  %v96 = vld [vmem:[%s0 + $0xf0] sm:$0xff]
  %v97 = vld [vmem:[%s0 + $0xf8] sm:$0xff]
  %v98 = vld [vmem:[%s0 + $0x100] sm:$0xff]
  %v99 = vld [vmem:[%s0 + $0x108] sm:$0xff]
  %v100 = vld [vmem:[%s0 + $0x110] sm:$0xff]
  %v101 = vld [vmem:[%s0 + $0x118] sm:$0xff]
  %v102 = vld [vmem:[%s0 + $0x120] sm:$0xff]
  %v103 = vld [vmem:[%s0 + $0x128] sm:$0xff]
  %v104 = vld [vmem:[%s0 + $0x130] sm:$0xff]
  %v105 = vld [vmem:[%s0 + $0x138] sm:$0xff]
  %v106 = vld [vmem:[%s0 + $0x140] sm:$0xff]
  %v107 = vld [vmem:[%s0 + $0x148] sm:$0xff]
  %v108 = vld [vmem:[%s0 + $0x150] sm:$0xff]
  %v109 = vld [vmem:[%s0 + $0x158] sm:$0xff]
  %v110 = vld [vmem:[%s0 + $0x160] sm:$0xff]
  %v111 = vld [vmem:[%s0 + $0x168] sm:$0xff]
  %v112 = vld [vmem:[%s0 + $0x170] sm:$0xff]
  %v113 = vld [vmem:[%s0 + $0x178] sm:$0xff]
  %v114 = vld [vmem:[%s0 + $0x180] sm:$0xff]
  %v115 = vld [vmem:[%s0 + $0x188] sm:$0xff]
  %v116 = vld [vmem:[%s0 + $0x190] sm:$0xff]
  %v117 = vld [vmem:[%s0 + $0x198] sm:$0xff]
  %v118 = vld [vmem:[%s0 + $0x1a0] sm:$0xff]
  %v119 = vld [vmem:[%s0 + $0x1a8] sm:$0xff]
  %v120 = vld [vmem:[%s0 + $0x1b0] sm:$0xff]
  %v121 = vld [vmem:[%s0 + $0x1b8] sm:$0xff]
  %v122 = vld [vmem:[%s0 + $0x1c0] sm:$0xff]
  %v123 = vld [vmem:[%s0 + $0x1c8] sm:$0xff]
  %v124 = vld [vmem:[%s0 + $0x1d0] sm:$0xff]
  %v125 = vld [vmem:[%s0 + $0x1d8] sm:$0xff]
  %v126 = vld [vmem:[%s0 + $0x1e0] sm:$0xff]
  %v127 = vld [vmem:[%s0 + $0x1e8] sm:$0xff]
  %v128 = vld [vmem:[%s0 + $0x1f0] sm:$0xff]
  %v129 = vld [vmem:[%s0 + $0x1f8] sm:$0xff]
  %v130 = vld [vmem:[%s0 + $0x200] sm:$0xff]
  %v131 = vld [vmem:[%s0 + $0x208] sm:$0xff]
  %v132 = vld [vmem:[%s0 + $0x210] sm:$0xff]
  %v133 = vld [vmem:[%s0 + $0x218] sm:$0xff]
  %v134 = vld [vmem:[%s0 + $0x220] sm:$0xff]
  %v135 = vld [vmem:[%s0 + $0x228] sm:$0xff]
  %v136 = vld [vmem:[%s0 + $0x230] sm:$0xff]
  %v137 = vld [vmem:[%s0 + $0x238] sm:$0xff]
  %v138 = vld [vmem:[%s0 + $0x240] sm:$0xff]
  %v139 = vld [vmem:[%s0 + $0x248] sm:$0xff]
  %v140 = vld [vmem:[%s0 + $0x250] sm:$0xff]
  %v141 = vld [vmem:[%s0 + $0x258] sm:$0xff]
  %v142 = vld [vmem:[%s0 + $0x260] sm:$0xf]
  %v143 = vpack.c.bf16 %v67, %v66
  %v144 = vpack.c.bf16 %v69, %v68
  %v145 = vpack.c.bf16 %v71, %v70
  %v146 = vpack.c.bf16 %v73, %v72
  %v147 = vpack.c.bf16 %v75, %v74
  %v148 = vpack.c.bf16 %v77, %v76
  %v149 = vpack.c.bf16 %v79, %v78
  %v150 = vpack.c.bf16 %v81, %v80
  %v151 = vpack.c.bf16 %v83, %v82
  %v152 = vpack.c.bf16 %v85, %v84
  %v153 = vpack.c.bf16 %v87, %v86
  %v154 = vpack.c.bf16 %v89, %v88
  %v155 = vpack.c.bf16 %v91, %v90
  %v156 = vpack.c.bf16 %v93, %v92
  %v157 = vpack.c.bf16 %v95, %v94
  %v158 = vpack.c.bf16 %v97, %v96
  %v159 = vpack.c.bf16 %v99, %v98
  %v160 = vpack.c.bf16 %v101, %v100
  %v161 = vpack.c.bf16 %v103, %v102
  %v162 = vpack.c.bf16 %v105, %v104
  %v163 = vpack.c.bf16 %v107, %v106
  %v164 = vpack.c.bf16 %v109, %v108
  %v165 = vpack.c.bf16 %v111, %v110
  %v166 = vpack.c.bf16 %v113, %v112
  %v167 = vpack.c.bf16 %v115, %v114
  %v168 = vpack.c.bf16 %v117, %v116
  %v169 = vpack.c.bf16 %v119, %v118
  %v170 = vpack.c.bf16 %v121, %v120
  %v171 = vpack.c.bf16 %v123, %v122
  %v172 = vpack.c.bf16 %v125, %v124
  %v173 = vpack.c.bf16 %v127, %v126
  %v174 = vpack.c.bf16 %v129, %v128
  %v175 = vpack.c.bf16 %v131, %v130
  %v176 = vpack.c.bf16 %v133, %v132
  %v177 = vpack.c.bf16 %v135, %v134
  %v178 = vpack.c.bf16 %v137, %v136
  %v179 = vpack.c.bf16 %v139, %v138
  %v180 = vpack.c.bf16 %v141, %v140
  %v181 = vpack.c.bf16 %v142, %v142
  %v182 = vld [vmem:[%s1] sm:$0xf]
  %v183 = vld [vmem:[%s0 + $0x1] sm:$0xff]
  %v184 = vld [vmem:[%s0 + $0x9] sm:$0xff]
  %v185 = vld [vmem:[%s0 + $0x11] sm:$0xff]
  %v186 = vld [vmem:[%s0 + $0x19] sm:$0xff]
  %v187 = vld [vmem:[%s0 + $0x21] sm:$0xff]
  %v188 = vld [vmem:[%s0 + $0x29] sm:$0xff]
  %v189 = vld [vmem:[%s0 + $0x31] sm:$0xff]
  %v190 = vld [vmem:[%s0 + $0x39] sm:$0xff]
  %v191 = vld [vmem:[%s0 + $0x41] sm:$0xff]
  %v192 = vld [vmem:[%s0 + $0x49] sm:$0xff]
  %v193 = vld [vmem:[%s0 + $0x51] sm:$0xff]
  %v194 = vld [vmem:[%s0 + $0x59] sm:$0xff]
  %v195 = vld [vmem:[%s0 + $0x61] sm:$0xff]
  %v196 = vld [vmem:[%s0 + $0x69] sm:$0xff]
  %v197 = vld [vmem:[%s0 + $0x71] sm:$0xff]
  %v198 = vld [vmem:[%s0 + $0x79] sm:$0xff]
  %v199 = vld [vmem:[%s0 + $0x81] sm:$0xff]
  %v200 = vld [vmem:[%s0 + $0x89] sm:$0xff]
  %v201 = vld [vmem:[%s0 + $0x91] sm:$0xff]
  %v202 = vld [vmem:[%s0 + $0x99] sm:$0xff]
  %v203 = vld [vmem:[%s0 + $0xa1] sm:$0xff]
  %v204 = vld [vmem:[%s0 + $0xa9] sm:$0xff]
  %v205 = vld [vmem:[%s0 + $0xb1] sm:$0xff]
  %v206 = vld [vmem:[%s0 + $0xb9] sm:$0xff]
  %v207 = vld [vmem:[%s0 + $0xc1] sm:$0xff]
  %v208 = vld [vmem:[%s0 + $0xc9] sm:$0xff]
  %v209 = vld [vmem:[%s0 + $0xd1] sm:$0xff]
  %v210 = vld [vmem:[%s0 + $0xd9] sm:$0xff]
  %v211 = vld [vmem:[%s0 + $0xe1] sm:$0xff]
  %v212 = vld [vmem:[%s0 + $0xe9] sm:$0xff]
  %v213 = vld [vmem:[%s0 + $0xf1] sm:$0xff]
  %v214 = vld [vmem:[%s0 + $0xf9] sm:$0xff]
  %v215 = vld [vmem:[%s0 + $0x101] sm:$0xff]
  %v216 = vld [vmem:[%s0 + $0x109] sm:$0xff]
  %v217 = vld [vmem:[%s0 + $0x111] sm:$0xff]
  %v218 = vld [vmem:[%s0 + $0x119] sm:$0xff]
  %v219 = vld [vmem:[%s0 + $0x121] sm:$0xff]
  %v220 = vld [vmem:[%s0 + $0x129] sm:$0xff]
  %v221 = vld [vmem:[%s0 + $0x131] sm:$0xff]
  %v222 = vld [vmem:[%s0 + $0x139] sm:$0xff]
  %v223 = vld [vmem:[%s0 + $0x141] sm:$0xff]
  %v224 = vld [vmem:[%s0 + $0x149] sm:$0xff]
  %v225 = vld [vmem:[%s0 + $0x151] sm:$0xff]
  %v226 = vld [vmem:[%s0 + $0x159] sm:$0xff]
  %v227 = vld [vmem:[%s0 + $0x161] sm:$0xff]
  %v228 = vld [vmem:[%s0 + $0x169] sm:$0xff]
  %v229 = vld [vmem:[%s0 + $0x171] sm:$0xff]
  %v230 = vld [vmem:[%s0 + $0x179] sm:$0xff]
  %v231 = vld [vmem:[%s0 + $0x181] sm:$0xff]
  %v232 = vld [vmem:[%s0 + $0x189] sm:$0xff]
  %v233 = vld [vmem:[%s0 + $0x191] sm:$0xff]
  %v234 = vld [vmem:[%s0 + $0x199] sm:$0xff]
  %v235 = vld [vmem:[%s0 + $0x1a1] sm:$0xff]
  %v236 = vld [vmem:[%s0 + $0x1a9] sm:$0xff]
  %v237 = vld [vmem:[%s0 + $0x1b1] sm:$0xff]
  %v238 = vld [vmem:[%s0 + $0x1b9] sm:$0xff]
  %v239 = vld [vmem:[%s0 + $0x1c1] sm:$0xff]
  %v240 = vld [vmem:[%s0 + $0x1c9] sm:$0xff]
  %v241 = vld [vmem:[%s0 + $0x1d1] sm:$0xff]
  %v242 = vld [vmem:[%s0 + $0x1d9] sm:$0xff]
  %v243 = vld [vmem:[%s0 + $0x1e1] sm:$0xff]
  %v244 = vld [vmem:[%s0 + $0x1e9] sm:$0xff]
  %v245 = vld [vmem:[%s0 + $0x1f1] sm:$0xff]
  %v246 = vld [vmem:[%s0 + $0x1f9] sm:$0xff]
  %v247 = vld [vmem:[%s0 + $0x201] sm:$0xff]
  %v248 = vld [vmem:[%s0 + $0x209] sm:$0xff]
  %v249 = vld [vmem:[%s0 + $0x211] sm:$0xff]
  %v250 = vld [vmem:[%s0 + $0x219] sm:$0xff]
  %v251 = vld [vmem:[%s0 + $0x221] sm:$0xff]
  %v252 = vld [vmem:[%s0 + $0x229] sm:$0xff]
  %v253 = vld [vmem:[%s0 + $0x231] sm:$0xff]
  %v254 = vld [vmem:[%s0 + $0x239] sm:$0xff]
  %v255 = vld [vmem:[%s0 + $0x241] sm:$0xff]
  %v256 = vld [vmem:[%s0 + $0x249] sm:$0xff]
  %v257 = vld [vmem:[%s0 + $0x251] sm:$0xff]
  %v258 = vld [vmem:[%s0 + $0x259] sm:$0xff]
  %v259 = vld [vmem:[%s0 + $0x261] sm:$0xf]
  %v260 = vpack.c.bf16 %v184, %v183
  %v261 = vpack.c.bf16 %v186, %v185
  %v262 = vpack.c.bf16 %v188, %v187
  %v263 = vpack.c.bf16 %v190, %v189
  %v264 = vpack.c.bf16 %v192, %v191
  %v265 = vpack.c.bf16 %v194, %v193
  %v266 = vpack.c.bf16 %v196, %v195
  %v267 = vpack.c.bf16 %v198, %v197
  %v268 = vpack.c.bf16 %v200, %v199
  %v269 = vpack.c.bf16 %v202, %v201
  %v270 = vpack.c.bf16 %v204, %v203
  %v271 = vpack.c.bf16 %v206, %v205
  %v272 = vpack.c.bf16 %v208, %v207
  %v273 = vpack.c.bf16 %v210, %v209
  %v274 = vpack.c.bf16 %v212, %v211
  %v275 = vpack.c.bf16 %v214, %v213
  %v276 = vpack.c.bf16 %v216, %v215
  %v277 = vpack.c.bf16 %v218, %v217
  %v278 = vpack.c.bf16 %v220, %v219
  %v279 = vpack.c.bf16 %v222, %v221
  %v280 = vpack.c.bf16 %v224, %v223
  %v281 = vpack.c.bf16 %v226, %v225
  %v282 = vpack.c.bf16 %v228, %v227
  %v283 = vpack.c.bf16 %v230, %v229
  %v284 = vpack.c.bf16 %v232, %v231
  %v285 = vpack.c.bf16 %v234, %v233
  %v286 = vpack.c.bf16 %v236, %v235
  %v287 = vpack.c.bf16 %v238, %v237
  %v288 = vpack.c.bf16 %v240, %v239
  %v289 = vpack.c.bf16 %v242, %v241
  %v290 = vpack.c.bf16 %v244, %v243
  %v291 = vpack.c.bf16 %v246, %v245
  %v292 = vpack.c.bf16 %v248, %v247
  %v293 = vpack.c.bf16 %v250, %v249
  %v294 = vpack.c.bf16 %v252, %v251
  %v295 = vpack.c.bf16 %v254, %v253
  %v296 = vpack.c.bf16 %v256, %v255
  %v297 = vpack.c.bf16 %v258, %v257
  %v298 = vpack.c.bf16 %v259, %v259
  %v299 = vld [vmem:[%s1 + $0x4] sm:$0xf]
  %v301 = vsel %vm39, %v260, 0
  %v304 = vsel %vm39, %v261, 0
  %v307 = vsel %vm39, %v262, 0
  %v310 = vsel %vm39, %v263, 0
  %v313 = vsel %vm39, %v264, 0
  %v316 = vsel %vm39, %v265, 0
  %v319 = vsel %vm39, %v266, 0
  %v322 = vsel %vm39, %v267, 0
  %v325 = vsel %vm39, %v268, 0
  %v328 = vsel %vm39, %v269, 0
  %v331 = vsel %vm39, %v270, 0
  %v334 = vsel %vm39, %v271, 0
  %v337 = vsel %vm39, %v272, 0
  %v340 = vsel %vm39, %v273, 0
  %v343 = vsel %vm39, %v274, 0
  %v346 = vsel %vm39, %v275, 0
  %v349 = vsel %vm39, %v276, 0
  %v352 = vsel %vm39, %v277, 0
  %v355 = vsel %vm39, %v278, 0
  %v358 = vsel %vm39, %v279, 0
  %v361 = vsel %vm39, %v280, 0
  %v364 = vsel %vm39, %v281, 0
  %v367 = vsel %vm39, %v282, 0
  %v370 = vsel %vm39, %v283, 0
  %v373 = vsel %vm39, %v284, 0
  %v376 = vsel %vm39, %v285, 0
  %v379 = vsel %vm39, %v286, 0
  %v382 = vsel %vm39, %v287, 0
  %v385 = vsel %vm39, %v288, 0
  %v388 = vsel %vm39, %v289, 0
  %v391 = vsel %vm39, %v290, 0
  %v394 = vsel %vm39, %v291, 0
  %v397 = vsel %vm39, %v292, 0
  %v400 = vsel %vm39, %v293, 0
  %v403 = vsel %vm39, %v294, 0
  %v406 = vsel %vm39, %v295, 0
  %v409 = vsel %vm39, %v296, 0
  %v412 = vsel %vm39, %v297, 0
  %v415 = vsel %vm39, %v298, 0
  %vm417 = vcmask 1043456
  %v419 = vsel %vm417, %v299, 0
  %421 = vmatpush.bf16.msra.mxu0 0
  %422 = vmatpush.bf16.msra.mxu0 0
  %423 = vmatpush.bf16.msra.mxu0 0
  %424 = vmatpush.bf16.msra.mxu0 0
  %425 = vmatpush.bf16.msra.mxu0 0
  %426 = vmatpush.bf16.msra.mxu0 0
  %427 = vmatpush.bf16.msra.mxu0 0
  %428 = vmatpush.bf16.msra.mxu0 %v419
  %429 = vmatmul.bf16.gmra.mxu0 %v301
  %v430 = vpop.f32.mrf.mxu0
  %v431 = vadd.f32 0.0, %v430
  %v432 = vpop.f32.mrf.mxu0
  %v433 = vadd.f32 0.0, %v432
  %434 = vmatmul.bf16.gmra.mxu0 %v304
  %v435 = vpop.f32.mrf.mxu0
  %v436 = vadd.f32 0.0, %v435
  %v437 = vpop.f32.mrf.mxu0
  %v438 = vadd.f32 0.0, %v437
  %439 = vmatmul.bf16.gmra.mxu0 %v307
  %v440 = vpop.f32.mrf.mxu0
  %v441 = vadd.f32 0.0, %v440
  %v442 = vpop.f32.mrf.mxu0
  %v443 = vadd.f32 0.0, %v442
  %444 = vmatmul.bf16.gmra.mxu0 %v310
  %v445 = vpop.f32.mrf.mxu0
  %v446 = vadd.f32 0.0, %v445
  %v447 = vpop.f32.mrf.mxu0
  %v448 = vadd.f32 0.0, %v447
  %449 = vmatmul.bf16.gmra.mxu0 %v313
  %v450 = vpop.f32.mrf.mxu0
  %v451 = vadd.f32 0.0, %v450
  %v452 = vpop.f32.mrf.mxu0
  %v453 = vadd.f32 0.0, %v452
  %454 = vmatmul.bf16.gmra.mxu0 %v316
  %v455 = vpop.f32.mrf.mxu0
  %v456 = vadd.f32 0.0, %v455
  %v457 = vpop.f32.mrf.mxu0
  %v458 = vadd.f32 0.0, %v457
  %459 = vmatmul.bf16.gmra.mxu0 %v319
  %v460 = vpop.f32.mrf.mxu0
  %v461 = vadd.f32 0.0, %v460
  %v462 = vpop.f32.mrf.mxu0
  %v463 = vadd.f32 0.0, %v462
  %464 = vmatmul.bf16.gmra.mxu0 %v322
  %v465 = vpop.f32.mrf.mxu0
  %v466 = vadd.f32 0.0, %v465
  %v467 = vpop.f32.mrf.mxu0
  %v468 = vadd.f32 0.0, %v467
  %469 = vmatmul.bf16.gmra.mxu0 %v325
  %v470 = vpop.f32.mrf.mxu0
  %v471 = vadd.f32 0.0, %v470
  %v472 = vpop.f32.mrf.mxu0
  %v473 = vadd.f32 0.0, %v472
  %474 = vmatmul.bf16.gmra.mxu0 %v328
  %v475 = vpop.f32.mrf.mxu0
  %v476 = vadd.f32 0.0, %v475
  %v477 = vpop.f32.mrf.mxu0
  %v478 = vadd.f32 0.0, %v477
  %479 = vmatmul.bf16.gmra.mxu0 %v331
  %v480 = vpop.f32.mrf.mxu0
  %v481 = vadd.f32 0.0, %v480
  %v482 = vpop.f32.mrf.mxu0
  %v483 = vadd.f32 0.0, %v482
  %484 = vmatmul.bf16.gmra.mxu0 %v334
  %v485 = vpop.f32.mrf.mxu0
  %v486 = vadd.f32 0.0, %v485
  %v487 = vpop.f32.mrf.mxu0
  %v488 = vadd.f32 0.0, %v487
  %489 = vmatmul.bf16.gmra.mxu0 %v337
  %v490 = vpop.f32.mrf.mxu0
  %v491 = vadd.f32 0.0, %v490
  %v492 = vpop.f32.mrf.mxu0
  %v493 = vadd.f32 0.0, %v492
  %494 = vmatmul.bf16.gmra.mxu0 %v340
  %v495 = vpop.f32.mrf.mxu0
  %v496 = vadd.f32 0.0, %v495
  %v497 = vpop.f32.mrf.mxu0
  %v498 = vadd.f32 0.0, %v497
  %499 = vmatmul.bf16.gmra.mxu0 %v343
  %v500 = vpop.f32.mrf.mxu0
  %v501 = vadd.f32 0.0, %v500
  %v502 = vpop.f32.mrf.mxu0
  %v503 = vadd.f32 0.0, %v502
  %504 = vmatmul.bf16.gmra.mxu0 %v346
  %v505 = vpop.f32.mrf.mxu0
  %v506 = vadd.f32 0.0, %v505
  %v507 = vpop.f32.mrf.mxu0
  %v508 = vadd.f32 0.0, %v507
  %509 = vmatmul.bf16.gmra.mxu0 %v349
  %v510 = vpop.f32.mrf.mxu0
  %v511 = vadd.f32 0.0, %v510
  %v512 = vpop.f32.mrf.mxu0
  %v513 = vadd.f32 0.0, %v512
  %514 = vmatmul.bf16.gmra.mxu0 %v352
  %v515 = vpop.f32.mrf.mxu0
  %v516 = vadd.f32 0.0, %v515
  %v517 = vpop.f32.mrf.mxu0
  %v518 = vadd.f32 0.0, %v517
  %519 = vmatmul.bf16.gmra.mxu0 %v355
  %v520 = vpop.f32.mrf.mxu0
  %v521 = vadd.f32 0.0, %v520
  %v522 = vpop.f32.mrf.mxu0
  %v523 = vadd.f32 0.0, %v522
  %524 = vmatmul.bf16.gmra.mxu0 %v358
  %v525 = vpop.f32.mrf.mxu0
  %v526 = vadd.f32 0.0, %v525
  %v527 = vpop.f32.mrf.mxu0
  %v528 = vadd.f32 0.0, %v527
  %529 = vmatmul.bf16.gmra.mxu0 %v361
  %v530 = vpop.f32.mrf.mxu0
  %v531 = vadd.f32 0.0, %v530
  %v532 = vpop.f32.mrf.mxu0
  %v533 = vadd.f32 0.0, %v532
  %534 = vmatmul.bf16.gmra.mxu0 %v364
  %v535 = vpop.f32.mrf.mxu0
  %v536 = vadd.f32 0.0, %v535
  %v537 = vpop.f32.mrf.mxu0
  %v538 = vadd.f32 0.0, %v537
  %539 = vmatmul.bf16.gmra.mxu0 %v367
  %v540 = vpop.f32.mrf.mxu0
  %v541 = vadd.f32 0.0, %v540
  %v542 = vpop.f32.mrf.mxu0
  %v543 = vadd.f32 0.0, %v542
  %544 = vmatmul.bf16.gmra.mxu0 %v370
  %v545 = vpop.f32.mrf.mxu0
  %v546 = vadd.f32 0.0, %v545
  %v547 = vpop.f32.mrf.mxu0
  %v548 = vadd.f32 0.0, %v547
  %549 = vmatmul.bf16.gmra.mxu0 %v373
  %v550 = vpop.f32.mrf.mxu0
  %v551 = vadd.f32 0.0, %v550
  %v552 = vpop.f32.mrf.mxu0
  %v553 = vadd.f32 0.0, %v552
  %554 = vmatmul.bf16.gmra.mxu0 %v376
  %v555 = vpop.f32.mrf.mxu0
  %v556 = vadd.f32 0.0, %v555
  %v557 = vpop.f32.mrf.mxu0
  %v558 = vadd.f32 0.0, %v557
  %559 = vmatmul.bf16.gmra.mxu0 %v379
  %v560 = vpop.f32.mrf.mxu0
  %v561 = vadd.f32 0.0, %v560
  %v562 = vpop.f32.mrf.mxu0
  %v563 = vadd.f32 0.0, %v562
  %564 = vmatmul.bf16.gmra.mxu0 %v382
  %v565 = vpop.f32.mrf.mxu0
  %v566 = vadd.f32 0.0, %v565
  %v567 = vpop.f32.mrf.mxu0
  %v568 = vadd.f32 0.0, %v567
  %569 = vmatmul.bf16.gmra.mxu0 %v385
  %v570 = vpop.f32.mrf.mxu0
  %v571 = vadd.f32 0.0, %v570
  %v572 = vpop.f32.mrf.mxu0
  %v573 = vadd.f32 0.0, %v572
  %574 = vmatmul.bf16.gmra.mxu0 %v388
  %v575 = vpop.f32.mrf.mxu0
  %v576 = vadd.f32 0.0, %v575
  %v577 = vpop.f32.mrf.mxu0
  %v578 = vadd.f32 0.0, %v577
  %579 = vmatmul.bf16.gmra.mxu0 %v391
  %v580 = vpop.f32.mrf.mxu0
  %v581 = vadd.f32 0.0, %v580
  %v582 = vpop.f32.mrf.mxu0
  %v583 = vadd.f32 0.0, %v582
  %584 = vmatmul.bf16.gmra.mxu0 %v394
  %v585 = vpop.f32.mrf.mxu0
  %v586 = vadd.f32 0.0, %v585
  %v587 = vpop.f32.mrf.mxu0
  %v588 = vadd.f32 0.0, %v587
  %589 = vmatmul.bf16.gmra.mxu0 %v397
  %v590 = vpop.f32.mrf.mxu0
  %v591 = vadd.f32 0.0, %v590
  %v592 = vpop.f32.mrf.mxu0
  %v593 = vadd.f32 0.0, %v592
  %594 = vmatmul.bf16.gmra.mxu0 %v400
  %v595 = vpop.f32.mrf.mxu0
  %v596 = vadd.f32 0.0, %v595
  %v597 = vpop.f32.mrf.mxu0
  %v598 = vadd.f32 0.0, %v597
  %599 = vmatmul.bf16.gmra.mxu0 %v403
  %v600 = vpop.f32.mrf.mxu0
  %v601 = vadd.f32 0.0, %v600
  %v602 = vpop.f32.mrf.mxu0
  %v603 = vadd.f32 0.0, %v602
  %604 = vmatmul.bf16.gmra.mxu0 %v406
  %v605 = vpop.f32.mrf.mxu0
  %v606 = vadd.f32 0.0, %v605
  %v607 = vpop.f32.mrf.mxu0
  %v608 = vadd.f32 0.0, %v607
  %609 = vmatmul.bf16.gmra.mxu0 %v409
  %v610 = vpop.f32.mrf.mxu0
  %v611 = vadd.f32 0.0, %v610
  %v612 = vpop.f32.mrf.mxu0
  %v613 = vadd.f32 0.0, %v612
  %614 = vmatmul.bf16.gmra.mxu0 %v412
  %v615 = vpop.f32.mrf.mxu0
  %v616 = vadd.f32 0.0, %v615
  %v617 = vpop.f32.mrf.mxu0
  %v618 = vadd.f32 0.0, %v617
  %619 = vmatmul.bf16.gmra.mxu0 %v415
  %v620 = vpop.f32.mrf.mxu0
  %v621 = vadd.f32 0.0, %v620
  %v622 = vpop.f32.mrf.mxu0
  %623 = vdwg.mxu0
  %v625 = vsel %vm39, %v143, 0
  %v628 = vsel %vm39, %v144, 0
  %v631 = vsel %vm39, %v145, 0
  %v634 = vsel %vm39, %v146, 0
  %v637 = vsel %vm39, %v147, 0
  %v640 = vsel %vm39, %v148, 0
  %v643 = vsel %vm39, %v149, 0
  %v646 = vsel %vm39, %v150, 0
  %v649 = vsel %vm39, %v151, 0
  %v652 = vsel %vm39, %v152, 0
  %v655 = vsel %vm39, %v153, 0
  %v658 = vsel %vm39, %v154, 0
  %v661 = vsel %vm39, %v155, 0
  %v664 = vsel %vm39, %v156, 0
  %v667 = vsel %vm39, %v157, 0
  %v670 = vsel %vm39, %v158, 0
  %v673 = vsel %vm39, %v159, 0
  %v676 = vsel %vm39, %v160, 0
  %v679 = vsel %vm39, %v161, 0
  %v682 = vsel %vm39, %v162, 0
  %v685 = vsel %vm39, %v163, 0
  %v688 = vsel %vm39, %v164, 0
  %v691 = vsel %vm39, %v165, 0
  %v694 = vsel %vm39, %v166, 0
  %v697 = vsel %vm39, %v167, 0
  %v700 = vsel %vm39, %v168, 0
  %v703 = vsel %vm39, %v169, 0
  %v706 = vsel %vm39, %v170, 0
  %v709 = vsel %vm39, %v171, 0
  %v712 = vsel %vm39, %v172, 0
  %v715 = vsel %vm39, %v173, 0
  %v718 = vsel %vm39, %v174, 0
  %v721 = vsel %vm39, %v175, 0
  %v724 = vsel %vm39, %v176, 0
  %v727 = vsel %vm39, %v177, 0
  %v730 = vsel %vm39, %v178, 0
  %v733 = vsel %vm39, %v179, 0
  %v736 = vsel %vm39, %v180, 0
  %v739 = vsel %vm39, %v181, 0
  %v742 = vsel %vm417, %v182, 0
  %744 = vmatpush.bf16.msra.mxu0 0
  %745 = vmatpush.bf16.msra.mxu0 0
  %746 = vmatpush.bf16.msra.mxu0 0
  %747 = vmatpush.bf16.msra.mxu0 0
  %748 = vmatpush.bf16.msra.mxu0 0
  %749 = vmatpush.bf16.msra.mxu0 0
  %750 = vmatpush.bf16.msra.mxu0 0
  %751 = vmatpush.bf16.msra.mxu0 %v742
  %752 = vmatmul.bf16.gmra.mxu0 %v625
  %v753 = vpop.f32.mrf.mxu0
  %v754 = vadd.f32 %v431, %v753
  %v755 = vpop.f32.mrf.mxu0
  %v756 = vadd.f32 %v433, %v755
  %757 = vmatmul.bf16.gmra.mxu0 %v628
  %v758 = vpop.f32.mrf.mxu0
  %v759 = vadd.f32 %v436, %v758
  %v760 = vpop.f32.mrf.mxu0
  %v761 = vadd.f32 %v438, %v760
  %762 = vmatmul.bf16.gmra.mxu0 %v631
  %v763 = vpop.f32.mrf.mxu0
  %v764 = vadd.f32 %v441, %v763
  %v765 = vpop.f32.mrf.mxu0
  %v766 = vadd.f32 %v443, %v765
  %767 = vmatmul.bf16.gmra.mxu0 %v634
  %v768 = vpop.f32.mrf.mxu0
  %v769 = vadd.f32 %v446, %v768
  %v770 = vpop.f32.mrf.mxu0
  %v771 = vadd.f32 %v448, %v770
  %772 = vmatmul.bf16.gmra.mxu0 %v637
  %v773 = vpop.f32.mrf.mxu0
  %v774 = vadd.f32 %v451, %v773
  %v775 = vpop.f32.mrf.mxu0
  %v776 = vadd.f32 %v453, %v775
  %777 = vmatmul.bf16.gmra.mxu0 %v640
  %v778 = vpop.f32.mrf.mxu0
  %v779 = vadd.f32 %v456, %v778
  %v780 = vpop.f32.mrf.mxu0
  %v781 = vadd.f32 %v458, %v780
  %782 = vmatmul.bf16.gmra.mxu0 %v643
  %v783 = vpop.f32.mrf.mxu0
  %v784 = vadd.f32 %v461, %v783
  %v785 = vpop.f32.mrf.mxu0
  %v786 = vadd.f32 %v463, %v785
  %787 = vmatmul.bf16.gmra.mxu0 %v646
  %v788 = vpop.f32.mrf.mxu0
  %v789 = vadd.f32 %v466, %v788
  %v790 = vpop.f32.mrf.mxu0
  %v791 = vadd.f32 %v468, %v790
  %792 = vmatmul.bf16.gmra.mxu0 %v649
  %v793 = vpop.f32.mrf.mxu0
  %v794 = vadd.f32 %v471, %v793
  %v795 = vpop.f32.mrf.mxu0
  %v796 = vadd.f32 %v473, %v795
  %797 = vmatmul.bf16.gmra.mxu0 %v652
  %v798 = vpop.f32.mrf.mxu0
  %v799 = vadd.f32 %v476, %v798
  %v800 = vpop.f32.mrf.mxu0
  %v801 = vadd.f32 %v478, %v800
  %802 = vmatmul.bf16.gmra.mxu0 %v655
  %v803 = vpop.f32.mrf.mxu0
  %v804 = vadd.f32 %v481, %v803
  %v805 = vpop.f32.mrf.mxu0
  %v806 = vadd.f32 %v483, %v805
  %807 = vmatmul.bf16.gmra.mxu0 %v658
  %v808 = vpop.f32.mrf.mxu0
  %v809 = vadd.f32 %v486, %v808
  %v810 = vpop.f32.mrf.mxu0
  %v811 = vadd.f32 %v488, %v810
  %812 = vmatmul.bf16.gmra.mxu0 %v661
  %v813 = vpop.f32.mrf.mxu0
  %v814 = vadd.f32 %v491, %v813
  %v815 = vpop.f32.mrf.mxu0
  %v816 = vadd.f32 %v493, %v815
  %817 = vmatmul.bf16.gmra.mxu0 %v664
  %v818 = vpop.f32.mrf.mxu0
  %v819 = vadd.f32 %v496, %v818
  %v820 = vpop.f32.mrf.mxu0
  %v821 = vadd.f32 %v498, %v820
  %822 = vmatmul.bf16.gmra.mxu0 %v667
  %v823 = vpop.f32.mrf.mxu0
  %v824 = vadd.f32 %v501, %v823
  %v825 = vpop.f32.mrf.mxu0
  %v826 = vadd.f32 %v503, %v825
  %827 = vmatmul.bf16.gmra.mxu0 %v670
  %v828 = vpop.f32.mrf.mxu0
  %v829 = vadd.f32 %v506, %v828
  %v830 = vpop.f32.mrf.mxu0
  %v831 = vadd.f32 %v508, %v830
  %832 = vmatmul.bf16.gmra.mxu0 %v673
  %v833 = vpop.f32.mrf.mxu0
  %v834 = vadd.f32 %v511, %v833
  %v835 = vpop.f32.mrf.mxu0
  %v836 = vadd.f32 %v513, %v835
  %837 = vmatmul.bf16.gmra.mxu0 %v676
  %v838 = vpop.f32.mrf.mxu0
  %v839 = vadd.f32 %v516, %v838
  %v840 = vpop.f32.mrf.mxu0
  %v841 = vadd.f32 %v518, %v840
  %842 = vmatmul.bf16.gmra.mxu0 %v679
  %v843 = vpop.f32.mrf.mxu0
  %v844 = vadd.f32 %v521, %v843
  %v845 = vpop.f32.mrf.mxu0
  %v846 = vadd.f32 %v523, %v845
  %847 = vmatmul.bf16.gmra.mxu0 %v682
  %v848 = vpop.f32.mrf.mxu0
  %v849 = vadd.f32 %v526, %v848
  %v850 = vpop.f32.mrf.mxu0
  %v851 = vadd.f32 %v528, %v850
  %852 = vmatmul.bf16.gmra.mxu0 %v685
  %v853 = vpop.f32.mrf.mxu0
  %v854 = vadd.f32 %v531, %v853
  %v855 = vpop.f32.mrf.mxu0
  %v856 = vadd.f32 %v533, %v855
  %857 = vmatmul.bf16.gmra.mxu0 %v688
  %v858 = vpop.f32.mrf.mxu0
  %v859 = vadd.f32 %v536, %v858
  %v860 = vpop.f32.mrf.mxu0
  %v861 = vadd.f32 %v538, %v860
  %862 = vmatmul.bf16.gmra.mxu0 %v691
  %v863 = vpop.f32.mrf.mxu0
  %v864 = vadd.f32 %v541, %v863
  %v865 = vpop.f32.mrf.mxu0
  %v866 = vadd.f32 %v543, %v865
  %867 = vmatmul.bf16.gmra.mxu0 %v694
  %v868 = vpop.f32.mrf.mxu0
  %v869 = vadd.f32 %v546, %v868
  %v870 = vpop.f32.mrf.mxu0
  %v871 = vadd.f32 %v548, %v870
  %872 = vmatmul.bf16.gmra.mxu0 %v697
  %v873 = vpop.f32.mrf.mxu0
  %v874 = vadd.f32 %v551, %v873
  %v875 = vpop.f32.mrf.mxu0
  %v876 = vadd.f32 %v553, %v875
  %877 = vmatmul.bf16.gmra.mxu0 %v700
  %v878 = vpop.f32.mrf.mxu0
  %v879 = vadd.f32 %v556, %v878
  %v880 = vpop.f32.mrf.mxu0
  %v881 = vadd.f32 %v558, %v880
  %882 = vmatmul.bf16.gmra.mxu0 %v703
  %v883 = vpop.f32.mrf.mxu0
  %v884 = vadd.f32 %v561, %v883
  %v885 = vpop.f32.mrf.mxu0
  %v886 = vadd.f32 %v563, %v885
  %887 = vmatmul.bf16.gmra.mxu0 %v706
  %v888 = vpop.f32.mrf.mxu0
  %v889 = vadd.f32 %v566, %v888
  %v890 = vpop.f32.mrf.mxu0
  %v891 = vadd.f32 %v568, %v890
  %892 = vmatmul.bf16.gmra.mxu0 %v709
  %v893 = vpop.f32.mrf.mxu0
  %v894 = vadd.f32 %v571, %v893
  %v895 = vpop.f32.mrf.mxu0
  %v896 = vadd.f32 %v573, %v895
  %897 = vmatmul.bf16.gmra.mxu0 %v712
  %v898 = vpop.f32.mrf.mxu0
  %v899 = vadd.f32 %v576, %v898
  %v900 = vpop.f32.mrf.mxu0
  %v901 = vadd.f32 %v578, %v900
  %902 = vmatmul.bf16.gmra.mxu0 %v715
  %v903 = vpop.f32.mrf.mxu0
  %v904 = vadd.f32 %v581, %v903
  %v905 = vpop.f32.mrf.mxu0
  %v906 = vadd.f32 %v583, %v905
  %907 = vmatmul.bf16.gmra.mxu0 %v718
  %v908 = vpop.f32.mrf.mxu0
  %v909 = vadd.f32 %v586, %v908
  %v910 = vpop.f32.mrf.mxu0
  %v911 = vadd.f32 %v588, %v910
  %912 = vmatmul.bf16.gmra.mxu0 %v721
  %v913 = vpop.f32.mrf.mxu0
  %v914 = vadd.f32 %v591, %v913
  %v915 = vpop.f32.mrf.mxu0
  %v916 = vadd.f32 %v593, %v915
  %917 = vmatmul.bf16.gmra.mxu0 %v724
  %v918 = vpop.f32.mrf.mxu0
  %v919 = vadd.f32 %v596, %v918
  %v920 = vpop.f32.mrf.mxu0
  %v921 = vadd.f32 %v598, %v920
  %922 = vmatmul.bf16.gmra.mxu0 %v727
  %v923 = vpop.f32.mrf.mxu0
  %v924 = vadd.f32 %v601, %v923
  %v925 = vpop.f32.mrf.mxu0
  %v926 = vadd.f32 %v603, %v925
  %927 = vmatmul.bf16.gmra.mxu0 %v730
  %v928 = vpop.f32.mrf.mxu0
  %v929 = vadd.f32 %v606, %v928
  %v930 = vpop.f32.mrf.mxu0
  %v931 = vadd.f32 %v608, %v930
  %932 = vmatmul.bf16.gmra.mxu0 %v733
  %v933 = vpop.f32.mrf.mxu0
  %v934 = vadd.f32 %v611, %v933
  %v935 = vpop.f32.mrf.mxu0
  %v936 = vadd.f32 %v613, %v935
  %937 = vmatmul.bf16.gmra.mxu0 %v736
  %v938 = vpop.f32.mrf.mxu0
  %v939 = vadd.f32 %v616, %v938
  %v940 = vpop.f32.mrf.mxu0
  %v941 = vadd.f32 %v618, %v940
  %942 = vmatmul.bf16.gmra.mxu0 %v739
  %v943 = vpop.f32.mrf.mxu0
  %v944 = vadd.f32 %v621, %v943
  %v945 = vpop.f32.mrf.mxu0
  %946 = vdwg.mxu0
  %v947 = vld [vmem:[%s0 + $0x2] sm:$0xff]
  %v948 = vld [vmem:[%s0 + $0xa] sm:$0xff]
  %v949 = vld [vmem:[%s0 + $0x12] sm:$0xff]
  %v950 = vld [vmem:[%s0 + $0x1a] sm:$0xff]
  %v951 = vld [vmem:[%s0 + $0x22] sm:$0xff]
  %v952 = vld [vmem:[%s0 + $0x2a] sm:$0xff]
  %v953 = vld [vmem:[%s0 + $0x32] sm:$0xff]
  %v954 = vld [vmem:[%s0 + $0x3a] sm:$0xff]
  %v955 = vld [vmem:[%s0 + $0x42] sm:$0xff]
  %v956 = vld [vmem:[%s0 + $0x4a] sm:$0xff]
  %v957 = vld [vmem:[%s0 + $0x52] sm:$0xff]
  %v958 = vld [vmem:[%s0 + $0x5a] sm:$0xff]
  %v959 = vld [vmem:[%s0 + $0x62] sm:$0xff]
  %v960 = vld [vmem:[%s0 + $0x6a] sm:$0xff]
  %v961 = vld [vmem:[%s0 + $0x72] sm:$0xff]
  %v962 = vld [vmem:[%s0 + $0x7a] sm:$0xff]
  %v963 = vld [vmem:[%s0 + $0x82] sm:$0xff]
  %v964 = vld [vmem:[%s0 + $0x8a] sm:$0xff]
  %v965 = vld [vmem:[%s0 + $0x92] sm:$0xff]
  %v966 = vld [vmem:[%s0 + $0x9a] sm:$0xff]
  %v967 = vld [vmem:[%s0 + $0xa2] sm:$0xff]
  %v968 = vld [vmem:[%s0 + $0xaa] sm:$0xff]
  %v969 = vld [vmem:[%s0 + $0xb2] sm:$0xff]
  %v970 = vld [vmem:[%s0 + $0xba] sm:$0xff]
  %v971 = vld [vmem:[%s0 + $0xc2] sm:$0xff]
  %v972 = vld [vmem:[%s0 + $0xca] sm:$0xff]
  %v973 = vld [vmem:[%s0 + $0xd2] sm:$0xff]
  %v974 = vld [vmem:[%s0 + $0xda] sm:$0xff]
  %v975 = vld [vmem:[%s0 + $0xe2] sm:$0xff]
  %v976 = vld [vmem:[%s0 + $0xea] sm:$0xff]
  %v977 = vld [vmem:[%s0 + $0xf2] sm:$0xff]
  %v978 = vld [vmem:[%s0 + $0xfa] sm:$0xff]
  %v979 = vld [vmem:[%s0 + $0x102] sm:$0xff]
  %v980 = vld [vmem:[%s0 + $0x10a] sm:$0xff]
  %v981 = vld [vmem:[%s0 + $0x112] sm:$0xff]
  %v982 = vld [vmem:[%s0 + $0x11a] sm:$0xff]
  %v983 = vld [vmem:[%s0 + $0x122] sm:$0xff]
  %v984 = vld [vmem:[%s0 + $0x12a] sm:$0xff]
  %v985 = vld [vmem:[%s0 + $0x132] sm:$0xff]
  %v986 = vld [vmem:[%s0 + $0x13a] sm:$0xff]
  %v987 = vld [vmem:[%s0 + $0x142] sm:$0xff]
  %v988 = vld [vmem:[%s0 + $0x14a] sm:$0xff]
  %v989 = vld [vmem:[%s0 + $0x152] sm:$0xff]
  %v990 = vld [vmem:[%s0 + $0x15a] sm:$0xff]
  %v991 = vld [vmem:[%s0 + $0x162] sm:$0xff]
  %v992 = vld [vmem:[%s0 + $0x16a] sm:$0xff]
  %v993 = vld [vmem:[%s0 + $0x172] sm:$0xff]
  %v994 = vld [vmem:[%s0 + $0x17a] sm:$0xff]
  %v995 = vld [vmem:[%s0 + $0x182] sm:$0xff]
  %v996 = vld [vmem:[%s0 + $0x18a] sm:$0xff]
  %v997 = vld [vmem:[%s0 + $0x192] sm:$0xff]
  %v998 = vld [vmem:[%s0 + $0x19a] sm:$0xff]
  %v999 = vld [vmem:[%s0 + $0x1a2] sm:$0xff]
  %v1000 = vld [vmem:[%s0 + $0x1aa] sm:$0xff]
  %v1001 = vld [vmem:[%s0 + $0x1b2] sm:$0xff]
  %v1002 = vld [vmem:[%s0 + $0x1ba] sm:$0xff]
  %v1003 = vld [vmem:[%s0 + $0x1c2] sm:$0xff]
  %v1004 = vld [vmem:[%s0 + $0x1ca] sm:$0xff]
  %v1005 = vld [vmem:[%s0 + $0x1d2] sm:$0xff]
  %v1006 = vld [vmem:[%s0 + $0x1da] sm:$0xff]
  %v1007 = vld [vmem:[%s0 + $0x1e2] sm:$0xff]
  %v1008 = vld [vmem:[%s0 + $0x1ea] sm:$0xff]
  %v1009 = vld [vmem:[%s0 + $0x1f2] sm:$0xff]
  %v1010 = vld [vmem:[%s0 + $0x1fa] sm:$0xff]
  %v1011 = vld [vmem:[%s0 + $0x202] sm:$0xff]
  %v1012 = vld [vmem:[%s0 + $0x20a] sm:$0xff]
  %v1013 = vld [vmem:[%s0 + $0x212] sm:$0xff]
  %v1014 = vld [vmem:[%s0 + $0x21a] sm:$0xff]
  %v1015 = vld [vmem:[%s0 + $0x222] sm:$0xff]
  %v1016 = vld [vmem:[%s0 + $0x22a] sm:$0xff]
  %v1017 = vld [vmem:[%s0 + $0x232] sm:$0xff]
  %v1018 = vld [vmem:[%s0 + $0x23a] sm:$0xff]
  %v1019 = vld [vmem:[%s0 + $0x242] sm:$0xff]
  %v1020 = vld [vmem:[%s0 + $0x24a] sm:$0xff]
  %v1021 = vld [vmem:[%s0 + $0x252] sm:$0xff]
  %v1022 = vld [vmem:[%s0 + $0x25a] sm:$0xff]
  %v1023 = vld [vmem:[%s0 + $0x262] sm:$0xf]
  %v1024 = vpack.c.bf16 %v948, %v947
  %v1025 = vpack.c.bf16 %v950, %v949
  %v1026 = vpack.c.bf16 %v952, %v951
  %v1027 = vpack.c.bf16 %v954, %v953
  %v1028 = vpack.c.bf16 %v956, %v955
  %v1029 = vpack.c.bf16 %v958, %v957
  %v1030 = vpack.c.bf16 %v960, %v959
  %v1031 = vpack.c.bf16 %v962, %v961
  %v1032 = vpack.c.bf16 %v964, %v963
  %v1033 = vpack.c.bf16 %v966, %v965
  %v1034 = vpack.c.bf16 %v968, %v967
  %v1035 = vpack.c.bf16 %v970, %v969
  %v1036 = vpack.c.bf16 %v972, %v971
  %v1037 = vpack.c.bf16 %v974, %v973
  %v1038 = vpack.c.bf16 %v976, %v975
  %v1039 = vpack.c.bf16 %v978, %v977
  %v1040 = vpack.c.bf16 %v980, %v979
  %v1041 = vpack.c.bf16 %v982, %v981
  %v1042 = vpack.c.bf16 %v984, %v983
  %v1043 = vpack.c.bf16 %v986, %v985
  %v1044 = vpack.c.bf16 %v988, %v987
  %v1045 = vpack.c.bf16 %v990, %v989
  %v1046 = vpack.c.bf16 %v992, %v991
  %v1047 = vpack.c.bf16 %v994, %v993
  %v1048 = vpack.c.bf16 %v996, %v995
  %v1049 = vpack.c.bf16 %v998, %v997
  %v1050 = vpack.c.bf16 %v1000, %v999
  %v1051 = vpack.c.bf16 %v1002, %v1001
  %v1052 = vpack.c.bf16 %v1004, %v1003
  %v1053 = vpack.c.bf16 %v1006, %v1005
  %v1054 = vpack.c.bf16 %v1008, %v1007
  %v1055 = vpack.c.bf16 %v1010, %v1009
  %v1056 = vpack.c.bf16 %v1012, %v1011
  %v1057 = vpack.c.bf16 %v1014, %v1013
  %v1058 = vpack.c.bf16 %v1016, %v1015
  %v1059 = vpack.c.bf16 %v1018, %v1017
  %v1060 = vpack.c.bf16 %v1020, %v1019
  %v1061 = vpack.c.bf16 %v1022, %v1021
  %v1062 = vpack.c.bf16 %v1023, %v1023
  %v1063 = vld [vmem:[%s1 + $0x8] sm:$0xf]
  %v1065 = vsel %vm39, %v1024, 0
  %v1068 = vsel %vm39, %v1025, 0
  %v1071 = vsel %vm39, %v1026, 0
  %v1074 = vsel %vm39, %v1027, 0
  %v1077 = vsel %vm39, %v1028, 0
  %v1080 = vsel %vm39, %v1029, 0
  %v1083 = vsel %vm39, %v1030, 0
  %v1086 = vsel %vm39, %v1031, 0
  %v1089 = vsel %vm39, %v1032, 0
  %v1092 = vsel %vm39, %v1033, 0
  %v1095 = vsel %vm39, %v1034, 0
  %v1098 = vsel %vm39, %v1035, 0
  %v1101 = vsel %vm39, %v1036, 0
  %v1104 = vsel %vm39, %v1037, 0
  %v1107 = vsel %vm39, %v1038, 0
  %v1110 = vsel %vm39, %v1039, 0
  %v1113 = vsel %vm39, %v1040, 0
  %v1116 = vsel %vm39, %v1041, 0
  %v1119 = vsel %vm39, %v1042, 0
  %v1122 = vsel %vm39, %v1043, 0
  %v1125 = vsel %vm39, %v1044, 0
  %v1128 = vsel %vm39, %v1045, 0
  %v1131 = vsel %vm39, %v1046, 0
  %v1134 = vsel %vm39, %v1047, 0
  %v1137 = vsel %vm39, %v1048, 0
  %v1140 = vsel %vm39, %v1049, 0
  %v1143 = vsel %vm39, %v1050, 0
  %v1146 = vsel %vm39, %v1051, 0
  %v1149 = vsel %vm39, %v1052, 0
  %v1152 = vsel %vm39, %v1053, 0
  %v1155 = vsel %vm39, %v1054, 0
  %v1158 = vsel %vm39, %v1055, 0
  %v1161 = vsel %vm39, %v1056, 0
  %v1164 = vsel %vm39, %v1057, 0
  %v1167 = vsel %vm39, %v1058, 0
  %v1170 = vsel %vm39, %v1059, 0
  %v1173 = vsel %vm39, %v1060, 0
  %v1176 = vsel %vm39, %v1061, 0
  %v1179 = vsel %vm39, %v1062, 0
  %v1182 = vsel %vm417, %v1063, 0
  %1184 = vmatpush.bf16.msra.mxu0 0
  %1185 = vmatpush.bf16.msra.mxu0 0
  %1186 = vmatpush.bf16.msra.mxu0 0
  %1187 = vmatpush.bf16.msra.mxu0 0
  %1188 = vmatpush.bf16.msra.mxu0 0
  %1189 = vmatpush.bf16.msra.mxu0 0
  %1190 = vmatpush.bf16.msra.mxu0 0
  %1191 = vmatpush.bf16.msra.mxu0 %v1182
  %1192 = vmatmul.bf16.gmra.mxu0 %v1065
  %v1193 = vpop.f32.mrf.mxu0
  %v1194 = vadd.f32 0.0, %v1193
  %v1195 = vpop.f32.mrf.mxu0
  %v1196 = vadd.f32 0.0, %v1195
  %1197 = vmatmul.bf16.gmra.mxu0 %v1068
  %v1198 = vpop.f32.mrf.mxu0
  %v1199 = vadd.f32 0.0, %v1198
  %v1200 = vpop.f32.mrf.mxu0
  %v1201 = vadd.f32 0.0, %v1200
  %1202 = vmatmul.bf16.gmra.mxu0 %v1071
  %v1203 = vpop.f32.mrf.mxu0
  %v1204 = vadd.f32 0.0, %v1203
  %v1205 = vpop.f32.mrf.mxu0
  %v1206 = vadd.f32 0.0, %v1205
  %1207 = vmatmul.bf16.gmra.mxu0 %v1074
  %v1208 = vpop.f32.mrf.mxu0
  %v1209 = vadd.f32 0.0, %v1208
  %v1210 = vpop.f32.mrf.mxu0
  %v1211 = vadd.f32 0.0, %v1210
  %1212 = vmatmul.bf16.gmra.mxu0 %v1077
  %v1213 = vpop.f32.mrf.mxu0
  %v1214 = vadd.f32 0.0, %v1213
  %v1215 = vpop.f32.mrf.mxu0
  %v1216 = vadd.f32 0.0, %v1215
  %1217 = vmatmul.bf16.gmra.mxu0 %v1080
  %v1218 = vpop.f32.mrf.mxu0
  %v1219 = vadd.f32 0.0, %v1218
  %v1220 = vpop.f32.mrf.mxu0
  %v1221 = vadd.f32 0.0, %v1220
  %1222 = vmatmul.bf16.gmra.mxu0 %v1083
  %v1223 = vpop.f32.mrf.mxu0
  %v1224 = vadd.f32 0.0, %v1223
  %v1225 = vpop.f32.mrf.mxu0
  %v1226 = vadd.f32 0.0, %v1225
  %1227 = vmatmul.bf16.gmra.mxu0 %v1086
  %v1228 = vpop.f32.mrf.mxu0
  %v1229 = vadd.f32 0.0, %v1228
  %v1230 = vpop.f32.mrf.mxu0
  %v1231 = vadd.f32 0.0, %v1230
  %1232 = vmatmul.bf16.gmra.mxu0 %v1089
  %v1233 = vpop.f32.mrf.mxu0
  %v1234 = vadd.f32 0.0, %v1233
  %v1235 = vpop.f32.mrf.mxu0
  %v1236 = vadd.f32 0.0, %v1235
  %1237 = vmatmul.bf16.gmra.mxu0 %v1092
  %v1238 = vpop.f32.mrf.mxu0
  %v1239 = vadd.f32 0.0, %v1238
  %v1240 = vpop.f32.mrf.mxu0
  %v1241 = vadd.f32 0.0, %v1240
  %1242 = vmatmul.bf16.gmra.mxu0 %v1095
  %v1243 = vpop.f32.mrf.mxu0
  %v1244 = vadd.f32 0.0, %v1243
  %v1245 = vpop.f32.mrf.mxu0
  %v1246 = vadd.f32 0.0, %v1245
  %1247 = vmatmul.bf16.gmra.mxu0 %v1098
  %v1248 = vpop.f32.mrf.mxu0
  %v1249 = vadd.f32 0.0, %v1248
  %v1250 = vpop.f32.mrf.mxu0
  %v1251 = vadd.f32 0.0, %v1250
  %1252 = vmatmul.bf16.gmra.mxu0 %v1101
  %v1253 = vpop.f32.mrf.mxu0
  %v1254 = vadd.f32 0.0, %v1253
  %v1255 = vpop.f32.mrf.mxu0
  %v1256 = vadd.f32 0.0, %v1255
  %1257 = vmatmul.bf16.gmra.mxu0 %v1104
  %v1258 = vpop.f32.mrf.mxu0
  %v1259 = vadd.f32 0.0, %v1258
  %v1260 = vpop.f32.mrf.mxu0
  %v1261 = vadd.f32 0.0, %v1260
  %1262 = vmatmul.bf16.gmra.mxu0 %v1107
  %v1263 = vpop.f32.mrf.mxu0
  %v1264 = vadd.f32 0.0, %v1263
  %v1265 = vpop.f32.mrf.mxu0
  %v1266 = vadd.f32 0.0, %v1265
  %1267 = vmatmul.bf16.gmra.mxu0 %v1110
  %v1268 = vpop.f32.mrf.mxu0
  %v1269 = vadd.f32 0.0, %v1268
  %v1270 = vpop.f32.mrf.mxu0
  %v1271 = vadd.f32 0.0, %v1270
  %1272 = vmatmul.bf16.gmra.mxu0 %v1113
  %v1273 = vpop.f32.mrf.mxu0
  %v1274 = vadd.f32 0.0, %v1273
  %v1275 = vpop.f32.mrf.mxu0
  %v1276 = vadd.f32 0.0, %v1275
  %1277 = vmatmul.bf16.gmra.mxu0 %v1116
  %v1278 = vpop.f32.mrf.mxu0
  %v1279 = vadd.f32 0.0, %v1278
  %v1280 = vpop.f32.mrf.mxu0
  %v1281 = vadd.f32 0.0, %v1280
  %1282 = vmatmul.bf16.gmra.mxu0 %v1119
  %v1283 = vpop.f32.mrf.mxu0
  %v1284 = vadd.f32 0.0, %v1283
  %v1285 = vpop.f32.mrf.mxu0
  %v1286 = vadd.f32 0.0, %v1285
  %1287 = vmatmul.bf16.gmra.mxu0 %v1122
  %v1288 = vpop.f32.mrf.mxu0
  %v1289 = vadd.f32 0.0, %v1288
  %v1290 = vpop.f32.mrf.mxu0
  %v1291 = vadd.f32 0.0, %v1290
  %1292 = vmatmul.bf16.gmra.mxu0 %v1125
  %v1293 = vpop.f32.mrf.mxu0
  %v1294 = vadd.f32 0.0, %v1293
  %v1295 = vpop.f32.mrf.mxu0
  %v1296 = vadd.f32 0.0, %v1295
  %1297 = vmatmul.bf16.gmra.mxu0 %v1128
  %v1298 = vpop.f32.mrf.mxu0
  %v1299 = vadd.f32 0.0, %v1298
  %v1300 = vpop.f32.mrf.mxu0
  %v1301 = vadd.f32 0.0, %v1300
  %1302 = vmatmul.bf16.gmra.mxu0 %v1131
  %v1303 = vpop.f32.mrf.mxu0
  %v1304 = vadd.f32 0.0, %v1303
  %v1305 = vpop.f32.mrf.mxu0
  %v1306 = vadd.f32 0.0, %v1305
  %1307 = vmatmul.bf16.gmra.mxu0 %v1134
  %v1308 = vpop.f32.mrf.mxu0
  %v1309 = vadd.f32 0.0, %v1308
  %v1310 = vpop.f32.mrf.mxu0
  %v1311 = vadd.f32 0.0, %v1310
  %1312 = vmatmul.bf16.gmra.mxu0 %v1137
  %v1313 = vpop.f32.mrf.mxu0
  %v1314 = vadd.f32 0.0, %v1313
  %v1315 = vpop.f32.mrf.mxu0
  %v1316 = vadd.f32 0.0, %v1315
  %1317 = vmatmul.bf16.gmra.mxu0 %v1140
  %v1318 = vpop.f32.mrf.mxu0
  %v1319 = vadd.f32 0.0, %v1318
  %v1320 = vpop.f32.mrf.mxu0
  %v1321 = vadd.f32 0.0, %v1320
  %1322 = vmatmul.bf16.gmra.mxu0 %v1143
  %v1323 = vpop.f32.mrf.mxu0
  %v1324 = vadd.f32 0.0, %v1323
  %v1325 = vpop.f32.mrf.mxu0
  %v1326 = vadd.f32 0.0, %v1325
  %1327 = vmatmul.bf16.gmra.mxu0 %v1146
  %v1328 = vpop.f32.mrf.mxu0
  %v1329 = vadd.f32 0.0, %v1328
  %v1330 = vpop.f32.mrf.mxu0
  %v1331 = vadd.f32 0.0, %v1330
  %1332 = vmatmul.bf16.gmra.mxu0 %v1149
  %v1333 = vpop.f32.mrf.mxu0
  %v1334 = vadd.f32 0.0, %v1333
  %v1335 = vpop.f32.mrf.mxu0
  %v1336 = vadd.f32 0.0, %v1335
  %1337 = vmatmul.bf16.gmra.mxu0 %v1152
  %v1338 = vpop.f32.mrf.mxu0
  %v1339 = vadd.f32 0.0, %v1338
  %v1340 = vpop.f32.mrf.mxu0
  %v1341 = vadd.f32 0.0, %v1340
  %1342 = vmatmul.bf16.gmra.mxu0 %v1155
  %v1343 = vpop.f32.mrf.mxu0
  %v1344 = vadd.f32 0.0, %v1343
  %v1345 = vpop.f32.mrf.mxu0
  %v1346 = vadd.f32 0.0, %v1345
  %1347 = vmatmul.bf16.gmra.mxu0 %v1158
  %v1348 = vpop.f32.mrf.mxu0
  %v1349 = vadd.f32 0.0, %v1348
  %v1350 = vpop.f32.mrf.mxu0
  %v1351 = vadd.f32 0.0, %v1350
  %1352 = vmatmul.bf16.gmra.mxu0 %v1161
  %v1353 = vpop.f32.mrf.mxu0
  %v1354 = vadd.f32 0.0, %v1353
  %v1355 = vpop.f32.mrf.mxu0
  %v1356 = vadd.f32 0.0, %v1355
  %1357 = vmatmul.bf16.gmra.mxu0 %v1164
  %v1358 = vpop.f32.mrf.mxu0
  %v1359 = vadd.f32 0.0, %v1358
  %v1360 = vpop.f32.mrf.mxu0
  %v1361 = vadd.f32 0.0, %v1360
  %1362 = vmatmul.bf16.gmra.mxu0 %v1167
  %v1363 = vpop.f32.mrf.mxu0
  %v1364 = vadd.f32 0.0, %v1363
  %v1365 = vpop.f32.mrf.mxu0
  %v1366 = vadd.f32 0.0, %v1365
  %1367 = vmatmul.bf16.gmra.mxu0 %v1170
  %v1368 = vpop.f32.mrf.mxu0
  %v1369 = vadd.f32 0.0, %v1368
  %v1370 = vpop.f32.mrf.mxu0
  %v1371 = vadd.f32 0.0, %v1370
  %1372 = vmatmul.bf16.gmra.mxu0 %v1173
  %v1373 = vpop.f32.mrf.mxu0
  %v1374 = vadd.f32 0.0, %v1373
  %v1375 = vpop.f32.mrf.mxu0
  %v1376 = vadd.f32 0.0, %v1375
  %1377 = vmatmul.bf16.gmra.mxu0 %v1176
  %v1378 = vpop.f32.mrf.mxu0
  %v1379 = vadd.f32 0.0, %v1378
  %v1380 = vpop.f32.mrf.mxu0
  %v1381 = vadd.f32 0.0, %v1380
  %1382 = vmatmul.bf16.gmra.mxu0 %v1179
  %v1383 = vpop.f32.mrf.mxu0
  %v1384 = vadd.f32 0.0, %v1383
  %v1385 = vpop.f32.mrf.mxu0
  %1386 = vdwg.mxu0
  %v1387 = vadd.f32 %v754, %v1194
  %v1388 = vadd.f32 %v756, %v1196
  %v1389 = vadd.f32 %v759, %v1199
  %v1390 = vadd.f32 %v761, %v1201
  %v1391 = vadd.f32 %v764, %v1204
  %v1392 = vadd.f32 %v766, %v1206
  %v1393 = vadd.f32 %v769, %v1209
  %v1394 = vadd.f32 %v771, %v1211
  %v1395 = vadd.f32 %v774, %v1214
  %v1396 = vadd.f32 %v776, %v1216
  %v1397 = vadd.f32 %v779, %v1219
  %v1398 = vadd.f32 %v781, %v1221
  %v1399 = vadd.f32 %v784, %v1224
  %v1400 = vadd.f32 %v786, %v1226
  %v1401 = vadd.f32 %v789, %v1229
  %v1402 = vadd.f32 %v791, %v1231
  %v1403 = vadd.f32 %v794, %v1234
  %v1404 = vadd.f32 %v796, %v1236
  %v1405 = vadd.f32 %v799, %v1239
  %v1406 = vadd.f32 %v801, %v1241
  %v1407 = vadd.f32 %v804, %v1244
  %v1408 = vadd.f32 %v806, %v1246
  %v1409 = vadd.f32 %v809, %v1249
  %v1410 = vadd.f32 %v811, %v1251
  %v1411 = vadd.f32 %v814, %v1254
  %v1412 = vadd.f32 %v816, %v1256
  %v1413 = vadd.f32 %v819, %v1259
  %v1414 = vadd.f32 %v821, %v1261
  %v1415 = vadd.f32 %v824, %v1264
  %v1416 = vadd.f32 %v826, %v1266
  %v1417 = vadd.f32 %v829, %v1269
  %v1418 = vadd.f32 %v831, %v1271
  %v1419 = vadd.f32 %v834, %v1274
  %v1420 = vadd.f32 %v836, %v1276
  %v1421 = vadd.f32 %v839, %v1279
  %v1422 = vadd.f32 %v841, %v1281
  %v1423 = vadd.f32 %v844, %v1284
  %v1424 = vadd.f32 %v846, %v1286
  %v1425 = vadd.f32 %v849, %v1289
  %v1426 = vadd.f32 %v851, %v1291
  %v1427 = vadd.f32 %v854, %v1294
  %v1428 = vadd.f32 %v856, %v1296
  %v1429 = vadd.f32 %v859, %v1299
  %v1430 = vadd.f32 %v861, %v1301
  %v1431 = vadd.f32 %v864, %v1304
  %v1432 = vadd.f32 %v866, %v1306
  %v1433 = vadd.f32 %v869, %v1309
  %v1434 = vadd.f32 %v871, %v1311
  %v1435 = vadd.f32 %v874, %v1314
  %v1436 = vadd.f32 %v876, %v1316
  %v1437 = vadd.f32 %v879, %v1319
  %v1438 = vadd.f32 %v881, %v1321
  %v1439 = vadd.f32 %v884, %v1324
  %v1440 = vadd.f32 %v886, %v1326
  %v1441 = vadd.f32 %v889, %v1329
  %v1442 = vadd.f32 %v891, %v1331
  %v1443 = vadd.f32 %v894, %v1334
  %v1444 = vadd.f32 %v896, %v1336
  %v1445 = vadd.f32 %v899, %v1339
  %v1446 = vadd.f32 %v901, %v1341
  %v1447 = vadd.f32 %v904, %v1344
  %v1448 = vadd.f32 %v906, %v1346
  %v1449 = vadd.f32 %v909, %v1349
  %v1450 = vadd.f32 %v911, %v1351
  %v1451 = vadd.f32 %v914, %v1354
  %v1452 = vadd.f32 %v916, %v1356
  %v1453 = vadd.f32 %v919, %v1359
  %v1454 = vadd.f32 %v921, %v1361
  %v1455 = vadd.f32 %v924, %v1364
  %v1456 = vadd.f32 %v926, %v1366
  %v1457 = vadd.f32 %v929, %v1369
  %v1458 = vadd.f32 %v931, %v1371
  %v1459 = vadd.f32 %v934, %v1374
  %v1460 = vadd.f32 %v936, %v1376
  %v1461 = vadd.f32 %v939, %v1379
  %v1462 = vadd.f32 %v941, %v1381
  %v1463 = vadd.f32 %v944, %v1384
  %v1464 = vld [vmem:[%s0 + $0x12] sm:$0xff]
  %v1465 = vld [vmem:[%s0 + $0x1a] sm:$0xff]
  %v1466 = vld [vmem:[%s0 + $0x22] sm:$0xff]
  %v1467 = vld [vmem:[%s0 + $0x2a] sm:$0xff]
  %v1468 = vld [vmem:[%s0 + $0x32] sm:$0xff]
  %v1469 = vld [vmem:[%s0 + $0x3a] sm:$0xff]
  %v1470 = vld [vmem:[%s0 + $0x42] sm:$0xff]
  %v1471 = vld [vmem:[%s0 + $0x4a] sm:$0xff]
  %v1472 = vld [vmem:[%s0 + $0x52] sm:$0xff]
  %v1473 = vld [vmem:[%s0 + $0x5a] sm:$0xff]
  %v1474 = vld [vmem:[%s0 + $0x62] sm:$0xff]
  %v1475 = vld [vmem:[%s0 + $0x6a] sm:$0xff]
  %v1476 = vld [vmem:[%s0 + $0x72] sm:$0xff]
  %v1477 = vld [vmem:[%s0 + $0x7a] sm:$0xff]
  %v1478 = vld [vmem:[%s0 + $0x82] sm:$0xff]
  %v1479 = vld [vmem:[%s0 + $0x8a] sm:$0xff]
  %v1480 = vld [vmem:[%s0 + $0x92] sm:$0xff]
  %v1481 = vld [vmem:[%s0 + $0x9a] sm:$0xff]
  %v1482 = vld [vmem:[%s0 + $0xa2] sm:$0xff]
  %v1483 = vld [vmem:[%s0 + $0xaa] sm:$0xff]
  %v1484 = vld [vmem:[%s0 + $0xb2] sm:$0xff]
  %v1485 = vld [vmem:[%s0 + $0xba] sm:$0xff]
  %v1486 = vld [vmem:[%s0 + $0xc2] sm:$0xff]
  %v1487 = vld [vmem:[%s0 + $0xca] sm:$0xff]
  %v1488 = vld [vmem:[%s0 + $0xd2] sm:$0xff]
  %v1489 = vld [vmem:[%s0 + $0xda] sm:$0xff]
  %v1490 = vld [vmem:[%s0 + $0xe2] sm:$0xff]
  %v1491 = vld [vmem:[%s0 + $0xea] sm:$0xff]
  %v1492 = vld [vmem:[%s0 + $0xf2] sm:$0xff]
  %v1493 = vld [vmem:[%s0 + $0xfa] sm:$0xff]
  %v1494 = vld [vmem:[%s0 + $0x102] sm:$0xff]
  %v1495 = vld [vmem:[%s0 + $0x10a] sm:$0xff]
  %v1496 = vld [vmem:[%s0 + $0x112] sm:$0xff]
  %v1497 = vld [vmem:[%s0 + $0x11a] sm:$0xff]
  %v1498 = vld [vmem:[%s0 + $0x122] sm:$0xff]
  %v1499 = vld [vmem:[%s0 + $0x12a] sm:$0xff]
  %v1500 = vld [vmem:[%s0 + $0x132] sm:$0xff]
  %v1501 = vld [vmem:[%s0 + $0x13a] sm:$0xff]
  %v1502 = vld [vmem:[%s0 + $0x142] sm:$0xff]
  %v1503 = vld [vmem:[%s0 + $0x14a] sm:$0xff]
  %v1504 = vld [vmem:[%s0 + $0x152] sm:$0xff]
  %v1505 = vld [vmem:[%s0 + $0x15a] sm:$0xff]
  %v1506 = vld [vmem:[%s0 + $0x162] sm:$0xff]
  %v1507 = vld [vmem:[%s0 + $0x16a] sm:$0xff]
  %v1508 = vld [vmem:[%s0 + $0x172] sm:$0xff]
  %v1509 = vld [vmem:[%s0 + $0x17a] sm:$0xff]
  %v1510 = vld [vmem:[%s0 + $0x182] sm:$0xff]
  %v1511 = vld [vmem:[%s0 + $0x18a] sm:$0xff]
  %v1512 = vld [vmem:[%s0 + $0x192] sm:$0xff]
  %v1513 = vld [vmem:[%s0 + $0x19a] sm:$0xff]
  %v1514 = vld [vmem:[%s0 + $0x1a2] sm:$0xff]
  %v1515 = vld [vmem:[%s0 + $0x1aa] sm:$0xff]
  %v1516 = vld [vmem:[%s0 + $0x1b2] sm:$0xff]
  %v1517 = vld [vmem:[%s0 + $0x1ba] sm:$0xff]
  %v1518 = vld [vmem:[%s0 + $0x1c2] sm:$0xff]
  %v1519 = vld [vmem:[%s0 + $0x1ca] sm:$0xff]
  %v1520 = vld [vmem:[%s0 + $0x1d2] sm:$0xff]
  %v1521 = vld [vmem:[%s0 + $0x1da] sm:$0xff]
  %v1522 = vld [vmem:[%s0 + $0x1e2] sm:$0xff]
  %v1523 = vld [vmem:[%s0 + $0x1ea] sm:$0xff]
  %v1524 = vld [vmem:[%s0 + $0x1f2] sm:$0xff]
  %v1525 = vld [vmem:[%s0 + $0x1fa] sm:$0xff]
  %v1526 = vld [vmem:[%s0 + $0x202] sm:$0xff]
  %v1527 = vld [vmem:[%s0 + $0x20a] sm:$0xff]
  %v1528 = vld [vmem:[%s0 + $0x212] sm:$0xff]
  %v1529 = vld [vmem:[%s0 + $0x21a] sm:$0xff]
  %v1530 = vld [vmem:[%s0 + $0x222] sm:$0xff]
  %v1531 = vld [vmem:[%s0 + $0x22a] sm:$0xff]
  %v1532 = vld [vmem:[%s0 + $0x232] sm:$0xff]
  %v1533 = vld [vmem:[%s0 + $0x23a] sm:$0xff]
  %v1534 = vld [vmem:[%s0 + $0x242] sm:$0xff]
  %v1535 = vld [vmem:[%s0 + $0x24a] sm:$0xff]
  %v1536 = vld [vmem:[%s0 + $0x252] sm:$0xff]
  %v1537 = vld [vmem:[%s0 + $0x25a] sm:$0xff]
  %v1538 = vld [vmem:[%s0 + $0x262] sm:$0xff]
  %v1539 = vld [vmem:[%s0 + $0x26a] sm:$0xff]
  %v1540 = vld [vmem:[%s0 + $0x272] sm:$0xf]
  %v1541 = vpack.c.bf16 %v1465, %v1464
  %v1542 = vpack.c.bf16 %v1467, %v1466
  %v1543 = vpack.c.bf16 %v1469, %v1468
  %v1544 = vpack.c.bf16 %v1471, %v1470
  %v1545 = vpack.c.bf16 %v1473, %v1472
  %v1546 = vpack.c.bf16 %v1475, %v1474
  %v1547 = vpack.c.bf16 %v1477, %v1476
  %v1548 = vpack.c.bf16 %v1479, %v1478
  %v1549 = vpack.c.bf16 %v1481, %v1480
  %v1550 = vpack.c.bf16 %v1483, %v1482
  %v1551 = vpack.c.bf16 %v1485, %v1484
  %v1552 = vpack.c.bf16 %v1487, %v1486
  %v1553 = vpack.c.bf16 %v1489, %v1488
  %v1554 = vpack.c.bf16 %v1491, %v1490
  %v1555 = vpack.c.bf16 %v1493, %v1492
  %v1556 = vpack.c.bf16 %v1495, %v1494
  %v1557 = vpack.c.bf16 %v1497, %v1496
  %v1558 = vpack.c.bf16 %v1499, %v1498
  %v1559 = vpack.c.bf16 %v1501, %v1500
  %v1560 = vpack.c.bf16 %v1503, %v1502
  %v1561 = vpack.c.bf16 %v1505, %v1504
  %v1562 = vpack.c.bf16 %v1507, %v1506
  %v1563 = vpack.c.bf16 %v1509, %v1508
  %v1564 = vpack.c.bf16 %v1511, %v1510
  %v1565 = vpack.c.bf16 %v1513, %v1512
  %v1566 = vpack.c.bf16 %v1515, %v1514
  %v1567 = vpack.c.bf16 %v1517, %v1516
  %v1568 = vpack.c.bf16 %v1519, %v1518
  %v1569 = vpack.c.bf16 %v1521, %v1520
  %v1570 = vpack.c.bf16 %v1523, %v1522
  %v1571 = vpack.c.bf16 %v1525, %v1524
  %v1572 = vpack.c.bf16 %v1527, %v1526
  %v1573 = vpack.c.bf16 %v1529, %v1528
  %v1574 = vpack.c.bf16 %v1531, %v1530
  %v1575 = vpack.c.bf16 %v1533, %v1532
  %v1576 = vpack.c.bf16 %v1535, %v1534
  %v1577 = vpack.c.bf16 %v1537, %v1536
  %v1578 = vpack.c.bf16 %v1539, %v1538
  %v1579 = vpack.c.bf16 %v1540, %v1540
  %v1580 = vld [vmem:[%s1 + $0xc] sm:$0xf]
  %v1582 = vsel %vm39, %v1541, 0
  %v1585 = vsel %vm39, %v1542, 0
  %v1588 = vsel %vm39, %v1543, 0
  %v1591 = vsel %vm39, %v1544, 0
  %v1594 = vsel %vm39, %v1545, 0
  %v1597 = vsel %vm39, %v1546, 0
  %v1600 = vsel %vm39, %v1547, 0
  %v1603 = vsel %vm39, %v1548, 0
  %v1606 = vsel %vm39, %v1549, 0
  %v1609 = vsel %vm39, %v1550, 0
  %v1612 = vsel %vm39, %v1551, 0
  %v1615 = vsel %vm39, %v1552, 0
  %v1618 = vsel %vm39, %v1553, 0
  %v1621 = vsel %vm39, %v1554, 0
  %v1624 = vsel %vm39, %v1555, 0
  %v1627 = vsel %vm39, %v1556, 0
  %v1630 = vsel %vm39, %v1557, 0
  %v1633 = vsel %vm39, %v1558, 0
  %v1636 = vsel %vm39, %v1559, 0
  %v1639 = vsel %vm39, %v1560, 0
  %v1642 = vsel %vm39, %v1561, 0
  %v1645 = vsel %vm39, %v1562, 0
  %v1648 = vsel %vm39, %v1563, 0
  %v1651 = vsel %vm39, %v1564, 0
  %v1654 = vsel %vm39, %v1565, 0
  %v1657 = vsel %vm39, %v1566, 0
  %v1660 = vsel %vm39, %v1567, 0
  %v1663 = vsel %vm39, %v1568, 0
  %v1666 = vsel %vm39, %v1569, 0
  %v1669 = vsel %vm39, %v1570, 0
  %v1672 = vsel %vm39, %v1571, 0
  %v1675 = vsel %vm39, %v1572, 0
  %v1678 = vsel %vm39, %v1573, 0
  %v1681 = vsel %vm39, %v1574, 0
  %v1684 = vsel %vm39, %v1575, 0
  %v1687 = vsel %vm39, %v1576, 0
  %v1690 = vsel %vm39, %v1577, 0
  %v1693 = vsel %vm39, %v1578, 0
  %v1696 = vsel %vm39, %v1579, 0
  %v1699 = vsel %vm417, %v1580, 0
  %1701 = vmatpush.bf16.msra.mxu0 0
  %1702 = vmatpush.bf16.msra.mxu0 0
  %1703 = vmatpush.bf16.msra.mxu0 0
  %1704 = vmatpush.bf16.msra.mxu0 0
  %1705 = vmatpush.bf16.msra.mxu0 0
  %1706 = vmatpush.bf16.msra.mxu0 0
  %1707 = vmatpush.bf16.msra.mxu0 0
  %1708 = vmatpush.bf16.msra.mxu0 %v1699
  %1709 = vmatmul.bf16.gmra.mxu0 %v1582
  %v1710 = vpop.f32.mrf.mxu0
  %v1711 = vadd.f32 0.0, %v1710
  %v1712 = vpop.f32.mrf.mxu0
  %v1713 = vadd.f32 0.0, %v1712
  %1714 = vmatmul.bf16.gmra.mxu0 %v1585
  %v1715 = vpop.f32.mrf.mxu0
  %v1716 = vadd.f32 0.0, %v1715
  %v1717 = vpop.f32.mrf.mxu0
  %v1718 = vadd.f32 0.0, %v1717
  %1719 = vmatmul.bf16.gmra.mxu0 %v1588
  %v1720 = vpop.f32.mrf.mxu0
  %v1721 = vadd.f32 0.0, %v1720
  %v1722 = vpop.f32.mrf.mxu0
  %v1723 = vadd.f32 0.0, %v1722
  %1724 = vmatmul.bf16.gmra.mxu0 %v1591
  %v1725 = vpop.f32.mrf.mxu0
  %v1726 = vadd.f32 0.0, %v1725
  %v1727 = vpop.f32.mrf.mxu0
  %v1728 = vadd.f32 0.0, %v1727
  %1729 = vmatmul.bf16.gmra.mxu0 %v1594
  %v1730 = vpop.f32.mrf.mxu0
  %v1731 = vadd.f32 0.0, %v1730
  %v1732 = vpop.f32.mrf.mxu0
  %v1733 = vadd.f32 0.0, %v1732
  %1734 = vmatmul.bf16.gmra.mxu0 %v1597
  %v1735 = vpop.f32.mrf.mxu0
  %v1736 = vadd.f32 0.0, %v1735
  %v1737 = vpop.f32.mrf.mxu0
  %v1738 = vadd.f32 0.0, %v1737
  %1739 = vmatmul.bf16.gmra.mxu0 %v1600
  %v1740 = vpop.f32.mrf.mxu0
  %v1741 = vadd.f32 0.0, %v1740
  %v1742 = vpop.f32.mrf.mxu0
  %v1743 = vadd.f32 0.0, %v1742
  %1744 = vmatmul.bf16.gmra.mxu0 %v1603
  %v1745 = vpop.f32.mrf.mxu0
  %v1746 = vadd.f32 0.0, %v1745
  %v1747 = vpop.f32.mrf.mxu0
  %v1748 = vadd.f32 0.0, %v1747
  %1749 = vmatmul.bf16.gmra.mxu0 %v1606
  %v1750 = vpop.f32.mrf.mxu0
  %v1751 = vadd.f32 0.0, %v1750
  %v1752 = vpop.f32.mrf.mxu0
  %v1753 = vadd.f32 0.0, %v1752
  %1754 = vmatmul.bf16.gmra.mxu0 %v1609
  %v1755 = vpop.f32.mrf.mxu0
  %v1756 = vadd.f32 0.0, %v1755
  %v1757 = vpop.f32.mrf.mxu0
  %v1758 = vadd.f32 0.0, %v1757
  %1759 = vmatmul.bf16.gmra.mxu0 %v1612
  %v1760 = vpop.f32.mrf.mxu0
  %v1761 = vadd.f32 0.0, %v1760
  %v1762 = vpop.f32.mrf.mxu0
  %v1763 = vadd.f32 0.0, %v1762
  %1764 = vmatmul.bf16.gmra.mxu0 %v1615
  %v1765 = vpop.f32.mrf.mxu0
  %v1766 = vadd.f32 0.0, %v1765
  %v1767 = vpop.f32.mrf.mxu0
  %v1768 = vadd.f32 0.0, %v1767
  %1769 = vmatmul.bf16.gmra.mxu0 %v1618
  %v1770 = vpop.f32.mrf.mxu0
  %v1771 = vadd.f32 0.0, %v1770
  %v1772 = vpop.f32.mrf.mxu0
  %v1773 = vadd.f32 0.0, %v1772
  %1774 = vmatmul.bf16.gmra.mxu0 %v1621
  %v1775 = vpop.f32.mrf.mxu0
  %v1776 = vadd.f32 0.0, %v1775
  %v1777 = vpop.f32.mrf.mxu0
  %v1778 = vadd.f32 0.0, %v1777
  %1779 = vmatmul.bf16.gmra.mxu0 %v1624
  %v1780 = vpop.f32.mrf.mxu0
  %v1781 = vadd.f32 0.0, %v1780
  %v1782 = vpop.f32.mrf.mxu0
  %v1783 = vadd.f32 0.0, %v1782
  %1784 = vmatmul.bf16.gmra.mxu0 %v1627
  %v1785 = vpop.f32.mrf.mxu0
  %v1786 = vadd.f32 0.0, %v1785
  %v1787 = vpop.f32.mrf.mxu0
  %v1788 = vadd.f32 0.0, %v1787
  %1789 = vmatmul.bf16.gmra.mxu0 %v1630
  %v1790 = vpop.f32.mrf.mxu0
  %v1791 = vadd.f32 0.0, %v1790
  %v1792 = vpop.f32.mrf.mxu0
  %v1793 = vadd.f32 0.0, %v1792
  %1794 = vmatmul.bf16.gmra.mxu0 %v1633
  %v1795 = vpop.f32.mrf.mxu0
  %v1796 = vadd.f32 0.0, %v1795
  %v1797 = vpop.f32.mrf.mxu0
  %v1798 = vadd.f32 0.0, %v1797
  %1799 = vmatmul.bf16.gmra.mxu0 %v1636
  %v1800 = vpop.f32.mrf.mxu0
  %v1801 = vadd.f32 0.0, %v1800
  %v1802 = vpop.f32.mrf.mxu0
  %v1803 = vadd.f32 0.0, %v1802
  %1804 = vmatmul.bf16.gmra.mxu0 %v1639
  %v1805 = vpop.f32.mrf.mxu0
  %v1806 = vadd.f32 0.0, %v1805
  %v1807 = vpop.f32.mrf.mxu0
  %v1808 = vadd.f32 0.0, %v1807
  %1809 = vmatmul.bf16.gmra.mxu0 %v1642
  %v1810 = vpop.f32.mrf.mxu0
  %v1811 = vadd.f32 0.0, %v1810
  %v1812 = vpop.f32.mrf.mxu0
  %v1813 = vadd.f32 0.0, %v1812
  %1814 = vmatmul.bf16.gmra.mxu0 %v1645
  %v1815 = vpop.f32.mrf.mxu0
  %v1816 = vadd.f32 0.0, %v1815
  %v1817 = vpop.f32.mrf.mxu0
  %v1818 = vadd.f32 0.0, %v1817
  %1819 = vmatmul.bf16.gmra.mxu0 %v1648
  %v1820 = vpop.f32.mrf.mxu0
  %v1821 = vadd.f32 0.0, %v1820
  %v1822 = vpop.f32.mrf.mxu0
  %v1823 = vadd.f32 0.0, %v1822
  %1824 = vmatmul.bf16.gmra.mxu0 %v1651
  %v1825 = vpop.f32.mrf.mxu0
  %v1826 = vadd.f32 0.0, %v1825
  %v1827 = vpop.f32.mrf.mxu0
  %v1828 = vadd.f32 0.0, %v1827
  %1829 = vmatmul.bf16.gmra.mxu0 %v1654
  %v1830 = vpop.f32.mrf.mxu0
  %v1831 = vadd.f32 0.0, %v1830
  %v1832 = vpop.f32.mrf.mxu0
  %v1833 = vadd.f32 0.0, %v1832
  %1834 = vmatmul.bf16.gmra.mxu0 %v1657
  %v1835 = vpop.f32.mrf.mxu0
  %v1836 = vadd.f32 0.0, %v1835
  %v1837 = vpop.f32.mrf.mxu0
  %v1838 = vadd.f32 0.0, %v1837
  %1839 = vmatmul.bf16.gmra.mxu0 %v1660
  %v1840 = vpop.f32.mrf.mxu0
  %v1841 = vadd.f32 0.0, %v1840
  %v1842 = vpop.f32.mrf.mxu0
  %v1843 = vadd.f32 0.0, %v1842
  %1844 = vmatmul.bf16.gmra.mxu0 %v1663
  %v1845 = vpop.f32.mrf.mxu0
  %v1846 = vadd.f32 0.0, %v1845
  %v1847 = vpop.f32.mrf.mxu0
  %v1848 = vadd.f32 0.0, %v1847
  %1849 = vmatmul.bf16.gmra.mxu0 %v1666
  %v1850 = vpop.f32.mrf.mxu0
  %v1851 = vadd.f32 0.0, %v1850
  %v1852 = vpop.f32.mrf.mxu0
  %v1853 = vadd.f32 0.0, %v1852
  %1854 = vmatmul.bf16.gmra.mxu0 %v1669
  %v1855 = vpop.f32.mrf.mxu0
  %v1856 = vadd.f32 0.0, %v1855
  %v1857 = vpop.f32.mrf.mxu0
  %v1858 = vadd.f32 0.0, %v1857
  %1859 = vmatmul.bf16.gmra.mxu0 %v1672
  %v1860 = vpop.f32.mrf.mxu0
  %v1861 = vadd.f32 0.0, %v1860
  %v1862 = vpop.f32.mrf.mxu0
  %v1863 = vadd.f32 0.0, %v1862
  %1864 = vmatmul.bf16.gmra.mxu0 %v1675
  %v1865 = vpop.f32.mrf.mxu0
  %v1866 = vadd.f32 0.0, %v1865
  %v1867 = vpop.f32.mrf.mxu0
  %v1868 = vadd.f32 0.0, %v1867
  %1869 = vmatmul.bf16.gmra.mxu0 %v1678
  %v1870 = vpop.f32.mrf.mxu0
  %v1871 = vadd.f32 0.0, %v1870
  %v1872 = vpop.f32.mrf.mxu0
  %v1873 = vadd.f32 0.0, %v1872
  %1874 = vmatmul.bf16.gmra.mxu0 %v1681
  %v1875 = vpop.f32.mrf.mxu0
  %v1876 = vadd.f32 0.0, %v1875
  %v1877 = vpop.f32.mrf.mxu0
  %v1878 = vadd.f32 0.0, %v1877
  %1879 = vmatmul.bf16.gmra.mxu0 %v1684
  %v1880 = vpop.f32.mrf.mxu0
  %v1881 = vadd.f32 0.0, %v1880
  %v1882 = vpop.f32.mrf.mxu0
  %v1883 = vadd.f32 0.0, %v1882
  %1884 = vmatmul.bf16.gmra.mxu0 %v1687
  %v1885 = vpop.f32.mrf.mxu0
  %v1886 = vadd.f32 0.0, %v1885
  %v1887 = vpop.f32.mrf.mxu0
  %v1888 = vadd.f32 0.0, %v1887
  %1889 = vmatmul.bf16.gmra.mxu0 %v1690
  %v1890 = vpop.f32.mrf.mxu0
  %v1891 = vadd.f32 0.0, %v1890
  %v1892 = vpop.f32.mrf.mxu0
  %v1893 = vadd.f32 0.0, %v1892
  %1894 = vmatmul.bf16.gmra.mxu0 %v1693
  %v1895 = vpop.f32.mrf.mxu0
  %v1896 = vadd.f32 0.0, %v1895
  %v1897 = vpop.f32.mrf.mxu0
  %v1898 = vadd.f32 0.0, %v1897
  %1899 = vmatmul.bf16.gmra.mxu0 %v1696
  %v1900 = vpop.f32.mrf.mxu0
  %v1901 = vadd.f32 0.0, %v1900
  %v1902 = vpop.f32.mrf.mxu0
  %1903 = vdwg.mxu0
  %v1904 = vadd.f32 %v1387, %v1711
  %v1905 = vadd.f32 %v1388, %v1713
  %v1906 = vadd.f32 %v1389, %v1716
  %v1907 = vadd.f32 %v1390, %v1718
  %v1908 = vadd.f32 %v1391, %v1721
  %v1909 = vadd.f32 %v1392, %v1723
  %v1910 = vadd.f32 %v1393, %v1726
  %v1911 = vadd.f32 %v1394, %v1728
  %v1912 = vadd.f32 %v1395, %v1731
  %v1913 = vadd.f32 %v1396, %v1733
  %v1914 = vadd.f32 %v1397, %v1736
  %v1915 = vadd.f32 %v1398, %v1738
  %v1916 = vadd.f32 %v1399, %v1741
  %v1917 = vadd.f32 %v1400, %v1743
  %v1918 = vadd.f32 %v1401, %v1746
  %v1919 = vadd.f32 %v1402, %v1748
  %v1920 = vadd.f32 %v1403, %v1751
  %v1921 = vadd.f32 %v1404, %v1753
  %v1922 = vadd.f32 %v1405, %v1756
  %v1923 = vadd.f32 %v1406, %v1758
  %v1924 = vadd.f32 %v1407, %v1761
  %v1925 = vadd.f32 %v1408, %v1763
  %v1926 = vadd.f32 %v1409, %v1766
  %v1927 = vadd.f32 %v1410, %v1768
  %v1928 = vadd.f32 %v1411, %v1771
  %v1929 = vadd.f32 %v1412, %v1773
  %v1930 = vadd.f32 %v1413, %v1776
  %v1931 = vadd.f32 %v1414, %v1778
  %v1932 = vadd.f32 %v1415, %v1781
  %v1933 = vadd.f32 %v1416, %v1783
  %v1934 = vadd.f32 %v1417, %v1786
  %v1935 = vadd.f32 %v1418, %v1788
  %v1936 = vadd.f32 %v1419, %v1791
  %v1937 = vadd.f32 %v1420, %v1793
  %v1938 = vadd.f32 %v1421, %v1796
  %v1939 = vadd.f32 %v1422, %v1798
  %v1940 = vadd.f32 %v1423, %v1801
  %v1941 = vadd.f32 %v1424, %v1803
  %v1942 = vadd.f32 %v1425, %v1806
  %v1943 = vadd.f32 %v1426, %v1808
  %v1944 = vadd.f32 %v1427, %v1811
  %v1945 = vadd.f32 %v1428, %v1813
  %v1946 = vadd.f32 %v1429, %v1816
  %v1947 = vadd.f32 %v1430, %v1818
  %v1948 = vadd.f32 %v1431, %v1821
  %v1949 = vadd.f32 %v1432, %v1823
  %v1950 = vadd.f32 %v1433, %v1826
  %v1951 = vadd.f32 %v1434, %v1828
  %v1952 = vadd.f32 %v1435, %v1831
  %v1953 = vadd.f32 %v1436, %v1833
  %v1954 = vadd.f32 %v1437, %v1836
  %v1955 = vadd.f32 %v1438, %v1838
  %v1956 = vadd.f32 %v1439, %v1841
  %v1957 = vadd.f32 %v1440, %v1843
  %v1958 = vadd.f32 %v1441, %v1846
  %v1959 = vadd.f32 %v1442, %v1848
  %v1960 = vadd.f32 %v1443, %v1851
  %v1961 = vadd.f32 %v1444, %v1853
  %v1962 = vadd.f32 %v1445, %v1856
  %v1963 = vadd.f32 %v1446, %v1858
  %v1964 = vadd.f32 %v1447, %v1861
  %v1965 = vadd.f32 %v1448, %v1863
  %v1966 = vadd.f32 %v1449, %v1866
  %v1967 = vadd.f32 %v1450, %v1868
  %v1968 = vadd.f32 %v1451, %v1871
  %v1969 = vadd.f32 %v1452, %v1873
  %v1970 = vadd.f32 %v1453, %v1876
  %v1971 = vadd.f32 %v1454, %v1878
  %v1972 = vadd.f32 %v1455, %v1881
  %v1973 = vadd.f32 %v1456, %v1883
  %v1974 = vadd.f32 %v1457, %v1886
  %v1975 = vadd.f32 %v1458, %v1888
  %v1976 = vadd.f32 %v1459, %v1891
  %v1977 = vadd.f32 %v1460, %v1893
  %v1978 = vadd.f32 %v1461, %v1896
  %v1979 = vadd.f32 %v1462, %v1898
  %v1980 = vadd.f32 %v1463, %v1901
  %v1981 = vld [vmem:[%s0 + $0x13] sm:$0xff]
  %v1982 = vld [vmem:[%s0 + $0x1b] sm:$0xff]
  %v1983 = vld [vmem:[%s0 + $0x23] sm:$0xff]
  %v1984 = vld [vmem:[%s0 + $0x2b] sm:$0xff]
  %v1985 = vld [vmem:[%s0 + $0x33] sm:$0xff]
  %v1986 = vld [vmem:[%s0 + $0x3b] sm:$0xff]
  %v1987 = vld [vmem:[%s0 + $0x43] sm:$0xff]
  %v1988 = vld [vmem:[%s0 + $0x4b] sm:$0xff]
  %v1989 = vld [vmem:[%s0 + $0x53] sm:$0xff]
  %v1990 = vld [vmem:[%s0 + $0x5b] sm:$0xff]
  %v1991 = vld [vmem:[%s0 + $0x63] sm:$0xff]
  %v1992 = vld [vmem:[%s0 + $0x6b] sm:$0xff]
  %v1993 = vld [vmem:[%s0 + $0x73] sm:$0xff]
  %v1994 = vld [vmem:[%s0 + $0x7b] sm:$0xff]
  %v1995 = vld [vmem:[%s0 + $0x83] sm:$0xff]
  %v1996 = vld [vmem:[%s0 + $0x8b] sm:$0xff]
  %v1997 = vld [vmem:[%s0 + $0x93] sm:$0xff]
  %v1998 = vld [vmem:[%s0 + $0x9b] sm:$0xff]
  %v1999 = vld [vmem:[%s0 + $0xa3] sm:$0xff]
  %v2000 = vld [vmem:[%s0 + $0xab] sm:$0xff]
  %v2001 = vld [vmem:[%s0 + $0xb3] sm:$0xff]
  %v2002 = vld [vmem:[%s0 + $0xbb] sm:$0xff]
  %v2003 = vld [vmem:[%s0 + $0xc3] sm:$0xff]
  %v2004 = vld [vmem:[%s0 + $0xcb] sm:$0xff]
  %v2005 = vld [vmem:[%s0 + $0xd3] sm:$0xff]
  %v2006 = vld [vmem:[%s0 + $0xdb] sm:$0xff]
  %v2007 = vld [vmem:[%s0 + $0xe3] sm:$0xff]
  %v2008 = vld [vmem:[%s0 + $0xeb] sm:$0xff]
  %v2009 = vld [vmem:[%s0 + $0xf3] sm:$0xff]
  %v2010 = vld [vmem:[%s0 + $0xfb] sm:$0xff]
  %v2011 = vld [vmem:[%s0 + $0x103] sm:$0xff]
  %v2012 = vld [vmem:[%s0 + $0x10b] sm:$0xff]
  %v2013 = vld [vmem:[%s0 + $0x113] sm:$0xff]
  %v2014 = vld [vmem:[%s0 + $0x11b] sm:$0xff]
  %v2015 = vld [vmem:[%s0 + $0x123] sm:$0xff]
  %v2016 = vld [vmem:[%s0 + $0x12b] sm:$0xff]
  %v2017 = vld [vmem:[%s0 + $0x133] sm:$0xff]
  %v2018 = vld [vmem:[%s0 + $0x13b] sm:$0xff]
  %v2019 = vld [vmem:[%s0 + $0x143] sm:$0xff]
  %v2020 = vld [vmem:[%s0 + $0x14b] sm:$0xff]
  %v2021 = vld [vmem:[%s0 + $0x153] sm:$0xff]
  %v2022 = vld [vmem:[%s0 + $0x15b] sm:$0xff]
  %v2023 = vld [vmem:[%s0 + $0x163] sm:$0xff]
  %v2024 = vld [vmem:[%s0 + $0x16b] sm:$0xff]
  %v2025 = vld [vmem:[%s0 + $0x173] sm:$0xff]
  %v2026 = vld [vmem:[%s0 + $0x17b] sm:$0xff]
  %v2027 = vld [vmem:[%s0 + $0x183] sm:$0xff]
  %v2028 = vld [vmem:[%s0 + $0x18b] sm:$0xff]
  %v2029 = vld [vmem:[%s0 + $0x193] sm:$0xff]
  %v2030 = vld [vmem:[%s0 + $0x19b] sm:$0xff]
  %v2031 = vld [vmem:[%s0 + $0x1a3] sm:$0xff]
  %v2032 = vld [vmem:[%s0 + $0x1ab] sm:$0xff]
  %v2033 = vld [vmem:[%s0 + $0x1b3] sm:$0xff]
  %v2034 = vld [vmem:[%s0 + $0x1bb] sm:$0xff]
  %v2035 = vld [vmem:[%s0 + $0x1c3] sm:$0xff]
  %v2036 = vld [vmem:[%s0 + $0x1cb] sm:$0xff]
  %v2037 = vld [vmem:[%s0 + $0x1d3] sm:$0xff]
  %v2038 = vld [vmem:[%s0 + $0x1db] sm:$0xff]
  %v2039 = vld [vmem:[%s0 + $0x1e3] sm:$0xff]
  %v2040 = vld [vmem:[%s0 + $0x1eb] sm:$0xff]
  %v2041 = vld [vmem:[%s0 + $0x1f3] sm:$0xff]
  %v2042 = vld [vmem:[%s0 + $0x1fb] sm:$0xff]
  %v2043 = vld [vmem:[%s0 + $0x203] sm:$0xff]
  %v2044 = vld [vmem:[%s0 + $0x20b] sm:$0xff]
  %v2045 = vld [vmem:[%s0 + $0x213] sm:$0xff]
  %v2046 = vld [vmem:[%s0 + $0x21b] sm:$0xff]
  %v2047 = vld [vmem:[%s0 + $0x223] sm:$0xff]
  %v2048 = vld [vmem:[%s0 + $0x22b] sm:$0xff]
  %v2049 = vld [vmem:[%s0 + $0x233] sm:$0xff]
  %v2050 = vld [vmem:[%s0 + $0x23b] sm:$0xff]
  %v2051 = vld [vmem:[%s0 + $0x243] sm:$0xff]
  %v2052 = vld [vmem:[%s0 + $0x24b] sm:$0xff]
  %v2053 = vld [vmem:[%s0 + $0x253] sm:$0xff]
  %v2054 = vld [vmem:[%s0 + $0x25b] sm:$0xff]
  %v2055 = vld [vmem:[%s0 + $0x263] sm:$0xff]
  %v2056 = vld [vmem:[%s0 + $0x26b] sm:$0xff]
  %v2057 = vld [vmem:[%s0 + $0x273] sm:$0xf]
  %v2058 = vpack.c.bf16 %v1982, %v1981
  %v2059 = vpack.c.bf16 %v1984, %v1983
  %v2060 = vpack.c.bf16 %v1986, %v1985
  %v2061 = vpack.c.bf16 %v1988, %v1987
  %v2062 = vpack.c.bf16 %v1990, %v1989
  %v2063 = vpack.c.bf16 %v1992, %v1991
  %v2064 = vpack.c.bf16 %v1994, %v1993
  %v2065 = vpack.c.bf16 %v1996, %v1995
  %v2066 = vpack.c.bf16 %v1998, %v1997
  %v2067 = vpack.c.bf16 %v2000, %v1999
  %v2068 = vpack.c.bf16 %v2002, %v2001
  %v2069 = vpack.c.bf16 %v2004, %v2003
  %v2070 = vpack.c.bf16 %v2006, %v2005
  %v2071 = vpack.c.bf16 %v2008, %v2007
  %v2072 = vpack.c.bf16 %v2010, %v2009
  %v2073 = vpack.c.bf16 %v2012, %v2011
  %v2074 = vpack.c.bf16 %v2014, %v2013
  %v2075 = vpack.c.bf16 %v2016, %v2015
  %v2076 = vpack.c.bf16 %v2018, %v2017
  %v2077 = vpack.c.bf16 %v2020, %v2019
  %v2078 = vpack.c.bf16 %v2022, %v2021
  %v2079 = vpack.c.bf16 %v2024, %v2023
  %v2080 = vpack.c.bf16 %v2026, %v2025
  %v2081 = vpack.c.bf16 %v2028, %v2027
  %v2082 = vpack.c.bf16 %v2030, %v2029
  %v2083 = vpack.c.bf16 %v2032, %v2031
  %v2084 = vpack.c.bf16 %v2034, %v2033
  %v2085 = vpack.c.bf16 %v2036, %v2035
  %v2086 = vpack.c.bf16 %v2038, %v2037
  %v2087 = vpack.c.bf16 %v2040, %v2039
  %v2088 = vpack.c.bf16 %v2042, %v2041
  %v2089 = vpack.c.bf16 %v2044, %v2043
  %v2090 = vpack.c.bf16 %v2046, %v2045
  %v2091 = vpack.c.bf16 %v2048, %v2047
  %v2092 = vpack.c.bf16 %v2050, %v2049
  %v2093 = vpack.c.bf16 %v2052, %v2051
  %v2094 = vpack.c.bf16 %v2054, %v2053
  %v2095 = vpack.c.bf16 %v2056, %v2055
  %v2096 = vpack.c.bf16 %v2057, %v2057
  %v2097 = vld [vmem:[%s1 + $0x10] sm:$0xf]
  %v2099 = vsel %vm39, %v2058, 0
  %v2102 = vsel %vm39, %v2059, 0
  %v2105 = vsel %vm39, %v2060, 0
  %v2108 = vsel %vm39, %v2061, 0
  %v2111 = vsel %vm39, %v2062, 0
  %v2114 = vsel %vm39, %v2063, 0
  %v2117 = vsel %vm39, %v2064, 0
  %v2120 = vsel %vm39, %v2065, 0
  %v2123 = vsel %vm39, %v2066, 0
  %v2126 = vsel %vm39, %v2067, 0
  %v2129 = vsel %vm39, %v2068, 0
  %v2132 = vsel %vm39, %v2069, 0
  %v2135 = vsel %vm39, %v2070, 0
  %v2138 = vsel %vm39, %v2071, 0
  %v2141 = vsel %vm39, %v2072, 0
  %v2144 = vsel %vm39, %v2073, 0
  %v2147 = vsel %vm39, %v2074, 0
  %v2150 = vsel %vm39, %v2075, 0
  %v2153 = vsel %vm39, %v2076, 0
  %v2156 = vsel %vm39, %v2077, 0
  %v2159 = vsel %vm39, %v2078, 0
  %v2162 = vsel %vm39, %v2079, 0
  %v2165 = vsel %vm39, %v2080, 0
  %v2168 = vsel %vm39, %v2081, 0
  %v2171 = vsel %vm39, %v2082, 0
  %v2174 = vsel %vm39, %v2083, 0
  %v2177 = vsel %vm39, %v2084, 0
  %v2180 = vsel %vm39, %v2085, 0
  %v2183 = vsel %vm39, %v2086, 0
  %v2186 = vsel %vm39, %v2087, 0
  %v2189 = vsel %vm39, %v2088, 0
  %v2192 = vsel %vm39, %v2089, 0
  %v2195 = vsel %vm39, %v2090, 0
  %v2198 = vsel %vm39, %v2091, 0
  %v2201 = vsel %vm39, %v2092, 0
  %v2204 = vsel %vm39, %v2093, 0
  %v2207 = vsel %vm39, %v2094, 0
  %v2210 = vsel %vm39, %v2095, 0
  %v2213 = vsel %vm39, %v2096, 0
  %v2216 = vsel %vm417, %v2097, 0
  %2218 = vmatpush.bf16.msra.mxu0 0
  %2219 = vmatpush.bf16.msra.mxu0 0
  %2220 = vmatpush.bf16.msra.mxu0 0
  %2221 = vmatpush.bf16.msra.mxu0 0
  %2222 = vmatpush.bf16.msra.mxu0 0
  %2223 = vmatpush.bf16.msra.mxu0 0
  %2224 = vmatpush.bf16.msra.mxu0 0
  %2225 = vmatpush.bf16.msra.mxu0 %v2216
  %2226 = vmatmul.bf16.gmra.mxu0 %v2099
  %v2227 = vpop.f32.mrf.mxu0
  %v2228 = vadd.f32 0.0, %v2227
  %v2229 = vpop.f32.mrf.mxu0
  %v2230 = vadd.f32 0.0, %v2229
  %2231 = vmatmul.bf16.gmra.mxu0 %v2102
  %v2232 = vpop.f32.mrf.mxu0
  %v2233 = vadd.f32 0.0, %v2232
  %v2234 = vpop.f32.mrf.mxu0
  %v2235 = vadd.f32 0.0, %v2234
  %2236 = vmatmul.bf16.gmra.mxu0 %v2105
  %v2237 = vpop.f32.mrf.mxu0
  %v2238 = vadd.f32 0.0, %v2237
  %v2239 = vpop.f32.mrf.mxu0
  %v2240 = vadd.f32 0.0, %v2239
  %2241 = vmatmul.bf16.gmra.mxu0 %v2108
  %v2242 = vpop.f32.mrf.mxu0
  %v2243 = vadd.f32 0.0, %v2242
  %v2244 = vpop.f32.mrf.mxu0
  %v2245 = vadd.f32 0.0, %v2244
  %2246 = vmatmul.bf16.gmra.mxu0 %v2111
  %v2247 = vpop.f32.mrf.mxu0
  %v2248 = vadd.f32 0.0, %v2247
  %v2249 = vpop.f32.mrf.mxu0
  %v2250 = vadd.f32 0.0, %v2249
  %2251 = vmatmul.bf16.gmra.mxu0 %v2114
  %v2252 = vpop.f32.mrf.mxu0
  %v2253 = vadd.f32 0.0, %v2252
  %v2254 = vpop.f32.mrf.mxu0
  %v2255 = vadd.f32 0.0, %v2254
  %2256 = vmatmul.bf16.gmra.mxu0 %v2117
  %v2257 = vpop.f32.mrf.mxu0
  %v2258 = vadd.f32 0.0, %v2257
  %v2259 = vpop.f32.mrf.mxu0
  %v2260 = vadd.f32 0.0, %v2259
  %2261 = vmatmul.bf16.gmra.mxu0 %v2120
  %v2262 = vpop.f32.mrf.mxu0
  %v2263 = vadd.f32 0.0, %v2262
  %v2264 = vpop.f32.mrf.mxu0
  %v2265 = vadd.f32 0.0, %v2264
  %2266 = vmatmul.bf16.gmra.mxu0 %v2123
  %v2267 = vpop.f32.mrf.mxu0
  %v2268 = vadd.f32 0.0, %v2267
  %v2269 = vpop.f32.mrf.mxu0
  %v2270 = vadd.f32 0.0, %v2269
  %2271 = vmatmul.bf16.gmra.mxu0 %v2126
  %v2272 = vpop.f32.mrf.mxu0
  %v2273 = vadd.f32 0.0, %v2272
  %v2274 = vpop.f32.mrf.mxu0
  %v2275 = vadd.f32 0.0, %v2274
  %2276 = vmatmul.bf16.gmra.mxu0 %v2129
  %v2277 = vpop.f32.mrf.mxu0
  %v2278 = vadd.f32 0.0, %v2277
  %v2279 = vpop.f32.mrf.mxu0
  %v2280 = vadd.f32 0.0, %v2279
  %2281 = vmatmul.bf16.gmra.mxu0 %v2132
  %v2282 = vpop.f32.mrf.mxu0
  %v2283 = vadd.f32 0.0, %v2282
  %v2284 = vpop.f32.mrf.mxu0
  %v2285 = vadd.f32 0.0, %v2284
  %2286 = vmatmul.bf16.gmra.mxu0 %v2135
  %v2287 = vpop.f32.mrf.mxu0
  %v2288 = vadd.f32 0.0, %v2287
  %v2289 = vpop.f32.mrf.mxu0
  %v2290 = vadd.f32 0.0, %v2289
  %2291 = vmatmul.bf16.gmra.mxu0 %v2138
  %v2292 = vpop.f32.mrf.mxu0
  %v2293 = vadd.f32 0.0, %v2292
  %v2294 = vpop.f32.mrf.mxu0
  %v2295 = vadd.f32 0.0, %v2294
  %2296 = vmatmul.bf16.gmra.mxu0 %v2141
  %v2297 = vpop.f32.mrf.mxu0
  %v2298 = vadd.f32 0.0, %v2297
  %v2299 = vpop.f32.mrf.mxu0
  %v2300 = vadd.f32 0.0, %v2299
  %2301 = vmatmul.bf16.gmra.mxu0 %v2144
  %v2302 = vpop.f32.mrf.mxu0
  %v2303 = vadd.f32 0.0, %v2302
  %v2304 = vpop.f32.mrf.mxu0
  %v2305 = vadd.f32 0.0, %v2304
  %2306 = vmatmul.bf16.gmra.mxu0 %v2147
  %v2307 = vpop.f32.mrf.mxu0
  %v2308 = vadd.f32 0.0, %v2307
  %v2309 = vpop.f32.mrf.mxu0
  %v2310 = vadd.f32 0.0, %v2309
  %2311 = vmatmul.bf16.gmra.mxu0 %v2150
  %v2312 = vpop.f32.mrf.mxu0
  %v2313 = vadd.f32 0.0, %v2312
  %v2314 = vpop.f32.mrf.mxu0
  %v2315 = vadd.f32 0.0, %v2314
  %2316 = vmatmul.bf16.gmra.mxu0 %v2153
  %v2317 = vpop.f32.mrf.mxu0
  %v2318 = vadd.f32 0.0, %v2317
  %v2319 = vpop.f32.mrf.mxu0
  %v2320 = vadd.f32 0.0, %v2319
  %2321 = vmatmul.bf16.gmra.mxu0 %v2156
  %v2322 = vpop.f32.mrf.mxu0
  %v2323 = vadd.f32 0.0, %v2322
  %v2324 = vpop.f32.mrf.mxu0
  %v2325 = vadd.f32 0.0, %v2324
  %2326 = vmatmul.bf16.gmra.mxu0 %v2159
  %v2327 = vpop.f32.mrf.mxu0
  %v2328 = vadd.f32 0.0, %v2327
  %v2329 = vpop.f32.mrf.mxu0
  %v2330 = vadd.f32 0.0, %v2329
  %2331 = vmatmul.bf16.gmra.mxu0 %v2162
  %v2332 = vpop.f32.mrf.mxu0
  %v2333 = vadd.f32 0.0, %v2332
  %v2334 = vpop.f32.mrf.mxu0
  %v2335 = vadd.f32 0.0, %v2334
  %2336 = vmatmul.bf16.gmra.mxu0 %v2165
  %v2337 = vpop.f32.mrf.mxu0
  %v2338 = vadd.f32 0.0, %v2337
  %v2339 = vpop.f32.mrf.mxu0
  %v2340 = vadd.f32 0.0, %v2339
  %2341 = vmatmul.bf16.gmra.mxu0 %v2168
  %v2342 = vpop.f32.mrf.mxu0
  %v2343 = vadd.f32 0.0, %v2342
  %v2344 = vpop.f32.mrf.mxu0
  %v2345 = vadd.f32 0.0, %v2344
  %2346 = vmatmul.bf16.gmra.mxu0 %v2171
  %v2347 = vpop.f32.mrf.mxu0
  %v2348 = vadd.f32 0.0, %v2347
  %v2349 = vpop.f32.mrf.mxu0
  %v2350 = vadd.f32 0.0, %v2349
  %2351 = vmatmul.bf16.gmra.mxu0 %v2174
  %v2352 = vpop.f32.mrf.mxu0
  %v2353 = vadd.f32 0.0, %v2352
  %v2354 = vpop.f32.mrf.mxu0
  %v2355 = vadd.f32 0.0, %v2354
  %2356 = vmatmul.bf16.gmra.mxu0 %v2177
  %v2357 = vpop.f32.mrf.mxu0
  %v2358 = vadd.f32 0.0, %v2357
  %v2359 = vpop.f32.mrf.mxu0
  %v2360 = vadd.f32 0.0, %v2359
  %2361 = vmatmul.bf16.gmra.mxu0 %v2180
  %v2362 = vpop.f32.mrf.mxu0
  %v2363 = vadd.f32 0.0, %v2362
  %v2364 = vpop.f32.mrf.mxu0
  %v2365 = vadd.f32 0.0, %v2364
  %2366 = vmatmul.bf16.gmra.mxu0 %v2183
  %v2367 = vpop.f32.mrf.mxu0
  %v2368 = vadd.f32 0.0, %v2367
  %v2369 = vpop.f32.mrf.mxu0
  %v2370 = vadd.f32 0.0, %v2369
  %2371 = vmatmul.bf16.gmra.mxu0 %v2186
  %v2372 = vpop.f32.mrf.mxu0
  %v2373 = vadd.f32 0.0, %v2372
  %v2374 = vpop.f32.mrf.mxu0
  %v2375 = vadd.f32 0.0, %v2374
  %2376 = vmatmul.bf16.gmra.mxu0 %v2189
  %v2377 = vpop.f32.mrf.mxu0
  %v2378 = vadd.f32 0.0, %v2377
  %v2379 = vpop.f32.mrf.mxu0
  %v2380 = vadd.f32 0.0, %v2379
  %2381 = vmatmul.bf16.gmra.mxu0 %v2192
  %v2382 = vpop.f32.mrf.mxu0
  %v2383 = vadd.f32 0.0, %v2382
  %v2384 = vpop.f32.mrf.mxu0
  %v2385 = vadd.f32 0.0, %v2384
  %2386 = vmatmul.bf16.gmra.mxu0 %v2195
  %v2387 = vpop.f32.mrf.mxu0
  %v2388 = vadd.f32 0.0, %v2387
  %v2389 = vpop.f32.mrf.mxu0
  %v2390 = vadd.f32 0.0, %v2389
  %2391 = vmatmul.bf16.gmra.mxu0 %v2198
  %v2392 = vpop.f32.mrf.mxu0
  %v2393 = vadd.f32 0.0, %v2392
  %v2394 = vpop.f32.mrf.mxu0
  %v2395 = vadd.f32 0.0, %v2394
  %2396 = vmatmul.bf16.gmra.mxu0 %v2201
  %v2397 = vpop.f32.mrf.mxu0
  %v2398 = vadd.f32 0.0, %v2397
  %v2399 = vpop.f32.mrf.mxu0
  %v2400 = vadd.f32 0.0, %v2399
  %2401 = vmatmul.bf16.gmra.mxu0 %v2204
  %v2402 = vpop.f32.mrf.mxu0
  %v2403 = vadd.f32 0.0, %v2402
  %v2404 = vpop.f32.mrf.mxu0
  %v2405 = vadd.f32 0.0, %v2404
  %2406 = vmatmul.bf16.gmra.mxu0 %v2207
  %v2407 = vpop.f32.mrf.mxu0
  %v2408 = vadd.f32 0.0, %v2407
  %v2409 = vpop.f32.mrf.mxu0
  %v2410 = vadd.f32 0.0, %v2409
  %2411 = vmatmul.bf16.gmra.mxu0 %v2210
  %v2412 = vpop.f32.mrf.mxu0
  %v2413 = vadd.f32 0.0, %v2412
  %v2414 = vpop.f32.mrf.mxu0
  %v2415 = vadd.f32 0.0, %v2414
  %2416 = vmatmul.bf16.gmra.mxu0 %v2213
  %v2417 = vpop.f32.mrf.mxu0
  %v2418 = vadd.f32 0.0, %v2417
  %v2419 = vpop.f32.mrf.mxu0
  %2420 = vdwg.mxu0
  %v2421 = vadd.f32 %v1904, %v2228
  %v2422 = vadd.f32 %v1905, %v2230
  %v2423 = vadd.f32 %v1906, %v2233
  %v2424 = vadd.f32 %v1907, %v2235
  %v2425 = vadd.f32 %v1908, %v2238
  %v2426 = vadd.f32 %v1909, %v2240
  %v2427 = vadd.f32 %v1910, %v2243
  %v2428 = vadd.f32 %v1911, %v2245
  %v2429 = vadd.f32 %v1912, %v2248
  %v2430 = vadd.f32 %v1913, %v2250
  %v2431 = vadd.f32 %v1914, %v2253
  %v2432 = vadd.f32 %v1915, %v2255
  %v2433 = vadd.f32 %v1916, %v2258
  %v2434 = vadd.f32 %v1917, %v2260
  %v2435 = vadd.f32 %v1918, %v2263
  %v2436 = vadd.f32 %v1919, %v2265
  %v2437 = vadd.f32 %v1920, %v2268
  %v2438 = vadd.f32 %v1921, %v2270
  %v2439 = vadd.f32 %v1922, %v2273
  %v2440 = vadd.f32 %v1923, %v2275
  %v2441 = vadd.f32 %v1924, %v2278
  %v2442 = vadd.f32 %v1925, %v2280
  %v2443 = vadd.f32 %v1926, %v2283
  %v2444 = vadd.f32 %v1927, %v2285
  %v2445 = vadd.f32 %v1928, %v2288
  %v2446 = vadd.f32 %v1929, %v2290
  %v2447 = vadd.f32 %v1930, %v2293
  %v2448 = vadd.f32 %v1931, %v2295
  %v2449 = vadd.f32 %v1932, %v2298
  %v2450 = vadd.f32 %v1933, %v2300
  %v2451 = vadd.f32 %v1934, %v2303
  %v2452 = vadd.f32 %v1935, %v2305
  %v2453 = vadd.f32 %v1936, %v2308
  %v2454 = vadd.f32 %v1937, %v2310
  %v2455 = vadd.f32 %v1938, %v2313
  %v2456 = vadd.f32 %v1939, %v2315
  %v2457 = vadd.f32 %v1940, %v2318
  %v2458 = vadd.f32 %v1941, %v2320
  %v2459 = vadd.f32 %v1942, %v2323
  %v2460 = vadd.f32 %v1943, %v2325
  %v2461 = vadd.f32 %v1944, %v2328
  %v2462 = vadd.f32 %v1945, %v2330
  %v2463 = vadd.f32 %v1946, %v2333
  %v2464 = vadd.f32 %v1947, %v2335
  %v2465 = vadd.f32 %v1948, %v2338
  %v2466 = vadd.f32 %v1949, %v2340
  %v2467 = vadd.f32 %v1950, %v2343
  %v2468 = vadd.f32 %v1951, %v2345
  %v2469 = vadd.f32 %v1952, %v2348
  %v2470 = vadd.f32 %v1953, %v2350
  %v2471 = vadd.f32 %v1954, %v2353
  %v2472 = vadd.f32 %v1955, %v2355
  %v2473 = vadd.f32 %v1956, %v2358
  %v2474 = vadd.f32 %v1957, %v2360
  %v2475 = vadd.f32 %v1958, %v2363
  %v2476 = vadd.f32 %v1959, %v2365
  %v2477 = vadd.f32 %v1960, %v2368
  %v2478 = vadd.f32 %v1961, %v2370
  %v2479 = vadd.f32 %v1962, %v2373
  %v2480 = vadd.f32 %v1963, %v2375
  %v2481 = vadd.f32 %v1964, %v2378
  %v2482 = vadd.f32 %v1965, %v2380
  %v2483 = vadd.f32 %v1966, %v2383
  %v2484 = vadd.f32 %v1967, %v2385
  %v2485 = vadd.f32 %v1968, %v2388
  %v2486 = vadd.f32 %v1969, %v2390
  %v2487 = vadd.f32 %v1970, %v2393
  %v2488 = vadd.f32 %v1971, %v2395
  %v2489 = vadd.f32 %v1972, %v2398
  %v2490 = vadd.f32 %v1973, %v2400
  %v2491 = vadd.f32 %v1974, %v2403
  %v2492 = vadd.f32 %v1975, %v2405
  %v2493 = vadd.f32 %v1976, %v2408
  %v2494 = vadd.f32 %v1977, %v2410
  %v2495 = vadd.f32 %v1978, %v2413
  %v2496 = vadd.f32 %v1979, %v2415
  %v2497 = vadd.f32 %v1980, %v2418
  %v2498 = vld [vmem:[%s0 + $0x14] sm:$0xff]
  %v2499 = vld [vmem:[%s0 + $0x1c] sm:$0xff]
  %v2500 = vld [vmem:[%s0 + $0x24] sm:$0xff]
  %v2501 = vld [vmem:[%s0 + $0x2c] sm:$0xff]
  %v2502 = vld [vmem:[%s0 + $0x34] sm:$0xff]
  %v2503 = vld [vmem:[%s0 + $0x3c] sm:$0xff]
  %v2504 = vld [vmem:[%s0 + $0x44] sm:$0xff]
  %v2505 = vld [vmem:[%s0 + $0x4c] sm:$0xff]
  %v2506 = vld [vmem:[%s0 + $0x54] sm:$0xff]
  %v2507 = vld [vmem:[%s0 + $0x5c] sm:$0xff]
  %v2508 = vld [vmem:[%s0 + $0x64] sm:$0xff]
  %v2509 = vld [vmem:[%s0 + $0x6c] sm:$0xff]
  %v2510 = vld [vmem:[%s0 + $0x74] sm:$0xff]
  %v2511 = vld [vmem:[%s0 + $0x7c] sm:$0xff]
  %v2512 = vld [vmem:[%s0 + $0x84] sm:$0xff]
  %v2513 = vld [vmem:[%s0 + $0x8c] sm:$0xff]
  %v2514 = vld [vmem:[%s0 + $0x94] sm:$0xff]
  %v2515 = vld [vmem:[%s0 + $0x9c] sm:$0xff]
  %v2516 = vld [vmem:[%s0 + $0xa4] sm:$0xff]
  %v2517 = vld [vmem:[%s0 + $0xac] sm:$0xff]
  %v2518 = vld [vmem:[%s0 + $0xb4] sm:$0xff]
  %v2519 = vld [vmem:[%s0 + $0xbc] sm:$0xff]
  %v2520 = vld [vmem:[%s0 + $0xc4] sm:$0xff]
  %v2521 = vld [vmem:[%s0 + $0xcc] sm:$0xff]
  %v2522 = vld [vmem:[%s0 + $0xd4] sm:$0xff]
  %v2523 = vld [vmem:[%s0 + $0xdc] sm:$0xff]
  %v2524 = vld [vmem:[%s0 + $0xe4] sm:$0xff]
  %v2525 = vld [vmem:[%s0 + $0xec] sm:$0xff]
  %v2526 = vld [vmem:[%s0 + $0xf4] sm:$0xff]
  %v2527 = vld [vmem:[%s0 + $0xfc] sm:$0xff]
  %v2528 = vld [vmem:[%s0 + $0x104] sm:$0xff]
  %v2529 = vld [vmem:[%s0 + $0x10c] sm:$0xff]
  %v2530 = vld [vmem:[%s0 + $0x114] sm:$0xff]
  %v2531 = vld [vmem:[%s0 + $0x11c] sm:$0xff]
  %v2532 = vld [vmem:[%s0 + $0x124] sm:$0xff]
  %v2533 = vld [vmem:[%s0 + $0x12c] sm:$0xff]
  %v2534 = vld [vmem:[%s0 + $0x134] sm:$0xff]
  %v2535 = vld [vmem:[%s0 + $0x13c] sm:$0xff]
  %v2536 = vld [vmem:[%s0 + $0x144] sm:$0xff]
  %v2537 = vld [vmem:[%s0 + $0x14c] sm:$0xff]
  %v2538 = vld [vmem:[%s0 + $0x154] sm:$0xff]
  %v2539 = vld [vmem:[%s0 + $0x15c] sm:$0xff]
  %v2540 = vld [vmem:[%s0 + $0x164] sm:$0xff]
  %v2541 = vld [vmem:[%s0 + $0x16c] sm:$0xff]
  %v2542 = vld [vmem:[%s0 + $0x174] sm:$0xff]
  %v2543 = vld [vmem:[%s0 + $0x17c] sm:$0xff]
  %v2544 = vld [vmem:[%s0 + $0x184] sm:$0xff]
  %v2545 = vld [vmem:[%s0 + $0x18c] sm:$0xff]
  %v2546 = vld [vmem:[%s0 + $0x194] sm:$0xff]
  %v2547 = vld [vmem:[%s0 + $0x19c] sm:$0xff]
  %v2548 = vld [vmem:[%s0 + $0x1a4] sm:$0xff]
  %v2549 = vld [vmem:[%s0 + $0x1ac] sm:$0xff]
  %v2550 = vld [vmem:[%s0 + $0x1b4] sm:$0xff]
  %v2551 = vld [vmem:[%s0 + $0x1bc] sm:$0xff]
  %v2552 = vld [vmem:[%s0 + $0x1c4] sm:$0xff]
  %v2553 = vld [vmem:[%s0 + $0x1cc] sm:$0xff]
  %v2554 = vld [vmem:[%s0 + $0x1d4] sm:$0xff]
  %v2555 = vld [vmem:[%s0 + $0x1dc] sm:$0xff]
  %v2556 = vld [vmem:[%s0 + $0x1e4] sm:$0xff]
  %v2557 = vld [vmem:[%s0 + $0x1ec] sm:$0xff]
  %v2558 = vld [vmem:[%s0 + $0x1f4] sm:$0xff]
  %v2559 = vld [vmem:[%s0 + $0x1fc] sm:$0xff]
  %v2560 = vld [vmem:[%s0 + $0x204] sm:$0xff]
  %v2561 = vld [vmem:[%s0 + $0x20c] sm:$0xff]
  %v2562 = vld [vmem:[%s0 + $0x214] sm:$0xff]
  %v2563 = vld [vmem:[%s0 + $0x21c] sm:$0xff]
  %v2564 = vld [vmem:[%s0 + $0x224] sm:$0xff]
  %v2565 = vld [vmem:[%s0 + $0x22c] sm:$0xff]
  %v2566 = vld [vmem:[%s0 + $0x234] sm:$0xff]
  %v2567 = vld [vmem:[%s0 + $0x23c] sm:$0xff]
  %v2568 = vld [vmem:[%s0 + $0x244] sm:$0xff]
  %v2569 = vld [vmem:[%s0 + $0x24c] sm:$0xff]
  %v2570 = vld [vmem:[%s0 + $0x254] sm:$0xff]
  %v2571 = vld [vmem:[%s0 + $0x25c] sm:$0xff]
  %v2572 = vld [vmem:[%s0 + $0x264] sm:$0xff]
  %v2573 = vld [vmem:[%s0 + $0x26c] sm:$0xff]
  %v2574 = vld [vmem:[%s0 + $0x274] sm:$0xf]
  %v2575 = vpack.c.bf16 %v2499, %v2498
  %v2576 = vpack.c.bf16 %v2501, %v2500
  %v2577 = vpack.c.bf16 %v2503, %v2502
  %v2578 = vpack.c.bf16 %v2505, %v2504
  %v2579 = vpack.c.bf16 %v2507, %v2506
  %v2580 = vpack.c.bf16 %v2509, %v2508
  %v2581 = vpack.c.bf16 %v2511, %v2510
  %v2582 = vpack.c.bf16 %v2513, %v2512
  %v2583 = vpack.c.bf16 %v2515, %v2514
  %v2584 = vpack.c.bf16 %v2517, %v2516
  %v2585 = vpack.c.bf16 %v2519, %v2518
  %v2586 = vpack.c.bf16 %v2521, %v2520
  %v2587 = vpack.c.bf16 %v2523, %v2522
  %v2588 = vpack.c.bf16 %v2525, %v2524
  %v2589 = vpack.c.bf16 %v2527, %v2526
  %v2590 = vpack.c.bf16 %v2529, %v2528
  %v2591 = vpack.c.bf16 %v2531, %v2530
  %v2592 = vpack.c.bf16 %v2533, %v2532
  %v2593 = vpack.c.bf16 %v2535, %v2534
  %v2594 = vpack.c.bf16 %v2537, %v2536
  %v2595 = vpack.c.bf16 %v2539, %v2538
  %v2596 = vpack.c.bf16 %v2541, %v2540
  %v2597 = vpack.c.bf16 %v2543, %v2542
  %v2598 = vpack.c.bf16 %v2545, %v2544
  %v2599 = vpack.c.bf16 %v2547, %v2546
  %v2600 = vpack.c.bf16 %v2549, %v2548
  %v2601 = vpack.c.bf16 %v2551, %v2550
  %v2602 = vpack.c.bf16 %v2553, %v2552
  %v2603 = vpack.c.bf16 %v2555, %v2554
  %v2604 = vpack.c.bf16 %v2557, %v2556
  %v2605 = vpack.c.bf16 %v2559, %v2558
  %v2606 = vpack.c.bf16 %v2561, %v2560
  %v2607 = vpack.c.bf16 %v2563, %v2562
  %v2608 = vpack.c.bf16 %v2565, %v2564
  %v2609 = vpack.c.bf16 %v2567, %v2566
  %v2610 = vpack.c.bf16 %v2569, %v2568
  %v2611 = vpack.c.bf16 %v2571, %v2570
  %v2612 = vpack.c.bf16 %v2573, %v2572
  %v2613 = vpack.c.bf16 %v2574, %v2574
  %v2614 = vld [vmem:[%s1 + $0x14] sm:$0xf]
  %v2616 = vsel %vm39, %v2575, 0
  %v2619 = vsel %vm39, %v2576, 0
  %v2622 = vsel %vm39, %v2577, 0
  %v2625 = vsel %vm39, %v2578, 0
  %v2628 = vsel %vm39, %v2579, 0
  %v2631 = vsel %vm39, %v2580, 0
  %v2634 = vsel %vm39, %v2581, 0
  %v2637 = vsel %vm39, %v2582, 0
  %v2640 = vsel %vm39, %v2583, 0
  %v2643 = vsel %vm39, %v2584, 0
  %v2646 = vsel %vm39, %v2585, 0
  %v2649 = vsel %vm39, %v2586, 0
  %v2652 = vsel %vm39, %v2587, 0
  %v2655 = vsel %vm39, %v2588, 0
  %v2658 = vsel %vm39, %v2589, 0
  %v2661 = vsel %vm39, %v2590, 0
  %v2664 = vsel %vm39, %v2591, 0
  %v2667 = vsel %vm39, %v2592, 0
  %v2670 = vsel %vm39, %v2593, 0
  %v2673 = vsel %vm39, %v2594, 0
  %v2676 = vsel %vm39, %v2595, 0
  %v2679 = vsel %vm39, %v2596, 0
  %v2682 = vsel %vm39, %v2597, 0
  %v2685 = vsel %vm39, %v2598, 0
  %v2688 = vsel %vm39, %v2599, 0
  %v2691 = vsel %vm39, %v2600, 0
  %v2694 = vsel %vm39, %v2601, 0
  %v2697 = vsel %vm39, %v2602, 0
  %v2700 = vsel %vm39, %v2603, 0
  %v2703 = vsel %vm39, %v2604, 0
  %v2706 = vsel %vm39, %v2605, 0
  %v2709 = vsel %vm39, %v2606, 0
  %v2712 = vsel %vm39, %v2607, 0
  %v2715 = vsel %vm39, %v2608, 0
  %v2718 = vsel %vm39, %v2609, 0
  %v2721 = vsel %vm39, %v2610, 0
  %v2724 = vsel %vm39, %v2611, 0
  %v2727 = vsel %vm39, %v2612, 0
  %v2730 = vsel %vm39, %v2613, 0
  %v2733 = vsel %vm417, %v2614, 0
  %2735 = vmatpush.bf16.msra.mxu0 0
  %2736 = vmatpush.bf16.msra.mxu0 0
  %2737 = vmatpush.bf16.msra.mxu0 0
  %2738 = vmatpush.bf16.msra.mxu0 0
  %2739 = vmatpush.bf16.msra.mxu0 0
  %2740 = vmatpush.bf16.msra.mxu0 0
  %2741 = vmatpush.bf16.msra.mxu0 0
  %2742 = vmatpush.bf16.msra.mxu0 %v2733
  %2743 = vmatmul.bf16.gmra.mxu0 %v2616
  %v2744 = vpop.f32.mrf.mxu0
  %v2745 = vadd.f32 0.0, %v2744
  %v2746 = vpop.f32.mrf.mxu0
  %v2747 = vadd.f32 0.0, %v2746
  %2748 = vmatmul.bf16.gmra.mxu0 %v2619
  %v2749 = vpop.f32.mrf.mxu0
  %v2750 = vadd.f32 0.0, %v2749
  %v2751 = vpop.f32.mrf.mxu0
  %v2752 = vadd.f32 0.0, %v2751
  %2753 = vmatmul.bf16.gmra.mxu0 %v2622
  %v2754 = vpop.f32.mrf.mxu0
  %v2755 = vadd.f32 0.0, %v2754
  %v2756 = vpop.f32.mrf.mxu0
  %v2757 = vadd.f32 0.0, %v2756
  %2758 = vmatmul.bf16.gmra.mxu0 %v2625
  %v2759 = vpop.f32.mrf.mxu0
  %v2760 = vadd.f32 0.0, %v2759
  %v2761 = vpop.f32.mrf.mxu0
  %v2762 = vadd.f32 0.0, %v2761
  %2763 = vmatmul.bf16.gmra.mxu0 %v2628
  %v2764 = vpop.f32.mrf.mxu0
  %v2765 = vadd.f32 0.0, %v2764
  %v2766 = vpop.f32.mrf.mxu0
  %v2767 = vadd.f32 0.0, %v2766
  %2768 = vmatmul.bf16.gmra.mxu0 %v2631
  %v2769 = vpop.f32.mrf.mxu0
  %v2770 = vadd.f32 0.0, %v2769
  %v2771 = vpop.f32.mrf.mxu0
  %v2772 = vadd.f32 0.0, %v2771
  %2773 = vmatmul.bf16.gmra.mxu0 %v2634
  %v2774 = vpop.f32.mrf.mxu0
  %v2775 = vadd.f32 0.0, %v2774
  %v2776 = vpop.f32.mrf.mxu0
  %v2777 = vadd.f32 0.0, %v2776
  %2778 = vmatmul.bf16.gmra.mxu0 %v2637
  %v2779 = vpop.f32.mrf.mxu0
  %v2780 = vadd.f32 0.0, %v2779
  %v2781 = vpop.f32.mrf.mxu0
  %v2782 = vadd.f32 0.0, %v2781
  %2783 = vmatmul.bf16.gmra.mxu0 %v2640
  %v2784 = vpop.f32.mrf.mxu0
  %v2785 = vadd.f32 0.0, %v2784
  %v2786 = vpop.f32.mrf.mxu0
  %v2787 = vadd.f32 0.0, %v2786
  %2788 = vmatmul.bf16.gmra.mxu0 %v2643
  %v2789 = vpop.f32.mrf.mxu0
  %v2790 = vadd.f32 0.0, %v2789
  %v2791 = vpop.f32.mrf.mxu0
  %v2792 = vadd.f32 0.0, %v2791
  %2793 = vmatmul.bf16.gmra.mxu0 %v2646
  %v2794 = vpop.f32.mrf.mxu0
  %v2795 = vadd.f32 0.0, %v2794
  %v2796 = vpop.f32.mrf.mxu0
  %v2797 = vadd.f32 0.0, %v2796
  %2798 = vmatmul.bf16.gmra.mxu0 %v2649
  %v2799 = vpop.f32.mrf.mxu0
  %v2800 = vadd.f32 0.0, %v2799
  %v2801 = vpop.f32.mrf.mxu0
  %v2802 = vadd.f32 0.0, %v2801
  %2803 = vmatmul.bf16.gmra.mxu0 %v2652
  %v2804 = vpop.f32.mrf.mxu0
  %v2805 = vadd.f32 0.0, %v2804
  %v2806 = vpop.f32.mrf.mxu0
  %v2807 = vadd.f32 0.0, %v2806
  %2808 = vmatmul.bf16.gmra.mxu0 %v2655
  %v2809 = vpop.f32.mrf.mxu0
  %v2810 = vadd.f32 0.0, %v2809
  %v2811 = vpop.f32.mrf.mxu0
  %v2812 = vadd.f32 0.0, %v2811
  %2813 = vmatmul.bf16.gmra.mxu0 %v2658
  %v2814 = vpop.f32.mrf.mxu0
  %v2815 = vadd.f32 0.0, %v2814
  %v2816 = vpop.f32.mrf.mxu0
  %v2817 = vadd.f32 0.0, %v2816
  %2818 = vmatmul.bf16.gmra.mxu0 %v2661
  %v2819 = vpop.f32.mrf.mxu0
  %v2820 = vadd.f32 0.0, %v2819
  %v2821 = vpop.f32.mrf.mxu0
  %v2822 = vadd.f32 0.0, %v2821
  %2823 = vmatmul.bf16.gmra.mxu0 %v2664
  %v2824 = vpop.f32.mrf.mxu0
  %v2825 = vadd.f32 0.0, %v2824
  %v2826 = vpop.f32.mrf.mxu0
  %v2827 = vadd.f32 0.0, %v2826
  %2828 = vmatmul.bf16.gmra.mxu0 %v2667
  %v2829 = vpop.f32.mrf.mxu0
  %v2830 = vadd.f32 0.0, %v2829
  %v2831 = vpop.f32.mrf.mxu0
  %v2832 = vadd.f32 0.0, %v2831
  %2833 = vmatmul.bf16.gmra.mxu0 %v2670
  %v2834 = vpop.f32.mrf.mxu0
  %v2835 = vadd.f32 0.0, %v2834
  %v2836 = vpop.f32.mrf.mxu0
  %v2837 = vadd.f32 0.0, %v2836
  %2838 = vmatmul.bf16.gmra.mxu0 %v2673
  %v2839 = vpop.f32.mrf.mxu0
  %v2840 = vadd.f32 0.0, %v2839
  %v2841 = vpop.f32.mrf.mxu0
  %v2842 = vadd.f32 0.0, %v2841
  %2843 = vmatmul.bf16.gmra.mxu0 %v2676
  %v2844 = vpop.f32.mrf.mxu0
  %v2845 = vadd.f32 0.0, %v2844
  %v2846 = vpop.f32.mrf.mxu0
  %v2847 = vadd.f32 0.0, %v2846
  %2848 = vmatmul.bf16.gmra.mxu0 %v2679
  %v2849 = vpop.f32.mrf.mxu0
  %v2850 = vadd.f32 0.0, %v2849
  %v2851 = vpop.f32.mrf.mxu0
  %v2852 = vadd.f32 0.0, %v2851
  %2853 = vmatmul.bf16.gmra.mxu0 %v2682
  %v2854 = vpop.f32.mrf.mxu0
  %v2855 = vadd.f32 0.0, %v2854
  %v2856 = vpop.f32.mrf.mxu0
  %v2857 = vadd.f32 0.0, %v2856
  %2858 = vmatmul.bf16.gmra.mxu0 %v2685
  %v2859 = vpop.f32.mrf.mxu0
  %v2860 = vadd.f32 0.0, %v2859
  %v2861 = vpop.f32.mrf.mxu0
  %v2862 = vadd.f32 0.0, %v2861
  %2863 = vmatmul.bf16.gmra.mxu0 %v2688
  %v2864 = vpop.f32.mrf.mxu0
  %v2865 = vadd.f32 0.0, %v2864
  %v2866 = vpop.f32.mrf.mxu0
  %v2867 = vadd.f32 0.0, %v2866
  %2868 = vmatmul.bf16.gmra.mxu0 %v2691
  %v2869 = vpop.f32.mrf.mxu0
  %v2870 = vadd.f32 0.0, %v2869
  %v2871 = vpop.f32.mrf.mxu0
  %v2872 = vadd.f32 0.0, %v2871
  %2873 = vmatmul.bf16.gmra.mxu0 %v2694
  %v2874 = vpop.f32.mrf.mxu0
  %v2875 = vadd.f32 0.0, %v2874
  %v2876 = vpop.f32.mrf.mxu0
  %v2877 = vadd.f32 0.0, %v2876
  %2878 = vmatmul.bf16.gmra.mxu0 %v2697
  %v2879 = vpop.f32.mrf.mxu0
  %v2880 = vadd.f32 0.0, %v2879
  %v2881 = vpop.f32.mrf.mxu0
  %v2882 = vadd.f32 0.0, %v2881
  %2883 = vmatmul.bf16.gmra.mxu0 %v2700
  %v2884 = vpop.f32.mrf.mxu0
  %v2885 = vadd.f32 0.0, %v2884
  %v2886 = vpop.f32.mrf.mxu0
  %v2887 = vadd.f32 0.0, %v2886
  %2888 = vmatmul.bf16.gmra.mxu0 %v2703
  %v2889 = vpop.f32.mrf.mxu0
  %v2890 = vadd.f32 0.0, %v2889
  %v2891 = vpop.f32.mrf.mxu0
  %v2892 = vadd.f32 0.0, %v2891
  %2893 = vmatmul.bf16.gmra.mxu0 %v2706
  %v2894 = vpop.f32.mrf.mxu0
  %v2895 = vadd.f32 0.0, %v2894
  %v2896 = vpop.f32.mrf.mxu0
  %v2897 = vadd.f32 0.0, %v2896
  %2898 = vmatmul.bf16.gmra.mxu0 %v2709
  %v2899 = vpop.f32.mrf.mxu0
  %v2900 = vadd.f32 0.0, %v2899
  %v2901 = vpop.f32.mrf.mxu0
  %v2902 = vadd.f32 0.0, %v2901
  %2903 = vmatmul.bf16.gmra.mxu0 %v2712
  %v2904 = vpop.f32.mrf.mxu0
  %v2905 = vadd.f32 0.0, %v2904
  %v2906 = vpop.f32.mrf.mxu0
  %v2907 = vadd.f32 0.0, %v2906
  %2908 = vmatmul.bf16.gmra.mxu0 %v2715
  %v2909 = vpop.f32.mrf.mxu0
  %v2910 = vadd.f32 0.0, %v2909
  %v2911 = vpop.f32.mrf.mxu0
  %v2912 = vadd.f32 0.0, %v2911
  %2913 = vmatmul.bf16.gmra.mxu0 %v2718
  %v2914 = vpop.f32.mrf.mxu0
  %v2915 = vadd.f32 0.0, %v2914
  %v2916 = vpop.f32.mrf.mxu0
  %v2917 = vadd.f32 0.0, %v2916
  %2918 = vmatmul.bf16.gmra.mxu0 %v2721
  %v2919 = vpop.f32.mrf.mxu0
  %v2920 = vadd.f32 0.0, %v2919
  %v2921 = vpop.f32.mrf.mxu0
  %v2922 = vadd.f32 0.0, %v2921
  %2923 = vmatmul.bf16.gmra.mxu0 %v2724
  %v2924 = vpop.f32.mrf.mxu0
  %v2925 = vadd.f32 0.0, %v2924
  %v2926 = vpop.f32.mrf.mxu0
  %v2927 = vadd.f32 0.0, %v2926
  %2928 = vmatmul.bf16.gmra.mxu0 %v2727
  %v2929 = vpop.f32.mrf.mxu0
  %v2930 = vadd.f32 0.0, %v2929
  %v2931 = vpop.f32.mrf.mxu0
  %v2932 = vadd.f32 0.0, %v2931
  %2933 = vmatmul.bf16.gmra.mxu0 %v2730
  %v2934 = vpop.f32.mrf.mxu0
  %v2935 = vadd.f32 0.0, %v2934
  %v2936 = vpop.f32.mrf.mxu0
  %2937 = vdwg.mxu0
  %v2938 = vadd.f32 %v2421, %v2745
  %v2939 = vadd.f32 %v2422, %v2747
  %v2940 = vadd.f32 %v2423, %v2750
  %v2941 = vadd.f32 %v2424, %v2752
  %v2942 = vadd.f32 %v2425, %v2755
  %v2943 = vadd.f32 %v2426, %v2757
  %v2944 = vadd.f32 %v2427, %v2760
  %v2945 = vadd.f32 %v2428, %v2762
  %v2946 = vadd.f32 %v2429, %v2765
  %v2947 = vadd.f32 %v2430, %v2767
  %v2948 = vadd.f32 %v2431, %v2770
  %v2949 = vadd.f32 %v2432, %v2772
  %v2950 = vadd.f32 %v2433, %v2775
  %v2951 = vadd.f32 %v2434, %v2777
  %v2952 = vadd.f32 %v2435, %v2780
  %v2953 = vadd.f32 %v2436, %v2782
  %v2954 = vadd.f32 %v2437, %v2785
  %v2955 = vadd.f32 %v2438, %v2787
  %v2956 = vadd.f32 %v2439, %v2790
  %v2957 = vadd.f32 %v2440, %v2792
  %v2958 = vadd.f32 %v2441, %v2795
  %v2959 = vadd.f32 %v2442, %v2797
  %v2960 = vadd.f32 %v2443, %v2800
  %v2961 = vadd.f32 %v2444, %v2802
  %v2962 = vadd.f32 %v2445, %v2805
  %v2963 = vadd.f32 %v2446, %v2807
  %v2964 = vadd.f32 %v2447, %v2810
  %v2965 = vadd.f32 %v2448, %v2812
  %v2966 = vadd.f32 %v2449, %v2815
  %v2967 = vadd.f32 %v2450, %v2817
  %v2968 = vadd.f32 %v2451, %v2820
  %v2969 = vadd.f32 %v2452, %v2822
  %v2970 = vadd.f32 %v2453, %v2825
  %v2971 = vadd.f32 %v2454, %v2827
  %v2972 = vadd.f32 %v2455, %v2830
  %v2973 = vadd.f32 %v2456, %v2832
  %v2974 = vadd.f32 %v2457, %v2835
  %v2975 = vadd.f32 %v2458, %v2837
  %v2976 = vadd.f32 %v2459, %v2840
  %v2977 = vadd.f32 %v2460, %v2842
  %v2978 = vadd.f32 %v2461, %v2845
  %v2979 = vadd.f32 %v2462, %v2847
  %v2980 = vadd.f32 %v2463, %v2850
  %v2981 = vadd.f32 %v2464, %v2852
  %v2982 = vadd.f32 %v2465, %v2855
  %v2983 = vadd.f32 %v2466, %v2857
  %v2984 = vadd.f32 %v2467, %v2860
  %v2985 = vadd.f32 %v2468, %v2862
  %v2986 = vadd.f32 %v2469, %v2865
  %v2987 = vadd.f32 %v2470, %v2867
  %v2988 = vadd.f32 %v2471, %v2870
  %v2989 = vadd.f32 %v2472, %v2872
  %v2990 = vadd.f32 %v2473, %v2875
  %v2991 = vadd.f32 %v2474, %v2877
  %v2992 = vadd.f32 %v2475, %v2880
  %v2993 = vadd.f32 %v2476, %v2882
  %v2994 = vadd.f32 %v2477, %v2885
  %v2995 = vadd.f32 %v2478, %v2887
  %v2996 = vadd.f32 %v2479, %v2890
  %v2997 = vadd.f32 %v2480, %v2892
  %v2998 = vadd.f32 %v2481, %v2895
  %v2999 = vadd.f32 %v2482, %v2897
  %v3000 = vadd.f32 %v2483, %v2900
  %v3001 = vadd.f32 %v2484, %v2902
  %v3002 = vadd.f32 %v2485, %v2905
  %v3003 = vadd.f32 %v2486, %v2907
  %v3004 = vadd.f32 %v2487, %v2910
  %v3005 = vadd.f32 %v2488, %v2912
  %v3006 = vadd.f32 %v2489, %v2915
  %v3007 = vadd.f32 %v2490, %v2917
  %v3008 = vadd.f32 %v2491, %v2920
  %v3009 = vadd.f32 %v2492, %v2922
  %v3010 = vadd.f32 %v2493, %v2925
  %v3011 = vadd.f32 %v2494, %v2927
  %v3012 = vadd.f32 %v2495, %v2930
  %v3013 = vadd.f32 %v2496, %v2932
  %v3014 = vadd.f32 %v2497, %v2935
  %v3015 = vld [vmem:[%s0 + $0x24] sm:$0xff]
  %v3016 = vld [vmem:[%s0 + $0x2c] sm:$0xff]
  %v3017 = vld [vmem:[%s0 + $0x34] sm:$0xff]
  %v3018 = vld [vmem:[%s0 + $0x3c] sm:$0xff]
  %v3019 = vld [vmem:[%s0 + $0x44] sm:$0xff]
  %v3020 = vld [vmem:[%s0 + $0x4c] sm:$0xff]
  %v3021 = vld [vmem:[%s0 + $0x54] sm:$0xff]
  %v3022 = vld [vmem:[%s0 + $0x5c] sm:$0xff]
  %v3023 = vld [vmem:[%s0 + $0x64] sm:$0xff]
  %v3024 = vld [vmem:[%s0 + $0x6c] sm:$0xff]
  %v3025 = vld [vmem:[%s0 + $0x74] sm:$0xff]
  %v3026 = vld [vmem:[%s0 + $0x7c] sm:$0xff]
  %v3027 = vld [vmem:[%s0 + $0x84] sm:$0xff]
  %v3028 = vld [vmem:[%s0 + $0x8c] sm:$0xff]
  %v3029 = vld [vmem:[%s0 + $0x94] sm:$0xff]
  %v3030 = vld [vmem:[%s0 + $0x9c] sm:$0xff]
  %v3031 = vld [vmem:[%s0 + $0xa4] sm:$0xff]
  %v3032 = vld [vmem:[%s0 + $0xac] sm:$0xff]
  %v3033 = vld [vmem:[%s0 + $0xb4] sm:$0xff]
  %v3034 = vld [vmem:[%s0 + $0xbc] sm:$0xff]
  %v3035 = vld [vmem:[%s0 + $0xc4] sm:$0xff]
  %v3036 = vld [vmem:[%s0 + $0xcc] sm:$0xff]
  %v3037 = vld [vmem:[%s0 + $0xd4] sm:$0xff]
  %v3038 = vld [vmem:[%s0 + $0xdc] sm:$0xff]
  %v3039 = vld [vmem:[%s0 + $0xe4] sm:$0xff]
  %v3040 = vld [vmem:[%s0 + $0xec] sm:$0xff]
  %v3041 = vld [vmem:[%s0 + $0xf4] sm:$0xff]
  %v3042 = vld [vmem:[%s0 + $0xfc] sm:$0xff]
  %v3043 = vld [vmem:[%s0 + $0x104] sm:$0xff]
  %v3044 = vld [vmem:[%s0 + $0x10c] sm:$0xff]
  %v3045 = vld [vmem:[%s0 + $0x114] sm:$0xff]
  %v3046 = vld [vmem:[%s0 + $0x11c] sm:$0xff]
  %v3047 = vld [vmem:[%s0 + $0x124] sm:$0xff]
  %v3048 = vld [vmem:[%s0 + $0x12c] sm:$0xff]
  %v3049 = vld [vmem:[%s0 + $0x134] sm:$0xff]
  %v3050 = vld [vmem:[%s0 + $0x13c] sm:$0xff]
  %v3051 = vld [vmem:[%s0 + $0x144] sm:$0xff]
  %v3052 = vld [vmem:[%s0 + $0x14c] sm:$0xff]
  %v3053 = vld [vmem:[%s0 + $0x154] sm:$0xff]
  %v3054 = vld [vmem:[%s0 + $0x15c] sm:$0xff]
  %v3055 = vld [vmem:[%s0 + $0x164] sm:$0xff]
  %v3056 = vld [vmem:[%s0 + $0x16c] sm:$0xff]
  %v3057 = vld [vmem:[%s0 + $0x174] sm:$0xff]
  %v3058 = vld [vmem:[%s0 + $0x17c] sm:$0xff]
  %v3059 = vld [vmem:[%s0 + $0x184] sm:$0xff]
  %v3060 = vld [vmem:[%s0 + $0x18c] sm:$0xff]
  %v3061 = vld [vmem:[%s0 + $0x194] sm:$0xff]
  %v3062 = vld [vmem:[%s0 + $0x19c] sm:$0xff]
  %v3063 = vld [vmem:[%s0 + $0x1a4] sm:$0xff]
  %v3064 = vld [vmem:[%s0 + $0x1ac] sm:$0xff]
  %v3065 = vld [vmem:[%s0 + $0x1b4] sm:$0xff]
  %v3066 = vld [vmem:[%s0 + $0x1bc] sm:$0xff]
  %v3067 = vld [vmem:[%s0 + $0x1c4] sm:$0xff]
  %v3068 = vld [vmem:[%s0 + $0x1cc] sm:$0xff]
  %v3069 = vld [vmem:[%s0 + $0x1d4] sm:$0xff]
  %v3070 = vld [vmem:[%s0 + $0x1dc] sm:$0xff]
  %v3071 = vld [vmem:[%s0 + $0x1e4] sm:$0xff]
  %v3072 = vld [vmem:[%s0 + $0x1ec] sm:$0xff]
  %v3073 = vld [vmem:[%s0 + $0x1f4] sm:$0xff]
  %v3074 = vld [vmem:[%s0 + $0x1fc] sm:$0xff]
  %v3075 = vld [vmem:[%s0 + $0x204] sm:$0xff]
  %v3076 = vld [vmem:[%s0 + $0x20c] sm:$0xff]
  %v3077 = vld [vmem:[%s0 + $0x214] sm:$0xff]
  %v3078 = vld [vmem:[%s0 + $0x21c] sm:$0xff]
  %v3079 = vld [vmem:[%s0 + $0x224] sm:$0xff]
  %v3080 = vld [vmem:[%s0 + $0x22c] sm:$0xff]
  %v3081 = vld [vmem:[%s0 + $0x234] sm:$0xff]
  %v3082 = vld [vmem:[%s0 + $0x23c] sm:$0xff]
  %v3083 = vld [vmem:[%s0 + $0x244] sm:$0xff]
  %v3084 = vld [vmem:[%s0 + $0x24c] sm:$0xff]
  %v3085 = vld [vmem:[%s0 + $0x254] sm:$0xff]
  %v3086 = vld [vmem:[%s0 + $0x25c] sm:$0xff]
  %v3087 = vld [vmem:[%s0 + $0x264] sm:$0xff]
  %v3088 = vld [vmem:[%s0 + $0x26c] sm:$0xff]
  %v3089 = vld [vmem:[%s0 + $0x274] sm:$0xff]
  %v3090 = vld [vmem:[%s0 + $0x27c] sm:$0xff]
  %v3091 = vld [vmem:[%s0 + $0x284] sm:$0xf]
  %v3092 = vpack.c.bf16 %v3016, %v3015
  %v3093 = vpack.c.bf16 %v3018, %v3017
  %v3094 = vpack.c.bf16 %v3020, %v3019
  %v3095 = vpack.c.bf16 %v3022, %v3021
  %v3096 = vpack.c.bf16 %v3024, %v3023
  %v3097 = vpack.c.bf16 %v3026, %v3025
  %v3098 = vpack.c.bf16 %v3028, %v3027
  %v3099 = vpack.c.bf16 %v3030, %v3029
  %v3100 = vpack.c.bf16 %v3032, %v3031
  %v3101 = vpack.c.bf16 %v3034, %v3033
  %v3102 = vpack.c.bf16 %v3036, %v3035
  %v3103 = vpack.c.bf16 %v3038, %v3037
  %v3104 = vpack.c.bf16 %v3040, %v3039
  %v3105 = vpack.c.bf16 %v3042, %v3041
  %v3106 = vpack.c.bf16 %v3044, %v3043
  %v3107 = vpack.c.bf16 %v3046, %v3045
  %v3108 = vpack.c.bf16 %v3048, %v3047
  %v3109 = vpack.c.bf16 %v3050, %v3049
  %v3110 = vpack.c.bf16 %v3052, %v3051
  %v3111 = vpack.c.bf16 %v3054, %v3053
  %v3112 = vpack.c.bf16 %v3056, %v3055
  %v3113 = vpack.c.bf16 %v3058, %v3057
  %v3114 = vpack.c.bf16 %v3060, %v3059
  %v3115 = vpack.c.bf16 %v3062, %v3061
  %v3116 = vpack.c.bf16 %v3064, %v3063
  %v3117 = vpack.c.bf16 %v3066, %v3065
  %v3118 = vpack.c.bf16 %v3068, %v3067
  %v3119 = vpack.c.bf16 %v3070, %v3069
  %v3120 = vpack.c.bf16 %v3072, %v3071
  %v3121 = vpack.c.bf16 %v3074, %v3073
  %v3122 = vpack.c.bf16 %v3076, %v3075
  %v3123 = vpack.c.bf16 %v3078, %v3077
  %v3124 = vpack.c.bf16 %v3080, %v3079
  %v3125 = vpack.c.bf16 %v3082, %v3081
  %v3126 = vpack.c.bf16 %v3084, %v3083
  %v3127 = vpack.c.bf16 %v3086, %v3085
  %v3128 = vpack.c.bf16 %v3088, %v3087
  %v3129 = vpack.c.bf16 %v3090, %v3089
  %v3130 = vpack.c.bf16 %v3091, %v3091
  %v3131 = vld [vmem:[%s1 + $0x18] sm:$0xf]
  %v3133 = vsel %vm39, %v3092, 0
  %v3136 = vsel %vm39, %v3093, 0
  %v3139 = vsel %vm39, %v3094, 0
  %v3142 = vsel %vm39, %v3095, 0
  %v3145 = vsel %vm39, %v3096, 0
  %v3148 = vsel %vm39, %v3097, 0
  %v3151 = vsel %vm39, %v3098, 0
  %v3154 = vsel %vm39, %v3099, 0
  %v3157 = vsel %vm39, %v3100, 0
  %v3160 = vsel %vm39, %v3101, 0
  %v3163 = vsel %vm39, %v3102, 0
  %v3166 = vsel %vm39, %v3103, 0
  %v3169 = vsel %vm39, %v3104, 0
  %v3172 = vsel %vm39, %v3105, 0
  %v3175 = vsel %vm39, %v3106, 0
  %v3178 = vsel %vm39, %v3107, 0
  %v3181 = vsel %vm39, %v3108, 0
  %v3184 = vsel %vm39, %v3109, 0
  %v3187 = vsel %vm39, %v3110, 0
  %v3190 = vsel %vm39, %v3111, 0
  %v3193 = vsel %vm39, %v3112, 0
  %v3196 = vsel %vm39, %v3113, 0
  %v3199 = vsel %vm39, %v3114, 0
  %v3202 = vsel %vm39, %v3115, 0
  %v3205 = vsel %vm39, %v3116, 0
  %v3208 = vsel %vm39, %v3117, 0
  %v3211 = vsel %vm39, %v3118, 0
  %v3214 = vsel %vm39, %v3119, 0
  %v3217 = vsel %vm39, %v3120, 0
  %v3220 = vsel %vm39, %v3121, 0
  %v3223 = vsel %vm39, %v3122, 0
  %v3226 = vsel %vm39, %v3123, 0
  %v3229 = vsel %vm39, %v3124, 0
  %v3232 = vsel %vm39, %v3125, 0
  %v3235 = vsel %vm39, %v3126, 0
  %v3238 = vsel %vm39, %v3127, 0
  %v3241 = vsel %vm39, %v3128, 0
  %v3244 = vsel %vm39, %v3129, 0
  %v3247 = vsel %vm39, %v3130, 0
  %v3250 = vsel %vm417, %v3131, 0
  %3252 = vmatpush.bf16.msra.mxu0 0
  %3253 = vmatpush.bf16.msra.mxu0 0
  %3254 = vmatpush.bf16.msra.mxu0 0
  %3255 = vmatpush.bf16.msra.mxu0 0
  %3256 = vmatpush.bf16.msra.mxu0 0
  %3257 = vmatpush.bf16.msra.mxu0 0
  %3258 = vmatpush.bf16.msra.mxu0 0
  %3259 = vmatpush.bf16.msra.mxu0 %v3250
  %3260 = vmatmul.bf16.gmra.mxu0 %v3133
  %v3261 = vpop.f32.mrf.mxu0
  %v3262 = vadd.f32 0.0, %v3261
  %v3263 = vpop.f32.mrf.mxu0
  %v3264 = vadd.f32 0.0, %v3263
  %3265 = vmatmul.bf16.gmra.mxu0 %v3136
  %v3266 = vpop.f32.mrf.mxu0
  %v3267 = vadd.f32 0.0, %v3266
  %v3268 = vpop.f32.mrf.mxu0
  %v3269 = vadd.f32 0.0, %v3268
  %3270 = vmatmul.bf16.gmra.mxu0 %v3139
  %v3271 = vpop.f32.mrf.mxu0
  %v3272 = vadd.f32 0.0, %v3271
  %v3273 = vpop.f32.mrf.mxu0
  %v3274 = vadd.f32 0.0, %v3273
  %3275 = vmatmul.bf16.gmra.mxu0 %v3142
  %v3276 = vpop.f32.mrf.mxu0
  %v3277 = vadd.f32 0.0, %v3276
  %v3278 = vpop.f32.mrf.mxu0
  %v3279 = vadd.f32 0.0, %v3278
  %3280 = vmatmul.bf16.gmra.mxu0 %v3145
  %v3281 = vpop.f32.mrf.mxu0
  %v3282 = vadd.f32 0.0, %v3281
  %v3283 = vpop.f32.mrf.mxu0
  %v3284 = vadd.f32 0.0, %v3283
  %3285 = vmatmul.bf16.gmra.mxu0 %v3148
  %v3286 = vpop.f32.mrf.mxu0
  %v3287 = vadd.f32 0.0, %v3286
  %v3288 = vpop.f32.mrf.mxu0
  %v3289 = vadd.f32 0.0, %v3288
  %3290 = vmatmul.bf16.gmra.mxu0 %v3151
  %v3291 = vpop.f32.mrf.mxu0
  %v3292 = vadd.f32 0.0, %v3291
  %v3293 = vpop.f32.mrf.mxu0
  %v3294 = vadd.f32 0.0, %v3293
  %3295 = vmatmul.bf16.gmra.mxu0 %v3154
  %v3296 = vpop.f32.mrf.mxu0
  %v3297 = vadd.f32 0.0, %v3296
  %v3298 = vpop.f32.mrf.mxu0
  %v3299 = vadd.f32 0.0, %v3298
  %3300 = vmatmul.bf16.gmra.mxu0 %v3157
  %v3301 = vpop.f32.mrf.mxu0
  %v3302 = vadd.f32 0.0, %v3301
  %v3303 = vpop.f32.mrf.mxu0
  %v3304 = vadd.f32 0.0, %v3303
  %3305 = vmatmul.bf16.gmra.mxu0 %v3160
  %v3306 = vpop.f32.mrf.mxu0
  %v3307 = vadd.f32 0.0, %v3306
  %v3308 = vpop.f32.mrf.mxu0
  %v3309 = vadd.f32 0.0, %v3308
  %3310 = vmatmul.bf16.gmra.mxu0 %v3163
  %v3311 = vpop.f32.mrf.mxu0
  %v3312 = vadd.f32 0.0, %v3311
  %v3313 = vpop.f32.mrf.mxu0
  %v3314 = vadd.f32 0.0, %v3313
  %3315 = vmatmul.bf16.gmra.mxu0 %v3166
  %v3316 = vpop.f32.mrf.mxu0
  %v3317 = vadd.f32 0.0, %v3316
  %v3318 = vpop.f32.mrf.mxu0
  %v3319 = vadd.f32 0.0, %v3318
  %3320 = vmatmul.bf16.gmra.mxu0 %v3169
  %v3321 = vpop.f32.mrf.mxu0
  %v3322 = vadd.f32 0.0, %v3321
  %v3323 = vpop.f32.mrf.mxu0
  %v3324 = vadd.f32 0.0, %v3323
  %3325 = vmatmul.bf16.gmra.mxu0 %v3172
  %v3326 = vpop.f32.mrf.mxu0
  %v3327 = vadd.f32 0.0, %v3326
  %v3328 = vpop.f32.mrf.mxu0
  %v3329 = vadd.f32 0.0, %v3328
  %3330 = vmatmul.bf16.gmra.mxu0 %v3175
  %v3331 = vpop.f32.mrf.mxu0
  %v3332 = vadd.f32 0.0, %v3331
  %v3333 = vpop.f32.mrf.mxu0
  %v3334 = vadd.f32 0.0, %v3333
  %3335 = vmatmul.bf16.gmra.mxu0 %v3178
  %v3336 = vpop.f32.mrf.mxu0
  %v3337 = vadd.f32 0.0, %v3336
  %v3338 = vpop.f32.mrf.mxu0
  %v3339 = vadd.f32 0.0, %v3338
  %3340 = vmatmul.bf16.gmra.mxu0 %v3181
  %v3341 = vpop.f32.mrf.mxu0
  %v3342 = vadd.f32 0.0, %v3341
  %v3343 = vpop.f32.mrf.mxu0
  %v3344 = vadd.f32 0.0, %v3343
  %3345 = vmatmul.bf16.gmra.mxu0 %v3184
  %v3346 = vpop.f32.mrf.mxu0
  %v3347 = vadd.f32 0.0, %v3346
  %v3348 = vpop.f32.mrf.mxu0
  %v3349 = vadd.f32 0.0, %v3348
  %3350 = vmatmul.bf16.gmra.mxu0 %v3187
  %v3351 = vpop.f32.mrf.mxu0
  %v3352 = vadd.f32 0.0, %v3351
  %v3353 = vpop.f32.mrf.mxu0
  %v3354 = vadd.f32 0.0, %v3353
  %3355 = vmatmul.bf16.gmra.mxu0 %v3190
  %v3356 = vpop.f32.mrf.mxu0
  %v3357 = vadd.f32 0.0, %v3356
  %v3358 = vpop.f32.mrf.mxu0
  %v3359 = vadd.f32 0.0, %v3358
  %3360 = vmatmul.bf16.gmra.mxu0 %v3193
  %v3361 = vpop.f32.mrf.mxu0
  %v3362 = vadd.f32 0.0, %v3361
  %v3363 = vpop.f32.mrf.mxu0
  %v3364 = vadd.f32 0.0, %v3363
  %3365 = vmatmul.bf16.gmra.mxu0 %v3196
  %v3366 = vpop.f32.mrf.mxu0
  %v3367 = vadd.f32 0.0, %v3366
  %v3368 = vpop.f32.mrf.mxu0
  %v3369 = vadd.f32 0.0, %v3368
  %3370 = vmatmul.bf16.gmra.mxu0 %v3199
  %v3371 = vpop.f32.mrf.mxu0
  %v3372 = vadd.f32 0.0, %v3371
  %v3373 = vpop.f32.mrf.mxu0
  %v3374 = vadd.f32 0.0, %v3373
  %3375 = vmatmul.bf16.gmra.mxu0 %v3202
  %v3376 = vpop.f32.mrf.mxu0
  %v3377 = vadd.f32 0.0, %v3376
  %v3378 = vpop.f32.mrf.mxu0
  %v3379 = vadd.f32 0.0, %v3378
  %3380 = vmatmul.bf16.gmra.mxu0 %v3205
  %v3381 = vpop.f32.mrf.mxu0
  %v3382 = vadd.f32 0.0, %v3381
  %v3383 = vpop.f32.mrf.mxu0
  %v3384 = vadd.f32 0.0, %v3383
  %3385 = vmatmul.bf16.gmra.mxu0 %v3208
  %v3386 = vpop.f32.mrf.mxu0
  %v3387 = vadd.f32 0.0, %v3386
  %v3388 = vpop.f32.mrf.mxu0
  %v3389 = vadd.f32 0.0, %v3388
  %3390 = vmatmul.bf16.gmra.mxu0 %v3211
  %v3391 = vpop.f32.mrf.mxu0
  %v3392 = vadd.f32 0.0, %v3391
  %v3393 = vpop.f32.mrf.mxu0
  %v3394 = vadd.f32 0.0, %v3393
  %3395 = vmatmul.bf16.gmra.mxu0 %v3214
  %v3396 = vpop.f32.mrf.mxu0
  %v3397 = vadd.f32 0.0, %v3396
  %v3398 = vpop.f32.mrf.mxu0
  %v3399 = vadd.f32 0.0, %v3398
  %3400 = vmatmul.bf16.gmra.mxu0 %v3217
  %v3401 = vpop.f32.mrf.mxu0
  %v3402 = vadd.f32 0.0, %v3401
  %v3403 = vpop.f32.mrf.mxu0
  %v3404 = vadd.f32 0.0, %v3403
  %3405 = vmatmul.bf16.gmra.mxu0 %v3220
  %v3406 = vpop.f32.mrf.mxu0
  %v3407 = vadd.f32 0.0, %v3406
  %v3408 = vpop.f32.mrf.mxu0
  %v3409 = vadd.f32 0.0, %v3408
  %3410 = vmatmul.bf16.gmra.mxu0 %v3223
  %v3411 = vpop.f32.mrf.mxu0
  %v3412 = vadd.f32 0.0, %v3411
  %v3413 = vpop.f32.mrf.mxu0
  %v3414 = vadd.f32 0.0, %v3413
  %3415 = vmatmul.bf16.gmra.mxu0 %v3226
  %v3416 = vpop.f32.mrf.mxu0
  %v3417 = vadd.f32 0.0, %v3416
  %v3418 = vpop.f32.mrf.mxu0
  %v3419 = vadd.f32 0.0, %v3418
  %3420 = vmatmul.bf16.gmra.mxu0 %v3229
  %v3421 = vpop.f32.mrf.mxu0
  %v3422 = vadd.f32 0.0, %v3421
  %v3423 = vpop.f32.mrf.mxu0
  %v3424 = vadd.f32 0.0, %v3423
  %3425 = vmatmul.bf16.gmra.mxu0 %v3232
  %v3426 = vpop.f32.mrf.mxu0
  %v3427 = vadd.f32 0.0, %v3426
  %v3428 = vpop.f32.mrf.mxu0
  %v3429 = vadd.f32 0.0, %v3428
  %3430 = vmatmul.bf16.gmra.mxu0 %v3235
  %v3431 = vpop.f32.mrf.mxu0
  %v3432 = vadd.f32 0.0, %v3431
  %v3433 = vpop.f32.mrf.mxu0
  %v3434 = vadd.f32 0.0, %v3433
  %3435 = vmatmul.bf16.gmra.mxu0 %v3238
  %v3436 = vpop.f32.mrf.mxu0
  %v3437 = vadd.f32 0.0, %v3436
  %v3438 = vpop.f32.mrf.mxu0
  %v3439 = vadd.f32 0.0, %v3438
  %3440 = vmatmul.bf16.gmra.mxu0 %v3241
  %v3441 = vpop.f32.mrf.mxu0
  %v3442 = vadd.f32 0.0, %v3441
  %v3443 = vpop.f32.mrf.mxu0
  %v3444 = vadd.f32 0.0, %v3443
  %3445 = vmatmul.bf16.gmra.mxu0 %v3244
  %v3446 = vpop.f32.mrf.mxu0
  %v3447 = vadd.f32 0.0, %v3446
  %v3448 = vpop.f32.mrf.mxu0
  %v3449 = vadd.f32 0.0, %v3448
  %3450 = vmatmul.bf16.gmra.mxu0 %v3247
  %v3451 = vpop.f32.mrf.mxu0
  %v3452 = vadd.f32 0.0, %v3451
  %v3453 = vpop.f32.mrf.mxu0
  %3454 = vdwg.mxu0
  %v3455 = vadd.f32 %v2938, %v3262
  %v3456 = vadd.f32 %v2939, %v3264
  %v3457 = vadd.f32 %v2940, %v3267
  %v3458 = vadd.f32 %v2941, %v3269
  %v3459 = vadd.f32 %v2942, %v3272
  %v3460 = vadd.f32 %v2943, %v3274
  %v3461 = vadd.f32 %v2944, %v3277
  %v3462 = vadd.f32 %v2945, %v3279
  %v3463 = vadd.f32 %v2946, %v3282
  %v3464 = vadd.f32 %v2947, %v3284
  %v3465 = vadd.f32 %v2948, %v3287
  %v3466 = vadd.f32 %v2949, %v3289
  %v3467 = vadd.f32 %v2950, %v3292
  %v3468 = vadd.f32 %v2951, %v3294
  %v3469 = vadd.f32 %v2952, %v3297
  %v3470 = vadd.f32 %v2953, %v3299
  %v3471 = vadd.f32 %v2954, %v3302
  %v3472 = vadd.f32 %v2955, %v3304
  %v3473 = vadd.f32 %v2956, %v3307
  %v3474 = vadd.f32 %v2957, %v3309
  %v3475 = vadd.f32 %v2958, %v3312
  %v3476 = vadd.f32 %v2959, %v3314
  %v3477 = vadd.f32 %v2960, %v3317
  %v3478 = vadd.f32 %v2961, %v3319
  %v3479 = vadd.f32 %v2962, %v3322
  %v3480 = vadd.f32 %v2963, %v3324
  %v3481 = vadd.f32 %v2964, %v3327
  %v3482 = vadd.f32 %v2965, %v3329
  %v3483 = vadd.f32 %v2966, %v3332
  %v3484 = vadd.f32 %v2967, %v3334
  %v3485 = vadd.f32 %v2968, %v3337
  %v3486 = vadd.f32 %v2969, %v3339
  %v3487 = vadd.f32 %v2970, %v3342
  %v3488 = vadd.f32 %v2971, %v3344
  %v3489 = vadd.f32 %v2972, %v3347
  %v3490 = vadd.f32 %v2973, %v3349
  %v3491 = vadd.f32 %v2974, %v3352
  %v3492 = vadd.f32 %v2975, %v3354
  %v3493 = vadd.f32 %v2976, %v3357
  %v3494 = vadd.f32 %v2977, %v3359
  %v3495 = vadd.f32 %v2978, %v3362
  %v3496 = vadd.f32 %v2979, %v3364
  %v3497 = vadd.f32 %v2980, %v3367
  %v3498 = vadd.f32 %v2981, %v3369
  %v3499 = vadd.f32 %v2982, %v3372
  %v3500 = vadd.f32 %v2983, %v3374
  %v3501 = vadd.f32 %v2984, %v3377
  %v3502 = vadd.f32 %v2985, %v3379
  %v3503 = vadd.f32 %v2986, %v3382
  %v3504 = vadd.f32 %v2987, %v3384
  %v3505 = vadd.f32 %v2988, %v3387
  %v3506 = vadd.f32 %v2989, %v3389
  %v3507 = vadd.f32 %v2990, %v3392
  %v3508 = vadd.f32 %v2991, %v3394
  %v3509 = vadd.f32 %v2992, %v3397
  %v3510 = vadd.f32 %v2993, %v3399
  %v3511 = vadd.f32 %v2994, %v3402
  %v3512 = vadd.f32 %v2995, %v3404
  %v3513 = vadd.f32 %v2996, %v3407
  %v3514 = vadd.f32 %v2997, %v3409
  %v3515 = vadd.f32 %v2998, %v3412
  %v3516 = vadd.f32 %v2999, %v3414
  %v3517 = vadd.f32 %v3000, %v3417
  %v3518 = vadd.f32 %v3001, %v3419
  %v3519 = vadd.f32 %v3002, %v3422
  %v3520 = vadd.f32 %v3003, %v3424
  %v3521 = vadd.f32 %v3004, %v3427
  %v3522 = vadd.f32 %v3005, %v3429
  %v3523 = vadd.f32 %v3006, %v3432
  %v3524 = vadd.f32 %v3007, %v3434
  %v3525 = vadd.f32 %v3008, %v3437
  %v3526 = vadd.f32 %v3009, %v3439
  %v3527 = vadd.f32 %v3010, %v3442
  %v3528 = vadd.f32 %v3011, %v3444
  %v3529 = vadd.f32 %v3012, %v3447
  %v3530 = vadd.f32 %v3013, %v3449
  %v3531 = vadd.f32 %v3014, %v3452
  %v3532 = vld [vmem:[%s0 + $0x25] sm:$0xff]
  %v3533 = vld [vmem:[%s0 + $0x2d] sm:$0xff]
  %v3534 = vld [vmem:[%s0 + $0x35] sm:$0xff]
  %v3535 = vld [vmem:[%s0 + $0x3d] sm:$0xff]
  %v3536 = vld [vmem:[%s0 + $0x45] sm:$0xff]
  %v3537 = vld [vmem:[%s0 + $0x4d] sm:$0xff]
  %v3538 = vld [vmem:[%s0 + $0x55] sm:$0xff]
  %v3539 = vld [vmem:[%s0 + $0x5d] sm:$0xff]
  %v3540 = vld [vmem:[%s0 + $0x65] sm:$0xff]
  %v3541 = vld [vmem:[%s0 + $0x6d] sm:$0xff]
  %v3542 = vld [vmem:[%s0 + $0x75] sm:$0xff]
  %v3543 = vld [vmem:[%s0 + $0x7d] sm:$0xff]
  %v3544 = vld [vmem:[%s0 + $0x85] sm:$0xff]
  %v3545 = vld [vmem:[%s0 + $0x8d] sm:$0xff]
  %v3546 = vld [vmem:[%s0 + $0x95] sm:$0xff]
  %v3547 = vld [vmem:[%s0 + $0x9d] sm:$0xff]
  %v3548 = vld [vmem:[%s0 + $0xa5] sm:$0xff]
  %v3549 = vld [vmem:[%s0 + $0xad] sm:$0xff]
  %v3550 = vld [vmem:[%s0 + $0xb5] sm:$0xff]
  %v3551 = vld [vmem:[%s0 + $0xbd] sm:$0xff]
  %v3552 = vld [vmem:[%s0 + $0xc5] sm:$0xff]
  %v3553 = vld [vmem:[%s0 + $0xcd] sm:$0xff]
  %v3554 = vld [vmem:[%s0 + $0xd5] sm:$0xff]
  %v3555 = vld [vmem:[%s0 + $0xdd] sm:$0xff]
  %v3556 = vld [vmem:[%s0 + $0xe5] sm:$0xff]
  %v3557 = vld [vmem:[%s0 + $0xed] sm:$0xff]
  %v3558 = vld [vmem:[%s0 + $0xf5] sm:$0xff]
  %v3559 = vld [vmem:[%s0 + $0xfd] sm:$0xff]
  %v3560 = vld [vmem:[%s0 + $0x105] sm:$0xff]
  %v3561 = vld [vmem:[%s0 + $0x10d] sm:$0xff]
  %v3562 = vld [vmem:[%s0 + $0x115] sm:$0xff]
  %v3563 = vld [vmem:[%s0 + $0x11d] sm:$0xff]
  %v3564 = vld [vmem:[%s0 + $0x125] sm:$0xff]
  %v3565 = vld [vmem:[%s0 + $0x12d] sm:$0xff]
  %v3566 = vld [vmem:[%s0 + $0x135] sm:$0xff]
  %v3567 = vld [vmem:[%s0 + $0x13d] sm:$0xff]
  %v3568 = vld [vmem:[%s0 + $0x145] sm:$0xff]
  %v3569 = vld [vmem:[%s0 + $0x14d] sm:$0xff]
  %v3570 = vld [vmem:[%s0 + $0x155] sm:$0xff]
  %v3571 = vld [vmem:[%s0 + $0x15d] sm:$0xff]
  %v3572 = vld [vmem:[%s0 + $0x165] sm:$0xff]
  %v3573 = vld [vmem:[%s0 + $0x16d] sm:$0xff]
  %v3574 = vld [vmem:[%s0 + $0x175] sm:$0xff]
  %v3575 = vld [vmem:[%s0 + $0x17d] sm:$0xff]
  %v3576 = vld [vmem:[%s0 + $0x185] sm:$0xff]
  %v3577 = vld [vmem:[%s0 + $0x18d] sm:$0xff]
  %v3578 = vld [vmem:[%s0 + $0x195] sm:$0xff]
  %v3579 = vld [vmem:[%s0 + $0x19d] sm:$0xff]
  %v3580 = vld [vmem:[%s0 + $0x1a5] sm:$0xff]
  %v3581 = vld [vmem:[%s0 + $0x1ad] sm:$0xff]
  %v3582 = vld [vmem:[%s0 + $0x1b5] sm:$0xff]
  %v3583 = vld [vmem:[%s0 + $0x1bd] sm:$0xff]
  %v3584 = vld [vmem:[%s0 + $0x1c5] sm:$0xff]
  %v3585 = vld [vmem:[%s0 + $0x1cd] sm:$0xff]
  %v3586 = vld [vmem:[%s0 + $0x1d5] sm:$0xff]
  %v3587 = vld [vmem:[%s0 + $0x1dd] sm:$0xff]
  %v3588 = vld [vmem:[%s0 + $0x1e5] sm:$0xff]
  %v3589 = vld [vmem:[%s0 + $0x1ed] sm:$0xff]
  %v3590 = vld [vmem:[%s0 + $0x1f5] sm:$0xff]
  %v3591 = vld [vmem:[%s0 + $0x1fd] sm:$0xff]
  %v3592 = vld [vmem:[%s0 + $0x205] sm:$0xff]
  %v3593 = vld [vmem:[%s0 + $0x20d] sm:$0xff]
  %v3594 = vld [vmem:[%s0 + $0x215] sm:$0xff]
  %v3595 = vld [vmem:[%s0 + $0x21d] sm:$0xff]
  %v3596 = vld [vmem:[%s0 + $0x225] sm:$0xff]
  %v3597 = vld [vmem:[%s0 + $0x22d] sm:$0xff]
  %v3598 = vld [vmem:[%s0 + $0x235] sm:$0xff]
  %v3599 = vld [vmem:[%s0 + $0x23d] sm:$0xff]
  %v3600 = vld [vmem:[%s0 + $0x245] sm:$0xff]
  %v3601 = vld [vmem:[%s0 + $0x24d] sm:$0xff]
  %v3602 = vld [vmem:[%s0 + $0x255] sm:$0xff]
  %v3603 = vld [vmem:[%s0 + $0x25d] sm:$0xff]
  %v3604 = vld [vmem:[%s0 + $0x265] sm:$0xff]
  %v3605 = vld [vmem:[%s0 + $0x26d] sm:$0xff]
  %v3606 = vld [vmem:[%s0 + $0x275] sm:$0xff]
  %v3607 = vld [vmem:[%s0 + $0x27d] sm:$0xff]
  %v3608 = vld [vmem:[%s0 + $0x285] sm:$0xf]
  %v3609 = vpack.c.bf16 %v3533, %v3532
  %v3610 = vpack.c.bf16 %v3535, %v3534
  %v3611 = vpack.c.bf16 %v3537, %v3536
  %v3612 = vpack.c.bf16 %v3539, %v3538
  %v3613 = vpack.c.bf16 %v3541, %v3540
  %v3614 = vpack.c.bf16 %v3543, %v3542
  %v3615 = vpack.c.bf16 %v3545, %v3544
  %v3616 = vpack.c.bf16 %v3547, %v3546
  %v3617 = vpack.c.bf16 %v3549, %v3548
  %v3618 = vpack.c.bf16 %v3551, %v3550
  %v3619 = vpack.c.bf16 %v3553, %v3552
  %v3620 = vpack.c.bf16 %v3555, %v3554
  %v3621 = vpack.c.bf16 %v3557, %v3556
  %v3622 = vpack.c.bf16 %v3559, %v3558
  %v3623 = vpack.c.bf16 %v3561, %v3560
  %v3624 = vpack.c.bf16 %v3563, %v3562
  %v3625 = vpack.c.bf16 %v3565, %v3564
  %v3626 = vpack.c.bf16 %v3567, %v3566
  %v3627 = vpack.c.bf16 %v3569, %v3568
  %v3628 = vpack.c.bf16 %v3571, %v3570
  %v3629 = vpack.c.bf16 %v3573, %v3572
  %v3630 = vpack.c.bf16 %v3575, %v3574
  %v3631 = vpack.c.bf16 %v3577, %v3576
  %v3632 = vpack.c.bf16 %v3579, %v3578
  %v3633 = vpack.c.bf16 %v3581, %v3580
  %v3634 = vpack.c.bf16 %v3583, %v3582
  %v3635 = vpack.c.bf16 %v3585, %v3584
  %v3636 = vpack.c.bf16 %v3587, %v3586
  %v3637 = vpack.c.bf16 %v3589, %v3588
  %v3638 = vpack.c.bf16 %v3591, %v3590
  %v3639 = vpack.c.bf16 %v3593, %v3592
  %v3640 = vpack.c.bf16 %v3595, %v3594
  %v3641 = vpack.c.bf16 %v3597, %v3596
  %v3642 = vpack.c.bf16 %v3599, %v3598
  %v3643 = vpack.c.bf16 %v3601, %v3600
  %v3644 = vpack.c.bf16 %v3603, %v3602
  %v3645 = vpack.c.bf16 %v3605, %v3604
  %v3646 = vpack.c.bf16 %v3607, %v3606
  %v3647 = vpack.c.bf16 %v3608, %v3608
  %v3648 = vld [vmem:[%s1 + $0x1c] sm:$0xf]
  %v3650 = vsel %vm39, %v3609, 0
  %v3653 = vsel %vm39, %v3610, 0
  %v3656 = vsel %vm39, %v3611, 0
  %v3659 = vsel %vm39, %v3612, 0
  %v3662 = vsel %vm39, %v3613, 0
  %v3665 = vsel %vm39, %v3614, 0
  %v3668 = vsel %vm39, %v3615, 0
  %v3671 = vsel %vm39, %v3616, 0
  %v3674 = vsel %vm39, %v3617, 0
  %v3677 = vsel %vm39, %v3618, 0
  %v3680 = vsel %vm39, %v3619, 0
  %v3683 = vsel %vm39, %v3620, 0
  %v3686 = vsel %vm39, %v3621, 0
  %v3689 = vsel %vm39, %v3622, 0
  %v3692 = vsel %vm39, %v3623, 0
  %v3695 = vsel %vm39, %v3624, 0
  %v3698 = vsel %vm39, %v3625, 0
  %v3701 = vsel %vm39, %v3626, 0
  %v3704 = vsel %vm39, %v3627, 0
  %v3707 = vsel %vm39, %v3628, 0
  %v3710 = vsel %vm39, %v3629, 0
  %v3713 = vsel %vm39, %v3630, 0
  %v3716 = vsel %vm39, %v3631, 0
  %v3719 = vsel %vm39, %v3632, 0
  %v3722 = vsel %vm39, %v3633, 0
  %v3725 = vsel %vm39, %v3634, 0
  %v3728 = vsel %vm39, %v3635, 0
  %v3731 = vsel %vm39, %v3636, 0
  %v3734 = vsel %vm39, %v3637, 0
  %v3737 = vsel %vm39, %v3638, 0
  %v3740 = vsel %vm39, %v3639, 0
  %v3743 = vsel %vm39, %v3640, 0
  %v3746 = vsel %vm39, %v3641, 0
  %v3749 = vsel %vm39, %v3642, 0
  %v3752 = vsel %vm39, %v3643, 0
  %v3755 = vsel %vm39, %v3644, 0
  %v3758 = vsel %vm39, %v3645, 0
  %v3761 = vsel %vm39, %v3646, 0
  %v3764 = vsel %vm39, %v3647, 0
  %v3767 = vsel %vm417, %v3648, 0
  %3769 = vmatpush.bf16.msra.mxu0 0
  %3770 = vmatpush.bf16.msra.mxu0 0
  %3771 = vmatpush.bf16.msra.mxu0 0
  %3772 = vmatpush.bf16.msra.mxu0 0
  %3773 = vmatpush.bf16.msra.mxu0 0
  %3774 = vmatpush.bf16.msra.mxu0 0
  %3775 = vmatpush.bf16.msra.mxu0 0
  %3776 = vmatpush.bf16.msra.mxu0 %v3767
  %3777 = vmatmul.bf16.gmra.mxu0 %v3650
  %v3778 = vpop.f32.mrf.mxu0
  %v3779 = vadd.f32 0.0, %v3778
  %v3780 = vpop.f32.mrf.mxu0
  %v3781 = vadd.f32 0.0, %v3780
  %3782 = vmatmul.bf16.gmra.mxu0 %v3653
  %v3783 = vpop.f32.mrf.mxu0
  %v3784 = vadd.f32 0.0, %v3783
  %v3785 = vpop.f32.mrf.mxu0
  %v3786 = vadd.f32 0.0, %v3785
  %3787 = vmatmul.bf16.gmra.mxu0 %v3656
  %v3788 = vpop.f32.mrf.mxu0
  %v3789 = vadd.f32 0.0, %v3788
  %v3790 = vpop.f32.mrf.mxu0
  %v3791 = vadd.f32 0.0, %v3790
  %3792 = vmatmul.bf16.gmra.mxu0 %v3659
  %v3793 = vpop.f32.mrf.mxu0
  %v3794 = vadd.f32 0.0, %v3793
  %v3795 = vpop.f32.mrf.mxu0
  %v3796 = vadd.f32 0.0, %v3795
  %3797 = vmatmul.bf16.gmra.mxu0 %v3662
  %v3798 = vpop.f32.mrf.mxu0
  %v3799 = vadd.f32 0.0, %v3798
  %v3800 = vpop.f32.mrf.mxu0
  %v3801 = vadd.f32 0.0, %v3800
  %3802 = vmatmul.bf16.gmra.mxu0 %v3665
  %v3803 = vpop.f32.mrf.mxu0
  %v3804 = vadd.f32 0.0, %v3803
  %v3805 = vpop.f32.mrf.mxu0
  %v3806 = vadd.f32 0.0, %v3805
  %3807 = vmatmul.bf16.gmra.mxu0 %v3668
  %v3808 = vpop.f32.mrf.mxu0
  %v3809 = vadd.f32 0.0, %v3808
  %v3810 = vpop.f32.mrf.mxu0
  %v3811 = vadd.f32 0.0, %v3810
  %3812 = vmatmul.bf16.gmra.mxu0 %v3671
  %v3813 = vpop.f32.mrf.mxu0
  %v3814 = vadd.f32 0.0, %v3813
  %v3815 = vpop.f32.mrf.mxu0
  %v3816 = vadd.f32 0.0, %v3815
  %3817 = vmatmul.bf16.gmra.mxu0 %v3674
  %v3818 = vpop.f32.mrf.mxu0
  %v3819 = vadd.f32 0.0, %v3818
  %v3820 = vpop.f32.mrf.mxu0
  %v3821 = vadd.f32 0.0, %v3820
  %3822 = vmatmul.bf16.gmra.mxu0 %v3677
  %v3823 = vpop.f32.mrf.mxu0
  %v3824 = vadd.f32 0.0, %v3823
  %v3825 = vpop.f32.mrf.mxu0
  %v3826 = vadd.f32 0.0, %v3825
  %3827 = vmatmul.bf16.gmra.mxu0 %v3680
  %v3828 = vpop.f32.mrf.mxu0
  %v3829 = vadd.f32 0.0, %v3828
  %v3830 = vpop.f32.mrf.mxu0
  %v3831 = vadd.f32 0.0, %v3830
  %3832 = vmatmul.bf16.gmra.mxu0 %v3683
  %v3833 = vpop.f32.mrf.mxu0
  %v3834 = vadd.f32 0.0, %v3833
  %v3835 = vpop.f32.mrf.mxu0
  %v3836 = vadd.f32 0.0, %v3835
  %3837 = vmatmul.bf16.gmra.mxu0 %v3686
  %v3838 = vpop.f32.mrf.mxu0
  %v3839 = vadd.f32 0.0, %v3838
  %v3840 = vpop.f32.mrf.mxu0
  %v3841 = vadd.f32 0.0, %v3840
  %3842 = vmatmul.bf16.gmra.mxu0 %v3689
  %v3843 = vpop.f32.mrf.mxu0
  %v3844 = vadd.f32 0.0, %v3843
  %v3845 = vpop.f32.mrf.mxu0
  %v3846 = vadd.f32 0.0, %v3845
  %3847 = vmatmul.bf16.gmra.mxu0 %v3692
  %v3848 = vpop.f32.mrf.mxu0
  %v3849 = vadd.f32 0.0, %v3848
  %v3850 = vpop.f32.mrf.mxu0
  %v3851 = vadd.f32 0.0, %v3850
  %3852 = vmatmul.bf16.gmra.mxu0 %v3695
  %v3853 = vpop.f32.mrf.mxu0
  %v3854 = vadd.f32 0.0, %v3853
  %v3855 = vpop.f32.mrf.mxu0
  %v3856 = vadd.f32 0.0, %v3855
  %3857 = vmatmul.bf16.gmra.mxu0 %v3698
  %v3858 = vpop.f32.mrf.mxu0
  %v3859 = vadd.f32 0.0, %v3858
  %v3860 = vpop.f32.mrf.mxu0
  %v3861 = vadd.f32 0.0, %v3860
  %3862 = vmatmul.bf16.gmra.mxu0 %v3701
  %v3863 = vpop.f32.mrf.mxu0
  %v3864 = vadd.f32 0.0, %v3863
  %v3865 = vpop.f32.mrf.mxu0
  %v3866 = vadd.f32 0.0, %v3865
  %3867 = vmatmul.bf16.gmra.mxu0 %v3704
  %v3868 = vpop.f32.mrf.mxu0
  %v3869 = vadd.f32 0.0, %v3868
  %v3870 = vpop.f32.mrf.mxu0
  %v3871 = vadd.f32 0.0, %v3870
  %3872 = vmatmul.bf16.gmra.mxu0 %v3707
  %v3873 = vpop.f32.mrf.mxu0
  %v3874 = vadd.f32 0.0, %v3873
  %v3875 = vpop.f32.mrf.mxu0
  %v3876 = vadd.f32 0.0, %v3875
  %3877 = vmatmul.bf16.gmra.mxu0 %v3710
  %v3878 = vpop.f32.mrf.mxu0
  %v3879 = vadd.f32 0.0, %v3878
  %v3880 = vpop.f32.mrf.mxu0
  %v3881 = vadd.f32 0.0, %v3880
  %3882 = vmatmul.bf16.gmra.mxu0 %v3713
  %v3883 = vpop.f32.mrf.mxu0
  %v3884 = vadd.f32 0.0, %v3883
  %v3885 = vpop.f32.mrf.mxu0
  %v3886 = vadd.f32 0.0, %v3885
  %3887 = vmatmul.bf16.gmra.mxu0 %v3716
  %v3888 = vpop.f32.mrf.mxu0
  %v3889 = vadd.f32 0.0, %v3888
  %v3890 = vpop.f32.mrf.mxu0
  %v3891 = vadd.f32 0.0, %v3890
  %3892 = vmatmul.bf16.gmra.mxu0 %v3719
  %v3893 = vpop.f32.mrf.mxu0
  %v3894 = vadd.f32 0.0, %v3893
  %v3895 = vpop.f32.mrf.mxu0
  %v3896 = vadd.f32 0.0, %v3895
  %3897 = vmatmul.bf16.gmra.mxu0 %v3722
  %v3898 = vpop.f32.mrf.mxu0
  %v3899 = vadd.f32 0.0, %v3898
  %v3900 = vpop.f32.mrf.mxu0
  %v3901 = vadd.f32 0.0, %v3900
  %3902 = vmatmul.bf16.gmra.mxu0 %v3725
  %v3903 = vpop.f32.mrf.mxu0
  %v3904 = vadd.f32 0.0, %v3903
  %v3905 = vpop.f32.mrf.mxu0
  %v3906 = vadd.f32 0.0, %v3905
  %3907 = vmatmul.bf16.gmra.mxu0 %v3728
  %v3908 = vpop.f32.mrf.mxu0
  %v3909 = vadd.f32 0.0, %v3908
  %v3910 = vpop.f32.mrf.mxu0
  %v3911 = vadd.f32 0.0, %v3910
  %3912 = vmatmul.bf16.gmra.mxu0 %v3731
  %v3913 = vpop.f32.mrf.mxu0
  %v3914 = vadd.f32 0.0, %v3913
  %v3915 = vpop.f32.mrf.mxu0
  %v3916 = vadd.f32 0.0, %v3915
  %3917 = vmatmul.bf16.gmra.mxu0 %v3734
  %v3918 = vpop.f32.mrf.mxu0
  %v3919 = vadd.f32 0.0, %v3918
  %v3920 = vpop.f32.mrf.mxu0
  %v3921 = vadd.f32 0.0, %v3920
  %3922 = vmatmul.bf16.gmra.mxu0 %v3737
  %v3923 = vpop.f32.mrf.mxu0
  %v3924 = vadd.f32 0.0, %v3923
  %v3925 = vpop.f32.mrf.mxu0
  %v3926 = vadd.f32 0.0, %v3925
  %3927 = vmatmul.bf16.gmra.mxu0 %v3740
  %v3928 = vpop.f32.mrf.mxu0
  %v3929 = vadd.f32 0.0, %v3928
  %v3930 = vpop.f32.mrf.mxu0
  %v3931 = vadd.f32 0.0, %v3930
  %3932 = vmatmul.bf16.gmra.mxu0 %v3743
  %v3933 = vpop.f32.mrf.mxu0
  %v3934 = vadd.f32 0.0, %v3933
  %v3935 = vpop.f32.mrf.mxu0
  %v3936 = vadd.f32 0.0, %v3935
  %3937 = vmatmul.bf16.gmra.mxu0 %v3746
  %v3938 = vpop.f32.mrf.mxu0
  %v3939 = vadd.f32 0.0, %v3938
  %v3940 = vpop.f32.mrf.mxu0
  %v3941 = vadd.f32 0.0, %v3940
  %3942 = vmatmul.bf16.gmra.mxu0 %v3749
  %v3943 = vpop.f32.mrf.mxu0
  %v3944 = vadd.f32 0.0, %v3943
  %v3945 = vpop.f32.mrf.mxu0
  %v3946 = vadd.f32 0.0, %v3945
  %3947 = vmatmul.bf16.gmra.mxu0 %v3752
  %v3948 = vpop.f32.mrf.mxu0
  %v3949 = vadd.f32 0.0, %v3948
  %v3950 = vpop.f32.mrf.mxu0
  %v3951 = vadd.f32 0.0, %v3950
  %3952 = vmatmul.bf16.gmra.mxu0 %v3755
  %v3953 = vpop.f32.mrf.mxu0
  %v3954 = vadd.f32 0.0, %v3953
  %v3955 = vpop.f32.mrf.mxu0
  %v3956 = vadd.f32 0.0, %v3955
  %3957 = vmatmul.bf16.gmra.mxu0 %v3758
  %v3958 = vpop.f32.mrf.mxu0
  %v3959 = vadd.f32 0.0, %v3958
  %v3960 = vpop.f32.mrf.mxu0
  %v3961 = vadd.f32 0.0, %v3960
  %3962 = vmatmul.bf16.gmra.mxu0 %v3761
  %v3963 = vpop.f32.mrf.mxu0
  %v3964 = vadd.f32 0.0, %v3963
  %v3965 = vpop.f32.mrf.mxu0
  %v3966 = vadd.f32 0.0, %v3965
  %3967 = vmatmul.bf16.gmra.mxu0 %v3764
  %v3968 = vpop.f32.mrf.mxu0
  %v3969 = vadd.f32 0.0, %v3968
  %v3970 = vpop.f32.mrf.mxu0
  %3971 = vdwg.mxu0
  %v3972 = vadd.f32 %v3455, %v3779
  %v3973 = vadd.f32 %v3456, %v3781
  %v3974 = vadd.f32 %v3457, %v3784
  %v3975 = vadd.f32 %v3458, %v3786
  %v3976 = vadd.f32 %v3459, %v3789
  %v3977 = vadd.f32 %v3460, %v3791
  %v3978 = vadd.f32 %v3461, %v3794
  %v3979 = vadd.f32 %v3462, %v3796
  %v3980 = vadd.f32 %v3463, %v3799
  %v3981 = vadd.f32 %v3464, %v3801
  %v3982 = vadd.f32 %v3465, %v3804
  %v3983 = vadd.f32 %v3466, %v3806
  %v3984 = vadd.f32 %v3467, %v3809
  %v3985 = vadd.f32 %v3468, %v3811
  %v3986 = vadd.f32 %v3469, %v3814
  %v3987 = vadd.f32 %v3470, %v3816
  %v3988 = vadd.f32 %v3471, %v3819
  %v3989 = vadd.f32 %v3472, %v3821
  %v3990 = vadd.f32 %v3473, %v3824
  %v3991 = vadd.f32 %v3474, %v3826
  %v3992 = vadd.f32 %v3475, %v3829
  %v3993 = vadd.f32 %v3476, %v3831
  %v3994 = vadd.f32 %v3477, %v3834
  %v3995 = vadd.f32 %v3478, %v3836
  %v3996 = vadd.f32 %v3479, %v3839
  %v3997 = vadd.f32 %v3480, %v3841
  %v3998 = vadd.f32 %v3481, %v3844
  %v3999 = vadd.f32 %v3482, %v3846
  %v4000 = vadd.f32 %v3483, %v3849
  %v4001 = vadd.f32 %v3484, %v3851
  %v4002 = vadd.f32 %v3485, %v3854
  %v4003 = vadd.f32 %v3486, %v3856
  %v4004 = vadd.f32 %v3487, %v3859
  %v4005 = vadd.f32 %v3488, %v3861
  %v4006 = vadd.f32 %v3489, %v3864
  %v4007 = vadd.f32 %v3490, %v3866
  %v4008 = vadd.f32 %v3491, %v3869
  %v4009 = vadd.f32 %v3492, %v3871
  %v4010 = vadd.f32 %v3493, %v3874
  %v4011 = vadd.f32 %v3494, %v3876
  %v4012 = vadd.f32 %v3495, %v3879
  %v4013 = vadd.f32 %v3496, %v3881
  %v4014 = vadd.f32 %v3497, %v3884
  %v4015 = vadd.f32 %v3498, %v3886
  %v4016 = vadd.f32 %v3499, %v3889
  %v4017 = vadd.f32 %v3500, %v3891
  %v4018 = vadd.f32 %v3501, %v3894
  %v4019 = vadd.f32 %v3502, %v3896
  %v4020 = vadd.f32 %v3503, %v3899
  %v4021 = vadd.f32 %v3504, %v3901
  %v4022 = vadd.f32 %v3505, %v3904
  %v4023 = vadd.f32 %v3506, %v3906
  %v4024 = vadd.f32 %v3507, %v3909
  %v4025 = vadd.f32 %v3508, %v3911
  %v4026 = vadd.f32 %v3509, %v3914
  %v4027 = vadd.f32 %v3510, %v3916
  %v4028 = vadd.f32 %v3511, %v3919
  %v4029 = vadd.f32 %v3512, %v3921
  %v4030 = vadd.f32 %v3513, %v3924
  %v4031 = vadd.f32 %v3514, %v3926
  %v4032 = vadd.f32 %v3515, %v3929
  %v4033 = vadd.f32 %v3516, %v3931
  %v4034 = vadd.f32 %v3517, %v3934
  %v4035 = vadd.f32 %v3518, %v3936
  %v4036 = vadd.f32 %v3519, %v3939
  %v4037 = vadd.f32 %v3520, %v3941
  %v4038 = vadd.f32 %v3521, %v3944
  %v4039 = vadd.f32 %v3522, %v3946
  %v4040 = vadd.f32 %v3523, %v3949
  %v4041 = vadd.f32 %v3524, %v3951
  %v4042 = vadd.f32 %v3525, %v3954
  %v4043 = vadd.f32 %v3526, %v3956
  %v4044 = vadd.f32 %v3527, %v3959
  %v4045 = vadd.f32 %v3528, %v3961
  %v4046 = vadd.f32 %v3529, %v3964
  %v4047 = vadd.f32 %v3530, %v3966
  %v4048 = vadd.f32 %v3531, %v3969
  %v4049 = vld [vmem:[%s0 + $0x26] sm:$0xff]
  %v4050 = vld [vmem:[%s0 + $0x2e] sm:$0xff]
  %v4051 = vld [vmem:[%s0 + $0x36] sm:$0xff]
  %v4052 = vld [vmem:[%s0 + $0x3e] sm:$0xff]
  %v4053 = vld [vmem:[%s0 + $0x46] sm:$0xff]
  %v4054 = vld [vmem:[%s0 + $0x4e] sm:$0xff]
  %v4055 = vld [vmem:[%s0 + $0x56] sm:$0xff]
  %v4056 = vld [vmem:[%s0 + $0x5e] sm:$0xff]
  %v4057 = vld [vmem:[%s0 + $0x66] sm:$0xff]
  %v4058 = vld [vmem:[%s0 + $0x6e] sm:$0xff]
  %v4059 = vld [vmem:[%s0 + $0x76] sm:$0xff]
  %v4060 = vld [vmem:[%s0 + $0x7e] sm:$0xff]
  %v4061 = vld [vmem:[%s0 + $0x86] sm:$0xff]
  %v4062 = vld [vmem:[%s0 + $0x8e] sm:$0xff]
  %v4063 = vld [vmem:[%s0 + $0x96] sm:$0xff]
  %v4064 = vld [vmem:[%s0 + $0x9e] sm:$0xff]
  %v4065 = vld [vmem:[%s0 + $0xa6] sm:$0xff]
  %v4066 = vld [vmem:[%s0 + $0xae] sm:$0xff]
  %v4067 = vld [vmem:[%s0 + $0xb6] sm:$0xff]
  %v4068 = vld [vmem:[%s0 + $0xbe] sm:$0xff]
  %v4069 = vld [vmem:[%s0 + $0xc6] sm:$0xff]
  %v4070 = vld [vmem:[%s0 + $0xce] sm:$0xff]
  %v4071 = vld [vmem:[%s0 + $0xd6] sm:$0xff]
  %v4072 = vld [vmem:[%s0 + $0xde] sm:$0xff]
  %v4073 = vld [vmem:[%s0 + $0xe6] sm:$0xff]
  %v4074 = vld [vmem:[%s0 + $0xee] sm:$0xff]
  %v4075 = vld [vmem:[%s0 + $0xf6] sm:$0xff]
  %v4076 = vld [vmem:[%s0 + $0xfe] sm:$0xff]
  %v4077 = vld [vmem:[%s0 + $0x106] sm:$0xff]
  %v4078 = vld [vmem:[%s0 + $0x10e] sm:$0xff]
  %v4079 = vld [vmem:[%s0 + $0x116] sm:$0xff]
  %v4080 = vld [vmem:[%s0 + $0x11e] sm:$0xff]
  %v4081 = vld [vmem:[%s0 + $0x126] sm:$0xff]
  %v4082 = vld [vmem:[%s0 + $0x12e] sm:$0xff]
  %v4083 = vld [vmem:[%s0 + $0x136] sm:$0xff]
  %v4084 = vld [vmem:[%s0 + $0x13e] sm:$0xff]
  %v4085 = vld [vmem:[%s0 + $0x146] sm:$0xff]
  %v4086 = vld [vmem:[%s0 + $0x14e] sm:$0xff]
  %v4087 = vld [vmem:[%s0 + $0x156] sm:$0xff]
  %v4088 = vld [vmem:[%s0 + $0x15e] sm:$0xff]
  %v4089 = vld [vmem:[%s0 + $0x166] sm:$0xff]
  %v4090 = vld [vmem:[%s0 + $0x16e] sm:$0xff]
  %v4091 = vld [vmem:[%s0 + $0x176] sm:$0xff]
  %v4092 = vld [vmem:[%s0 + $0x17e] sm:$0xff]
  %v4093 = vld [vmem:[%s0 + $0x186] sm:$0xff]
  %v4094 = vld [vmem:[%s0 + $0x18e] sm:$0xff]
  %v4095 = vld [vmem:[%s0 + $0x196] sm:$0xff]
  %v4096 = vld [vmem:[%s0 + $0x19e] sm:$0xff]
  %v4097 = vld [vmem:[%s0 + $0x1a6] sm:$0xff]
  %v4098 = vld [vmem:[%s0 + $0x1ae] sm:$0xff]
  %v4099 = vld [vmem:[%s0 + $0x1b6] sm:$0xff]
  %v4100 = vld [vmem:[%s0 + $0x1be] sm:$0xff]
  %v4101 = vld [vmem:[%s0 + $0x1c6] sm:$0xff]
  %v4102 = vld [vmem:[%s0 + $0x1ce] sm:$0xff]
  %v4103 = vld [vmem:[%s0 + $0x1d6] sm:$0xff]
  %v4104 = vld [vmem:[%s0 + $0x1de] sm:$0xff]
  %v4105 = vld [vmem:[%s0 + $0x1e6] sm:$0xff]
  %v4106 = vld [vmem:[%s0 + $0x1ee] sm:$0xff]
  %v4107 = vld [vmem:[%s0 + $0x1f6] sm:$0xff]
  %v4108 = vld [vmem:[%s0 + $0x1fe] sm:$0xff]
  %v4109 = vld [vmem:[%s0 + $0x206] sm:$0xff]
  %v4110 = vld [vmem:[%s0 + $0x20e] sm:$0xff]
  %v4111 = vld [vmem:[%s0 + $0x216] sm:$0xff]
  %v4112 = vld [vmem:[%s0 + $0x21e] sm:$0xff]
  %v4113 = vld [vmem:[%s0 + $0x226] sm:$0xff]
  %v4114 = vld [vmem:[%s0 + $0x22e] sm:$0xff]
  %v4115 = vld [vmem:[%s0 + $0x236] sm:$0xff]
  %v4116 = vld [vmem:[%s0 + $0x23e] sm:$0xff]
  %v4117 = vld [vmem:[%s0 + $0x246] sm:$0xff]
  %v4118 = vld [vmem:[%s0 + $0x24e] sm:$0xff]
  %v4119 = vld [vmem:[%s0 + $0x256] sm:$0xff]
  %v4120 = vld [vmem:[%s0 + $0x25e] sm:$0xff]
  %v4121 = vld [vmem:[%s0 + $0x266] sm:$0xff]
  %v4122 = vld [vmem:[%s0 + $0x26e] sm:$0xff]
  %v4123 = vld [vmem:[%s0 + $0x276] sm:$0xff]
  %v4124 = vld [vmem:[%s0 + $0x27e] sm:$0xff]
  %v4125 = vld [vmem:[%s0 + $0x286] sm:$0xf]
  %v4126 = vpack.c.bf16 %v4050, %v4049
  %v4127 = vpack.c.bf16 %v4052, %v4051
  %v4128 = vpack.c.bf16 %v4054, %v4053
  %v4129 = vpack.c.bf16 %v4056, %v4055
  %v4130 = vpack.c.bf16 %v4058, %v4057
  %v4131 = vpack.c.bf16 %v4060, %v4059
  %v4132 = vpack.c.bf16 %v4062, %v4061
  %v4133 = vpack.c.bf16 %v4064, %v4063
  %v4134 = vpack.c.bf16 %v4066, %v4065
  %v4135 = vpack.c.bf16 %v4068, %v4067
  %v4136 = vpack.c.bf16 %v4070, %v4069
  %v4137 = vpack.c.bf16 %v4072, %v4071
  %v4138 = vpack.c.bf16 %v4074, %v4073
  %v4139 = vpack.c.bf16 %v4076, %v4075
  %v4140 = vpack.c.bf16 %v4078, %v4077
  %v4141 = vpack.c.bf16 %v4080, %v4079
  %v4142 = vpack.c.bf16 %v4082, %v4081
  %v4143 = vpack.c.bf16 %v4084, %v4083
  %v4144 = vpack.c.bf16 %v4086, %v4085
  %v4145 = vpack.c.bf16 %v4088, %v4087
  %v4146 = vpack.c.bf16 %v4090, %v4089
  %v4147 = vpack.c.bf16 %v4092, %v4091
  %v4148 = vpack.c.bf16 %v4094, %v4093
  %v4149 = vpack.c.bf16 %v4096, %v4095
  %v4150 = vpack.c.bf16 %v4098, %v4097
  %v4151 = vpack.c.bf16 %v4100, %v4099
  %v4152 = vpack.c.bf16 %v4102, %v4101
  %v4153 = vpack.c.bf16 %v4104, %v4103
  %v4154 = vpack.c.bf16 %v4106, %v4105
  %v4155 = vpack.c.bf16 %v4108, %v4107
  %v4156 = vpack.c.bf16 %v4110, %v4109
  %v4157 = vpack.c.bf16 %v4112, %v4111
  %v4158 = vpack.c.bf16 %v4114, %v4113
  %v4159 = vpack.c.bf16 %v4116, %v4115
  %v4160 = vpack.c.bf16 %v4118, %v4117
  %v4161 = vpack.c.bf16 %v4120, %v4119
  %v4162 = vpack.c.bf16 %v4122, %v4121
  %v4163 = vpack.c.bf16 %v4124, %v4123
  %v4164 = vpack.c.bf16 %v4125, %v4125
  %v4165 = vld [vmem:[%s1 + $0x20] sm:$0xf]
  %v4167 = vsel %vm39, %v4126, 0
  %v4170 = vsel %vm39, %v4127, 0
  %v4173 = vsel %vm39, %v4128, 0
  %v4176 = vsel %vm39, %v4129, 0
  %v4179 = vsel %vm39, %v4130, 0
  %v4182 = vsel %vm39, %v4131, 0
  %v4185 = vsel %vm39, %v4132, 0
  %v4188 = vsel %vm39, %v4133, 0
  %v4191 = vsel %vm39, %v4134, 0
  %v4194 = vsel %vm39, %v4135, 0
  %v4197 = vsel %vm39, %v4136, 0
  %v4200 = vsel %vm39, %v4137, 0
  %v4203 = vsel %vm39, %v4138, 0
  %v4206 = vsel %vm39, %v4139, 0
  %v4209 = vsel %vm39, %v4140, 0
  %v4212 = vsel %vm39, %v4141, 0
  %v4215 = vsel %vm39, %v4142, 0
  %v4218 = vsel %vm39, %v4143, 0
  %v4221 = vsel %vm39, %v4144, 0
  %v4224 = vsel %vm39, %v4145, 0
  %v4227 = vsel %vm39, %v4146, 0
  %v4230 = vsel %vm39, %v4147, 0
  %v4233 = vsel %vm39, %v4148, 0
  %v4236 = vsel %vm39, %v4149, 0
  %v4239 = vsel %vm39, %v4150, 0
  %v4242 = vsel %vm39, %v4151, 0
  %v4245 = vsel %vm39, %v4152, 0
  %v4248 = vsel %vm39, %v4153, 0
  %v4251 = vsel %vm39, %v4154, 0
  %v4254 = vsel %vm39, %v4155, 0
  %v4257 = vsel %vm39, %v4156, 0
  %v4260 = vsel %vm39, %v4157, 0
  %v4263 = vsel %vm39, %v4158, 0
  %v4266 = vsel %vm39, %v4159, 0
  %v4269 = vsel %vm39, %v4160, 0
  %v4272 = vsel %vm39, %v4161, 0
  %v4275 = vsel %vm39, %v4162, 0
  %v4278 = vsel %vm39, %v4163, 0
  %v4281 = vsel %vm39, %v4164, 0
  %v4284 = vsel %vm417, %v4165, 0
  %4286 = vmatpush.bf16.msra.mxu0 0
  %4287 = vmatpush.bf16.msra.mxu0 0
  %4288 = vmatpush.bf16.msra.mxu0 0
  %4289 = vmatpush.bf16.msra.mxu0 0
  %4290 = vmatpush.bf16.msra.mxu0 0
  %4291 = vmatpush.bf16.msra.mxu0 0
  %4292 = vmatpush.bf16.msra.mxu0 0
  %4293 = vmatpush.bf16.msra.mxu0 %v4284
  %4294 = vmatmul.bf16.gmra.mxu0 %v4167
  %v4295 = vpop.f32.mrf.mxu0
  %v4296 = vadd.f32 0.0, %v4295
  %v4297 = vpop.f32.mrf.mxu0
  %v4298 = vadd.f32 0.0, %v4297
  %4299 = vmatmul.bf16.gmra.mxu0 %v4170
  %v4300 = vpop.f32.mrf.mxu0
  %v4301 = vadd.f32 0.0, %v4300
  %v4302 = vpop.f32.mrf.mxu0
  %v4303 = vadd.f32 0.0, %v4302
  %4304 = vmatmul.bf16.gmra.mxu0 %v4173
  %v4305 = vpop.f32.mrf.mxu0
  %v4306 = vadd.f32 0.0, %v4305
  %v4307 = vpop.f32.mrf.mxu0
  %v4308 = vadd.f32 0.0, %v4307
  %4309 = vmatmul.bf16.gmra.mxu0 %v4176
  %v4310 = vpop.f32.mrf.mxu0
  %v4311 = vadd.f32 0.0, %v4310
  %v4312 = vpop.f32.mrf.mxu0
  %v4313 = vadd.f32 0.0, %v4312
  %4314 = vmatmul.bf16.gmra.mxu0 %v4179
  %v4315 = vpop.f32.mrf.mxu0
  %v4316 = vadd.f32 0.0, %v4315
  %v4317 = vpop.f32.mrf.mxu0
  %v4318 = vadd.f32 0.0, %v4317
  %4319 = vmatmul.bf16.gmra.mxu0 %v4182
  %v4320 = vpop.f32.mrf.mxu0
  %v4321 = vadd.f32 0.0, %v4320
  %v4322 = vpop.f32.mrf.mxu0
  %v4323 = vadd.f32 0.0, %v4322
  %4324 = vmatmul.bf16.gmra.mxu0 %v4185
  %v4325 = vpop.f32.mrf.mxu0
  %v4326 = vadd.f32 0.0, %v4325
  %v4327 = vpop.f32.mrf.mxu0
  %v4328 = vadd.f32 0.0, %v4327
  %4329 = vmatmul.bf16.gmra.mxu0 %v4188
  %v4330 = vpop.f32.mrf.mxu0
  %v4331 = vadd.f32 0.0, %v4330
  %v4332 = vpop.f32.mrf.mxu0
  %v4333 = vadd.f32 0.0, %v4332
  %4334 = vmatmul.bf16.gmra.mxu0 %v4191
  %v4335 = vpop.f32.mrf.mxu0
  %v4336 = vadd.f32 0.0, %v4335
  %v4337 = vpop.f32.mrf.mxu0
  %v4338 = vadd.f32 0.0, %v4337
  %4339 = vmatmul.bf16.gmra.mxu0 %v4194
  %v4340 = vpop.f32.mrf.mxu0
  %v4341 = vadd.f32 0.0, %v4340
  %v4342 = vpop.f32.mrf.mxu0
  %v4343 = vadd.f32 0.0, %v4342
  %4344 = vmatmul.bf16.gmra.mxu0 %v4197
  %v4345 = vpop.f32.mrf.mxu0
  %v4346 = vadd.f32 0.0, %v4345
  %v4347 = vpop.f32.mrf.mxu0
  %v4348 = vadd.f32 0.0, %v4347
  %4349 = vmatmul.bf16.gmra.mxu0 %v4200
  %v4350 = vpop.f32.mrf.mxu0
  %v4351 = vadd.f32 0.0, %v4350
  %v4352 = vpop.f32.mrf.mxu0
  %v4353 = vadd.f32 0.0, %v4352
  %4354 = vmatmul.bf16.gmra.mxu0 %v4203
  %v4355 = vpop.f32.mrf.mxu0
  %v4356 = vadd.f32 0.0, %v4355
  %v4357 = vpop.f32.mrf.mxu0
  %v4358 = vadd.f32 0.0, %v4357
  %4359 = vmatmul.bf16.gmra.mxu0 %v4206
  %v4360 = vpop.f32.mrf.mxu0
  %v4361 = vadd.f32 0.0, %v4360
  %v4362 = vpop.f32.mrf.mxu0
  %v4363 = vadd.f32 0.0, %v4362
  %4364 = vmatmul.bf16.gmra.mxu0 %v4209
  %v4365 = vpop.f32.mrf.mxu0
  %v4366 = vadd.f32 0.0, %v4365
  %v4367 = vpop.f32.mrf.mxu0
  %v4368 = vadd.f32 0.0, %v4367
  %4369 = vmatmul.bf16.gmra.mxu0 %v4212
  %v4370 = vpop.f32.mrf.mxu0
  %v4371 = vadd.f32 0.0, %v4370
  %v4372 = vpop.f32.mrf.mxu0
  %v4373 = vadd.f32 0.0, %v4372
  %4374 = vmatmul.bf16.gmra.mxu0 %v4215
  %v4375 = vpop.f32.mrf.mxu0
  %v4376 = vadd.f32 0.0, %v4375
  %v4377 = vpop.f32.mrf.mxu0
  %v4378 = vadd.f32 0.0, %v4377
  %4379 = vmatmul.bf16.gmra.mxu0 %v4218
  %v4380 = vpop.f32.mrf.mxu0
  %v4381 = vadd.f32 0.0, %v4380
  %v4382 = vpop.f32.mrf.mxu0
  %v4383 = vadd.f32 0.0, %v4382
  %4384 = vmatmul.bf16.gmra.mxu0 %v4221
  %v4385 = vpop.f32.mrf.mxu0
  %v4386 = vadd.f32 0.0, %v4385
  %v4387 = vpop.f32.mrf.mxu0
  %v4388 = vadd.f32 0.0, %v4387
  %4389 = vmatmul.bf16.gmra.mxu0 %v4224
  %v4390 = vpop.f32.mrf.mxu0
  %v4391 = vadd.f32 0.0, %v4390
  %v4392 = vpop.f32.mrf.mxu0
  %v4393 = vadd.f32 0.0, %v4392
  %4394 = vmatmul.bf16.gmra.mxu0 %v4227
  %v4395 = vpop.f32.mrf.mxu0
  %v4396 = vadd.f32 0.0, %v4395
  %v4397 = vpop.f32.mrf.mxu0
  %v4398 = vadd.f32 0.0, %v4397
  %4399 = vmatmul.bf16.gmra.mxu0 %v4230
  %v4400 = vpop.f32.mrf.mxu0
  %v4401 = vadd.f32 0.0, %v4400
  %v4402 = vpop.f32.mrf.mxu0
  %v4403 = vadd.f32 0.0, %v4402
  %4404 = vmatmul.bf16.gmra.mxu0 %v4233
  %v4405 = vpop.f32.mrf.mxu0
  %v4406 = vadd.f32 0.0, %v4405
  %v4407 = vpop.f32.mrf.mxu0
  %v4408 = vadd.f32 0.0, %v4407
  %4409 = vmatmul.bf16.gmra.mxu0 %v4236
  %v4410 = vpop.f32.mrf.mxu0
  %v4411 = vadd.f32 0.0, %v4410
  %v4412 = vpop.f32.mrf.mxu0
  %v4413 = vadd.f32 0.0, %v4412
  %4414 = vmatmul.bf16.gmra.mxu0 %v4239
  %v4415 = vpop.f32.mrf.mxu0
  %v4416 = vadd.f32 0.0, %v4415
  %v4417 = vpop.f32.mrf.mxu0
  %v4418 = vadd.f32 0.0, %v4417
  %4419 = vmatmul.bf16.gmra.mxu0 %v4242
  %v4420 = vpop.f32.mrf.mxu0
  %v4421 = vadd.f32 0.0, %v4420
  %v4422 = vpop.f32.mrf.mxu0
  %v4423 = vadd.f32 0.0, %v4422
  %4424 = vmatmul.bf16.gmra.mxu0 %v4245
  %v4425 = vpop.f32.mrf.mxu0
  %v4426 = vadd.f32 0.0, %v4425
  %v4427 = vpop.f32.mrf.mxu0
  %v4428 = vadd.f32 0.0, %v4427
  %4429 = vmatmul.bf16.gmra.mxu0 %v4248
  %v4430 = vpop.f32.mrf.mxu0
  %v4431 = vadd.f32 0.0, %v4430
  %v4432 = vpop.f32.mrf.mxu0
  %v4433 = vadd.f32 0.0, %v4432
  %4434 = vmatmul.bf16.gmra.mxu0 %v4251
  %v4435 = vpop.f32.mrf.mxu0
  %v4436 = vadd.f32 0.0, %v4435
  %v4437 = vpop.f32.mrf.mxu0
  %v4438 = vadd.f32 0.0, %v4437
  %4439 = vmatmul.bf16.gmra.mxu0 %v4254
  %v4440 = vpop.f32.mrf.mxu0
  %v4441 = vadd.f32 0.0, %v4440
  %v4442 = vpop.f32.mrf.mxu0
  %v4443 = vadd.f32 0.0, %v4442
  %4444 = vmatmul.bf16.gmra.mxu0 %v4257
  %v4445 = vpop.f32.mrf.mxu0
  %v4446 = vadd.f32 0.0, %v4445
  %v4447 = vpop.f32.mrf.mxu0
  %v4448 = vadd.f32 0.0, %v4447
  %4449 = vmatmul.bf16.gmra.mxu0 %v4260
  %v4450 = vpop.f32.mrf.mxu0
  %v4451 = vadd.f32 0.0, %v4450
  %v4452 = vpop.f32.mrf.mxu0
  %v4453 = vadd.f32 0.0, %v4452
  %4454 = vmatmul.bf16.gmra.mxu0 %v4263
  %v4455 = vpop.f32.mrf.mxu0
  %v4456 = vadd.f32 0.0, %v4455
  %v4457 = vpop.f32.mrf.mxu0
  %v4458 = vadd.f32 0.0, %v4457
  %4459 = vmatmul.bf16.gmra.mxu0 %v4266
  %v4460 = vpop.f32.mrf.mxu0
  %v4461 = vadd.f32 0.0, %v4460
  %v4462 = vpop.f32.mrf.mxu0
  %v4463 = vadd.f32 0.0, %v4462
  %4464 = vmatmul.bf16.gmra.mxu0 %v4269
  %v4465 = vpop.f32.mrf.mxu0
  %v4466 = vadd.f32 0.0, %v4465
  %v4467 = vpop.f32.mrf.mxu0
  %v4468 = vadd.f32 0.0, %v4467
  %4469 = vmatmul.bf16.gmra.mxu0 %v4272
  %v4470 = vpop.f32.mrf.mxu0
  %v4471 = vadd.f32 0.0, %v4470
  %v4472 = vpop.f32.mrf.mxu0
  %v4473 = vadd.f32 0.0, %v4472
  %4474 = vmatmul.bf16.gmra.mxu0 %v4275
  %v4475 = vpop.f32.mrf.mxu0
  %v4476 = vadd.f32 0.0, %v4475
  %v4477 = vpop.f32.mrf.mxu0
  %v4478 = vadd.f32 0.0, %v4477
  %4479 = vmatmul.bf16.gmra.mxu0 %v4278
  %v4480 = vpop.f32.mrf.mxu0
  %v4481 = vadd.f32 0.0, %v4480
  %v4482 = vpop.f32.mrf.mxu0
  %v4483 = vadd.f32 0.0, %v4482
  %4484 = vmatmul.bf16.gmra.mxu0 %v4281
  %v4485 = vpop.f32.mrf.mxu0
  %v4486 = vadd.f32 0.0, %v4485
  %v4487 = vpop.f32.mrf.mxu0
  %4488 = vdwg.mxu0
  %v4489 = vadd.f32 %v3972, %v4296
  %v4490 = vadd.f32 %v3973, %v4298
  %v4491 = vadd.f32 %v3974, %v4301
  %v4492 = vadd.f32 %v3975, %v4303
  %v4493 = vadd.f32 %v3976, %v4306
  %v4494 = vadd.f32 %v3977, %v4308
  %v4495 = vadd.f32 %v3978, %v4311
  %v4496 = vadd.f32 %v3979, %v4313
  %v4497 = vadd.f32 %v3980, %v4316
  %v4498 = vadd.f32 %v3981, %v4318
  %v4499 = vadd.f32 %v3982, %v4321
  %v4500 = vadd.f32 %v3983, %v4323
  %v4501 = vadd.f32 %v3984, %v4326
  %v4502 = vadd.f32 %v3985, %v4328
  %v4503 = vadd.f32 %v3986, %v4331
  %v4504 = vadd.f32 %v3987, %v4333
  %v4505 = vadd.f32 %v3988, %v4336
  %v4506 = vadd.f32 %v3989, %v4338
  %v4507 = vadd.f32 %v3990, %v4341
  %v4508 = vadd.f32 %v3991, %v4343
  %v4509 = vadd.f32 %v3992, %v4346
  %v4510 = vadd.f32 %v3993, %v4348
  %v4511 = vadd.f32 %v3994, %v4351
  %v4512 = vadd.f32 %v3995, %v4353
  %v4513 = vadd.f32 %v3996, %v4356
  %v4514 = vadd.f32 %v3997, %v4358
  %v4515 = vadd.f32 %v3998, %v4361
  %v4516 = vadd.f32 %v3999, %v4363
  %v4517 = vadd.f32 %v4000, %v4366
  %v4518 = vadd.f32 %v4001, %v4368
  %v4519 = vadd.f32 %v4002, %v4371
  %v4520 = vadd.f32 %v4003, %v4373
  %v4521 = vadd.f32 %v4004, %v4376
  %v4522 = vadd.f32 %v4005, %v4378
  %v4523 = vadd.f32 %v4006, %v4381
  %v4524 = vadd.f32 %v4007, %v4383
  %v4525 = vadd.f32 %v4008, %v4386
  %v4526 = vadd.f32 %v4009, %v4388
  %v4527 = vadd.f32 %v4010, %v4391
  %v4528 = vadd.f32 %v4011, %v4393
  %v4529 = vadd.f32 %v4012, %v4396
  %v4530 = vadd.f32 %v4013, %v4398
  %v4531 = vadd.f32 %v4014, %v4401
  %v4532 = vadd.f32 %v4015, %v4403
  %v4533 = vadd.f32 %v4016, %v4406
  %v4534 = vadd.f32 %v4017, %v4408
  %v4535 = vadd.f32 %v4018, %v4411
  %v4536 = vadd.f32 %v4019, %v4413
  %v4537 = vadd.f32 %v4020, %v4416
  %v4538 = vadd.f32 %v4021, %v4418
  %v4539 = vadd.f32 %v4022, %v4421
  %v4540 = vadd.f32 %v4023, %v4423
  %v4541 = vadd.f32 %v4024, %v4426
  %v4542 = vadd.f32 %v4025, %v4428
  %v4543 = vadd.f32 %v4026, %v4431
  %v4544 = vadd.f32 %v4027, %v4433
  %v4545 = vadd.f32 %v4028, %v4436
  %v4546 = vadd.f32 %v4029, %v4438
  %v4547 = vadd.f32 %v4030, %v4441
  %v4548 = vadd.f32 %v4031, %v4443
  %v4549 = vadd.f32 %v4032, %v4446
  %v4550 = vadd.f32 %v4033, %v4448
  %v4551 = vadd.f32 %v4034, %v4451
  %v4552 = vadd.f32 %v4035, %v4453
  %v4553 = vadd.f32 %v4036, %v4456
  %v4554 = vadd.f32 %v4037, %v4458
  %v4555 = vadd.f32 %v4038, %v4461
  %v4556 = vadd.f32 %v4039, %v4463
  %v4557 = vadd.f32 %v4040, %v4466
  %v4558 = vadd.f32 %v4041, %v4468
  %v4559 = vadd.f32 %v4042, %v4471
  %v4560 = vadd.f32 %v4043, %v4473
  %v4561 = vadd.f32 %v4044, %v4476
  %v4562 = vadd.f32 %v4045, %v4478
  %v4563 = vadd.f32 %v4046, %v4481
  %v4564 = vadd.f32 %v4047, %v4483
  %v4565 = vadd.f32 %v4048, %v4486
  %v4566 = vld [vmem:[%s2] sm:$0x1]
  %v4568 = vperm.slane %v4566, 0
  %v4570 = vadd.f32 %v4489, %v4568
  %v4571 = vadd.f32 %v4490, %v4568
  %v4572 = vadd.f32 %v4491, %v4568
  %v4573 = vadd.f32 %v4492, %v4568
  %v4574 = vadd.f32 %v4493, %v4568
  %v4575 = vadd.f32 %v4494, %v4568
  %v4576 = vadd.f32 %v4495, %v4568
  %v4577 = vadd.f32 %v4496, %v4568
  %v4578 = vadd.f32 %v4497, %v4568
  %v4579 = vadd.f32 %v4498, %v4568
  %v4580 = vadd.f32 %v4499, %v4568
  %v4581 = vadd.f32 %v4500, %v4568
  %v4582 = vadd.f32 %v4501, %v4568
  %v4583 = vadd.f32 %v4502, %v4568
  %v4584 = vadd.f32 %v4503, %v4568
  %v4585 = vadd.f32 %v4504, %v4568
  %v4586 = vadd.f32 %v4505, %v4568
  %v4587 = vadd.f32 %v4506, %v4568
  %v4588 = vadd.f32 %v4507, %v4568
  %v4589 = vadd.f32 %v4508, %v4568
  %v4590 = vadd.f32 %v4509, %v4568
  %v4591 = vadd.f32 %v4510, %v4568
  %v4592 = vadd.f32 %v4511, %v4568
  %v4593 = vadd.f32 %v4512, %v4568
  %v4594 = vadd.f32 %v4513, %v4568
  %v4595 = vadd.f32 %v4514, %v4568
  %v4596 = vadd.f32 %v4515, %v4568
  %v4597 = vadd.f32 %v4516, %v4568
  %v4598 = vadd.f32 %v4517, %v4568
  %v4599 = vadd.f32 %v4518, %v4568
  %v4600 = vadd.f32 %v4519, %v4568
  %v4601 = vadd.f32 %v4520, %v4568
  %v4602 = vadd.f32 %v4521, %v4568
  %v4603 = vadd.f32 %v4522, %v4568
  %v4604 = vadd.f32 %v4523, %v4568
  %v4605 = vadd.f32 %v4524, %v4568
  %v4606 = vadd.f32 %v4525, %v4568
  %v4607 = vadd.f32 %v4526, %v4568
  %v4608 = vadd.f32 %v4527, %v4568
  %v4609 = vadd.f32 %v4528, %v4568
  %v4610 = vadd.f32 %v4529, %v4568
  %v4611 = vadd.f32 %v4530, %v4568
  %v4612 = vadd.f32 %v4531, %v4568
  %v4613 = vadd.f32 %v4532, %v4568
  %v4614 = vadd.f32 %v4533, %v4568
  %v4615 = vadd.f32 %v4534, %v4568
  %v4616 = vadd.f32 %v4535, %v4568
  %v4617 = vadd.f32 %v4536, %v4568
  %v4618 = vadd.f32 %v4537, %v4568
  %v4619 = vadd.f32 %v4538, %v4568
  %v4620 = vadd.f32 %v4539, %v4568
  %v4621 = vadd.f32 %v4540, %v4568
  %v4622 = vadd.f32 %v4541, %v4568
  %v4623 = vadd.f32 %v4542, %v4568
  %v4624 = vadd.f32 %v4543, %v4568
  %v4625 = vadd.f32 %v4544, %v4568
  %v4626 = vadd.f32 %v4545, %v4568
  %v4627 = vadd.f32 %v4546, %v4568
  %v4628 = vadd.f32 %v4547, %v4568
  %v4629 = vadd.f32 %v4548, %v4568
  %v4630 = vadd.f32 %v4549, %v4568
  %v4631 = vadd.f32 %v4550, %v4568
  %v4632 = vadd.f32 %v4551, %v4568
  %v4633 = vadd.f32 %v4552, %v4568
  %v4634 = vadd.f32 %v4553, %v4568
  %v4635 = vadd.f32 %v4554, %v4568
  %v4636 = vadd.f32 %v4555, %v4568
  %v4637 = vadd.f32 %v4556, %v4568
  %v4638 = vadd.f32 %v4557, %v4568
  %v4639 = vadd.f32 %v4558, %v4568
  %v4640 = vadd.f32 %v4559, %v4568
  %v4641 = vadd.f32 %v4560, %v4568
  %v4642 = vadd.f32 %v4561, %v4568
  %v4643 = vadd.f32 %v4562, %v4568
  %v4644 = vadd.f32 %v4563, %v4568
  %v4645 = vadd.f32 %v4564, %v4568
  %v4646 = vadd.f32 %v4565, %v4568
  %vm4647 = vcmp.ge.f32.partialorder %v4570, 0.0
  %vm4648 = vcmp.ge.f32.partialorder %v4571, 0.0
  %vm4649 = vcmp.ge.f32.partialorder %v4572, 0.0
  %vm4650 = vcmp.ge.f32.partialorder %v4573, 0.0
  %vm4651 = vcmp.ge.f32.partialorder %v4574, 0.0
  %vm4652 = vcmp.ge.f32.partialorder %v4575, 0.0
  %vm4653 = vcmp.ge.f32.partialorder %v4576, 0.0
  %vm4654 = vcmp.ge.f32.partialorder %v4577, 0.0
  %vm4655 = vcmp.ge.f32.partialorder %v4578, 0.0
  %vm4656 = vcmp.ge.f32.partialorder %v4579, 0.0
  %vm4657 = vcmp.ge.f32.partialorder %v4580, 0.0
  %vm4658 = vcmp.ge.f32.partialorder %v4581, 0.0
  %vm4659 = vcmp.ge.f32.partialorder %v4582, 0.0
  %vm4660 = vcmp.ge.f32.partialorder %v4583, 0.0
  %vm4661 = vcmp.ge.f32.partialorder %v4584, 0.0
  %vm4662 = vcmp.ge.f32.partialorder %v4585, 0.0
  %vm4663 = vcmp.ge.f32.partialorder %v4586, 0.0
  %vm4664 = vcmp.ge.f32.partialorder %v4587, 0.0
  %vm4665 = vcmp.ge.f32.partialorder %v4588, 0.0
  %vm4666 = vcmp.ge.f32.partialorder %v4589, 0.0
  %vm4667 = vcmp.ge.f32.partialorder %v4590, 0.0
  %vm4668 = vcmp.ge.f32.partialorder %v4591, 0.0
  %vm4669 = vcmp.ge.f32.partialorder %v4592, 0.0
  %vm4670 = vcmp.ge.f32.partialorder %v4593, 0.0
  %vm4671 = vcmp.ge.f32.partialorder %v4594, 0.0
  %vm4672 = vcmp.ge.f32.partialorder %v4595, 0.0
  %vm4673 = vcmp.ge.f32.partialorder %v4596, 0.0
  %vm4674 = vcmp.ge.f32.partialorder %v4597, 0.0
  %vm4675 = vcmp.ge.f32.partialorder %v4598, 0.0
  %vm4676 = vcmp.ge.f32.partialorder %v4599, 0.0
  %vm4677 = vcmp.ge.f32.partialorder %v4600, 0.0
  %vm4678 = vcmp.ge.f32.partialorder %v4601, 0.0
  %vm4679 = vcmp.ge.f32.partialorder %v4602, 0.0
  %vm4680 = vcmp.ge.f32.partialorder %v4603, 0.0
  %vm4681 = vcmp.ge.f32.partialorder %v4604, 0.0
  %vm4682 = vcmp.ge.f32.partialorder %v4605, 0.0
  %vm4683 = vcmp.ge.f32.partialorder %v4606, 0.0
  %vm4684 = vcmp.ge.f32.partialorder %v4607, 0.0
  %vm4685 = vcmp.ge.f32.partialorder %v4608, 0.0
  %vm4686 = vcmp.ge.f32.partialorder %v4609, 0.0
  %vm4687 = vcmp.ge.f32.partialorder %v4610, 0.0
  %vm4688 = vcmp.ge.f32.partialorder %v4611, 0.0
  %vm4689 = vcmp.ge.f32.partialorder %v4612, 0.0
  %vm4690 = vcmp.ge.f32.partialorder %v4613, 0.0
  %vm4691 = vcmp.ge.f32.partialorder %v4614, 0.0
  %vm4692 = vcmp.ge.f32.partialorder %v4615, 0.0
  %vm4693 = vcmp.ge.f32.partialorder %v4616, 0.0
  %vm4694 = vcmp.ge.f32.partialorder %v4617, 0.0
  %vm4695 = vcmp.ge.f32.partialorder %v4618, 0.0
  %vm4696 = vcmp.ge.f32.partialorder %v4619, 0.0
  %vm4697 = vcmp.ge.f32.partialorder %v4620, 0.0
  %vm4698 = vcmp.ge.f32.partialorder %v4621, 0.0
  %vm4699 = vcmp.ge.f32.partialorder %v4622, 0.0
  %vm4700 = vcmp.ge.f32.partialorder %v4623, 0.0
  %vm4701 = vcmp.ge.f32.partialorder %v4624, 0.0
  %vm4702 = vcmp.ge.f32.partialorder %v4625, 0.0
  %vm4703 = vcmp.ge.f32.partialorder %v4626, 0.0
  %vm4704 = vcmp.ge.f32.partialorder %v4627, 0.0
  %vm4705 = vcmp.ge.f32.partialorder %v4628, 0.0
  %vm4706 = vcmp.ge.f32.partialorder %v4629, 0.0
  %vm4707 = vcmp.ge.f32.partialorder %v4630, 0.0
  %vm4708 = vcmp.ge.f32.partialorder %v4631, 0.0
  %vm4709 = vcmp.ge.f32.partialorder %v4632, 0.0
  %vm4710 = vcmp.ge.f32.partialorder %v4633, 0.0
  %vm4711 = vcmp.ge.f32.partialorder %v4634, 0.0
  %vm4712 = vcmp.ge.f32.partialorder %v4635, 0.0
  %vm4713 = vcmp.ge.f32.partialorder %v4636, 0.0
  %vm4714 = vcmp.ge.f32.partialorder %v4637, 0.0
  %vm4715 = vcmp.ge.f32.partialorder %v4638, 0.0
  %vm4716 = vcmp.ge.f32.partialorder %v4639, 0.0
  %vm4717 = vcmp.ge.f32.partialorder %v4640, 0.0
  %vm4718 = vcmp.ge.f32.partialorder %v4641, 0.0
  %vm4719 = vcmp.ge.f32.partialorder %v4642, 0.0
  %vm4720 = vcmp.ge.f32.partialorder %v4643, 0.0
  %vm4721 = vcmp.ge.f32.partialorder %v4644, 0.0
  %vm4722 = vcmp.ge.f32.partialorder %v4645, 0.0
  %vm4723 = vcmp.ge.f32.partialorder %v4646, 0.0
  %v4724 = vmul.f32 %v4570, 0.01
  %v4725 = vmul.f32 %v4571, 0.01
  %v4726 = vmul.f32 %v4572, 0.01
  %v4727 = vmul.f32 %v4573, 0.01
  %v4728 = vmul.f32 %v4574, 0.01
  %v4729 = vmul.f32 %v4575, 0.01
  %v4730 = vmul.f32 %v4576, 0.01
  %v4731 = vmul.f32 %v4577, 0.01
  %v4732 = vmul.f32 %v4578, 0.01
  %v4733 = vmul.f32 %v4579, 0.01
  %v4734 = vmul.f32 %v4580, 0.01
  %v4735 = vmul.f32 %v4581, 0.01
  %v4736 = vmul.f32 %v4582, 0.01
  %v4737 = vmul.f32 %v4583, 0.01
  %v4738 = vmul.f32 %v4584, 0.01
  %v4739 = vmul.f32 %v4585, 0.01
  %v4740 = vmul.f32 %v4586, 0.01
  %v4741 = vmul.f32 %v4587, 0.01
  %v4742 = vmul.f32 %v4588, 0.01
  %v4743 = vmul.f32 %v4589, 0.01
  %v4744 = vmul.f32 %v4590, 0.01
  %v4745 = vmul.f32 %v4591, 0.01
  %v4746 = vmul.f32 %v4592, 0.01
  %v4747 = vmul.f32 %v4593, 0.01
  %v4748 = vmul.f32 %v4594, 0.01
  %v4749 = vmul.f32 %v4595, 0.01
  %v4750 = vmul.f32 %v4596, 0.01
  %v4751 = vmul.f32 %v4597, 0.01
  %v4752 = vmul.f32 %v4598, 0.01
  %v4753 = vmul.f32 %v4599, 0.01
  %v4754 = vmul.f32 %v4600, 0.01
  %v4755 = vmul.f32 %v4601, 0.01
  %v4756 = vmul.f32 %v4602, 0.01
  %v4757 = vmul.f32 %v4603, 0.01
  %v4758 = vmul.f32 %v4604, 0.01
  %v4759 = vmul.f32 %v4605, 0.01
  %v4760 = vmul.f32 %v4606, 0.01
  %v4761 = vmul.f32 %v4607, 0.01
  %v4762 = vmul.f32 %v4608, 0.01
  %v4763 = vmul.f32 %v4609, 0.01
  %v4764 = vmul.f32 %v4610, 0.01
  %v4765 = vmul.f32 %v4611, 0.01
  %v4766 = vmul.f32 %v4612, 0.01
  %v4767 = vmul.f32 %v4613, 0.01
  %v4768 = vmul.f32 %v4614, 0.01
  %v4769 = vmul.f32 %v4615, 0.01
  %v4770 = vmul.f32 %v4616, 0.01
  %v4771 = vmul.f32 %v4617, 0.01
  %v4772 = vmul.f32 %v4618, 0.01
  %v4773 = vmul.f32 %v4619, 0.01
  %v4774 = vmul.f32 %v4620, 0.01
  %v4775 = vmul.f32 %v4621, 0.01
  %v4776 = vmul.f32 %v4622, 0.01
  %v4777 = vmul.f32 %v4623, 0.01
  %v4778 = vmul.f32 %v4624, 0.01
  %v4779 = vmul.f32 %v4625, 0.01
  %v4780 = vmul.f32 %v4626, 0.01
  %v4781 = vmul.f32 %v4627, 0.01
  %v4782 = vmul.f32 %v4628, 0.01
  %v4783 = vmul.f32 %v4629, 0.01
  %v4784 = vmul.f32 %v4630, 0.01
  %v4785 = vmul.f32 %v4631, 0.01
  %v4786 = vmul.f32 %v4632, 0.01
  %v4787 = vmul.f32 %v4633, 0.01
  %v4788 = vmul.f32 %v4634, 0.01
  %v4789 = vmul.f32 %v4635, 0.01
  %v4790 = vmul.f32 %v4636, 0.01
  %v4791 = vmul.f32 %v4637, 0.01
  %v4792 = vmul.f32 %v4638, 0.01
  %v4793 = vmul.f32 %v4639, 0.01
  %v4794 = vmul.f32 %v4640, 0.01
  %v4795 = vmul.f32 %v4641, 0.01
  %v4796 = vmul.f32 %v4642, 0.01
  %v4797 = vmul.f32 %v4643, 0.01
  %v4798 = vmul.f32 %v4644, 0.01
  %v4799 = vmul.f32 %v4645, 0.01
  %v4800 = vmul.f32 %v4646, 0.01
  %v4801 = vsel %vm4647, %v4570, %v4724
  %v4802 = vsel %vm4648, %v4571, %v4725
  %v4803 = vsel %vm4649, %v4572, %v4726
  %v4804 = vsel %vm4650, %v4573, %v4727
  %v4805 = vsel %vm4651, %v4574, %v4728
  %v4806 = vsel %vm4652, %v4575, %v4729
  %v4807 = vsel %vm4653, %v4576, %v4730
  %v4808 = vsel %vm4654, %v4577, %v4731
  %v4809 = vsel %vm4655, %v4578, %v4732
  %v4810 = vsel %vm4656, %v4579, %v4733
  %v4811 = vsel %vm4657, %v4580, %v4734
  %v4812 = vsel %vm4658, %v4581, %v4735
  %v4813 = vsel %vm4659, %v4582, %v4736
  %v4814 = vsel %vm4660, %v4583, %v4737
  %v4815 = vsel %vm4661, %v4584, %v4738
  %v4816 = vsel %vm4662, %v4585, %v4739
  %v4817 = vsel %vm4663, %v4586, %v4740
  %v4818 = vsel %vm4664, %v4587, %v4741
  %v4819 = vsel %vm4665, %v4588, %v4742
  %v4820 = vsel %vm4666, %v4589, %v4743
  %v4821 = vsel %vm4667, %v4590, %v4744
  %v4822 = vsel %vm4668, %v4591, %v4745
  %v4823 = vsel %vm4669, %v4592, %v4746
  %v4824 = vsel %vm4670, %v4593, %v4747
  %v4825 = vsel %vm4671, %v4594, %v4748
  %v4826 = vsel %vm4672, %v4595, %v4749
  %v4827 = vsel %vm4673, %v4596, %v4750
  %v4828 = vsel %vm4674, %v4597, %v4751
  %v4829 = vsel %vm4675, %v4598, %v4752
  %v4830 = vsel %vm4676, %v4599, %v4753
  %v4831 = vsel %vm4677, %v4600, %v4754
  %v4832 = vsel %vm4678, %v4601, %v4755
  %v4833 = vsel %vm4679, %v4602, %v4756
  %v4834 = vsel %vm4680, %v4603, %v4757
  %v4835 = vsel %vm4681, %v4604, %v4758
  %v4836 = vsel %vm4682, %v4605, %v4759
  %v4837 = vsel %vm4683, %v4606, %v4760
  %v4838 = vsel %vm4684, %v4607, %v4761
  %v4839 = vsel %vm4685, %v4608, %v4762
  %v4840 = vsel %vm4686, %v4609, %v4763
  %v4841 = vsel %vm4687, %v4610, %v4764
  %v4842 = vsel %vm4688, %v4611, %v4765
  %v4843 = vsel %vm4689, %v4612, %v4766
  %v4844 = vsel %vm4690, %v4613, %v4767
  %v4845 = vsel %vm4691, %v4614, %v4768
  %v4846 = vsel %vm4692, %v4615, %v4769
  %v4847 = vsel %vm4693, %v4616, %v4770
  %v4848 = vsel %vm4694, %v4617, %v4771
  %v4849 = vsel %vm4695, %v4618, %v4772
  %v4850 = vsel %vm4696, %v4619, %v4773
  %v4851 = vsel %vm4697, %v4620, %v4774
  %v4852 = vsel %vm4698, %v4621, %v4775
  %v4853 = vsel %vm4699, %v4622, %v4776
  %v4854 = vsel %vm4700, %v4623, %v4777
  %v4855 = vsel %vm4701, %v4624, %v4778
  %v4856 = vsel %vm4702, %v4625, %v4779
  %v4857 = vsel %vm4703, %v4626, %v4780
  %v4858 = vsel %vm4704, %v4627, %v4781
  %v4859 = vsel %vm4705, %v4628, %v4782
  %v4860 = vsel %vm4706, %v4629, %v4783
  %v4861 = vsel %vm4707, %v4630, %v4784
  %v4862 = vsel %vm4708, %v4631, %v4785
  %v4863 = vsel %vm4709, %v4632, %v4786
  %v4864 = vsel %vm4710, %v4633, %v4787
  %v4865 = vsel %vm4711, %v4634, %v4788
  %v4866 = vsel %vm4712, %v4635, %v4789
  %v4867 = vsel %vm4713, %v4636, %v4790
  %v4868 = vsel %vm4714, %v4637, %v4791
  %v4869 = vsel %vm4715, %v4638, %v4792
  %v4870 = vsel %vm4716, %v4639, %v4793
  %v4871 = vsel %vm4717, %v4640, %v4794
  %v4872 = vsel %vm4718, %v4641, %v4795
  %v4873 = vsel %vm4719, %v4642, %v4796
  %v4874 = vsel %vm4720, %v4643, %v4797
  %v4875 = vsel %vm4721, %v4644, %v4798
  %v4876 = vsel %vm4722, %v4645, %v4799
  %v4877 = vsel %vm4723, %v4646, %v4800
  %4878 = vst.msk [vmem:[#allocation2] sm:$0xff] %vm39, %v4801
  %4879 = vst.msk [vmem:[#allocation2 + $0x8] sm:$0xff] %vm39, %v4802
  %4880 = vst.msk [vmem:[#allocation2 + $0x10] sm:$0xff] %vm39, %v4803
  %4881 = vst.msk [vmem:[#allocation2 + $0x18] sm:$0xff] %vm39, %v4804
  %4882 = vst.msk [vmem:[#allocation2 + $0x20] sm:$0xff] %vm39, %v4805
  %4883 = vst.msk [vmem:[#allocation2 + $0x28] sm:$0xff] %vm39, %v4806
  %4884 = vst.msk [vmem:[#allocation2 + $0x30] sm:$0xff] %vm39, %v4807
  %4885 = vst.msk [vmem:[#allocation2 + $0x38] sm:$0xff] %vm39, %v4808
  %4886 = vst.msk [vmem:[#allocation2 + $0x40] sm:$0xff] %vm39, %v4809
  %4887 = vst.msk [vmem:[#allocation2 + $0x48] sm:$0xff] %vm39, %v4810
  %4888 = vst.msk [vmem:[#allocation2 + $0x50] sm:$0xff] %vm39, %v4811
  %4889 = vst.msk [vmem:[#allocation2 + $0x58] sm:$0xff] %vm39, %v4812
  %4890 = vst.msk [vmem:[#allocation2 + $0x60] sm:$0xff] %vm39, %v4813
  %4891 = vst.msk [vmem:[#allocation2 + $0x68] sm:$0xff] %vm39, %v4814
  %4892 = vst.msk [vmem:[#allocation2 + $0x70] sm:$0xff] %vm39, %v4815
  %4893 = vst.msk [vmem:[#allocation2 + $0x78] sm:$0xff] %vm39, %v4816
  %4894 = vst.msk [vmem:[#allocation2 + $0x80] sm:$0xff] %vm39, %v4817
  %4895 = vst.msk [vmem:[#allocation2 + $0x88] sm:$0xff] %vm39, %v4818
  %4896 = vst.msk [vmem:[#allocation2 + $0x90] sm:$0xff] %vm39, %v4819
  %4897 = vst.msk [vmem:[#allocation2 + $0x98] sm:$0xff] %vm39, %v4820
  %4898 = vst.msk [vmem:[#allocation2 + $0xa0] sm:$0xff] %vm39, %v4821
  %4899 = vst.msk [vmem:[#allocation2 + $0xa8] sm:$0xff] %vm39, %v4822
  %4900 = vst.msk [vmem:[#allocation2 + $0xb0] sm:$0xff] %vm39, %v4823
  %4901 = vst.msk [vmem:[#allocation2 + $0xb8] sm:$0xff] %vm39, %v4824
  %4902 = vst.msk [vmem:[#allocation2 + $0xc0] sm:$0xff] %vm39, %v4825
  %4903 = vst.msk [vmem:[#allocation2 + $0xc8] sm:$0xff] %vm39, %v4826
  %4904 = vst.msk [vmem:[#allocation2 + $0xd0] sm:$0xff] %vm39, %v4827
  %4905 = vst.msk [vmem:[#allocation2 + $0xd8] sm:$0xff] %vm39, %v4828
  %4906 = vst.msk [vmem:[#allocation2 + $0xe0] sm:$0xff] %vm39, %v4829
  %4907 = vst.msk [vmem:[#allocation2 + $0xe8] sm:$0xff] %vm39, %v4830
  %4908 = vst.msk [vmem:[#allocation2 + $0xf0] sm:$0xff] %vm39, %v4831
  %4909 = vst.msk [vmem:[#allocation2 + $0xf8] sm:$0xff] %vm39, %v4832
  %4910 = vst.msk [vmem:[#allocation2 + $0x100] sm:$0xff] %vm39, %v4833
  %4911 = vst.msk [vmem:[#allocation2 + $0x108] sm:$0xff] %vm39, %v4834
  %4912 = vst.msk [vmem:[#allocation2 + $0x110] sm:$0xff] %vm39, %v4835
  %4913 = vst.msk [vmem:[#allocation2 + $0x118] sm:$0xff] %vm39, %v4836
  %4914 = vst.msk [vmem:[#allocation2 + $0x120] sm:$0xff] %vm39, %v4837
  %4915 = vst.msk [vmem:[#allocation2 + $0x128] sm:$0xff] %vm39, %v4838
  %4916 = vst.msk [vmem:[#allocation2 + $0x130] sm:$0xff] %vm39, %v4839
  %4917 = vst.msk [vmem:[#allocation2 + $0x138] sm:$0xff] %vm39, %v4840
  %4918 = vst.msk [vmem:[#allocation2 + $0x140] sm:$0xff] %vm39, %v4841
  %4919 = vst.msk [vmem:[#allocation2 + $0x148] sm:$0xff] %vm39, %v4842
  %4920 = vst.msk [vmem:[#allocation2 + $0x150] sm:$0xff] %vm39, %v4843
  %4921 = vst.msk [vmem:[#allocation2 + $0x158] sm:$0xff] %vm39, %v4844
  %4922 = vst.msk [vmem:[#allocation2 + $0x160] sm:$0xff] %vm39, %v4845
  %4923 = vst.msk [vmem:[#allocation2 + $0x168] sm:$0xff] %vm39, %v4846
  %4924 = vst.msk [vmem:[#allocation2 + $0x170] sm:$0xff] %vm39, %v4847
  %4925 = vst.msk [vmem:[#allocation2 + $0x178] sm:$0xff] %vm39, %v4848
  %4926 = vst.msk [vmem:[#allocation2 + $0x180] sm:$0xff] %vm39, %v4849
  %4927 = vst.msk [vmem:[#allocation2 + $0x188] sm:$0xff] %vm39, %v4850
  %4928 = vst.msk [vmem:[#allocation2 + $0x190] sm:$0xff] %vm39, %v4851
  %4929 = vst.msk [vmem:[#allocation2 + $0x198] sm:$0xff] %vm39, %v4852
  %4930 = vst.msk [vmem:[#allocation2 + $0x1a0] sm:$0xff] %vm39, %v4853
  %4931 = vst.msk [vmem:[#allocation2 + $0x1a8] sm:$0xff] %vm39, %v4854
  %4932 = vst.msk [vmem:[#allocation2 + $0x1b0] sm:$0xff] %vm39, %v4855
  %4933 = vst.msk [vmem:[#allocation2 + $0x1b8] sm:$0xff] %vm39, %v4856
  %4934 = vst.msk [vmem:[#allocation2 + $0x1c0] sm:$0xff] %vm39, %v4857
  %4935 = vst.msk [vmem:[#allocation2 + $0x1c8] sm:$0xff] %vm39, %v4858
  %4936 = vst.msk [vmem:[#allocation2 + $0x1d0] sm:$0xff] %vm39, %v4859
  %4937 = vst.msk [vmem:[#allocation2 + $0x1d8] sm:$0xff] %vm39, %v4860
  %4938 = vst.msk [vmem:[#allocation2 + $0x1e0] sm:$0xff] %vm39, %v4861
  %4939 = vst.msk [vmem:[#allocation2 + $0x1e8] sm:$0xff] %vm39, %v4862
  %4940 = vst.msk [vmem:[#allocation2 + $0x1f0] sm:$0xff] %vm39, %v4863
  %4941 = vst.msk [vmem:[#allocation2 + $0x1f8] sm:$0xff] %vm39, %v4864
  %4942 = vst.msk [vmem:[#allocation2 + $0x200] sm:$0xff] %vm39, %v4865
  %4943 = vst.msk [vmem:[#allocation2 + $0x208] sm:$0xff] %vm39, %v4866
  %4944 = vst.msk [vmem:[#allocation2 + $0x210] sm:$0xff] %vm39, %v4867
  %4945 = vst.msk [vmem:[#allocation2 + $0x218] sm:$0xff] %vm39, %v4868
  %4946 = vst.msk [vmem:[#allocation2 + $0x220] sm:$0xff] %vm39, %v4869
  %4947 = vst.msk [vmem:[#allocation2 + $0x228] sm:$0xff] %vm39, %v4870
  %4948 = vst.msk [vmem:[#allocation2 + $0x230] sm:$0xff] %vm39, %v4871
  %4949 = vst.msk [vmem:[#allocation2 + $0x238] sm:$0xff] %vm39, %v4872
  %4950 = vst.msk [vmem:[#allocation2 + $0x240] sm:$0xff] %vm39, %v4873
  %4951 = vst.msk [vmem:[#allocation2 + $0x248] sm:$0xff] %vm39, %v4874
  %4952 = vst.msk [vmem:[#allocation2 + $0x250] sm:$0xff] %vm39, %v4875
  %4953 = vst.msk [vmem:[#allocation2 + $0x258] sm:$0xff] %vm39, %v4876
  %vm4954 = vcmask 60416
  %4955 = vst.msk [vmem:[#allocation2 + $0x260] sm:$0xf] %vm4954, %v4877
  %v4956 = vld [vmem:[#allocation2] ss:$2 sm:$0xff]
  %s4957 = scalar_lea.vmem [#allocation2], 1
  %v4958 = vld [vmem:[%s4957] ss:$2 sm:$0xff]
  %s4959 = scalar_lea.vmem [#allocation2], 18
  %v4960 = vld [vmem:[%s4959] ss:$2 sm:$0xff]
  %s4961 = scalar_lea.vmem [#allocation2], 19
  %v4962 = vld [vmem:[%s4961] ss:$2 sm:$0xff]
  %v4963 = vmax.f32 %v4956, %v4958
  %v4964 = vmax.f32 %v4960, %v4962
  %v4965 = vmax.f32 %v4963, %v4964
  %4966 = vst.msk [vmem:[#allocation3 + $0xb] sm:$0xff] %vm39, %v4965
  %s4967 = scalar_lea.vmem [#allocation2], 36
  %v4968 = vld [vmem:[%s4967] ss:$2 sm:$0xff]
  %s4969 = scalar_lea.vmem [#allocation2], 37
  %v4970 = vld [vmem:[%s4969] ss:$2 sm:$0xff]
  %s4971 = scalar_lea.vmem [#allocation2], 54
  %v4972 = vld [vmem:[%s4971] ss:$2 sm:$0xff]
  %s4973 = scalar_lea.vmem [#allocation2], 55
  %v4974 = vld [vmem:[%s4973] ss:$2 sm:$0xff]
  %v4975 = vmax.f32 %v4968, %v4970
  %v4976 = vmax.f32 %v4972, %v4974
  %v4977 = vmax.f32 %v4975, %v4976
  %4978 = vst.msk [vmem:[#allocation3 + $0x15] sm:$0xff] %vm39, %v4977
  %s4979 = scalar_lea.vmem [#allocation2], 72
  %v4980 = vld [vmem:[%s4979] ss:$2 sm:$0xff]
  %s4981 = scalar_lea.vmem [#allocation2], 73
  %v4982 = vld [vmem:[%s4981] ss:$2 sm:$0xff]
  %s4983 = scalar_lea.vmem [#allocation2], 90
  %v4984 = vld [vmem:[%s4983] ss:$2 sm:$0xff]
  %s4985 = scalar_lea.vmem [#allocation2], 91
  %v4986 = vld [vmem:[%s4985] ss:$2 sm:$0xff]
  %v4987 = vmax.f32 %v4980, %v4982
  %v4988 = vmax.f32 %v4984, %v4986
  %v4989 = vmax.f32 %v4987, %v4988
  %4990 = vst.msk [vmem:[#allocation3 + $0x1f] sm:$0xff] %vm39, %v4989
  %s4991 = scalar_lea.vmem [#allocation2], 108
  %v4992 = vld [vmem:[%s4991] ss:$2 sm:$0xff]
  %s4993 = scalar_lea.vmem [#allocation2], 109
  %v4994 = vld [vmem:[%s4993] ss:$2 sm:$0xff]
  %s4995 = scalar_lea.vmem [#allocation2], 126
  %v4996 = vld [vmem:[%s4995] ss:$2 sm:$0xff]
  %s4997 = scalar_lea.vmem [#allocation2], 127
  %v4998 = vld [vmem:[%s4997] ss:$2 sm:$0xff]
  %v4999 = vmax.f32 %v4992, %v4994
  %v5000 = vmax.f32 %v4996, %v4998
  %v5001 = vmax.f32 %v4999, %v5000
  %5002 = vst.msk [vmem:[#allocation3 + $0x29] sm:$0xff] %vm39, %v5001
  %s5003 = scalar_lea.vmem [#allocation2], 144
  %v5004 = vld [vmem:[%s5003] ss:$2 sm:$0xff]
  %s5005 = scalar_lea.vmem [#allocation2], 145
  %v5006 = vld [vmem:[%s5005] ss:$2 sm:$0xff]
  %s5007 = scalar_lea.vmem [#allocation2], 162
  %v5008 = vld [vmem:[%s5007] ss:$2 sm:$0xff]
  %s5009 = scalar_lea.vmem [#allocation2], 163
  %v5010 = vld [vmem:[%s5009] ss:$2 sm:$0xff]
  %v5011 = vmax.f32 %v5004, %v5006
  %v5012 = vmax.f32 %v5008, %v5010
  %v5013 = vmax.f32 %v5011, %v5012
  %5014 = vst.msk [vmem:[#allocation3 + $0x33] sm:$0xff] %vm39, %v5013
  %s5015 = scalar_lea.vmem [#allocation2], 180
  %v5016 = vld [vmem:[%s5015] ss:$2 sm:$0xff]
  %s5017 = scalar_lea.vmem [#allocation2], 181
  %v5018 = vld [vmem:[%s5017] ss:$2 sm:$0xff]
  %s5019 = scalar_lea.vmem [#allocation2], 198
  %v5020 = vld [vmem:[%s5019] ss:$2 sm:$0xff]
  %s5021 = scalar_lea.vmem [#allocation2], 199
  %v5022 = vld [vmem:[%s5021] ss:$2 sm:$0xff]
  %v5023 = vmax.f32 %v5016, %v5018
  %v5024 = vmax.f32 %v5020, %v5022
  %v5025 = vmax.f32 %v5023, %v5024
  %5026 = vst.msk [vmem:[#allocation3 + $0x3d] sm:$0xff] %vm39, %v5025
  %s5027 = scalar_lea.vmem [#allocation2], 216
  %v5028 = vld [vmem:[%s5027] ss:$2 sm:$0xff]
  %s5029 = scalar_lea.vmem [#allocation2], 217
  %v5030 = vld [vmem:[%s5029] ss:$2 sm:$0xff]
  %s5031 = scalar_lea.vmem [#allocation2], 234
  %v5032 = vld [vmem:[%s5031] ss:$2 sm:$0xff]
  %s5033 = scalar_lea.vmem [#allocation2], 235
  %v5034 = vld [vmem:[%s5033] ss:$2 sm:$0xff]
  %v5035 = vmax.f32 %v5028, %v5030
  %v5036 = vmax.f32 %v5032, %v5034
  %v5037 = vmax.f32 %v5035, %v5036
  %5038 = vst.msk [vmem:[#allocation3 + $0x47] sm:$0xff] %vm39, %v5037
  %s5039 = scalar_lea.vmem [#allocation2], 252
  %v5040 = vld [vmem:[%s5039] ss:$2 sm:$0xff]
  %s5041 = scalar_lea.vmem [#allocation2], 253
  %v5042 = vld [vmem:[%s5041] ss:$2 sm:$0xff]
  %s5043 = scalar_lea.vmem [#allocation2], 270
  %v5044 = vld [vmem:[%s5043] ss:$2 sm:$0xff]
  %s5045 = scalar_lea.vmem [#allocation2], 271
  %v5046 = vld [vmem:[%s5045] ss:$2 sm:$0xff]
  %v5047 = vmax.f32 %v5040, %v5042
  %v5048 = vmax.f32 %v5044, %v5046
  %v5049 = vmax.f32 %v5047, %v5048
  %5050 = vst.msk [vmem:[#allocation3 + $0x51] sm:$0xff] %vm39, %v5049
  %s5051 = scalar_lea.vmem [#allocation2], 324
  %v5052 = vld [vmem:[%s5051] ss:$2 sm:$0xff]
  %s5053 = scalar_lea.vmem [#allocation2], 325
  %v5054 = vld [vmem:[%s5053] ss:$2 sm:$0xff]
  %s5055 = scalar_lea.vmem [#allocation2], 342
  %v5056 = vld [vmem:[%s5055] ss:$2 sm:$0xff]
  %s5057 = scalar_lea.vmem [#allocation2], 343
  %v5058 = vld [vmem:[%s5057] ss:$2 sm:$0xff]
  %v5059 = vmax.f32 %v5052, %v5054
  %v5060 = vmax.f32 %v5056, %v5058
  %v5061 = vmax.f32 %v5059, %v5060
  %5062 = vst.msk [vmem:[#allocation3 + $0x6f] sm:$0xff] %vm39, %v5061
  %s5063 = scalar_lea.vmem [#allocation2], 360
  %v5064 = vld [vmem:[%s5063] ss:$2 sm:$0xff]
  %s5065 = scalar_lea.vmem [#allocation2], 361
  %v5066 = vld [vmem:[%s5065] ss:$2 sm:$0xff]
  %s5067 = scalar_lea.vmem [#allocation2], 378
  %v5068 = vld [vmem:[%s5067] ss:$2 sm:$0xff]
  %s5069 = scalar_lea.vmem [#allocation2], 379
  %v5070 = vld [vmem:[%s5069] ss:$2 sm:$0xff]
  %v5071 = vmax.f32 %v5064, %v5066
  %v5072 = vmax.f32 %v5068, %v5070
  %v5073 = vmax.f32 %v5071, %v5072
  %5074 = vst.msk [vmem:[#allocation3 + $0x79] sm:$0xff] %vm39, %v5073
  %s5075 = scalar_lea.vmem [#allocation2], 396
  %v5076 = vld [vmem:[%s5075] ss:$2 sm:$0xff]
  %s5077 = scalar_lea.vmem [#allocation2], 397
  %v5078 = vld [vmem:[%s5077] ss:$2 sm:$0xff]
  %s5079 = scalar_lea.vmem [#allocation2], 414
  %v5080 = vld [vmem:[%s5079] ss:$2 sm:$0xff]
  %s5081 = scalar_lea.vmem [#allocation2], 415
  %v5082 = vld [vmem:[%s5081] ss:$2 sm:$0xff]
  %v5083 = vmax.f32 %v5076, %v5078
  %v5084 = vmax.f32 %v5080, %v5082
  %v5085 = vmax.f32 %v5083, %v5084
  %5086 = vst.msk [vmem:[#allocation3 + $0x83] sm:$0xff] %vm39, %v5085
  %s5087 = scalar_lea.vmem [#allocation2], 432
  %v5088 = vld [vmem:[%s5087] ss:$2 sm:$0xff]
  %s5089 = scalar_lea.vmem [#allocation2], 433
  %v5090 = vld [vmem:[%s5089] ss:$2 sm:$0xff]
  %s5091 = scalar_lea.vmem [#allocation2], 450
  %v5092 = vld [vmem:[%s5091] ss:$2 sm:$0xff]
  %s5093 = scalar_lea.vmem [#allocation2], 451
  %v5094 = vld [vmem:[%s5093] ss:$2 sm:$0xff]
  %v5095 = vmax.f32 %v5088, %v5090
  %v5096 = vmax.f32 %v5092, %v5094
  %v5097 = vmax.f32 %v5095, %v5096
  %5098 = vst.msk [vmem:[#allocation3 + $0x8d] sm:$0xff] %vm39, %v5097
  %s5099 = scalar_lea.vmem [#allocation2], 468
  %v5100 = vld [vmem:[%s5099] ss:$2 sm:$0xff]
  %s5101 = scalar_lea.vmem [#allocation2], 469
  %v5102 = vld [vmem:[%s5101] ss:$2 sm:$0xff]
  %s5103 = scalar_lea.vmem [#allocation2], 486
  %v5104 = vld [vmem:[%s5103] ss:$2 sm:$0xff]
  %s5105 = scalar_lea.vmem [#allocation2], 487
  %v5106 = vld [vmem:[%s5105] ss:$2 sm:$0xff]
  %v5107 = vmax.f32 %v5100, %v5102
  %v5108 = vmax.f32 %v5104, %v5106
  %v5109 = vmax.f32 %v5107, %v5108
  %5110 = vst.msk [vmem:[#allocation3 + $0x97] sm:$0xff] %vm39, %v5109
  %s5111 = scalar_lea.vmem [#allocation2], 504
  %v5112 = vld [vmem:[%s5111] ss:$2 sm:$0xff]
  %s5113 = scalar_lea.vmem [#allocation2], 505
  %v5114 = vld [vmem:[%s5113] ss:$2 sm:$0xff]
  %s5115 = scalar_lea.vmem [#allocation2], 522
  %v5116 = vld [vmem:[%s5115] ss:$2 sm:$0xff]
  %s5117 = scalar_lea.vmem [#allocation2], 523
  %v5118 = vld [vmem:[%s5117] ss:$2 sm:$0xff]
  %v5119 = vmax.f32 %v5112, %v5114
  %v5120 = vmax.f32 %v5116, %v5118
  %v5121 = vmax.f32 %v5119, %v5120
  %5122 = vst.msk [vmem:[#allocation3 + $0xa1] sm:$0xff] %vm39, %v5121
  %s5123 = scalar_lea.vmem [#allocation2], 540
  %v5124 = vld [vmem:[%s5123] ss:$2 sm:$0xff]
  %s5125 = scalar_lea.vmem [#allocation2], 541
  %v5126 = vld [vmem:[%s5125] ss:$2 sm:$0xff]
  %s5127 = scalar_lea.vmem [#allocation2], 558
  %v5128 = vld [vmem:[%s5127] ss:$2 sm:$0xff]
  %s5129 = scalar_lea.vmem [#allocation2], 559
  %v5130 = vld [vmem:[%s5129] ss:$2 sm:$0xff]
  %v5131 = vmax.f32 %v5124, %v5126
  %v5132 = vmax.f32 %v5128, %v5130
  %v5133 = vmax.f32 %v5131, %v5132
  %5134 = vst.msk [vmem:[#allocation3 + $0xab] sm:$0xff] %vm39, %v5133
  %s5135 = scalar_lea.vmem [#allocation2], 576
  %v5136 = vld [vmem:[%s5135] ss:$2 sm:$0xff]
  %s5137 = scalar_lea.vmem [#allocation2], 577
  %v5138 = vld [vmem:[%s5137] ss:$2 sm:$0xff]
  %s5139 = scalar_lea.vmem [#allocation2], 594
  %v5140 = vld [vmem:[%s5139] ss:$2 sm:$0xff]
  %s5141 = scalar_lea.vmem [#allocation2], 595
  %v5142 = vld [vmem:[%s5141] ss:$2 sm:$0xff]
  %v5143 = vmax.f32 %v5136, %v5138
  %v5144 = vmax.f32 %v5140, %v5142
  %v5145 = vmax.f32 %v5143, %v5144
  %5146 = vst.msk [vmem:[#allocation3 + $0xb5] sm:$0xff] %vm39, %v5145
  %v5147 = vld [vmem:[#allocation3] sm:$0xff]
  %v5148 = vld [vmem:[#allocation3 + $0x8] sm:$0xff]
  %v5149 = vld [vmem:[#allocation3 + $0x10] sm:$0xff]
  %v5150 = vld [vmem:[#allocation3 + $0x18] sm:$0xff]
  %v5151 = vld [vmem:[#allocation3 + $0x20] sm:$0xff]
  %v5152 = vld [vmem:[#allocation3 + $0x28] sm:$0xff]
  %v5153 = vld [vmem:[#allocation3 + $0x30] sm:$0xff]
  %v5154 = vld [vmem:[#allocation3 + $0x38] sm:$0xff]
  %v5155 = vld [vmem:[#allocation3 + $0x40] sm:$0xff]
  %v5156 = vld [vmem:[#allocation3 + $0x48] sm:$0xff]
  %v5157 = vld [vmem:[#allocation3 + $0x50] sm:$0xff]
  %v5158 = vld [vmem:[#allocation3 + $0x58] sm:$0xff]
  %v5159 = vld [vmem:[#allocation3 + $0x60] sm:$0xff]
  %v5160 = vld [vmem:[#allocation3 + $0x68] sm:$0xff]
  %v5161 = vld [vmem:[#allocation3 + $0x70] sm:$0xff]
  %v5162 = vld [vmem:[#allocation3 + $0x78] sm:$0xff]
  %v5163 = vld [vmem:[#allocation3 + $0x80] sm:$0xff]
  %v5164 = vld [vmem:[#allocation3 + $0x88] sm:$0xff]
  %v5165 = vld [vmem:[#allocation3 + $0x90] sm:$0xff]
  %v5166 = vld [vmem:[#allocation3 + $0x98] sm:$0xff]
  %v5167 = vld [vmem:[#allocation3 + $0xa0] sm:$0xff]
  %v5168 = vld [vmem:[#allocation3 + $0xa8] sm:$0xff]
  %v5169 = vld [vmem:[#allocation3 + $0xb0] sm:$0xf]
  %v5170 = vpack.c.bf16 %v5148, %v5147
  %v5171 = vpack.c.bf16 %v5150, %v5149
  %v5172 = vpack.c.bf16 %v5152, %v5151
  %v5173 = vpack.c.bf16 %v5154, %v5153
  %v5174 = vpack.c.bf16 %v5156, %v5155
  %v5175 = vpack.c.bf16 %v5158, %v5157
  %v5176 = vpack.c.bf16 %v5160, %v5159
  %v5177 = vpack.c.bf16 %v5162, %v5161
  %v5178 = vpack.c.bf16 %v5164, %v5163
  %v5179 = vpack.c.bf16 %v5166, %v5165
  %v5180 = vpack.c.bf16 %v5168, %v5167
  %v5181 = vpack.c.bf16 %v5169, %v5169
  %v5182 = vld [vmem:[%s3] sm:$0xf]
  %v5183 = vld [vmem:[#allocation3 + $0x1] sm:$0xff]
  %v5184 = vld [vmem:[#allocation3 + $0x9] sm:$0xff]
  %v5185 = vld [vmem:[#allocation3 + $0x11] sm:$0xff]
  %v5186 = vld [vmem:[#allocation3 + $0x19] sm:$0xff]
  %v5187 = vld [vmem:[#allocation3 + $0x21] sm:$0xff]
  %v5188 = vld [vmem:[#allocation3 + $0x29] sm:$0xff]
  %v5189 = vld [vmem:[#allocation3 + $0x31] sm:$0xff]
  %v5190 = vld [vmem:[#allocation3 + $0x39] sm:$0xff]
  %v5191 = vld [vmem:[#allocation3 + $0x41] sm:$0xff]
  %v5192 = vld [vmem:[#allocation3 + $0x49] sm:$0xff]
  %v5193 = vld [vmem:[#allocation3 + $0x51] sm:$0xff]
  %v5194 = vld [vmem:[#allocation3 + $0x59] sm:$0xff]
  %v5195 = vld [vmem:[#allocation3 + $0x61] sm:$0xff]
  %v5196 = vld [vmem:[#allocation3 + $0x69] sm:$0xff]
  %v5197 = vld [vmem:[#allocation3 + $0x71] sm:$0xff]
  %v5198 = vld [vmem:[#allocation3 + $0x79] sm:$0xff]
  %v5199 = vld [vmem:[#allocation3 + $0x81] sm:$0xff]
  %v5200 = vld [vmem:[#allocation3 + $0x89] sm:$0xff]
  %v5201 = vld [vmem:[#allocation3 + $0x91] sm:$0xff]
  %v5202 = vld [vmem:[#allocation3 + $0x99] sm:$0xff]
  %v5203 = vld [vmem:[#allocation3 + $0xa1] sm:$0xff]
  %v5204 = vld [vmem:[#allocation3 + $0xa9] sm:$0xff]
  %v5205 = vld [vmem:[#allocation3 + $0xb1] sm:$0xf]
  %v5206 = vpack.c.bf16 %v5184, %v5183
  %v5207 = vpack.c.bf16 %v5186, %v5185
  %v5208 = vpack.c.bf16 %v5188, %v5187
  %v5209 = vpack.c.bf16 %v5190, %v5189
  %v5210 = vpack.c.bf16 %v5192, %v5191
  %v5211 = vpack.c.bf16 %v5194, %v5193
  %v5212 = vpack.c.bf16 %v5196, %v5195
  %v5213 = vpack.c.bf16 %v5198, %v5197
  %v5214 = vpack.c.bf16 %v5200, %v5199
  %v5215 = vpack.c.bf16 %v5202, %v5201
  %v5216 = vpack.c.bf16 %v5204, %v5203
  %v5217 = vpack.c.bf16 %v5205, %v5205
  %v5218 = vld [vmem:[%s3 + $0x4] sm:$0xf]
  %v5220 = vsel %vm39, %v5206, 0
  %v5223 = vsel %vm39, %v5207, 0
  %v5226 = vsel %vm39, %v5208, 0
  %v5229 = vsel %vm39, %v5209, 0
  %v5232 = vsel %vm39, %v5210, 0
  %v5235 = vsel %vm39, %v5211, 0
  %v5238 = vsel %vm39, %v5212, 0
  %v5241 = vsel %vm39, %v5213, 0
  %v5244 = vsel %vm39, %v5214, 0
  %v5247 = vsel %vm39, %v5215, 0
  %v5250 = vsel %vm39, %v5216, 0
  %v5253 = vsel %vm39, %v5217, 0
  %v5256 = vsel %vm417, %v5218, 0
  %5258 = vmatpush.bf16.msra.mxu0 0
  %5259 = vmatpush.bf16.msra.mxu0 0
  %5260 = vmatpush.bf16.msra.mxu0 0
  %5261 = vmatpush.bf16.msra.mxu0 0
  %5262 = vmatpush.bf16.msra.mxu0 0
  %5263 = vmatpush.bf16.msra.mxu0 0
  %5264 = vmatpush.bf16.msra.mxu0 0
  %5265 = vmatpush.bf16.msra.mxu0 %v5256
  %5266 = vmatmul.bf16.gmra.mxu0 %v5220
  %v5267 = vpop.f32.mrf.mxu0
  %v5268 = vadd.f32 0.0, %v5267
  %v5269 = vpop.f32.mrf.mxu0
  %v5270 = vadd.f32 0.0, %v5269
  %5271 = vmatmul.bf16.gmra.mxu0 %v5223
  %v5272 = vpop.f32.mrf.mxu0
  %v5273 = vadd.f32 0.0, %v5272
  %v5274 = vpop.f32.mrf.mxu0
  %v5275 = vadd.f32 0.0, %v5274
  %5276 = vmatmul.bf16.gmra.mxu0 %v5226
  %v5277 = vpop.f32.mrf.mxu0
  %v5278 = vadd.f32 0.0, %v5277
  %v5279 = vpop.f32.mrf.mxu0
  %v5280 = vadd.f32 0.0, %v5279
  %5281 = vmatmul.bf16.gmra.mxu0 %v5229
  %v5282 = vpop.f32.mrf.mxu0
  %v5283 = vadd.f32 0.0, %v5282
  %v5284 = vpop.f32.mrf.mxu0
  %v5285 = vadd.f32 0.0, %v5284
  %5286 = vmatmul.bf16.gmra.mxu0 %v5232
  %v5287 = vpop.f32.mrf.mxu0
  %v5288 = vadd.f32 0.0, %v5287
  %v5289 = vpop.f32.mrf.mxu0
  %v5290 = vadd.f32 0.0, %v5289
  %5291 = vmatmul.bf16.gmra.mxu0 %v5235
  %v5292 = vpop.f32.mrf.mxu0
  %v5293 = vadd.f32 0.0, %v5292
  %v5294 = vpop.f32.mrf.mxu0
  %v5295 = vadd.f32 0.0, %v5294
  %5296 = vmatmul.bf16.gmra.mxu0 %v5238
  %v5297 = vpop.f32.mrf.mxu0
  %v5298 = vadd.f32 0.0, %v5297
  %v5299 = vpop.f32.mrf.mxu0
  %v5300 = vadd.f32 0.0, %v5299
  %5301 = vmatmul.bf16.gmra.mxu0 %v5241
  %v5302 = vpop.f32.mrf.mxu0
  %v5303 = vadd.f32 0.0, %v5302
  %v5304 = vpop.f32.mrf.mxu0
  %v5305 = vadd.f32 0.0, %v5304
  %5306 = vmatmul.bf16.gmra.mxu0 %v5244
  %v5307 = vpop.f32.mrf.mxu0
  %v5308 = vadd.f32 0.0, %v5307
  %v5309 = vpop.f32.mrf.mxu0
  %v5310 = vadd.f32 0.0, %v5309
  %5311 = vmatmul.bf16.gmra.mxu0 %v5247
  %v5312 = vpop.f32.mrf.mxu0
  %v5313 = vadd.f32 0.0, %v5312
  %v5314 = vpop.f32.mrf.mxu0
  %v5315 = vadd.f32 0.0, %v5314
  %5316 = vmatmul.bf16.gmra.mxu0 %v5250
  %v5317 = vpop.f32.mrf.mxu0
  %v5318 = vadd.f32 0.0, %v5317
  %v5319 = vpop.f32.mrf.mxu0
  %v5320 = vadd.f32 0.0, %v5319
  %5321 = vmatmul.bf16.gmra.mxu0 %v5253
  %v5322 = vpop.f32.mrf.mxu0
  %v5323 = vadd.f32 0.0, %v5322
  %v5324 = vpop.f32.mrf.mxu0
  %5325 = vdwg.mxu0
  %v5327 = vsel %vm39, %v5170, 0
  %v5330 = vsel %vm39, %v5171, 0
  %v5333 = vsel %vm39, %v5172, 0
  %v5336 = vsel %vm39, %v5173, 0
  %v5339 = vsel %vm39, %v5174, 0
  %v5342 = vsel %vm39, %v5175, 0
  %v5345 = vsel %vm39, %v5176, 0
  %v5348 = vsel %vm39, %v5177, 0
  %v5351 = vsel %vm39, %v5178, 0
  %v5354 = vsel %vm39, %v5179, 0
  %v5357 = vsel %vm39, %v5180, 0
  %v5360 = vsel %vm39, %v5181, 0
  %v5363 = vsel %vm417, %v5182, 0
  %5365 = vmatpush.bf16.msra.mxu0 0
  %5366 = vmatpush.bf16.msra.mxu0 0
  %5367 = vmatpush.bf16.msra.mxu0 0
  %5368 = vmatpush.bf16.msra.mxu0 0
  %5369 = vmatpush.bf16.msra.mxu0 0
  %5370 = vmatpush.bf16.msra.mxu0 0
  %5371 = vmatpush.bf16.msra.mxu0 0
  %5372 = vmatpush.bf16.msra.mxu0 %v5363
  %5373 = vmatmul.bf16.gmra.mxu0 %v5327
  %v5374 = vpop.f32.mrf.mxu0
  %v5375 = vadd.f32 %v5268, %v5374
  %v5376 = vpop.f32.mrf.mxu0
  %v5377 = vadd.f32 %v5270, %v5376
  %5378 = vmatmul.bf16.gmra.mxu0 %v5330
  %v5379 = vpop.f32.mrf.mxu0
  %v5380 = vadd.f32 %v5273, %v5379
  %v5381 = vpop.f32.mrf.mxu0
  %v5382 = vadd.f32 %v5275, %v5381
  %5383 = vmatmul.bf16.gmra.mxu0 %v5333
  %v5384 = vpop.f32.mrf.mxu0
  %v5385 = vadd.f32 %v5278, %v5384
  %v5386 = vpop.f32.mrf.mxu0
  %v5387 = vadd.f32 %v5280, %v5386
  %5388 = vmatmul.bf16.gmra.mxu0 %v5336
  %v5389 = vpop.f32.mrf.mxu0
  %v5390 = vadd.f32 %v5283, %v5389
  %v5391 = vpop.f32.mrf.mxu0
  %v5392 = vadd.f32 %v5285, %v5391
  %5393 = vmatmul.bf16.gmra.mxu0 %v5339
  %v5394 = vpop.f32.mrf.mxu0
  %v5395 = vadd.f32 %v5288, %v5394
  %v5396 = vpop.f32.mrf.mxu0
  %v5397 = vadd.f32 %v5290, %v5396
  %5398 = vmatmul.bf16.gmra.mxu0 %v5342
  %v5399 = vpop.f32.mrf.mxu0
  %v5400 = vadd.f32 %v5293, %v5399
  %v5401 = vpop.f32.mrf.mxu0
  %v5402 = vadd.f32 %v5295, %v5401
  %5403 = vmatmul.bf16.gmra.mxu0 %v5345
  %v5404 = vpop.f32.mrf.mxu0
  %v5405 = vadd.f32 %v5298, %v5404
  %v5406 = vpop.f32.mrf.mxu0
  %v5407 = vadd.f32 %v5300, %v5406
  %5408 = vmatmul.bf16.gmra.mxu0 %v5348
  %v5409 = vpop.f32.mrf.mxu0
  %v5410 = vadd.f32 %v5303, %v5409
  %v5411 = vpop.f32.mrf.mxu0
  %v5412 = vadd.f32 %v5305, %v5411
  %5413 = vmatmul.bf16.gmra.mxu0 %v5351
  %v5414 = vpop.f32.mrf.mxu0
  %v5415 = vadd.f32 %v5308, %v5414
  %v5416 = vpop.f32.mrf.mxu0
  %v5417 = vadd.f32 %v5310, %v5416
  %5418 = vmatmul.bf16.gmra.mxu0 %v5354
  %v5419 = vpop.f32.mrf.mxu0
  %v5420 = vadd.f32 %v5313, %v5419
  %v5421 = vpop.f32.mrf.mxu0
  %v5422 = vadd.f32 %v5315, %v5421
  %5423 = vmatmul.bf16.gmra.mxu0 %v5357
  %v5424 = vpop.f32.mrf.mxu0
  %v5425 = vadd.f32 %v5318, %v5424
  %v5426 = vpop.f32.mrf.mxu0
  %v5427 = vadd.f32 %v5320, %v5426
  %5428 = vmatmul.bf16.gmra.mxu0 %v5360
  %v5429 = vpop.f32.mrf.mxu0
  %v5430 = vadd.f32 %v5323, %v5429
  %v5431 = vpop.f32.mrf.mxu0
  %5432 = vdwg.mxu0
  %v5433 = vld [vmem:[#allocation3 + $0x2] sm:$0xff]
  %v5434 = vld [vmem:[#allocation3 + $0xa] sm:$0xff]
  %v5435 = vld [vmem:[#allocation3 + $0x12] sm:$0xff]
  %v5436 = vld [vmem:[#allocation3 + $0x1a] sm:$0xff]
  %v5437 = vld [vmem:[#allocation3 + $0x22] sm:$0xff]
  %v5438 = vld [vmem:[#allocation3 + $0x2a] sm:$0xff]
  %v5439 = vld [vmem:[#allocation3 + $0x32] sm:$0xff]
  %v5440 = vld [vmem:[#allocation3 + $0x3a] sm:$0xff]
  %v5441 = vld [vmem:[#allocation3 + $0x42] sm:$0xff]
  %v5442 = vld [vmem:[#allocation3 + $0x4a] sm:$0xff]
  %v5443 = vld [vmem:[#allocation3 + $0x52] sm:$0xff]
  %v5444 = vld [vmem:[#allocation3 + $0x5a] sm:$0xff]
  %v5445 = vld [vmem:[#allocation3 + $0x62] sm:$0xff]
  %v5446 = vld [vmem:[#allocation3 + $0x6a] sm:$0xff]
  %v5447 = vld [vmem:[#allocation3 + $0x72] sm:$0xff]
  %v5448 = vld [vmem:[#allocation3 + $0x7a] sm:$0xff]
  %v5449 = vld [vmem:[#allocation3 + $0x82] sm:$0xff]
  %v5450 = vld [vmem:[#allocation3 + $0x8a] sm:$0xff]
  %v5451 = vld [vmem:[#allocation3 + $0x92] sm:$0xff]
  %v5452 = vld [vmem:[#allocation3 + $0x9a] sm:$0xff]
  %v5453 = vld [vmem:[#allocation3 + $0xa2] sm:$0xff]
  %v5454 = vld [vmem:[#allocation3 + $0xaa] sm:$0xff]
  %v5455 = vld [vmem:[#allocation3 + $0xb2] sm:$0xf]
  %v5456 = vpack.c.bf16 %v5434, %v5433
  %v5457 = vpack.c.bf16 %v5436, %v5435
  %v5458 = vpack.c.bf16 %v5438, %v5437
  %v5459 = vpack.c.bf16 %v5440, %v5439
  %v5460 = vpack.c.bf16 %v5442, %v5441
  %v5461 = vpack.c.bf16 %v5444, %v5443
  %v5462 = vpack.c.bf16 %v5446, %v5445
  %v5463 = vpack.c.bf16 %v5448, %v5447
  %v5464 = vpack.c.bf16 %v5450, %v5449
  %v5465 = vpack.c.bf16 %v5452, %v5451
  %v5466 = vpack.c.bf16 %v5454, %v5453
  %v5467 = vpack.c.bf16 %v5455, %v5455
  %v5468 = vld [vmem:[%s3 + $0x8] sm:$0xf]
  %v5470 = vsel %vm39, %v5456, 0
  %v5473 = vsel %vm39, %v5457, 0
  %v5476 = vsel %vm39, %v5458, 0
  %v5479 = vsel %vm39, %v5459, 0
  %v5482 = vsel %vm39, %v5460, 0
  %v5485 = vsel %vm39, %v5461, 0
  %v5488 = vsel %vm39, %v5462, 0
  %v5491 = vsel %vm39, %v5463, 0
  %v5494 = vsel %vm39, %v5464, 0
  %v5497 = vsel %vm39, %v5465, 0
  %v5500 = vsel %vm39, %v5466, 0
  %v5503 = vsel %vm39, %v5467, 0
  %v5506 = vsel %vm417, %v5468, 0
  %5508 = vmatpush.bf16.msra.mxu0 0
  %5509 = vmatpush.bf16.msra.mxu0 0
  %5510 = vmatpush.bf16.msra.mxu0 0
  %5511 = vmatpush.bf16.msra.mxu0 0
  %5512 = vmatpush.bf16.msra.mxu0 0
  %5513 = vmatpush.bf16.msra.mxu0 0
  %5514 = vmatpush.bf16.msra.mxu0 0
  %5515 = vmatpush.bf16.msra.mxu0 %v5506
  %5516 = vmatmul.bf16.gmra.mxu0 %v5470
  %v5517 = vpop.f32.mrf.mxu0
  %v5518 = vadd.f32 0.0, %v5517
  %v5519 = vpop.f32.mrf.mxu0
  %v5520 = vadd.f32 0.0, %v5519
  %5521 = vmatmul.bf16.gmra.mxu0 %v5473
  %v5522 = vpop.f32.mrf.mxu0
  %v5523 = vadd.f32 0.0, %v5522
  %v5524 = vpop.f32.mrf.mxu0
  %v5525 = vadd.f32 0.0, %v5524
  %5526 = vmatmul.bf16.gmra.mxu0 %v5476
  %v5527 = vpop.f32.mrf.mxu0
  %v5528 = vadd.f32 0.0, %v5527
  %v5529 = vpop.f32.mrf.mxu0
  %v5530 = vadd.f32 0.0, %v5529
  %5531 = vmatmul.bf16.gmra.mxu0 %v5479
  %v5532 = vpop.f32.mrf.mxu0
  %v5533 = vadd.f32 0.0, %v5532
  %v5534 = vpop.f32.mrf.mxu0
  %v5535 = vadd.f32 0.0, %v5534
  %5536 = vmatmul.bf16.gmra.mxu0 %v5482
  %v5537 = vpop.f32.mrf.mxu0
  %v5538 = vadd.f32 0.0, %v5537
  %v5539 = vpop.f32.mrf.mxu0
  %v5540 = vadd.f32 0.0, %v5539
  %5541 = vmatmul.bf16.gmra.mxu0 %v5485
  %v5542 = vpop.f32.mrf.mxu0
  %v5543 = vadd.f32 0.0, %v5542
  %v5544 = vpop.f32.mrf.mxu0
  %v5545 = vadd.f32 0.0, %v5544
  %5546 = vmatmul.bf16.gmra.mxu0 %v5488
  %v5547 = vpop.f32.mrf.mxu0
  %v5548 = vadd.f32 0.0, %v5547
  %v5549 = vpop.f32.mrf.mxu0
  %v5550 = vadd.f32 0.0, %v5549
  %5551 = vmatmul.bf16.gmra.mxu0 %v5491
  %v5552 = vpop.f32.mrf.mxu0
  %v5553 = vadd.f32 0.0, %v5552
  %v5554 = vpop.f32.mrf.mxu0
  %v5555 = vadd.f32 0.0, %v5554
  %5556 = vmatmul.bf16.gmra.mxu0 %v5494
  %v5557 = vpop.f32.mrf.mxu0
  %v5558 = vadd.f32 0.0, %v5557
  %v5559 = vpop.f32.mrf.mxu0
  %v5560 = vadd.f32 0.0, %v5559
  %5561 = vmatmul.bf16.gmra.mxu0 %v5497
  %v5562 = vpop.f32.mrf.mxu0
  %v5563 = vadd.f32 0.0, %v5562
  %v5564 = vpop.f32.mrf.mxu0
  %v5565 = vadd.f32 0.0, %v5564
  %5566 = vmatmul.bf16.gmra.mxu0 %v5500
  %v5567 = vpop.f32.mrf.mxu0
  %v5568 = vadd.f32 0.0, %v5567
  %v5569 = vpop.f32.mrf.mxu0
  %v5570 = vadd.f32 0.0, %v5569
  %5571 = vmatmul.bf16.gmra.mxu0 %v5503
  %v5572 = vpop.f32.mrf.mxu0
  %v5573 = vadd.f32 0.0, %v5572
  %v5574 = vpop.f32.mrf.mxu0
  %5575 = vdwg.mxu0
  %v5576 = vadd.f32 %v5375, %v5518
  %v5577 = vadd.f32 %v5377, %v5520
  %v5578 = vadd.f32 %v5380, %v5523
  %v5579 = vadd.f32 %v5382, %v5525
  %v5580 = vadd.f32 %v5385, %v5528
  %v5581 = vadd.f32 %v5387, %v5530
  %v5582 = vadd.f32 %v5390, %v5533
  %v5583 = vadd.f32 %v5392, %v5535
  %v5584 = vadd.f32 %v5395, %v5538
  %v5585 = vadd.f32 %v5397, %v5540
  %v5586 = vadd.f32 %v5400, %v5543
  %v5587 = vadd.f32 %v5402, %v5545
  %v5588 = vadd.f32 %v5405, %v5548
  %v5589 = vadd.f32 %v5407, %v5550
  %v5590 = vadd.f32 %v5410, %v5553
  %v5591 = vadd.f32 %v5412, %v5555
  %v5592 = vadd.f32 %v5415, %v5558
  %v5593 = vadd.f32 %v5417, %v5560
  %v5594 = vadd.f32 %v5420, %v5563
  %v5595 = vadd.f32 %v5422, %v5565
  %v5596 = vadd.f32 %v5425, %v5568
  %v5597 = vadd.f32 %v5427, %v5570
  %v5598 = vadd.f32 %v5430, %v5573
  %v5599 = vld [vmem:[#allocation3 + $0xa] sm:$0xff]
  %v5600 = vld [vmem:[#allocation3 + $0x12] sm:$0xff]
  %v5601 = vld [vmem:[#allocation3 + $0x1a] sm:$0xff]
  %v5602 = vld [vmem:[#allocation3 + $0x22] sm:$0xff]
  %v5603 = vld [vmem:[#allocation3 + $0x2a] sm:$0xff]
  %v5604 = vld [vmem:[#allocation3 + $0x32] sm:$0xff]
  %v5605 = vld [vmem:[#allocation3 + $0x3a] sm:$0xff]
  %v5606 = vld [vmem:[#allocation3 + $0x42] sm:$0xff]
  %v5607 = vld [vmem:[#allocation3 + $0x4a] sm:$0xff]
  %v5608 = vld [vmem:[#allocation3 + $0x52] sm:$0xff]
  %v5609 = vld [vmem:[#allocation3 + $0x5a] sm:$0xff]
  %v5610 = vld [vmem:[#allocation3 + $0x62] sm:$0xff]
  %v5611 = vld [vmem:[#allocation3 + $0x6a] sm:$0xff]
  %v5612 = vld [vmem:[#allocation3 + $0x72] sm:$0xff]
  %v5613 = vld [vmem:[#allocation3 + $0x7a] sm:$0xff]
  %v5614 = vld [vmem:[#allocation3 + $0x82] sm:$0xff]
  %v5615 = vld [vmem:[#allocation3 + $0x8a] sm:$0xff]
  %v5616 = vld [vmem:[#allocation3 + $0x92] sm:$0xff]
  %v5617 = vld [vmem:[#allocation3 + $0x9a] sm:$0xff]
  %v5618 = vld [vmem:[#allocation3 + $0xa2] sm:$0xff]
  %v5619 = vld [vmem:[#allocation3 + $0xaa] sm:$0xff]
  %v5620 = vld [vmem:[#allocation3 + $0xb2] sm:$0xff]
  %v5621 = vld [vmem:[#allocation3 + $0xba] sm:$0xf]
  %v5622 = vpack.c.bf16 %v5600, %v5599
  %v5623 = vpack.c.bf16 %v5602, %v5601
  %v5624 = vpack.c.bf16 %v5604, %v5603
  %v5625 = vpack.c.bf16 %v5606, %v5605
  %v5626 = vpack.c.bf16 %v5608, %v5607
  %v5627 = vpack.c.bf16 %v5610, %v5609
  %v5628 = vpack.c.bf16 %v5612, %v5611
  %v5629 = vpack.c.bf16 %v5614, %v5613
  %v5630 = vpack.c.bf16 %v5616, %v5615
  %v5631 = vpack.c.bf16 %v5618, %v5617
  %v5632 = vpack.c.bf16 %v5620, %v5619
  %v5633 = vpack.c.bf16 %v5621, %v5621
  %v5634 = vld [vmem:[%s3 + $0xc] sm:$0xf]
  %v5636 = vsel %vm39, %v5622, 0
  %v5639 = vsel %vm39, %v5623, 0
  %v5642 = vsel %vm39, %v5624, 0
  %v5645 = vsel %vm39, %v5625, 0
  %v5648 = vsel %vm39, %v5626, 0
  %v5651 = vsel %vm39, %v5627, 0
  %v5654 = vsel %vm39, %v5628, 0
  %v5657 = vsel %vm39, %v5629, 0
  %v5660 = vsel %vm39, %v5630, 0
  %v5663 = vsel %vm39, %v5631, 0
  %v5666 = vsel %vm39, %v5632, 0
  %v5669 = vsel %vm39, %v5633, 0
  %v5672 = vsel %vm417, %v5634, 0
  %5674 = vmatpush.bf16.msra.mxu0 0
  %5675 = vmatpush.bf16.msra.mxu0 0
  %5676 = vmatpush.bf16.msra.mxu0 0
  %5677 = vmatpush.bf16.msra.mxu0 0
  %5678 = vmatpush.bf16.msra.mxu0 0
  %5679 = vmatpush.bf16.msra.mxu0 0
  %5680 = vmatpush.bf16.msra.mxu0 0
  %5681 = vmatpush.bf16.msra.mxu0 %v5672
  %5682 = vmatmul.bf16.gmra.mxu0 %v5636
  %v5683 = vpop.f32.mrf.mxu0
  %v5684 = vadd.f32 0.0, %v5683
  %v5685 = vpop.f32.mrf.mxu0
  %v5686 = vadd.f32 0.0, %v5685
  %5687 = vmatmul.bf16.gmra.mxu0 %v5639
  %v5688 = vpop.f32.mrf.mxu0
  %v5689 = vadd.f32 0.0, %v5688
  %v5690 = vpop.f32.mrf.mxu0
  %v5691 = vadd.f32 0.0, %v5690
  %5692 = vmatmul.bf16.gmra.mxu0 %v5642
  %v5693 = vpop.f32.mrf.mxu0
  %v5694 = vadd.f32 0.0, %v5693
  %v5695 = vpop.f32.mrf.mxu0
  %v5696 = vadd.f32 0.0, %v5695
  %5697 = vmatmul.bf16.gmra.mxu0 %v5645
  %v5698 = vpop.f32.mrf.mxu0
  %v5699 = vadd.f32 0.0, %v5698
  %v5700 = vpop.f32.mrf.mxu0
  %v5701 = vadd.f32 0.0, %v5700
  %5702 = vmatmul.bf16.gmra.mxu0 %v5648
  %v5703 = vpop.f32.mrf.mxu0
  %v5704 = vadd.f32 0.0, %v5703
  %v5705 = vpop.f32.mrf.mxu0
  %v5706 = vadd.f32 0.0, %v5705
  %5707 = vmatmul.bf16.gmra.mxu0 %v5651
  %v5708 = vpop.f32.mrf.mxu0
  %v5709 = vadd.f32 0.0, %v5708
  %v5710 = vpop.f32.mrf.mxu0
  %v5711 = vadd.f32 0.0, %v5710
  %5712 = vmatmul.bf16.gmra.mxu0 %v5654
  %v5713 = vpop.f32.mrf.mxu0
  %v5714 = vadd.f32 0.0, %v5713
  %v5715 = vpop.f32.mrf.mxu0
  %v5716 = vadd.f32 0.0, %v5715
  %5717 = vmatmul.bf16.gmra.mxu0 %v5657
  %v5718 = vpop.f32.mrf.mxu0
  %v5719 = vadd.f32 0.0, %v5718
  %v5720 = vpop.f32.mrf.mxu0
  %v5721 = vadd.f32 0.0, %v5720
  %5722 = vmatmul.bf16.gmra.mxu0 %v5660
  %v5723 = vpop.f32.mrf.mxu0
  %v5724 = vadd.f32 0.0, %v5723
  %v5725 = vpop.f32.mrf.mxu0
  %v5726 = vadd.f32 0.0, %v5725
  %5727 = vmatmul.bf16.gmra.mxu0 %v5663
  %v5728 = vpop.f32.mrf.mxu0
  %v5729 = vadd.f32 0.0, %v5728
  %v5730 = vpop.f32.mrf.mxu0
  %v5731 = vadd.f32 0.0, %v5730
  %5732 = vmatmul.bf16.gmra.mxu0 %v5666
  %v5733 = vpop.f32.mrf.mxu0
  %v5734 = vadd.f32 0.0, %v5733
  %v5735 = vpop.f32.mrf.mxu0
  %v5736 = vadd.f32 0.0, %v5735
  %5737 = vmatmul.bf16.gmra.mxu0 %v5669
  %v5738 = vpop.f32.mrf.mxu0
  %v5739 = vadd.f32 0.0, %v5738
  %v5740 = vpop.f32.mrf.mxu0
  %5741 = vdwg.mxu0
  %v5742 = vadd.f32 %v5576, %v5684
  %v5743 = vadd.f32 %v5577, %v5686
  %v5744 = vadd.f32 %v5578, %v5689
  %v5745 = vadd.f32 %v5579, %v5691
  %v5746 = vadd.f32 %v5580, %v5694
  %v5747 = vadd.f32 %v5581, %v5696
  %v5748 = vadd.f32 %v5582, %v5699
  %v5749 = vadd.f32 %v5583, %v5701
  %v5750 = vadd.f32 %v5584, %v5704
  %v5751 = vadd.f32 %v5585, %v5706
  %v5752 = vadd.f32 %v5586, %v5709
  %v5753 = vadd.f32 %v5587, %v5711
  %v5754 = vadd.f32 %v5588, %v5714
  %v5755 = vadd.f32 %v5589, %v5716
  %v5756 = vadd.f32 %v5590, %v5719
  %v5757 = vadd.f32 %v5591, %v5721
  %v5758 = vadd.f32 %v5592, %v5724
  %v5759 = vadd.f32 %v5593, %v5726
  %v5760 = vadd.f32 %v5594, %v5729
  %v5761 = vadd.f32 %v5595, %v5731
  %v5762 = vadd.f32 %v5596, %v5734
  %v5763 = vadd.f32 %v5597, %v5736
  %v5764 = vadd.f32 %v5598, %v5739
  %v5765 = vld [vmem:[#allocation3 + $0xb] sm:$0xff]
  %v5766 = vld [vmem:[#allocation3 + $0x13] sm:$0xff]
  %v5767 = vld [vmem:[#allocation3 + $0x1b] sm:$0xff]
  %v5768 = vld [vmem:[#allocation3 + $0x23] sm:$0xff]
  %v5769 = vld [vmem:[#allocation3 + $0x2b] sm:$0xff]
  %v5770 = vld [vmem:[#allocation3 + $0x33] sm:$0xff]
  %v5771 = vld [vmem:[#allocation3 + $0x3b] sm:$0xff]
  %v5772 = vld [vmem:[#allocation3 + $0x43] sm:$0xff]
  %v5773 = vld [vmem:[#allocation3 + $0x4b] sm:$0xff]
  %v5774 = vld [vmem:[#allocation3 + $0x53] sm:$0xff]
  %v5775 = vld [vmem:[#allocation3 + $0x5b] sm:$0xff]
  %v5776 = vld [vmem:[#allocation3 + $0x63] sm:$0xff]
  %v5777 = vld [vmem:[#allocation3 + $0x6b] sm:$0xff]
  %v5778 = vld [vmem:[#allocation3 + $0x73] sm:$0xff]
  %v5779 = vld [vmem:[#allocation3 + $0x7b] sm:$0xff]
  %v5780 = vld [vmem:[#allocation3 + $0x83] sm:$0xff]
  %v5781 = vld [vmem:[#allocation3 + $0x8b] sm:$0xff]
  %v5782 = vld [vmem:[#allocation3 + $0x93] sm:$0xff]
  %v5783 = vld [vmem:[#allocation3 + $0x9b] sm:$0xff]
  %v5784 = vld [vmem:[#allocation3 + $0xa3] sm:$0xff]
  %v5785 = vld [vmem:[#allocation3 + $0xab] sm:$0xff]
  %v5786 = vld [vmem:[#allocation3 + $0xb3] sm:$0xff]
  %v5787 = vld [vmem:[#allocation3 + $0xbb] sm:$0xf]
  %v5788 = vpack.c.bf16 %v5766, %v5765
  %v5789 = vpack.c.bf16 %v5768, %v5767
  %v5790 = vpack.c.bf16 %v5770, %v5769
  %v5791 = vpack.c.bf16 %v5772, %v5771
  %v5792 = vpack.c.bf16 %v5774, %v5773
  %v5793 = vpack.c.bf16 %v5776, %v5775
  %v5794 = vpack.c.bf16 %v5778, %v5777
  %v5795 = vpack.c.bf16 %v5780, %v5779
  %v5796 = vpack.c.bf16 %v5782, %v5781
  %v5797 = vpack.c.bf16 %v5784, %v5783
  %v5798 = vpack.c.bf16 %v5786, %v5785
  %v5799 = vpack.c.bf16 %v5787, %v5787
  %v5800 = vld [vmem:[%s3 + $0x10] sm:$0xf]
  %v5802 = vsel %vm39, %v5788, 0
  %v5805 = vsel %vm39, %v5789, 0
  %v5808 = vsel %vm39, %v5790, 0
  %v5811 = vsel %vm39, %v5791, 0
  %v5814 = vsel %vm39, %v5792, 0
  %v5817 = vsel %vm39, %v5793, 0
  %v5820 = vsel %vm39, %v5794, 0
  %v5823 = vsel %vm39, %v5795, 0
  %v5826 = vsel %vm39, %v5796, 0
  %v5829 = vsel %vm39, %v5797, 0
  %v5832 = vsel %vm39, %v5798, 0
  %v5835 = vsel %vm39, %v5799, 0
  %v5838 = vsel %vm417, %v5800, 0
  %5840 = vmatpush.bf16.msra.mxu0 0
  %5841 = vmatpush.bf16.msra.mxu0 0
  %5842 = vmatpush.bf16.msra.mxu0 0
  %5843 = vmatpush.bf16.msra.mxu0 0
  %5844 = vmatpush.bf16.msra.mxu0 0
  %5845 = vmatpush.bf16.msra.mxu0 0
  %5846 = vmatpush.bf16.msra.mxu0 0
  %5847 = vmatpush.bf16.msra.mxu0 %v5838
  %5848 = vmatmul.bf16.gmra.mxu0 %v5802
  %v5849 = vpop.f32.mrf.mxu0
  %v5850 = vadd.f32 0.0, %v5849
  %v5851 = vpop.f32.mrf.mxu0
  %v5852 = vadd.f32 0.0, %v5851
  %5853 = vmatmul.bf16.gmra.mxu0 %v5805
  %v5854 = vpop.f32.mrf.mxu0
  %v5855 = vadd.f32 0.0, %v5854
  %v5856 = vpop.f32.mrf.mxu0
  %v5857 = vadd.f32 0.0, %v5856
  %5858 = vmatmul.bf16.gmra.mxu0 %v5808
  %v5859 = vpop.f32.mrf.mxu0
  %v5860 = vadd.f32 0.0, %v5859
  %v5861 = vpop.f32.mrf.mxu0
  %v5862 = vadd.f32 0.0, %v5861
  %5863 = vmatmul.bf16.gmra.mxu0 %v5811
  %v5864 = vpop.f32.mrf.mxu0
  %v5865 = vadd.f32 0.0, %v5864
  %v5866 = vpop.f32.mrf.mxu0
  %v5867 = vadd.f32 0.0, %v5866
  %5868 = vmatmul.bf16.gmra.mxu0 %v5814
  %v5869 = vpop.f32.mrf.mxu0
  %v5870 = vadd.f32 0.0, %v5869
  %v5871 = vpop.f32.mrf.mxu0
  %v5872 = vadd.f32 0.0, %v5871
  %5873 = vmatmul.bf16.gmra.mxu0 %v5817
  %v5874 = vpop.f32.mrf.mxu0
  %v5875 = vadd.f32 0.0, %v5874
  %v5876 = vpop.f32.mrf.mxu0
  %v5877 = vadd.f32 0.0, %v5876
  %5878 = vmatmul.bf16.gmra.mxu0 %v5820
  %v5879 = vpop.f32.mrf.mxu0
  %v5880 = vadd.f32 0.0, %v5879
  %v5881 = vpop.f32.mrf.mxu0
  %v5882 = vadd.f32 0.0, %v5881
  %5883 = vmatmul.bf16.gmra.mxu0 %v5823
  %v5884 = vpop.f32.mrf.mxu0
  %v5885 = vadd.f32 0.0, %v5884
  %v5886 = vpop.f32.mrf.mxu0
  %v5887 = vadd.f32 0.0, %v5886
  %5888 = vmatmul.bf16.gmra.mxu0 %v5826
  %v5889 = vpop.f32.mrf.mxu0
  %v5890 = vadd.f32 0.0, %v5889
  %v5891 = vpop.f32.mrf.mxu0
  %v5892 = vadd.f32 0.0, %v5891
  %5893 = vmatmul.bf16.gmra.mxu0 %v5829
  %v5894 = vpop.f32.mrf.mxu0
  %v5895 = vadd.f32 0.0, %v5894
  %v5896 = vpop.f32.mrf.mxu0
  %v5897 = vadd.f32 0.0, %v5896
  %5898 = vmatmul.bf16.gmra.mxu0 %v5832
  %v5899 = vpop.f32.mrf.mxu0
  %v5900 = vadd.f32 0.0, %v5899
  %v5901 = vpop.f32.mrf.mxu0
  %v5902 = vadd.f32 0.0, %v5901
  %5903 = vmatmul.bf16.gmra.mxu0 %v5835
  %v5904 = vpop.f32.mrf.mxu0
  %v5905 = vadd.f32 0.0, %v5904
  %v5906 = vpop.f32.mrf.mxu0
  %5907 = vdwg.mxu0
  %v5908 = vadd.f32 %v5742, %v5850
  %v5909 = vadd.f32 %v5743, %v5852
  %v5910 = vadd.f32 %v5744, %v5855
  %v5911 = vadd.f32 %v5745, %v5857
  %v5912 = vadd.f32 %v5746, %v5860
  %v5913 = vadd.f32 %v5747, %v5862
  %v5914 = vadd.f32 %v5748, %v5865
  %v5915 = vadd.f32 %v5749, %v5867
  %v5916 = vadd.f32 %v5750, %v5870
  %v5917 = vadd.f32 %v5751, %v5872
  %v5918 = vadd.f32 %v5752, %v5875
  %v5919 = vadd.f32 %v5753, %v5877
  %v5920 = vadd.f32 %v5754, %v5880
  %v5921 = vadd.f32 %v5755, %v5882
  %v5922 = vadd.f32 %v5756, %v5885
  %v5923 = vadd.f32 %v5757, %v5887
  %v5924 = vadd.f32 %v5758, %v5890
  %v5925 = vadd.f32 %v5759, %v5892
  %v5926 = vadd.f32 %v5760, %v5895
  %v5927 = vadd.f32 %v5761, %v5897
  %v5928 = vadd.f32 %v5762, %v5900
  %v5929 = vadd.f32 %v5763, %v5902
  %v5930 = vadd.f32 %v5764, %v5905
  %v5931 = vld [vmem:[#allocation3 + $0xc] sm:$0xff]
  %v5932 = vld [vmem:[#allocation3 + $0x14] sm:$0xff]
  %v5933 = vld [vmem:[#allocation3 + $0x1c] sm:$0xff]
  %v5934 = vld [vmem:[#allocation3 + $0x24] sm:$0xff]
  %v5935 = vld [vmem:[#allocation3 + $0x2c] sm:$0xff]
  %v5936 = vld [vmem:[#allocation3 + $0x34] sm:$0xff]
  %v5937 = vld [vmem:[#allocation3 + $0x3c] sm:$0xff]
  %v5938 = vld [vmem:[#allocation3 + $0x44] sm:$0xff]
  %v5939 = vld [vmem:[#allocation3 + $0x4c] sm:$0xff]
  %v5940 = vld [vmem:[#allocation3 + $0x54] sm:$0xff]
  %v5941 = vld [vmem:[#allocation3 + $0x5c] sm:$0xff]
  %v5942 = vld [vmem:[#allocation3 + $0x64] sm:$0xff]
  %v5943 = vld [vmem:[#allocation3 + $0x6c] sm:$0xff]
  %v5944 = vld [vmem:[#allocation3 + $0x74] sm:$0xff]
  %v5945 = vld [vmem:[#allocation3 + $0x7c] sm:$0xff]
  %v5946 = vld [vmem:[#allocation3 + $0x84] sm:$0xff]
  %v5947 = vld [vmem:[#allocation3 + $0x8c] sm:$0xff]
  %v5948 = vld [vmem:[#allocation3 + $0x94] sm:$0xff]
  %v5949 = vld [vmem:[#allocation3 + $0x9c] sm:$0xff]
  %v5950 = vld [vmem:[#allocation3 + $0xa4] sm:$0xff]
  %v5951 = vld [vmem:[#allocation3 + $0xac] sm:$0xff]
  %v5952 = vld [vmem:[#allocation3 + $0xb4] sm:$0xff]
  %v5953 = vld [vmem:[#allocation3 + $0xbc] sm:$0xf]
  %v5954 = vpack.c.bf16 %v5932, %v5931
  %v5955 = vpack.c.bf16 %v5934, %v5933
  %v5956 = vpack.c.bf16 %v5936, %v5935
  %v5957 = vpack.c.bf16 %v5938, %v5937
  %v5958 = vpack.c.bf16 %v5940, %v5939
  %v5959 = vpack.c.bf16 %v5942, %v5941
  %v5960 = vpack.c.bf16 %v5944, %v5943
  %v5961 = vpack.c.bf16 %v5946, %v5945
  %v5962 = vpack.c.bf16 %v5948, %v5947
  %v5963 = vpack.c.bf16 %v5950, %v5949
  %v5964 = vpack.c.bf16 %v5952, %v5951
  %v5965 = vpack.c.bf16 %v5953, %v5953
  %v5966 = vld [vmem:[%s3 + $0x14] sm:$0xf]
  %v5968 = vsel %vm39, %v5954, 0
  %v5971 = vsel %vm39, %v5955, 0
  %v5974 = vsel %vm39, %v5956, 0
  %v5977 = vsel %vm39, %v5957, 0
  %v5980 = vsel %vm39, %v5958, 0
  %v5983 = vsel %vm39, %v5959, 0
  %v5986 = vsel %vm39, %v5960, 0
  %v5989 = vsel %vm39, %v5961, 0
  %v5992 = vsel %vm39, %v5962, 0
  %v5995 = vsel %vm39, %v5963, 0
  %v5998 = vsel %vm39, %v5964, 0
  %v6001 = vsel %vm39, %v5965, 0
  %v6004 = vsel %vm417, %v5966, 0
  %6006 = vmatpush.bf16.msra.mxu0 0
  %6007 = vmatpush.bf16.msra.mxu0 0
  %6008 = vmatpush.bf16.msra.mxu0 0
  %6009 = vmatpush.bf16.msra.mxu0 0
  %6010 = vmatpush.bf16.msra.mxu0 0
  %6011 = vmatpush.bf16.msra.mxu0 0
  %6012 = vmatpush.bf16.msra.mxu0 0
  %6013 = vmatpush.bf16.msra.mxu0 %v6004
  %6014 = vmatmul.bf16.gmra.mxu0 %v5968
  %v6015 = vpop.f32.mrf.mxu0
  %v6016 = vadd.f32 0.0, %v6015
  %v6017 = vpop.f32.mrf.mxu0
  %v6018 = vadd.f32 0.0, %v6017
  %6019 = vmatmul.bf16.gmra.mxu0 %v5971
  %v6020 = vpop.f32.mrf.mxu0
  %v6021 = vadd.f32 0.0, %v6020
  %v6022 = vpop.f32.mrf.mxu0
  %v6023 = vadd.f32 0.0, %v6022
  %6024 = vmatmul.bf16.gmra.mxu0 %v5974
  %v6025 = vpop.f32.mrf.mxu0
  %v6026 = vadd.f32 0.0, %v6025
  %v6027 = vpop.f32.mrf.mxu0
  %v6028 = vadd.f32 0.0, %v6027
  %6029 = vmatmul.bf16.gmra.mxu0 %v5977
  %v6030 = vpop.f32.mrf.mxu0
  %v6031 = vadd.f32 0.0, %v6030
  %v6032 = vpop.f32.mrf.mxu0
  %v6033 = vadd.f32 0.0, %v6032
  %6034 = vmatmul.bf16.gmra.mxu0 %v5980
  %v6035 = vpop.f32.mrf.mxu0
  %v6036 = vadd.f32 0.0, %v6035
  %v6037 = vpop.f32.mrf.mxu0
  %v6038 = vadd.f32 0.0, %v6037
  %6039 = vmatmul.bf16.gmra.mxu0 %v5983
  %v6040 = vpop.f32.mrf.mxu0
  %v6041 = vadd.f32 0.0, %v6040
  %v6042 = vpop.f32.mrf.mxu0
  %v6043 = vadd.f32 0.0, %v6042
  %6044 = vmatmul.bf16.gmra.mxu0 %v5986
  %v6045 = vpop.f32.mrf.mxu0
  %v6046 = vadd.f32 0.0, %v6045
  %v6047 = vpop.f32.mrf.mxu0
  %v6048 = vadd.f32 0.0, %v6047
  %6049 = vmatmul.bf16.gmra.mxu0 %v5989
  %v6050 = vpop.f32.mrf.mxu0
  %v6051 = vadd.f32 0.0, %v6050
  %v6052 = vpop.f32.mrf.mxu0
  %v6053 = vadd.f32 0.0, %v6052
  %6054 = vmatmul.bf16.gmra.mxu0 %v5992
  %v6055 = vpop.f32.mrf.mxu0
  %v6056 = vadd.f32 0.0, %v6055
  %v6057 = vpop.f32.mrf.mxu0
  %v6058 = vadd.f32 0.0, %v6057
  %6059 = vmatmul.bf16.gmra.mxu0 %v5995
  %v6060 = vpop.f32.mrf.mxu0
  %v6061 = vadd.f32 0.0, %v6060
  %v6062 = vpop.f32.mrf.mxu0
  %v6063 = vadd.f32 0.0, %v6062
  %6064 = vmatmul.bf16.gmra.mxu0 %v5998
  %v6065 = vpop.f32.mrf.mxu0
  %v6066 = vadd.f32 0.0, %v6065
  %v6067 = vpop.f32.mrf.mxu0
  %v6068 = vadd.f32 0.0, %v6067
  %6069 = vmatmul.bf16.gmra.mxu0 %v6001
  %v6070 = vpop.f32.mrf.mxu0
  %v6071 = vadd.f32 0.0, %v6070
  %v6072 = vpop.f32.mrf.mxu0
  %6073 = vdwg.mxu0
  %v6074 = vadd.f32 %v5908, %v6016
  %v6075 = vadd.f32 %v5909, %v6018
  %v6076 = vadd.f32 %v5910, %v6021
  %v6077 = vadd.f32 %v5911, %v6023
  %v6078 = vadd.f32 %v5912, %v6026
  %v6079 = vadd.f32 %v5913, %v6028
  %v6080 = vadd.f32 %v5914, %v6031
  %v6081 = vadd.f32 %v5915, %v6033
  %v6082 = vadd.f32 %v5916, %v6036
  %v6083 = vadd.f32 %v5917, %v6038
  %v6084 = vadd.f32 %v5918, %v6041
  %v6085 = vadd.f32 %v5919, %v6043
  %v6086 = vadd.f32 %v5920, %v6046
  %v6087 = vadd.f32 %v5921, %v6048
  %v6088 = vadd.f32 %v5922, %v6051
  %v6089 = vadd.f32 %v5923, %v6053
  %v6090 = vadd.f32 %v5924, %v6056
  %v6091 = vadd.f32 %v5925, %v6058
  %v6092 = vadd.f32 %v5926, %v6061
  %v6093 = vadd.f32 %v5927, %v6063
  %v6094 = vadd.f32 %v5928, %v6066
  %v6095 = vadd.f32 %v5929, %v6068
  %v6096 = vadd.f32 %v5930, %v6071
  %v6097 = vld [vmem:[#allocation3 + $0x14] sm:$0xff]
  %v6098 = vld [vmem:[#allocation3 + $0x1c] sm:$0xff]
  %v6099 = vld [vmem:[#allocation3 + $0x24] sm:$0xff]
  %v6100 = vld [vmem:[#allocation3 + $0x2c] sm:$0xff]
  %v6101 = vld [vmem:[#allocation3 + $0x34] sm:$0xff]
  %v6102 = vld [vmem:[#allocation3 + $0x3c] sm:$0xff]
  %v6103 = vld [vmem:[#allocation3 + $0x44] sm:$0xff]
  %v6104 = vld [vmem:[#allocation3 + $0x4c] sm:$0xff]
  %v6105 = vld [vmem:[#allocation3 + $0x54] sm:$0xff]
  %v6106 = vld [vmem:[#allocation3 + $0x5c] sm:$0xff]
  %v6107 = vld [vmem:[#allocation3 + $0x64] sm:$0xff]
  %v6108 = vld [vmem:[#allocation3 + $0x6c] sm:$0xff]
  %v6109 = vld [vmem:[#allocation3 + $0x74] sm:$0xff]
  %v6110 = vld [vmem:[#allocation3 + $0x7c] sm:$0xff]
  %v6111 = vld [vmem:[#allocation3 + $0x84] sm:$0xff]
  %v6112 = vld [vmem:[#allocation3 + $0x8c] sm:$0xff]
  %v6113 = vld [vmem:[#allocation3 + $0x94] sm:$0xff]
  %v6114 = vld [vmem:[#allocation3 + $0x9c] sm:$0xff]
  %v6115 = vld [vmem:[#allocation3 + $0xa4] sm:$0xff]
  %v6116 = vld [vmem:[#allocation3 + $0xac] sm:$0xff]
  %v6117 = vld [vmem:[#allocation3 + $0xb4] sm:$0xff]
  %v6118 = vld [vmem:[#allocation3 + $0xbc] sm:$0xff]
  %v6119 = vld [vmem:[#allocation3 + $0xc4] sm:$0xf]
  %v6120 = vpack.c.bf16 %v6098, %v6097
  %v6121 = vpack.c.bf16 %v6100, %v6099
  %v6122 = vpack.c.bf16 %v6102, %v6101
  %v6123 = vpack.c.bf16 %v6104, %v6103
  %v6124 = vpack.c.bf16 %v6106, %v6105
  %v6125 = vpack.c.bf16 %v6108, %v6107
  %v6126 = vpack.c.bf16 %v6110, %v6109
  %v6127 = vpack.c.bf16 %v6112, %v6111
  %v6128 = vpack.c.bf16 %v6114, %v6113
  %v6129 = vpack.c.bf16 %v6116, %v6115
  %v6130 = vpack.c.bf16 %v6118, %v6117
  %v6131 = vpack.c.bf16 %v6119, %v6119
  %v6132 = vld [vmem:[%s3 + $0x18] sm:$0xf]
  %v6134 = vsel %vm39, %v6120, 0
  %v6137 = vsel %vm39, %v6121, 0
  %v6140 = vsel %vm39, %v6122, 0
  %v6143 = vsel %vm39, %v6123, 0
  %v6146 = vsel %vm39, %v6124, 0
  %v6149 = vsel %vm39, %v6125, 0
  %v6152 = vsel %vm39, %v6126, 0
  %v6155 = vsel %vm39, %v6127, 0
  %v6158 = vsel %vm39, %v6128, 0
  %v6161 = vsel %vm39, %v6129, 0
  %v6164 = vsel %vm39, %v6130, 0
  %v6167 = vsel %vm39, %v6131, 0
  %v6170 = vsel %vm417, %v6132, 0
  %6172 = vmatpush.bf16.msra.mxu0 0
  %6173 = vmatpush.bf16.msra.mxu0 0
  %6174 = vmatpush.bf16.msra.mxu0 0
  %6175 = vmatpush.bf16.msra.mxu0 0
  %6176 = vmatpush.bf16.msra.mxu0 0
  %6177 = vmatpush.bf16.msra.mxu0 0
  %6178 = vmatpush.bf16.msra.mxu0 0
  %6179 = vmatpush.bf16.msra.mxu0 %v6170
  %6180 = vmatmul.bf16.gmra.mxu0 %v6134
  %v6181 = vpop.f32.mrf.mxu0
  %v6182 = vadd.f32 0.0, %v6181
  %v6183 = vpop.f32.mrf.mxu0
  %v6184 = vadd.f32 0.0, %v6183
  %6185 = vmatmul.bf16.gmra.mxu0 %v6137
  %v6186 = vpop.f32.mrf.mxu0
  %v6187 = vadd.f32 0.0, %v6186
  %v6188 = vpop.f32.mrf.mxu0
  %v6189 = vadd.f32 0.0, %v6188
  %6190 = vmatmul.bf16.gmra.mxu0 %v6140
  %v6191 = vpop.f32.mrf.mxu0
  %v6192 = vadd.f32 0.0, %v6191
  %v6193 = vpop.f32.mrf.mxu0
  %v6194 = vadd.f32 0.0, %v6193
  %6195 = vmatmul.bf16.gmra.mxu0 %v6143
  %v6196 = vpop.f32.mrf.mxu0
  %v6197 = vadd.f32 0.0, %v6196
  %v6198 = vpop.f32.mrf.mxu0
  %v6199 = vadd.f32 0.0, %v6198
  %6200 = vmatmul.bf16.gmra.mxu0 %v6146
  %v6201 = vpop.f32.mrf.mxu0
  %v6202 = vadd.f32 0.0, %v6201
  %v6203 = vpop.f32.mrf.mxu0
  %v6204 = vadd.f32 0.0, %v6203
  %6205 = vmatmul.bf16.gmra.mxu0 %v6149
  %v6206 = vpop.f32.mrf.mxu0
  %v6207 = vadd.f32 0.0, %v6206
  %v6208 = vpop.f32.mrf.mxu0
  %v6209 = vadd.f32 0.0, %v6208
  %6210 = vmatmul.bf16.gmra.mxu0 %v6152
  %v6211 = vpop.f32.mrf.mxu0
  %v6212 = vadd.f32 0.0, %v6211
  %v6213 = vpop.f32.mrf.mxu0
  %v6214 = vadd.f32 0.0, %v6213
  %6215 = vmatmul.bf16.gmra.mxu0 %v6155
  %v6216 = vpop.f32.mrf.mxu0
  %v6217 = vadd.f32 0.0, %v6216
  %v6218 = vpop.f32.mrf.mxu0
  %v6219 = vadd.f32 0.0, %v6218
  %6220 = vmatmul.bf16.gmra.mxu0 %v6158
  %v6221 = vpop.f32.mrf.mxu0
  %v6222 = vadd.f32 0.0, %v6221
  %v6223 = vpop.f32.mrf.mxu0
  %v6224 = vadd.f32 0.0, %v6223
  %6225 = vmatmul.bf16.gmra.mxu0 %v6161
  %v6226 = vpop.f32.mrf.mxu0
  %v6227 = vadd.f32 0.0, %v6226
  %v6228 = vpop.f32.mrf.mxu0
  %v6229 = vadd.f32 0.0, %v6228
  %6230 = vmatmul.bf16.gmra.mxu0 %v6164
  %v6231 = vpop.f32.mrf.mxu0
  %v6232 = vadd.f32 0.0, %v6231
  %v6233 = vpop.f32.mrf.mxu0
  %v6234 = vadd.f32 0.0, %v6233
  %6235 = vmatmul.bf16.gmra.mxu0 %v6167
  %v6236 = vpop.f32.mrf.mxu0
  %v6237 = vadd.f32 0.0, %v6236
  %v6238 = vpop.f32.mrf.mxu0
  %6239 = vdwg.mxu0
  %v6240 = vadd.f32 %v6074, %v6182
  %v6241 = vadd.f32 %v6075, %v6184
  %v6242 = vadd.f32 %v6076, %v6187
  %v6243 = vadd.f32 %v6077, %v6189
  %v6244 = vadd.f32 %v6078, %v6192
  %v6245 = vadd.f32 %v6079, %v6194
  %v6246 = vadd.f32 %v6080, %v6197
  %v6247 = vadd.f32 %v6081, %v6199
  %v6248 = vadd.f32 %v6082, %v6202
  %v6249 = vadd.f32 %v6083, %v6204
  %v6250 = vadd.f32 %v6084, %v6207
  %v6251 = vadd.f32 %v6085, %v6209
  %v6252 = vadd.f32 %v6086, %v6212
  %v6253 = vadd.f32 %v6087, %v6214
  %v6254 = vadd.f32 %v6088, %v6217
  %v6255 = vadd.f32 %v6089, %v6219
  %v6256 = vadd.f32 %v6090, %v6222
  %v6257 = vadd.f32 %v6091, %v6224
  %v6258 = vadd.f32 %v6092, %v6227
  %v6259 = vadd.f32 %v6093, %v6229
  %v6260 = vadd.f32 %v6094, %v6232
  %v6261 = vadd.f32 %v6095, %v6234
  %v6262 = vadd.f32 %v6096, %v6237
  %v6263 = vld [vmem:[#allocation3 + $0x15] sm:$0xff]
  %v6264 = vld [vmem:[#allocation3 + $0x1d] sm:$0xff]
  %v6265 = vld [vmem:[#allocation3 + $0x25] sm:$0xff]
  %v6266 = vld [vmem:[#allocation3 + $0x2d] sm:$0xff]
  %v6267 = vld [vmem:[#allocation3 + $0x35] sm:$0xff]
  %v6268 = vld [vmem:[#allocation3 + $0x3d] sm:$0xff]
  %v6269 = vld [vmem:[#allocation3 + $0x45] sm:$0xff]
  %v6270 = vld [vmem:[#allocation3 + $0x4d] sm:$0xff]
  %v6271 = vld [vmem:[#allocation3 + $0x55] sm:$0xff]
  %v6272 = vld [vmem:[#allocation3 + $0x5d] sm:$0xff]
  %v6273 = vld [vmem:[#allocation3 + $0x65] sm:$0xff]
  %v6274 = vld [vmem:[#allocation3 + $0x6d] sm:$0xff]
  %v6275 = vld [vmem:[#allocation3 + $0x75] sm:$0xff]
  %v6276 = vld [vmem:[#allocation3 + $0x7d] sm:$0xff]
  %v6277 = vld [vmem:[#allocation3 + $0x85] sm:$0xff]
  %v6278 = vld [vmem:[#allocation3 + $0x8d] sm:$0xff]
  %v6279 = vld [vmem:[#allocation3 + $0x95] sm:$0xff]
  %v6280 = vld [vmem:[#allocation3 + $0x9d] sm:$0xff]
  %v6281 = vld [vmem:[#allocation3 + $0xa5] sm:$0xff]
  %v6282 = vld [vmem:[#allocation3 + $0xad] sm:$0xff]
  %v6283 = vld [vmem:[#allocation3 + $0xb5] sm:$0xff]
  %v6284 = vld [vmem:[#allocation3 + $0xbd] sm:$0xff]
  %v6285 = vld [vmem:[#allocation3 + $0xc5] sm:$0xf]
  %v6286 = vpack.c.bf16 %v6264, %v6263
  %v6287 = vpack.c.bf16 %v6266, %v6265
  %v6288 = vpack.c.bf16 %v6268, %v6267
  %v6289 = vpack.c.bf16 %v6270, %v6269
  %v6290 = vpack.c.bf16 %v6272, %v6271
  %v6291 = vpack.c.bf16 %v6274, %v6273
  %v6292 = vpack.c.bf16 %v6276, %v6275
  %v6293 = vpack.c.bf16 %v6278, %v6277
  %v6294 = vpack.c.bf16 %v6280, %v6279
  %v6295 = vpack.c.bf16 %v6282, %v6281
  %v6296 = vpack.c.bf16 %v6284, %v6283
  %v6297 = vpack.c.bf16 %v6285, %v6285
  %v6298 = vld [vmem:[%s3 + $0x1c] sm:$0xf]
  %v6300 = vsel %vm39, %v6286, 0
  %v6303 = vsel %vm39, %v6287, 0
  %v6306 = vsel %vm39, %v6288, 0
  %v6309 = vsel %vm39, %v6289, 0
  %v6312 = vsel %vm39, %v6290, 0
  %v6315 = vsel %vm39, %v6291, 0
  %v6318 = vsel %vm39, %v6292, 0
  %v6321 = vsel %vm39, %v6293, 0
  %v6324 = vsel %vm39, %v6294, 0
  %v6327 = vsel %vm39, %v6295, 0
  %v6330 = vsel %vm39, %v6296, 0
  %v6333 = vsel %vm39, %v6297, 0
  %v6336 = vsel %vm417, %v6298, 0
  %6338 = vmatpush.bf16.msra.mxu0 0
  %6339 = vmatpush.bf16.msra.mxu0 0
  %6340 = vmatpush.bf16.msra.mxu0 0
  %6341 = vmatpush.bf16.msra.mxu0 0
  %6342 = vmatpush.bf16.msra.mxu0 0
  %6343 = vmatpush.bf16.msra.mxu0 0
  %6344 = vmatpush.bf16.msra.mxu0 0
  %6345 = vmatpush.bf16.msra.mxu0 %v6336
  %6346 = vmatmul.bf16.gmra.mxu0 %v6300
  %v6347 = vpop.f32.mrf.mxu0
  %v6348 = vadd.f32 0.0, %v6347
  %v6349 = vpop.f32.mrf.mxu0
  %v6350 = vadd.f32 0.0, %v6349
  %6351 = vmatmul.bf16.gmra.mxu0 %v6303
  %v6352 = vpop.f32.mrf.mxu0
  %v6353 = vadd.f32 0.0, %v6352
  %v6354 = vpop.f32.mrf.mxu0
  %v6355 = vadd.f32 0.0, %v6354
  %6356 = vmatmul.bf16.gmra.mxu0 %v6306
  %v6357 = vpop.f32.mrf.mxu0
  %v6358 = vadd.f32 0.0, %v6357
  %v6359 = vpop.f32.mrf.mxu0
  %v6360 = vadd.f32 0.0, %v6359
  %6361 = vmatmul.bf16.gmra.mxu0 %v6309
  %v6362 = vpop.f32.mrf.mxu0
  %v6363 = vadd.f32 0.0, %v6362
  %v6364 = vpop.f32.mrf.mxu0
  %v6365 = vadd.f32 0.0, %v6364
  %6366 = vmatmul.bf16.gmra.mxu0 %v6312
  %v6367 = vpop.f32.mrf.mxu0
  %v6368 = vadd.f32 0.0, %v6367
  %v6369 = vpop.f32.mrf.mxu0
  %v6370 = vadd.f32 0.0, %v6369
  %6371 = vmatmul.bf16.gmra.mxu0 %v6315
  %v6372 = vpop.f32.mrf.mxu0
  %v6373 = vadd.f32 0.0, %v6372
  %v6374 = vpop.f32.mrf.mxu0
  %v6375 = vadd.f32 0.0, %v6374
  %6376 = vmatmul.bf16.gmra.mxu0 %v6318
  %v6377 = vpop.f32.mrf.mxu0
  %v6378 = vadd.f32 0.0, %v6377
  %v6379 = vpop.f32.mrf.mxu0
  %v6380 = vadd.f32 0.0, %v6379
  %6381 = vmatmul.bf16.gmra.mxu0 %v6321
  %v6382 = vpop.f32.mrf.mxu0
  %v6383 = vadd.f32 0.0, %v6382
  %v6384 = vpop.f32.mrf.mxu0
  %v6385 = vadd.f32 0.0, %v6384
  %6386 = vmatmul.bf16.gmra.mxu0 %v6324
  %v6387 = vpop.f32.mrf.mxu0
  %v6388 = vadd.f32 0.0, %v6387
  %v6389 = vpop.f32.mrf.mxu0
  %v6390 = vadd.f32 0.0, %v6389
  %6391 = vmatmul.bf16.gmra.mxu0 %v6327
  %v6392 = vpop.f32.mrf.mxu0
  %v6393 = vadd.f32 0.0, %v6392
  %v6394 = vpop.f32.mrf.mxu0
  %v6395 = vadd.f32 0.0, %v6394
  %6396 = vmatmul.bf16.gmra.mxu0 %v6330
  %v6397 = vpop.f32.mrf.mxu0
  %v6398 = vadd.f32 0.0, %v6397
  %v6399 = vpop.f32.mrf.mxu0
  %v6400 = vadd.f32 0.0, %v6399
  %6401 = vmatmul.bf16.gmra.mxu0 %v6333
  %v6402 = vpop.f32.mrf.mxu0
  %v6403 = vadd.f32 0.0, %v6402
  %v6404 = vpop.f32.mrf.mxu0
  %6405 = vdwg.mxu0
  %v6406 = vadd.f32 %v6240, %v6348
  %v6407 = vadd.f32 %v6241, %v6350
  %v6408 = vadd.f32 %v6242, %v6353
  %v6409 = vadd.f32 %v6243, %v6355
  %v6410 = vadd.f32 %v6244, %v6358
  %v6411 = vadd.f32 %v6245, %v6360
  %v6412 = vadd.f32 %v6246, %v6363
  %v6413 = vadd.f32 %v6247, %v6365
  %v6414 = vadd.f32 %v6248, %v6368
  %v6415 = vadd.f32 %v6249, %v6370
  %v6416 = vadd.f32 %v6250, %v6373
  %v6417 = vadd.f32 %v6251, %v6375
  %v6418 = vadd.f32 %v6252, %v6378
  %v6419 = vadd.f32 %v6253, %v6380
  %v6420 = vadd.f32 %v6254, %v6383
  %v6421 = vadd.f32 %v6255, %v6385
  %v6422 = vadd.f32 %v6256, %v6388
  %v6423 = vadd.f32 %v6257, %v6390
  %v6424 = vadd.f32 %v6258, %v6393
  %v6425 = vadd.f32 %v6259, %v6395
  %v6426 = vadd.f32 %v6260, %v6398
  %v6427 = vadd.f32 %v6261, %v6400
  %v6428 = vadd.f32 %v6262, %v6403
  %v6429 = vld [vmem:[#allocation3 + $0x16] sm:$0xff]
  %v6430 = vld [vmem:[#allocation3 + $0x1e] sm:$0xff]
  %v6431 = vld [vmem:[#allocation3 + $0x26] sm:$0xff]
  %v6432 = vld [vmem:[#allocation3 + $0x2e] sm:$0xff]
  %v6433 = vld [vmem:[#allocation3 + $0x36] sm:$0xff]
  %v6434 = vld [vmem:[#allocation3 + $0x3e] sm:$0xff]
  %v6435 = vld [vmem:[#allocation3 + $0x46] sm:$0xff]
  %v6436 = vld [vmem:[#allocation3 + $0x4e] sm:$0xff]
  %v6437 = vld [vmem:[#allocation3 + $0x56] sm:$0xff]
  %v6438 = vld [vmem:[#allocation3 + $0x5e] sm:$0xff]
  %v6439 = vld [vmem:[#allocation3 + $0x66] sm:$0xff]
  %v6440 = vld [vmem:[#allocation3 + $0x6e] sm:$0xff]
  %v6441 = vld [vmem:[#allocation3 + $0x76] sm:$0xff]
  %v6442 = vld [vmem:[#allocation3 + $0x7e] sm:$0xff]
  %v6443 = vld [vmem:[#allocation3 + $0x86] sm:$0xff]
  %v6444 = vld [vmem:[#allocation3 + $0x8e] sm:$0xff]
  %v6445 = vld [vmem:[#allocation3 + $0x96] sm:$0xff]
  %v6446 = vld [vmem:[#allocation3 + $0x9e] sm:$0xff]
  %v6447 = vld [vmem:[#allocation3 + $0xa6] sm:$0xff]
  %v6448 = vld [vmem:[#allocation3 + $0xae] sm:$0xff]
  %v6449 = vld [vmem:[#allocation3 + $0xb6] sm:$0xff]
  %v6450 = vld [vmem:[#allocation3 + $0xbe] sm:$0xff]
  %v6451 = vld [vmem:[#allocation3 + $0xc6] sm:$0xf]
  %v6452 = vpack.c.bf16 %v6430, %v6429
  %v6453 = vpack.c.bf16 %v6432, %v6431
  %v6454 = vpack.c.bf16 %v6434, %v6433
  %v6455 = vpack.c.bf16 %v6436, %v6435
  %v6456 = vpack.c.bf16 %v6438, %v6437
  %v6457 = vpack.c.bf16 %v6440, %v6439
  %v6458 = vpack.c.bf16 %v6442, %v6441
  %v6459 = vpack.c.bf16 %v6444, %v6443
  %v6460 = vpack.c.bf16 %v6446, %v6445
  %v6461 = vpack.c.bf16 %v6448, %v6447
  %v6462 = vpack.c.bf16 %v6450, %v6449
  %v6463 = vpack.c.bf16 %v6451, %v6451
  %v6464 = vld [vmem:[%s3 + $0x20] sm:$0xf]
  %v6466 = vsel %vm39, %v6452, 0
  %v6469 = vsel %vm39, %v6453, 0
  %v6472 = vsel %vm39, %v6454, 0
  %v6475 = vsel %vm39, %v6455, 0
  %v6478 = vsel %vm39, %v6456, 0
  %v6481 = vsel %vm39, %v6457, 0
  %v6484 = vsel %vm39, %v6458, 0
  %v6487 = vsel %vm39, %v6459, 0
  %v6490 = vsel %vm39, %v6460, 0
  %v6493 = vsel %vm39, %v6461, 0
  %v6496 = vsel %vm39, %v6462, 0
  %v6499 = vsel %vm39, %v6463, 0
  %v6502 = vsel %vm417, %v6464, 0
  %6504 = vmatpush.bf16.msra.mxu0 0
  %6505 = vmatpush.bf16.msra.mxu0 0
  %6506 = vmatpush.bf16.msra.mxu0 0
  %6507 = vmatpush.bf16.msra.mxu0 0
  %6508 = vmatpush.bf16.msra.mxu0 0
  %6509 = vmatpush.bf16.msra.mxu0 0
  %6510 = vmatpush.bf16.msra.mxu0 0
  %6511 = vmatpush.bf16.msra.mxu0 %v6502
  %6512 = vmatmul.bf16.gmra.mxu0 %v6466
  %v6513 = vpop.f32.mrf.mxu0
  %v6514 = vadd.f32 0.0, %v6513
  %v6515 = vpop.f32.mrf.mxu0
  %v6516 = vadd.f32 0.0, %v6515
  %6517 = vmatmul.bf16.gmra.mxu0 %v6469
  %v6518 = vpop.f32.mrf.mxu0
  %v6519 = vadd.f32 0.0, %v6518
  %v6520 = vpop.f32.mrf.mxu0
  %v6521 = vadd.f32 0.0, %v6520
  %6522 = vmatmul.bf16.gmra.mxu0 %v6472
  %v6523 = vpop.f32.mrf.mxu0
  %v6524 = vadd.f32 0.0, %v6523
  %v6525 = vpop.f32.mrf.mxu0
  %v6526 = vadd.f32 0.0, %v6525
  %6527 = vmatmul.bf16.gmra.mxu0 %v6475
  %v6528 = vpop.f32.mrf.mxu0
  %v6529 = vadd.f32 0.0, %v6528
  %v6530 = vpop.f32.mrf.mxu0
  %v6531 = vadd.f32 0.0, %v6530
  %6532 = vmatmul.bf16.gmra.mxu0 %v6478
  %v6533 = vpop.f32.mrf.mxu0
  %v6534 = vadd.f32 0.0, %v6533
  %v6535 = vpop.f32.mrf.mxu0
  %v6536 = vadd.f32 0.0, %v6535
  %6537 = vmatmul.bf16.gmra.mxu0 %v6481
  %v6538 = vpop.f32.mrf.mxu0
  %v6539 = vadd.f32 0.0, %v6538
  %v6540 = vpop.f32.mrf.mxu0
  %v6541 = vadd.f32 0.0, %v6540
  %6542 = vmatmul.bf16.gmra.mxu0 %v6484
  %v6543 = vpop.f32.mrf.mxu0
  %v6544 = vadd.f32 0.0, %v6543
  %v6545 = vpop.f32.mrf.mxu0
  %v6546 = vadd.f32 0.0, %v6545
  %6547 = vmatmul.bf16.gmra.mxu0 %v6487
  %v6548 = vpop.f32.mrf.mxu0
  %v6549 = vadd.f32 0.0, %v6548
  %v6550 = vpop.f32.mrf.mxu0
  %v6551 = vadd.f32 0.0, %v6550
  %6552 = vmatmul.bf16.gmra.mxu0 %v6490
  %v6553 = vpop.f32.mrf.mxu0
  %v6554 = vadd.f32 0.0, %v6553
  %v6555 = vpop.f32.mrf.mxu0
  %v6556 = vadd.f32 0.0, %v6555
  %6557 = vmatmul.bf16.gmra.mxu0 %v6493
  %v6558 = vpop.f32.mrf.mxu0
  %v6559 = vadd.f32 0.0, %v6558
  %v6560 = vpop.f32.mrf.mxu0
  %v6561 = vadd.f32 0.0, %v6560
  %6562 = vmatmul.bf16.gmra.mxu0 %v6496
  %v6563 = vpop.f32.mrf.mxu0
  %v6564 = vadd.f32 0.0, %v6563
  %v6565 = vpop.f32.mrf.mxu0
  %v6566 = vadd.f32 0.0, %v6565
  %6567 = vmatmul.bf16.gmra.mxu0 %v6499
  %v6568 = vpop.f32.mrf.mxu0
  %v6569 = vadd.f32 0.0, %v6568
  %v6570 = vpop.f32.mrf.mxu0
  %6571 = vdwg.mxu0
  %v6572 = vadd.f32 %v6406, %v6514
  %v6573 = vadd.f32 %v6407, %v6516
  %v6574 = vadd.f32 %v6408, %v6519
  %v6575 = vadd.f32 %v6409, %v6521
  %v6576 = vadd.f32 %v6410, %v6524
  %v6577 = vadd.f32 %v6411, %v6526
  %v6578 = vadd.f32 %v6412, %v6529
  %v6579 = vadd.f32 %v6413, %v6531
  %v6580 = vadd.f32 %v6414, %v6534
  %v6581 = vadd.f32 %v6415, %v6536
  %v6582 = vadd.f32 %v6416, %v6539
  %v6583 = vadd.f32 %v6417, %v6541
  %v6584 = vadd.f32 %v6418, %v6544
  %v6585 = vadd.f32 %v6419, %v6546
  %v6586 = vadd.f32 %v6420, %v6549
  %v6587 = vadd.f32 %v6421, %v6551
  %v6588 = vadd.f32 %v6422, %v6554
  %v6589 = vadd.f32 %v6423, %v6556
  %v6590 = vadd.f32 %v6424, %v6559
  %v6591 = vadd.f32 %v6425, %v6561
  %v6592 = vadd.f32 %v6426, %v6564
  %v6593 = vadd.f32 %v6427, %v6566
  %v6594 = vadd.f32 %v6428, %v6569
  %v6595 = vld [vmem:[%s4] sm:$0x1]
  %v6597 = vperm.slane %v6595, 0
  %v6599 = vadd.f32 %v6572, %v6597
  %v6600 = vadd.f32 %v6573, %v6597
  %v6601 = vadd.f32 %v6574, %v6597
  %v6602 = vadd.f32 %v6575, %v6597
  %v6603 = vadd.f32 %v6576, %v6597
  %v6604 = vadd.f32 %v6577, %v6597
  %v6605 = vadd.f32 %v6578, %v6597
  %v6606 = vadd.f32 %v6579, %v6597
  %v6607 = vadd.f32 %v6580, %v6597
  %v6608 = vadd.f32 %v6581, %v6597
  %v6609 = vadd.f32 %v6582, %v6597
  %v6610 = vadd.f32 %v6583, %v6597
  %v6611 = vadd.f32 %v6584, %v6597
  %v6612 = vadd.f32 %v6585, %v6597
  %v6613 = vadd.f32 %v6586, %v6597
  %v6614 = vadd.f32 %v6587, %v6597
  %v6615 = vadd.f32 %v6588, %v6597
  %v6616 = vadd.f32 %v6589, %v6597
  %v6617 = vadd.f32 %v6590, %v6597
  %v6618 = vadd.f32 %v6591, %v6597
  %v6619 = vadd.f32 %v6592, %v6597
  %v6620 = vadd.f32 %v6593, %v6597
  %v6621 = vadd.f32 %v6594, %v6597
  %vm6622 = vcmp.ge.f32.partialorder %v6599, 0.0
  %vm6623 = vcmp.ge.f32.partialorder %v6600, 0.0
  %vm6624 = vcmp.ge.f32.partialorder %v6601, 0.0
  %vm6625 = vcmp.ge.f32.partialorder %v6602, 0.0
  %vm6626 = vcmp.ge.f32.partialorder %v6603, 0.0
  %vm6627 = vcmp.ge.f32.partialorder %v6604, 0.0
  %vm6628 = vcmp.ge.f32.partialorder %v6605, 0.0
  %vm6629 = vcmp.ge.f32.partialorder %v6606, 0.0
  %vm6630 = vcmp.ge.f32.partialorder %v6607, 0.0
  %vm6631 = vcmp.ge.f32.partialorder %v6608, 0.0
  %vm6632 = vcmp.ge.f32.partialorder %v6609, 0.0
  %vm6633 = vcmp.ge.f32.partialorder %v6610, 0.0
  %vm6634 = vcmp.ge.f32.partialorder %v6611, 0.0
  %vm6635 = vcmp.ge.f32.partialorder %v6612, 0.0
  %vm6636 = vcmp.ge.f32.partialorder %v6613, 0.0
  %vm6637 = vcmp.ge.f32.partialorder %v6614, 0.0
  %vm6638 = vcmp.ge.f32.partialorder %v6615, 0.0
  %vm6639 = vcmp.ge.f32.partialorder %v6616, 0.0
  %vm6640 = vcmp.ge.f32.partialorder %v6617, 0.0
  %vm6641 = vcmp.ge.f32.partialorder %v6618, 0.0
  %vm6642 = vcmp.ge.f32.partialorder %v6619, 0.0
  %vm6643 = vcmp.ge.f32.partialorder %v6620, 0.0
  %vm6644 = vcmp.ge.f32.partialorder %v6621, 0.0
  %v6645 = vmul.f32 %v6599, 0.01
  %v6646 = vmul.f32 %v6600, 0.01
  %v6647 = vmul.f32 %v6601, 0.01
  %v6648 = vmul.f32 %v6602, 0.01
  %v6649 = vmul.f32 %v6603, 0.01
  %v6650 = vmul.f32 %v6604, 0.01
  %v6651 = vmul.f32 %v6605, 0.01
  %v6652 = vmul.f32 %v6606, 0.01
  %v6653 = vmul.f32 %v6607, 0.01
  %v6654 = vmul.f32 %v6608, 0.01
  %v6655 = vmul.f32 %v6609, 0.01
  %v6656 = vmul.f32 %v6610, 0.01
  %v6657 = vmul.f32 %v6611, 0.01
  %v6658 = vmul.f32 %v6612, 0.01
  %v6659 = vmul.f32 %v6613, 0.01
  %v6660 = vmul.f32 %v6614, 0.01
  %v6661 = vmul.f32 %v6615, 0.01
  %v6662 = vmul.f32 %v6616, 0.01
  %v6663 = vmul.f32 %v6617, 0.01
  %v6664 = vmul.f32 %v6618, 0.01
  %v6665 = vmul.f32 %v6619, 0.01
  %v6666 = vmul.f32 %v6620, 0.01
  %v6667 = vmul.f32 %v6621, 0.01
  %v6668 = vsel %vm6622, %v6599, %v6645
  %v6669 = vsel %vm6623, %v6600, %v6646
  %v6670 = vsel %vm6624, %v6601, %v6647
  %v6671 = vsel %vm6625, %v6602, %v6648
  %v6672 = vsel %vm6626, %v6603, %v6649
  %v6673 = vsel %vm6627, %v6604, %v6650
  %v6674 = vsel %vm6628, %v6605, %v6651
  %v6675 = vsel %vm6629, %v6606, %v6652
  %v6676 = vsel %vm6630, %v6607, %v6653
  %v6677 = vsel %vm6631, %v6608, %v6654
  %v6678 = vsel %vm6632, %v6609, %v6655
  %v6679 = vsel %vm6633, %v6610, %v6656
  %v6680 = vsel %vm6634, %v6611, %v6657
  %v6681 = vsel %vm6635, %v6612, %v6658
  %v6682 = vsel %vm6636, %v6613, %v6659
  %v6683 = vsel %vm6637, %v6614, %v6660
  %v6684 = vsel %vm6638, %v6615, %v6661
  %v6685 = vsel %vm6639, %v6616, %v6662
  %v6686 = vsel %vm6640, %v6617, %v6663
  %v6687 = vsel %vm6641, %v6618, %v6664
  %v6688 = vsel %vm6642, %v6619, %v6665
  %v6689 = vsel %vm6643, %v6620, %v6666
  %v6690 = vsel %vm6644, %v6621, %v6667
  %vm6691 = vcmask 130048
  %6692 = vst.msk [vmem:[#allocation4] sm:$0xff] %vm6691, %v6668
  %6693 = vst.msk [vmem:[#allocation4 + $0x8] sm:$0xff] %vm6691, %v6669
  %6694 = vst.msk [vmem:[#allocation4 + $0x10] sm:$0xff] %vm6691, %v6670
  %6695 = vst.msk [vmem:[#allocation4 + $0x18] sm:$0xff] %vm6691, %v6671
  %6696 = vst.msk [vmem:[#allocation4 + $0x20] sm:$0xff] %vm6691, %v6672
  %6697 = vst.msk [vmem:[#allocation4 + $0x28] sm:$0xff] %vm6691, %v6673
  %6698 = vst.msk [vmem:[#allocation4 + $0x30] sm:$0xff] %vm6691, %v6674
  %6699 = vst.msk [vmem:[#allocation4 + $0x38] sm:$0xff] %vm6691, %v6675
  %6700 = vst.msk [vmem:[#allocation4 + $0x40] sm:$0xff] %vm6691, %v6676
  %6701 = vst.msk [vmem:[#allocation4 + $0x48] sm:$0xff] %vm6691, %v6677
  %6702 = vst.msk [vmem:[#allocation4 + $0x50] sm:$0xff] %vm6691, %v6678
  %6703 = vst.msk [vmem:[#allocation4 + $0x58] sm:$0xff] %vm6691, %v6679
  %6704 = vst.msk [vmem:[#allocation4 + $0x60] sm:$0xff] %vm6691, %v6680
  %6705 = vst.msk [vmem:[#allocation4 + $0x68] sm:$0xff] %vm6691, %v6681
  %6706 = vst.msk [vmem:[#allocation4 + $0x70] sm:$0xff] %vm6691, %v6682
  %6707 = vst.msk [vmem:[#allocation4 + $0x78] sm:$0xff] %vm6691, %v6683
  %6708 = vst.msk [vmem:[#allocation4 + $0x80] sm:$0xff] %vm6691, %v6684
  %6709 = vst.msk [vmem:[#allocation4 + $0x88] sm:$0xff] %vm6691, %v6685
  %6710 = vst.msk [vmem:[#allocation4 + $0x90] sm:$0xff] %vm6691, %v6686
  %6711 = vst.msk [vmem:[#allocation4 + $0x98] sm:$0xff] %vm6691, %v6687
  %6712 = vst.msk [vmem:[#allocation4 + $0xa0] sm:$0xff] %vm6691, %v6688
  %6713 = vst.msk [vmem:[#allocation4 + $0xa8] sm:$0xff] %vm6691, %v6689
  %vm6714 = vcmask 125952
  %6715 = vst.msk [vmem:[#allocation4 + $0xb0] sm:$0xf] %vm6714, %v6690
  %v6716 = vld [vmem:[#allocation4] ss:$2 sm:$0xf]
  %s6717 = scalar_lea.vmem [#allocation4], 1
  %v6718 = vld [vmem:[%s6717] ss:$2 sm:$0xf]
  %s6719 = scalar_lea.vmem [#allocation4], 10
  %v6720 = vld [vmem:[%s6719] ss:$2 sm:$0xf]
  %s6721 = scalar_lea.vmem [#allocation4], 11
  %v6722 = vld [vmem:[%s6721] ss:$2 sm:$0xf]
  %v6723 = vmax.f32 %v6716, %v6718
  %v6724 = vmax.f32 %v6720, %v6722
  %v6725 = vmax.f32 %v6723, %v6724
  %vm6726 = vcmask 122880
  %6727 = vst.msk [vmem:[#allocation5] sm:$0x1] %vm6726, %v6725
  %vm6728 = vcmask 123905
  %6729 = vst.msk [vmem:[#allocation5 + $0x7] sm:$0x2] %vm6728, %v6725
  %vm6730 = vcmask 124930
  %6731 = vst.msk [vmem:[#allocation5 + $0xe] sm:$0x4] %vm6730, %v6725
  %vm6732 = vcmask 125955
  %6733 = vst.msk [vmem:[#allocation5 + $0x15] sm:$0x8] %vm6732, %v6725
  %s6734 = scalar_lea.vmem [#allocation4], 20
  %v6735 = vld [vmem:[%s6734] ss:$2 sm:$0xf]
  %s6736 = scalar_lea.vmem [#allocation4], 21
  %v6737 = vld [vmem:[%s6736] ss:$2 sm:$0xf]
  %s6738 = scalar_lea.vmem [#allocation4], 30
  %v6739 = vld [vmem:[%s6738] ss:$2 sm:$0xf]
  %s6740 = scalar_lea.vmem [#allocation4], 31
  %v6741 = vld [vmem:[%s6740] ss:$2 sm:$0xf]
  %v6742 = vmax.f32 %v6735, %v6737
  %v6743 = vmax.f32 %v6739, %v6741
  %v6744 = vmax.f32 %v6742, %v6743
  %6745 = vst.msk [vmem:[#allocation5 + $0x20] sm:$0x1] %vm6726, %v6744
  %6746 = vst.msk [vmem:[#allocation5 + $0x27] sm:$0x2] %vm6728, %v6744
  %6747 = vst.msk [vmem:[#allocation5 + $0x2e] sm:$0x4] %vm6730, %v6744
  %6748 = vst.msk [vmem:[#allocation5 + $0x35] sm:$0x8] %vm6732, %v6744
  %s6749 = scalar_lea.vmem [#allocation4], 40
  %v6750 = vld [vmem:[%s6749] ss:$2 sm:$0xf]
  %s6751 = scalar_lea.vmem [#allocation4], 41
  %v6752 = vld [vmem:[%s6751] ss:$2 sm:$0xf]
  %s6753 = scalar_lea.vmem [#allocation4], 50
  %v6754 = vld [vmem:[%s6753] ss:$2 sm:$0xf]
  %s6755 = scalar_lea.vmem [#allocation4], 51
  %v6756 = vld [vmem:[%s6755] ss:$2 sm:$0xf]
  %v6757 = vmax.f32 %v6750, %v6752
  %v6758 = vmax.f32 %v6754, %v6756
  %v6759 = vmax.f32 %v6757, %v6758
  %6760 = vst.msk [vmem:[#allocation5 + $0x40] sm:$0x1] %vm6726, %v6759
  %6761 = vst.msk [vmem:[#allocation5 + $0x47] sm:$0x2] %vm6728, %v6759
  %6762 = vst.msk [vmem:[#allocation5 + $0x4e] sm:$0x4] %vm6730, %v6759
  %6763 = vst.msk [vmem:[#allocation5 + $0x55] sm:$0x8] %vm6732, %v6759
  %s6764 = scalar_lea.vmem [#allocation4], 60
  %v6765 = vld [vmem:[%s6764] ss:$2 sm:$0xf]
  %s6766 = scalar_lea.vmem [#allocation4], 61
  %v6767 = vld [vmem:[%s6766] ss:$2 sm:$0xf]
  %s6768 = scalar_lea.vmem [#allocation4], 70
  %v6769 = vld [vmem:[%s6768] ss:$2 sm:$0xf]
  %s6770 = scalar_lea.vmem [#allocation4], 71
  %v6771 = vld [vmem:[%s6770] ss:$2 sm:$0xf]
  %v6772 = vmax.f32 %v6765, %v6767
  %v6773 = vmax.f32 %v6769, %v6771
  %v6774 = vmax.f32 %v6772, %v6773
  %6775 = vst.msk [vmem:[#allocation5 + $0x60] sm:$0x1] %vm6726, %v6774
  %6776 = vst.msk [vmem:[#allocation5 + $0x67] sm:$0x2] %vm6728, %v6774
  %6777 = vst.msk [vmem:[#allocation5 + $0x6e] sm:$0x4] %vm6730, %v6774
  %6778 = vst.msk [vmem:[#allocation5 + $0x75] sm:$0x8] %vm6732, %v6774
  %s6779 = scalar_lea.vmem [#allocation4], 100
  %v6780 = vld [vmem:[%s6779] ss:$2 sm:$0xf]
  %s6781 = scalar_lea.vmem [#allocation4], 101
  %v6782 = vld [vmem:[%s6781] ss:$2 sm:$0xf]
  %s6783 = scalar_lea.vmem [#allocation4], 110
  %v6784 = vld [vmem:[%s6783] ss:$2 sm:$0xf]
  %s6785 = scalar_lea.vmem [#allocation4], 111
  %v6786 = vld [vmem:[%s6785] ss:$2 sm:$0xf]
  %v6787 = vmax.f32 %v6780, %v6782
  %v6788 = vmax.f32 %v6784, %v6786
  %v6789 = vmax.f32 %v6787, %v6788
  %6790 = vst.msk [vmem:[#allocation5 + $0x1] sm:$0x1] %vm6726, %v6789
  %6791 = vst.msk [vmem:[#allocation5 + $0x8] sm:$0x2] %vm6728, %v6789
  %6792 = vst.msk [vmem:[#allocation5 + $0xf] sm:$0x4] %vm6730, %v6789
  %6793 = vst.msk [vmem:[#allocation5 + $0x16] sm:$0x8] %vm6732, %v6789
  %s6794 = scalar_lea.vmem [#allocation4], 120
  %v6795 = vld [vmem:[%s6794] ss:$2 sm:$0xf]
  %s6796 = scalar_lea.vmem [#allocation4], 121
  %v6797 = vld [vmem:[%s6796] ss:$2 sm:$0xf]
  %s6798 = scalar_lea.vmem [#allocation4], 130
  %v6799 = vld [vmem:[%s6798] ss:$2 sm:$0xf]
  %s6800 = scalar_lea.vmem [#allocation4], 131
  %v6801 = vld [vmem:[%s6800] ss:$2 sm:$0xf]
  %v6802 = vmax.f32 %v6795, %v6797
  %v6803 = vmax.f32 %v6799, %v6801
  %v6804 = vmax.f32 %v6802, %v6803
  %6805 = vst.msk [vmem:[#allocation5 + $0x21] sm:$0x1] %vm6726, %v6804
  %6806 = vst.msk [vmem:[#allocation5 + $0x28] sm:$0x2] %vm6728, %v6804
  %6807 = vst.msk [vmem:[#allocation5 + $0x2f] sm:$0x4] %vm6730, %v6804
  %6808 = vst.msk [vmem:[#allocation5 + $0x36] sm:$0x8] %vm6732, %v6804
  %s6809 = scalar_lea.vmem [#allocation4], 140
  %v6810 = vld [vmem:[%s6809] ss:$2 sm:$0xf]
  %s6811 = scalar_lea.vmem [#allocation4], 141
  %v6812 = vld [vmem:[%s6811] ss:$2 sm:$0xf]
  %s6813 = scalar_lea.vmem [#allocation4], 150
  %v6814 = vld [vmem:[%s6813] ss:$2 sm:$0xf]
  %s6815 = scalar_lea.vmem [#allocation4], 151
  %v6816 = vld [vmem:[%s6815] ss:$2 sm:$0xf]
  %v6817 = vmax.f32 %v6810, %v6812
  %v6818 = vmax.f32 %v6814, %v6816
  %v6819 = vmax.f32 %v6817, %v6818
  %6820 = vst.msk [vmem:[#allocation5 + $0x41] sm:$0x1] %vm6726, %v6819
  %6821 = vst.msk [vmem:[#allocation5 + $0x48] sm:$0x2] %vm6728, %v6819
  %6822 = vst.msk [vmem:[#allocation5 + $0x4f] sm:$0x4] %vm6730, %v6819
  %6823 = vst.msk [vmem:[#allocation5 + $0x56] sm:$0x8] %vm6732, %v6819
  %s6824 = scalar_lea.vmem [#allocation4], 160
  %v6825 = vld [vmem:[%s6824] ss:$2 sm:$0xf]
  %s6826 = scalar_lea.vmem [#allocation4], 161
  %v6827 = vld [vmem:[%s6826] ss:$2 sm:$0xf]
  %s6828 = scalar_lea.vmem [#allocation4], 170
  %v6829 = vld [vmem:[%s6828] ss:$2 sm:$0xf]
  %s6830 = scalar_lea.vmem [#allocation4], 171
  %v6831 = vld [vmem:[%s6830] ss:$2 sm:$0xf]
  %v6832 = vmax.f32 %v6825, %v6827
  %v6833 = vmax.f32 %v6829, %v6831
  %v6834 = vmax.f32 %v6832, %v6833
  %6835 = vst.msk [vmem:[#allocation5 + $0x61] sm:$0x1] %vm6726, %v6834
  %6836 = vst.msk [vmem:[#allocation5 + $0x68] sm:$0x2] %vm6728, %v6834
  %6837 = vst.msk [vmem:[#allocation5 + $0x6f] sm:$0x4] %vm6730, %v6834
  %6838 = vst.msk [vmem:[#allocation5 + $0x76] sm:$0x8] %vm6732, %v6834
  %v6839 = vld [vmem:[#allocation5] sm:$0x3]
  %v6840 = vpack.c.bf16 %v6839, %v6839
  %v6841 = vld [vmem:[%s5] sm:$0xf]
  %v6842 = vld [vmem:[%s5 + $0x4] sm:$0xf]
  %v6843 = vld [vmem:[#allocation5 + $0x8] sm:$0x3]
  %v6844 = vpack.c.bf16 %v6843, %v6843
  %v6845 = vld [vmem:[%s5 + $0x8] sm:$0xf]
  %v6846 = vld [vmem:[%s5 + $0xc] sm:$0xf]
  %v6849 = vunpack.c.l.b16 %v6845
  %v6850 = vunpack.c.l.b16 %v6846
  %v6851 = vpack.c.b16 %v6850, %v6849
  %v6854 = vsel %vm6691, %v6844, 0
  %6856 = vmatpush.bf16.msra.mxu0 0
  %6857 = vmatpush.bf16.msra.mxu0 0
  %6858 = vmatpush.bf16.msra.mxu0 0
  %6859 = vmatpush.bf16.msra.mxu0 0
  %6860 = vmatpush.bf16.msra.mxu0 0
  %6861 = vmatpush.bf16.msra.mxu0 0
  %6862 = vmatpush.bf16.msra.mxu0 0
  %6863 = vmatpush.bf16.msra.mxu0 %v6851
  %6864 = vmatmul.bf16.gmra.mxu0 %v6854
  %v6865 = vpop.f32.mrf.mxu0
  %v6866 = vadd.f32 0.0, %v6865
  %v6867 = vpop.f32.mrf.mxu0
  %6868 = vdwg.mxu0
  %v6871 = vunpack.c.l.b16 %v6841
  %v6872 = vunpack.c.l.b16 %v6842
  %v6873 = vpack.c.b16 %v6872, %v6871
  %v6876 = vsel %vm6691, %v6840, 0
  %6878 = vmatpush.bf16.msra.mxu0 0
  %6879 = vmatpush.bf16.msra.mxu0 0
  %6880 = vmatpush.bf16.msra.mxu0 0
  %6881 = vmatpush.bf16.msra.mxu0 0
  %6882 = vmatpush.bf16.msra.mxu0 0
  %6883 = vmatpush.bf16.msra.mxu0 0
  %6884 = vmatpush.bf16.msra.mxu0 0
  %6885 = vmatpush.bf16.msra.mxu0 %v6873
  %6886 = vmatmul.bf16.gmra.mxu0 %v6876
  %v6887 = vpop.f32.mrf.mxu0
  %v6888 = vadd.f32 %v6866, %v6887
  %v6889 = vpop.f32.mrf.mxu0
  %6890 = vdwg.mxu0
  %v6891 = vld [vmem:[#allocation5 + $0x10] sm:$0x3]
  %v6892 = vpack.c.bf16 %v6891, %v6891
  %v6893 = vld [vmem:[%s5 + $0x10] sm:$0xf]
  %v6894 = vld [vmem:[%s5 + $0x14] sm:$0xf]
  %v6897 = vunpack.c.l.b16 %v6893
  %v6898 = vunpack.c.l.b16 %v6894
  %v6899 = vpack.c.b16 %v6898, %v6897
  %v6902 = vsel %vm6691, %v6892, 0
  %6904 = vmatpush.bf16.msra.mxu0 0
  %6905 = vmatpush.bf16.msra.mxu0 0
  %6906 = vmatpush.bf16.msra.mxu0 0
  %6907 = vmatpush.bf16.msra.mxu0 0
  %6908 = vmatpush.bf16.msra.mxu0 0
  %6909 = vmatpush.bf16.msra.mxu0 0
  %6910 = vmatpush.bf16.msra.mxu0 0
  %6911 = vmatpush.bf16.msra.mxu0 %v6899
  %6912 = vmatmul.bf16.gmra.mxu0 %v6902
  %v6913 = vpop.f32.mrf.mxu0
  %v6914 = vadd.f32 0.0, %v6913
  %v6915 = vpop.f32.mrf.mxu0
  %6916 = vdwg.mxu0
  %v6917 = vadd.f32 %v6888, %v6914
  %v6918 = vld [vmem:[#allocation5 + $0x18] sm:$0x3]
  %v6919 = vpack.c.bf16 %v6918, %v6918
  %v6920 = vld [vmem:[%s5 + $0x18] sm:$0xf]
  %v6921 = vld [vmem:[%s5 + $0x1c] sm:$0xf]
  %v6924 = vunpack.c.l.b16 %v6920
  %v6925 = vunpack.c.l.b16 %v6921
  %v6926 = vpack.c.b16 %v6925, %v6924
  %v6929 = vsel %vm6691, %v6919, 0
  %6931 = vmatpush.bf16.msra.mxu0 0
  %6932 = vmatpush.bf16.msra.mxu0 0
  %6933 = vmatpush.bf16.msra.mxu0 0
  %6934 = vmatpush.bf16.msra.mxu0 0
  %6935 = vmatpush.bf16.msra.mxu0 0
  %6936 = vmatpush.bf16.msra.mxu0 0
  %6937 = vmatpush.bf16.msra.mxu0 0
  %6938 = vmatpush.bf16.msra.mxu0 %v6926
  %6939 = vmatmul.bf16.gmra.mxu0 %v6929
  %v6940 = vpop.f32.mrf.mxu0
  %v6941 = vadd.f32 0.0, %v6940
  %v6942 = vpop.f32.mrf.mxu0
  %6943 = vdwg.mxu0
  %v6944 = vadd.f32 %v6917, %v6941
  %v6945 = vld [vmem:[#allocation5 + $0x20] sm:$0x3]
  %v6946 = vpack.c.bf16 %v6945, %v6945
  %v6947 = vld [vmem:[%s5 + $0x20] sm:$0xf]
  %v6948 = vld [vmem:[%s5 + $0x24] sm:$0xf]
  %v6951 = vunpack.c.l.b16 %v6947
  %v6952 = vunpack.c.l.b16 %v6948
  %v6953 = vpack.c.b16 %v6952, %v6951
  %v6956 = vsel %vm6691, %v6946, 0
  %6958 = vmatpush.bf16.msra.mxu0 0
  %6959 = vmatpush.bf16.msra.mxu0 0
  %6960 = vmatpush.bf16.msra.mxu0 0
  %6961 = vmatpush.bf16.msra.mxu0 0
  %6962 = vmatpush.bf16.msra.mxu0 0
  %6963 = vmatpush.bf16.msra.mxu0 0
  %6964 = vmatpush.bf16.msra.mxu0 0
  %6965 = vmatpush.bf16.msra.mxu0 %v6953
  %6966 = vmatmul.bf16.gmra.mxu0 %v6956
  %v6967 = vpop.f32.mrf.mxu0
  %v6968 = vadd.f32 0.0, %v6967
  %v6969 = vpop.f32.mrf.mxu0
  %6970 = vdwg.mxu0
  %v6971 = vadd.f32 %v6944, %v6968
  %v6972 = vld [vmem:[#allocation5 + $0x28] sm:$0x3]
  %v6973 = vpack.c.bf16 %v6972, %v6972
  %v6974 = vld [vmem:[%s5 + $0x28] sm:$0xf]
  %v6975 = vld [vmem:[%s5 + $0x2c] sm:$0xf]
  %v6978 = vunpack.c.l.b16 %v6974
  %v6979 = vunpack.c.l.b16 %v6975
  %v6980 = vpack.c.b16 %v6979, %v6978
  %v6983 = vsel %vm6691, %v6973, 0
  %6985 = vmatpush.bf16.msra.mxu0 0
  %6986 = vmatpush.bf16.msra.mxu0 0
  %6987 = vmatpush.bf16.msra.mxu0 0
  %6988 = vmatpush.bf16.msra.mxu0 0
  %6989 = vmatpush.bf16.msra.mxu0 0
  %6990 = vmatpush.bf16.msra.mxu0 0
  %6991 = vmatpush.bf16.msra.mxu0 0
  %6992 = vmatpush.bf16.msra.mxu0 %v6980
  %6993 = vmatmul.bf16.gmra.mxu0 %v6983
  %v6994 = vpop.f32.mrf.mxu0
  %v6995 = vadd.f32 0.0, %v6994
  %v6996 = vpop.f32.mrf.mxu0
  %6997 = vdwg.mxu0
  %v6998 = vadd.f32 %v6971, %v6995
  %v6999 = vld [vmem:[#allocation5 + $0x30] sm:$0x3]
  %v7000 = vpack.c.bf16 %v6999, %v6999
  %v7001 = vld [vmem:[%s5 + $0x30] sm:$0xf]
  %v7002 = vld [vmem:[%s5 + $0x34] sm:$0xf]
  %v7005 = vunpack.c.l.b16 %v7001
  %v7006 = vunpack.c.l.b16 %v7002
  %v7007 = vpack.c.b16 %v7006, %v7005
  %v7010 = vsel %vm6691, %v7000, 0
  %7012 = vmatpush.bf16.msra.mxu0 0
  %7013 = vmatpush.bf16.msra.mxu0 0
  %7014 = vmatpush.bf16.msra.mxu0 0
  %7015 = vmatpush.bf16.msra.mxu0 0
  %7016 = vmatpush.bf16.msra.mxu0 0
  %7017 = vmatpush.bf16.msra.mxu0 0
  %7018 = vmatpush.bf16.msra.mxu0 0
  %7019 = vmatpush.bf16.msra.mxu0 %v7007
  %7020 = vmatmul.bf16.gmra.mxu0 %v7010
  %v7021 = vpop.f32.mrf.mxu0
  %v7022 = vadd.f32 0.0, %v7021
  %v7023 = vpop.f32.mrf.mxu0
  %7024 = vdwg.mxu0
  %v7025 = vadd.f32 %v6998, %v7022
  %v7026 = vld [vmem:[#allocation5 + $0x38] sm:$0x3]
  %v7027 = vpack.c.bf16 %v7026, %v7026
  %v7028 = vld [vmem:[%s5 + $0x38] sm:$0xf]
  %v7029 = vld [vmem:[%s5 + $0x3c] sm:$0xf]
  %v7032 = vunpack.c.l.b16 %v7028
  %v7033 = vunpack.c.l.b16 %v7029
  %v7034 = vpack.c.b16 %v7033, %v7032
  %v7037 = vsel %vm6691, %v7027, 0
  %7039 = vmatpush.bf16.msra.mxu0 0
  %7040 = vmatpush.bf16.msra.mxu0 0
  %7041 = vmatpush.bf16.msra.mxu0 0
  %7042 = vmatpush.bf16.msra.mxu0 0
  %7043 = vmatpush.bf16.msra.mxu0 0
  %7044 = vmatpush.bf16.msra.mxu0 0
  %7045 = vmatpush.bf16.msra.mxu0 0
  %7046 = vmatpush.bf16.msra.mxu0 %v7034
  %7047 = vmatmul.bf16.gmra.mxu0 %v7037
  %v7048 = vpop.f32.mrf.mxu0
  %v7049 = vadd.f32 0.0, %v7048
  %v7050 = vpop.f32.mrf.mxu0
  %7051 = vdwg.mxu0
  %v7052 = vadd.f32 %v7025, %v7049
  %v7053 = vld [vmem:[#allocation5 + $0x40] sm:$0x3]
  %v7054 = vpack.c.bf16 %v7053, %v7053
  %v7055 = vld [vmem:[%s5 + $0x40] sm:$0xf]
  %v7056 = vld [vmem:[%s5 + $0x44] sm:$0xf]
  %v7059 = vunpack.c.l.b16 %v7055
  %v7060 = vunpack.c.l.b16 %v7056
  %v7061 = vpack.c.b16 %v7060, %v7059
  %v7064 = vsel %vm6691, %v7054, 0
  %7066 = vmatpush.bf16.msra.mxu0 0
  %7067 = vmatpush.bf16.msra.mxu0 0
  %7068 = vmatpush.bf16.msra.mxu0 0
  %7069 = vmatpush.bf16.msra.mxu0 0
  %7070 = vmatpush.bf16.msra.mxu0 0
  %7071 = vmatpush.bf16.msra.mxu0 0
  %7072 = vmatpush.bf16.msra.mxu0 0
  %7073 = vmatpush.bf16.msra.mxu0 %v7061
  %7074 = vmatmul.bf16.gmra.mxu0 %v7064
  %v7075 = vpop.f32.mrf.mxu0
  %v7076 = vadd.f32 0.0, %v7075
  %v7077 = vpop.f32.mrf.mxu0
  %7078 = vdwg.mxu0
  %v7079 = vadd.f32 %v7052, %v7076
  %v7080 = vld [vmem:[#allocation5 + $0x48] sm:$0x3]
  %v7081 = vpack.c.bf16 %v7080, %v7080
  %v7082 = vld [vmem:[%s5 + $0x48] sm:$0xf]
  %v7083 = vld [vmem:[%s5 + $0x4c] sm:$0xf]
  %v7086 = vunpack.c.l.b16 %v7082
  %v7087 = vunpack.c.l.b16 %v7083
  %v7088 = vpack.c.b16 %v7087, %v7086
  %v7091 = vsel %vm6691, %v7081, 0
  %7093 = vmatpush.bf16.msra.mxu0 0
  %7094 = vmatpush.bf16.msra.mxu0 0
  %7095 = vmatpush.bf16.msra.mxu0 0
  %7096 = vmatpush.bf16.msra.mxu0 0
  %7097 = vmatpush.bf16.msra.mxu0 0
  %7098 = vmatpush.bf16.msra.mxu0 0
  %7099 = vmatpush.bf16.msra.mxu0 0
  %7100 = vmatpush.bf16.msra.mxu0 %v7088
  %7101 = vmatmul.bf16.gmra.mxu0 %v7091
  %v7102 = vpop.f32.mrf.mxu0
  %v7103 = vadd.f32 0.0, %v7102
  %v7104 = vpop.f32.mrf.mxu0
  %7105 = vdwg.mxu0
  %v7106 = vadd.f32 %v7079, %v7103
  %v7107 = vld [vmem:[#allocation5 + $0x50] sm:$0x3]
  %v7108 = vpack.c.bf16 %v7107, %v7107
  %v7109 = vld [vmem:[%s5 + $0x50] sm:$0xf]
  %v7110 = vld [vmem:[%s5 + $0x54] sm:$0xf]
  %v7113 = vunpack.c.l.b16 %v7109
  %v7114 = vunpack.c.l.b16 %v7110
  %v7115 = vpack.c.b16 %v7114, %v7113
  %v7118 = vsel %vm6691, %v7108, 0
  %7120 = vmatpush.bf16.msra.mxu0 0
  %7121 = vmatpush.bf16.msra.mxu0 0
  %7122 = vmatpush.bf16.msra.mxu0 0
  %7123 = vmatpush.bf16.msra.mxu0 0
  %7124 = vmatpush.bf16.msra.mxu0 0
  %7125 = vmatpush.bf16.msra.mxu0 0
  %7126 = vmatpush.bf16.msra.mxu0 0
  %7127 = vmatpush.bf16.msra.mxu0 %v7115
  %7128 = vmatmul.bf16.gmra.mxu0 %v7118
  %v7129 = vpop.f32.mrf.mxu0
  %v7130 = vadd.f32 0.0, %v7129
  %v7131 = vpop.f32.mrf.mxu0
  %7132 = vdwg.mxu0
  %v7133 = vadd.f32 %v7106, %v7130
  %v7134 = vld [vmem:[#allocation5 + $0x58] sm:$0x3]
  %v7135 = vpack.c.bf16 %v7134, %v7134
  %v7136 = vld [vmem:[%s5 + $0x58] sm:$0xf]
  %v7137 = vld [vmem:[%s5 + $0x5c] sm:$0xf]
  %v7140 = vunpack.c.l.b16 %v7136
  %v7141 = vunpack.c.l.b16 %v7137
  %v7142 = vpack.c.b16 %v7141, %v7140
  %v7145 = vsel %vm6691, %v7135, 0
  %7147 = vmatpush.bf16.msra.mxu0 0
  %7148 = vmatpush.bf16.msra.mxu0 0
  %7149 = vmatpush.bf16.msra.mxu0 0
  %7150 = vmatpush.bf16.msra.mxu0 0
  %7151 = vmatpush.bf16.msra.mxu0 0
  %7152 = vmatpush.bf16.msra.mxu0 0
  %7153 = vmatpush.bf16.msra.mxu0 0
  %7154 = vmatpush.bf16.msra.mxu0 %v7142
  %7155 = vmatmul.bf16.gmra.mxu0 %v7145
  %v7156 = vpop.f32.mrf.mxu0
  %v7157 = vadd.f32 0.0, %v7156
  %v7158 = vpop.f32.mrf.mxu0
  %7159 = vdwg.mxu0
  %v7160 = vadd.f32 %v7133, %v7157
  %v7161 = vld [vmem:[#allocation5 + $0x60] sm:$0x3]
  %v7162 = vpack.c.bf16 %v7161, %v7161
  %v7163 = vld [vmem:[%s5 + $0x60] sm:$0xf]
  %v7164 = vld [vmem:[%s5 + $0x64] sm:$0xf]
  %v7167 = vunpack.c.l.b16 %v7163
  %v7168 = vunpack.c.l.b16 %v7164
  %v7169 = vpack.c.b16 %v7168, %v7167
  %v7172 = vsel %vm6691, %v7162, 0
  %7174 = vmatpush.bf16.msra.mxu0 0
  %7175 = vmatpush.bf16.msra.mxu0 0
  %7176 = vmatpush.bf16.msra.mxu0 0
  %7177 = vmatpush.bf16.msra.mxu0 0
  %7178 = vmatpush.bf16.msra.mxu0 0
  %7179 = vmatpush.bf16.msra.mxu0 0
  %7180 = vmatpush.bf16.msra.mxu0 0
  %7181 = vmatpush.bf16.msra.mxu0 %v7169
  %7182 = vmatmul.bf16.gmra.mxu0 %v7172
  %v7183 = vpop.f32.mrf.mxu0
  %v7184 = vadd.f32 0.0, %v7183
  %v7185 = vpop.f32.mrf.mxu0
  %7186 = vdwg.mxu0
  %v7187 = vadd.f32 %v7160, %v7184
  %v7188 = vld [vmem:[#allocation5 + $0x68] sm:$0x3]
  %v7189 = vpack.c.bf16 %v7188, %v7188
  %v7190 = vld [vmem:[%s5 + $0x68] sm:$0xf]
  %v7191 = vld [vmem:[%s5 + $0x6c] sm:$0xf]
  %v7194 = vunpack.c.l.b16 %v7190
  %v7195 = vunpack.c.l.b16 %v7191
  %v7196 = vpack.c.b16 %v7195, %v7194
  %v7199 = vsel %vm6691, %v7189, 0
  %7201 = vmatpush.bf16.msra.mxu0 0
  %7202 = vmatpush.bf16.msra.mxu0 0
  %7203 = vmatpush.bf16.msra.mxu0 0
  %7204 = vmatpush.bf16.msra.mxu0 0
  %7205 = vmatpush.bf16.msra.mxu0 0
  %7206 = vmatpush.bf16.msra.mxu0 0
  %7207 = vmatpush.bf16.msra.mxu0 0
  %7208 = vmatpush.bf16.msra.mxu0 %v7196
  %7209 = vmatmul.bf16.gmra.mxu0 %v7199
  %v7210 = vpop.f32.mrf.mxu0
  %v7211 = vadd.f32 0.0, %v7210
  %v7212 = vpop.f32.mrf.mxu0
  %7213 = vdwg.mxu0
  %v7214 = vadd.f32 %v7187, %v7211
  %v7215 = vld [vmem:[#allocation5 + $0x70] sm:$0x3]
  %v7216 = vpack.c.bf16 %v7215, %v7215
  %v7217 = vld [vmem:[%s5 + $0x70] sm:$0xf]
  %v7218 = vld [vmem:[%s5 + $0x74] sm:$0xf]
  %v7221 = vunpack.c.l.b16 %v7217
  %v7222 = vunpack.c.l.b16 %v7218
  %v7223 = vpack.c.b16 %v7222, %v7221
  %v7226 = vsel %vm6691, %v7216, 0
  %7228 = vmatpush.bf16.msra.mxu0 0
  %7229 = vmatpush.bf16.msra.mxu0 0
  %7230 = vmatpush.bf16.msra.mxu0 0
  %7231 = vmatpush.bf16.msra.mxu0 0
  %7232 = vmatpush.bf16.msra.mxu0 0
  %7233 = vmatpush.bf16.msra.mxu0 0
  %7234 = vmatpush.bf16.msra.mxu0 0
  %7235 = vmatpush.bf16.msra.mxu0 %v7223
  %7236 = vmatmul.bf16.gmra.mxu0 %v7226
  %v7237 = vpop.f32.mrf.mxu0
  %v7238 = vadd.f32 0.0, %v7237
  %v7239 = vpop.f32.mrf.mxu0
  %7240 = vdwg.mxu0
  %v7241 = vadd.f32 %v7214, %v7238
  %v7242 = vld [vmem:[#allocation5 + $0x78] sm:$0x3]
  %v7243 = vpack.c.bf16 %v7242, %v7242
  %v7244 = vld [vmem:[%s5 + $0x78] sm:$0xf]
  %v7245 = vld [vmem:[%s5 + $0x7c] sm:$0xf]
  %v7248 = vunpack.c.l.b16 %v7244
  %v7249 = vunpack.c.l.b16 %v7245
  %v7250 = vpack.c.b16 %v7249, %v7248
  %v7253 = vsel %vm6691, %v7243, 0
  %7255 = vmatpush.bf16.msra.mxu0 0
  %7256 = vmatpush.bf16.msra.mxu0 0
  %7257 = vmatpush.bf16.msra.mxu0 0
  %7258 = vmatpush.bf16.msra.mxu0 0
  %7259 = vmatpush.bf16.msra.mxu0 0
  %7260 = vmatpush.bf16.msra.mxu0 0
  %7261 = vmatpush.bf16.msra.mxu0 0
  %7262 = vmatpush.bf16.msra.mxu0 %v7250
  %7263 = vmatmul.bf16.gmra.mxu0 %v7253
  %v7264 = vpop.f32.mrf.mxu0
  %v7265 = vadd.f32 0.0, %v7264
  %v7266 = vpop.f32.mrf.mxu0
  %7267 = vdwg.mxu0
  %v7268 = vadd.f32 %v7241, %v7265
  %v7269 = vld [vmem:[%s6] sm:$0x1]
  %v7271 = vperm.slane %v7269, 0
  %v7273 = vadd.f32 %v7268, %v7271
  %vm7274 = vcmp.ge.f32.partialorder %v7273, 0.0
  %v7275 = vmul.f32 %v7273, 0.01
  %v7276 = vsel %vm7274, %v7273, %v7275
  %v7277 = vpack.c.bf16 %v7276, %v7276
  %v7278 = vld [vmem:[%s7] sm:$0xf]
  %v7279 = vld [vmem:[%s7 + $0x4] sm:$0xf]
  %v7280 = vld [vmem:[%s7 + $0x8] sm:$0xf]
  %v7281 = vld [vmem:[%s7 + $0xc] sm:$0xf]
  %v7282 = vld [vmem:[%s7 + $0x10] sm:$0xf]
  %v7283 = vld [vmem:[%s7 + $0x14] sm:$0xf]
  %v7284 = vld [vmem:[%s7 + $0x18] sm:$0xf]
  %v7285 = vld [vmem:[%s7 + $0x1c] sm:$0xf]
  %v7286 = vld [vmem:[%s8] sm:$0x1]
  %v7288 = vperm.slane %v7286, 0
  %v7298 = vunpack.c.l.b16 %v7278
  %v7299 = vunpack.c.l.b16 %v7279
  %v7300 = vunpack.c.l.b16 %v7280
  %v7301 = vunpack.c.l.b16 %v7281
  %v7302 = vunpack.c.l.b16 %v7282
  %v7303 = vunpack.c.l.b16 %v7283
  %v7304 = vunpack.c.l.b16 %v7284
  %v7305 = vunpack.c.l.b16 %v7285
  %v7306 = vpack.c.b16 %v7299, %v7298
  %v7307 = vpack.c.b16 %v7301, %v7300
  %v7308 = vpack.c.b16 %v7303, %v7302
  %v7309 = vpack.c.b16 %v7305, %v7304
  %vm7314 = vcmask 523264
  %v7316 = vsel %vm7314, %v7277, 0
  %7318 = vmatpush.bf16.msra.mxu0 0
  %7319 = vmatpush.bf16.msra.mxu0 0
  %7320 = vmatpush.bf16.msra.mxu0 0
  %7321 = vmatpush.bf16.msra.mxu0 0
  %7322 = vmatpush.bf16.msra.mxu0 %v7309
  %7323 = vmatpush.bf16.msra.mxu0 %v7308
  %7324 = vmatpush.bf16.msra.mxu0 %v7307
  %7325 = vmatpush.bf16.msra.mxu0 %v7306
  %7326 = vmatmul.bf16.gmra.mxu0 %v7316
  %v7327 = vpop.f32.mrf.mxu0
  %v7328 = vadd.f32 %v7288, %v7327
  %v7329 = vpop.f32.mrf.mxu0
  %7330 = vdwg.mxu0
  %vm7331 = vcmp.ge.f32.partialorder %v7328, 0.0
  %v7332 = vmul.f32 %v7328, 0.01
  %v7333 = vsel %vm7331, %v7328, %v7332
  %v7334 = vpack.c.bf16 %v7333, %v7333
  %v7335 = vld [vmem:[%s9] sm:$0xf]
  %v7336 = vld [vmem:[%s9 + $0x4] sm:$0xf]
  %v7337 = vld [vmem:[%s9 + $0x8] sm:$0xf]
  %v7338 = vld [vmem:[%s9 + $0xc] sm:$0xf]
  %v7339 = vld [vmem:[%s9 + $0x10] sm:$0xf]
  %v7340 = vld [vmem:[%s9 + $0x14] sm:$0xf]
  %v7341 = vld [vmem:[%s9 + $0x18] sm:$0xf]
  %v7342 = vld [vmem:[%s9 + $0x1c] sm:$0xf]
  %v7343 = vld [vmem:[%s10] sm:$0x1]
  %v7345 = vperm.slane %v7343, 0
  %v7355 = vunpack.c.l.b16 %v7335
  %v7356 = vunpack.c.l.b16 %v7336
  %v7357 = vunpack.c.l.b16 %v7337
  %v7358 = vunpack.c.l.b16 %v7338
  %v7359 = vunpack.c.l.b16 %v7339
  %v7360 = vunpack.c.l.b16 %v7340
  %v7361 = vunpack.c.l.b16 %v7341
  %v7362 = vunpack.c.l.b16 %v7342
  %v7363 = vpack.c.b16 %v7356, %v7355
  %v7364 = vpack.c.b16 %v7358, %v7357
  %v7365 = vpack.c.b16 %v7360, %v7359
  %v7366 = vpack.c.b16 %v7362, %v7361
  %v7372 = vsel %vm7314, %v7334, 0
  %7374 = vmatpush.bf16.msra.mxu0 0
  %7375 = vmatpush.bf16.msra.mxu0 0
  %7376 = vmatpush.bf16.msra.mxu0 0
  %7377 = vmatpush.bf16.msra.mxu0 0
  %7378 = vmatpush.bf16.msra.mxu0 %v7366
  %7379 = vmatpush.bf16.msra.mxu0 %v7365
  %7380 = vmatpush.bf16.msra.mxu0 %v7364
  %7381 = vmatpush.bf16.msra.mxu0 %v7363
  %7382 = vmatmul.bf16.gmra.mxu0 %v7372
  %v7383 = vpop.f32.mrf.mxu0
  %v7384 = vadd.f32 %v7345, %v7383
  %v7385 = vpop.f32.mrf.mxu0
  %7386 = vdwg.mxu0
  %vm7387 = vcmask 123904
  %7388 = vst.msk [vmem:[%s11] sm:$0x3] %vm7387, %v7384
  // Predicated region
  $region46: #{lap_video_us_forward.1} parent=0 // pred_check
    _
  $region47: #{lap_video_us_forward.1} parent=0 // pred_check_branch
    %7390 = sbr.rel (0) target = $region49
  $region48: #{lap_video_us_forward.1} parent=0 // pred_region
    _
  $region49: #{lap_video_us_forward.1} parent=0 // pred_fallthru
    _
  // Predicated region
  $region50: #{lap_video_us_forward.1} parent=0 // pred_check
    _
  $region51: #{lap_video_us_forward.1} parent=0 // pred_check_branch
    %7392 = sbr.rel (0) target = $region53
  $region52: #{lap_video_us_forward.1} parent=0 // pred_region
    _
  $region53: #{lap_video_us_forward.1} parent=0 // pred_fallthru
    _

</llo_original>
